<compile_context>
chip_gen: v6e
topology: v6e:2x2x1
jax: 0.10.0
libtpu: 0.0.40
codegen_flags: <defaults>
</compile_context>

<pallas_src>
import jax
import jax.numpy as jnp
from jax import lax
from jax.experimental import pallas as pl
from jax.experimental.pallas import tpu as pltpu


def _round_up(x, m):
    return ((x + m - 1) // m) * m


def _make_kernel(H, W, C, Cout):
    """Builds the kernel closure and returns (kernel, padded_buffer_rows)."""
    assert C == Cout, "downsample=False path requires in_channels == out_channels"
    HW = H * W
    SUB = 16                          # bf16 sublane tile height
    S = _round_up(W + 1, SUB)         # interior (pixel (0,0)) row in flat buffers
    TAP_BASE = S - W - 1              # flat row offset of tap (ky=0, kx=0)
    NB = _round_up(S + HW + W + 1, SUB)   # rows per flat padded buffer

    def kernel(x_ref, w1_ref, s1_ref, b1_ref, w2_ref, s2_ref, b2_ref,
               out_ref, xbuf, midbuf, patch):
        """One batch element per grid step.

        x_ref   : (1, H, W, C) f32   unpadded input (also the residual)
        w1/w2   : (9*C, C)     bf16  conv weights, im2col layout (ky,kx major)
        s*/b*   : (1, C)       f32   folded BN scale / shift (conv bias folded)
        out_ref : (1, H, W, C) f32
        xbuf    : VMEM (NB, C)    bf16  row-padded flat staging of x
        midbuf  : VMEM (NB, C)    bf16  row-padded flat staging of relu(BN1(conv1))
        patch   : VMEM (HW, 9*C)  bf16  im2col patch matrix (reused by both convs)
        """
        # Output-column masks: tap kx=0 is invalid where w==0, tap kx=2 where
        # w==W-1 (those slice rows wrap into the neighbouring image row).
        w_idx = lax.broadcasted_iota(jnp.int32, (HW, 1), 0) % W
        is_left = w_idx == 0
        is_right = w_idx == (W - 1)

        zstrip = jnp.zeros((W, C), jnp.bfloat16)

        def stage(buf, interior_bf16):
            # Zero only the two halo row-strips (aligned full-tile stores); the
            # interior is a single contiguous aligned store.  Rows outside
            # [TAP_BASE, TAP_BASE + 2W + 2 + HW) are never read, and the two
            # "corner" rows just outside the strips are only read by masked taps.
            buf[S - W:S, :] = zstrip
            buf[S + HW:S + HW + W, :] = zstrip
            buf[S:S + HW, :] = interior_bf16

        def build_patches(buf):
            # 9 contiguous constant-offset slices of the flat bf16 buffer; the
            # kx=+-1 taps are sublane-unaligned (inherent to the conv) and the
            # kx-edge taps get one jnp.where each for horizontal SAME padding.
            for ky in range(3):
                for kx in range(3):
                    off = TAP_BASE + ky * W + kx
                    tap = buf[off:off + HW, :]
                    if kx == 0:
                        tap = jnp.where(is_left, jnp.zeros_like(tap), tap)
                    elif kx == 2:
                        tap = jnp.where(is_right, jnp.zeros_like(tap), tap)
                    t = ky * 3 + kx
                    patch[:, t * C:(t + 1) * C] = tap

        # ---- stage input (single f32->bf16 cast) ----
        stage(xbuf, x_ref[0].reshape(HW, C).astype(jnp.bfloat16))

        # ---- conv1 as one deep-K MXU matmul, folded BN1 + ReLU in f32 ----
        build_patches(xbuf)
        acc1 = jnp.dot(patch[...], w1_ref[...],
                       preferred_element_type=jnp.float32)      # (HW, C) f32
        y1 = jnp.maximum(acc1 * s1_ref[...] + b1_ref[...], 0.0)

        # ---- stage intermediate activation (single cast) ----
        stage(midbuf, y1.astype(jnp.bfloat16))

        # ---- conv2 + folded BN2 + residual add + ReLU ----
        build_patches(midbuf)
        acc2 = jnp.dot(patch[...], w2_ref[...],
                       preferred_element_type=jnp.float32)      # (HW, C) f32
        y2 = acc2 * s2_ref[...] + b2_ref[...]
        residual = x_ref[0].reshape(HW, C)                      # f32
        out = jnp.maximum(y2 + residual, 0.0)
        out_ref[0] = out.reshape(H, W, Cout).astype(out_ref.dtype)

    return kernel, NB


@jax.jit
def basic_block_pallas(x_nhwc, w1_2d, s1, b1, w2_2d, s2, b2):
    N, H, W, C = x_nhwc.shape
    Cout = w1_2d.shape[-1]
    kernel, NB = _make_kernel(H, W, C, Cout)

    return pl.pallas_call(
        kernel,
        out_shape=jax.ShapeDtypeStruct((N, H, W, Cout), jnp.float32),
        grid_spec=pltpu.PrefetchScalarGridSpec(
            num_scalar_prefetch=0,
            grid=(N,),
            in_specs=[
                pl.BlockSpec((1, H, W, C), lambda n: (n, 0, 0, 0)),
                pl.BlockSpec((9 * C, Cout), lambda n: (0, 0)),
                pl.BlockSpec((1, Cout), lambda n: (0, 0)),
                pl.BlockSpec((1, Cout), lambda n: (0, 0)),
                pl.BlockSpec((9 * Cout, Cout), lambda n: (0, 0)),
                pl.BlockSpec((1, Cout), lambda n: (0, 0)),
                pl.BlockSpec((1, Cout), lambda n: (0, 0)),
            ],
            out_specs=pl.BlockSpec((1, H, W, Cout), lambda n: (n, 0, 0, 0)),
            scratch_shapes=[
                pltpu.VMEM((NB, C), jnp.bfloat16),           # xbuf
                pltpu.VMEM((NB, Cout), jnp.bfloat16),        # midbuf
                pltpu.VMEM((H * W, 9 * C), jnp.bfloat16),    # patch matrix
            ],
        ),
        compiler_params=pltpu.CompilerParams(
            dimension_semantics=("parallel",),
            vmem_limit_bytes=32 * 1024 * 1024),
    )(x_nhwc, w1_2d, s1, b1, w2_2d, s2, b2)


# ----------------------------- pure-JAX reference -----------------------------
def conv3x3_ref(x_nhwc, w_hwio):
    return jax.lax.conv_general_dilated(
        x_nhwc, w_hwio, window_strides=(1, 1), padding="SAME",
        dimension_numbers=("NHWC", "HWIO", "NHWC"),
        precision=jax.lax.Precision.HIGHEST)


def basic_block_ref(x_nhwc, w1, s1, b1, w2, s2, b2):
    # Mirrors the kernel's bf16 rounding of MXU operands; accumulation and all
    # elementwise math in f32 (so the comparison stays tight).
    f32 = lambda a: a.astype(jnp.float32)
    bf16 = lambda a: a.astype(jnp.bfloat16)
    w1r, w2r = f32(bf16(w1)), f32(bf16(w2))
    y = conv3x3_ref(f32(bf16(x_nhwc)), w1r) * s1 + b1
    y = jnp.maximum(y, 0.0)
    y = conv3x3_ref(f32(bf16(y)), w2r) * s2 + b2
    return jnp.maximum(y + x_nhwc, 0.0)


if __name__ == "__main__":
    # Small but lane-dense ResNet-ish shapes:
    # NHWC (2, 16, 16, 128)  <->  PyTorch NCHW (2, 128, 16, 16).
    N, H, W, C = 2, 16, 16, 128
    eps = 1e-5

    key = jax.random.PRNGKey(0)
    keys = jax.random.split(key, 12)

    # Input (constructed NHWC directly; NCHW equivalent would be x.transpose(0,3,1,2)).
    x = jax.random.normal(keys[0], (N, H, W, C), jnp.float32)

    # Conv weights in HWIO layout (PyTorch OIHW -> transpose(2,3,1,0)).
    wscale = 1.0 / (3.0 * float(C) ** 0.5)      # ~1/sqrt(9*C), keeps activations O(1)
    w1 = jax.random.normal(keys[1], (3, 3, C, C), jnp.float32) * wscale
    w2 = jax.random.normal(keys[2], (3, 3, C, C), jnp.float32) * wscale
    cb1 = 0.1 * jax.random.normal(keys[3], (C,), jnp.float32)   # conv1 bias
    cb2 = 0.1 * jax.random.normal(keys[4], (C,), jnp.float32)   # conv2 bias

    # BatchNorm params (eval / running-stats semantics).
    g1 = 1.0 + 0.1 * jax.random.normal(keys[5], (C,), jnp.float32)
    be1 = 0.1 * jax.random.normal(keys[6], (C,), jnp.float32)
    m1 = 0.1 * jax.random.normal(keys[7], (C,), jnp.float32)
    v1 = 1.0 + 0.1 * jax.random.uniform(keys[8], (C,), jnp.float32)

    g2 = 1.0 + 0.1 * jax.random.normal(keys[9], (C,), jnp.float32)
    be2 = 0.1 * jax.random.normal(keys[10], (C,), jnp.float32)
    m2 = 0.1 * jax.random.normal(keys[11], (C,), jnp.float32)
    v2 = jnp.ones((C,), jnp.float32)

    # Fold conv bias + eval-mode BN into per-channel scale/shift:
    #   BN(conv(x) + cb) = conv(x)*s + (beta + (cb - mean)*s)
    s1 = g1 / jnp.sqrt(v1 + eps)
    b1 = be1 + (cb1 - m1) * s1
    s2 = g2 / jnp.sqrt(v2 + eps)
    b2 = be2 + (cb2 - m2) * s2

    # Kernel-side weight prep: im2col layout (9*C, Cout), bf16 MXU operands.
    w1k = w1.reshape(9 * C, C).astype(jnp.bfloat16)
    w2k = w2.reshape(9 * C, C).astype(jnp.bfloat16)

    out = basic_block_pallas(x, w1k, s1.reshape(1, C), b1.reshape(1, C),
                             w2k, s2.reshape(1, C), b2.reshape(1, C))
    out = jax.block_until_ready(out)

    ref = basic_block_ref(x, w1, s1, b1, w2, s2, b2)
    assert out.shape == (N, H, W, C)
    max_err = float(jnp.max(jnp.abs(out - ref)))
    assert jnp.allclose(out, ref, rtol=1e-3, atol=2e-3), max_err

    print("KERNEL_OK")
</pallas_src>

<mosaic_0001>
module attributes {stable_mosaic.version = 11 : i64} {
  func.func @kernel(%arg0: i32, %arg1: memref<1x16x16x128xf32, #tpu.memory_space<vmem>>, %arg2: memref<1152x128xbf16, #tpu.memory_space<vmem>>, %arg3: memref<1x128xf32, #tpu.memory_space<vmem>>, %arg4: memref<1x128xf32, #tpu.memory_space<vmem>>, %arg5: memref<1152x128xbf16, #tpu.memory_space<vmem>>, %arg6: memref<1x128xf32, #tpu.memory_space<vmem>>, %arg7: memref<1x128xf32, #tpu.memory_space<vmem>>, %arg8: memref<1x16x16x128xf32, #tpu.memory_space<vmem>>, %arg9: memref<320x128xbf16, #tpu.memory_space<vmem>>, %arg10: memref<320x128xbf16, #tpu.memory_space<vmem>>, %arg11: memref<256x1152xbf16, #tpu.memory_space<vmem>>) attributes {dimension_semantics = [#tpu.dimension_semantics<parallel>], iteration_bounds = array<i64: 2>, scalar_prefetch = 0 : i64, scratch_operands = 3 : i64, tpu.core_type = #tpu.core_type<tc>, window_params = [{transform_indices = @transform_0, window_bounds = array<i64: 1, 16, 16, 128>}, {pipeline_mode = #tpu.pipeline_mode<synchronous>, transform_indices = @transform_1, window_bounds = array<i64: 1152, 128>}, {pipeline_mode = #tpu.pipeline_mode<synchronous>, transform_indices = @transform_2, window_bounds = array<i64: 1, 128>}, {pipeline_mode = #tpu.pipeline_mode<synchronous>, transform_indices = @transform_3, window_bounds = array<i64: 1, 128>}, {pipeline_mode = #tpu.pipeline_mode<synchronous>, transform_indices = @transform_4, window_bounds = array<i64: 1152, 128>}, {pipeline_mode = #tpu.pipeline_mode<synchronous>, transform_indices = @transform_5, window_bounds = array<i64: 1, 128>}, {pipeline_mode = #tpu.pipeline_mode<synchronous>, transform_indices = @transform_6, window_bounds = array<i64: 1, 128>}, {transform_indices = @transform_7, window_bounds = array<i64: 1, 16, 16, 128>}]} {
    %0 = tpu.iota {dimensions = array<i32: 0>} : vector<256x1xi32>
    %c16_i32 = arith.constant 16 : i32
    %c0_i32 = arith.constant 0 : i32
    %1 = arith.cmpi eq, %c16_i32, %c0_i32 : i32
    %c1_i32 = arith.constant 1 : i32
    %2 = arith.select %1, %c1_i32, %c16_i32 : i32
    %3 = vector.broadcast %2 : i32 to vector<256x1xi32>
    %4 = arith.remsi %0, %3 : vector<256x1xi32>
    %c0_i32_0 = arith.constant 0 : i32
    %5 = vector.broadcast %c0_i32_0 : i32 to vector<256x1xi32>
    %6 = arith.cmpi ne, %4, %5 : vector<256x1xi32>
    %c0_i32_1 = arith.constant 0 : i32
    %7 = vector.broadcast %c0_i32_1 : i32 to vector<256x1xi32>
    %8 = arith.cmpi slt, %4, %7 : vector<256x1xi32>
    %c0_i32_2 = arith.constant 0 : i32
    %9 = arith.cmpi slt, %2, %c0_i32_2 : i32
    %10 = vector.broadcast %9 : i1 to vector<256x1xi1>
    %11 = vector.broadcast %10 : vector<256x1xi1> to vector<256x1xi1>
    %12 = arith.xori %8, %11 : vector<256x1xi1>
    %13 = arith.andi %12, %6 : vector<256x1xi1>
    %14 = vector.broadcast %2 : i32 to vector<256x1xi32>
    %15 = arith.addi %4, %14 : vector<256x1xi32>
    %16 = arith.select %13, %15, %4 : vector<256x1xi1>, vector<256x1xi32>
    %c0_i32_3 = arith.constant 0 : i32
    %17 = vector.broadcast %c0_i32_3 : i32 to vector<256x1xi32>
    %18 = arith.cmpi eq, %16, %17 : vector<256x1xi32>
    %c15_i32 = arith.constant 15 : i32
    %19 = vector.broadcast %c15_i32 : i32 to vector<256x1xi32>
    %20 = arith.cmpi eq, %16, %19 : vector<256x1xi32>
    %cst = arith.constant 0.000000e+00 : bf16
    %21 = vector.broadcast %cst : bf16 to vector<16x128xbf16>
    %c0 = arith.constant 0 : index
    %c0_4 = arith.constant 0 : index
    %c0_5 = arith.constant 0 : index
    %c0_6 = arith.constant 0 : index
    %22 = vector.load %arg1[%c0, %c0_4, %c0_5, %c0_6] : memref<1x16x16x128xf32, #tpu.memory_space<vmem>>, vector<1x16x16x128xf32>
    %23 = vector.shape_cast %22 : vector<1x16x16x128xf32> to vector<16x16x128xf32>
    %24 = vector.shape_cast %23 : vector<16x16x128xf32> to vector<256x128xf32>
    %25 = arith.truncf %24 : vector<256x128xf32> to vector<256x128xbf16>
    %c16 = arith.constant 16 : index
    %c0_7 = arith.constant 0 : index
    %26 = vector.load %arg9[%c16, %c0_7] : memref<320x128xbf16, #tpu.memory_space<vmem>>, vector<16x128xbf16>
    tpu.vector_store %arg9[%c16, %c0_7], %21 {strides = array<i32>} : memref<320x128xbf16, #tpu.memory_space<vmem>>, vector<16x128xbf16>,
    %c288 = arith.constant 288 : index
    %c0_8 = arith.constant 0 : index
    %27 = vector.load %arg9[%c288, %c0_8] : memref<320x128xbf16, #tpu.memory_space<vmem>>, vector<16x128xbf16>
    tpu.vector_store %arg9[%c288, %c0_8], %21 {strides = array<i32>} : memref<320x128xbf16, #tpu.memory_space<vmem>>, vector<16x128xbf16>,
    %c32 = arith.constant 32 : index
    %c0_9 = arith.constant 0 : index
    %28 = vector.load %arg9[%c32, %c0_9] : memref<320x128xbf16, #tpu.memory_space<vmem>>, vector<256x128xbf16>
    tpu.vector_store %arg9[%c32, %c0_9], %25 {strides = array<i32>} : memref<320x128xbf16, #tpu.memory_space<vmem>>, vector<256x128xbf16>,
    %c15 = arith.constant 15 : index
    %c0_10 = arith.constant 0 : index
    %29 = vector.load %arg9[%c15, %c0_10] : memref<320x128xbf16, #tpu.memory_space<vmem>>, vector<256x128xbf16>
    %cst_11 = arith.constant 0.000000e+00 : bf16
    %30 = vector.broadcast %cst_11 : bf16 to vector<256x128xbf16>
    %31 = vector.shape_cast %18 : vector<256x1xi1> to vector<256x1xi1>
    %32 = vector.broadcast %31 : vector<256x1xi1> to vector<256x128xi1>
    %33 = arith.select %32, %30, %29 : vector<256x128xi1>, vector<256x128xbf16>
    %c0_12 = arith.constant 0 : index
    %c0_13 = arith.constant 0 : index
    %34 = vector.load %arg11[%c0_12, %c0_13] : memref<256x1152xbf16, #tpu.memory_space<vmem>>, vector<256x128xbf16>
    tpu.vector_store %arg11[%c0_12, %c0_13], %33 {strides = array<i32>} : memref<256x1152xbf16, #tpu.memory_space<vmem>>, vector<256x128xbf16>,
    %c16_14 = arith.constant 16 : index
    %c0_15 = arith.constant 0 : index
    %35 = vector.load %arg9[%c16_14, %c0_15] : memref<320x128xbf16, #tpu.memory_space<vmem>>, vector<256x128xbf16>
    %c0_16 = arith.constant 0 : index
    %c128 = arith.constant 128 : index
    %36 = vector.load %arg11[%c0_16, %c128] : memref<256x1152xbf16, #tpu.memory_space<vmem>>, vector<256x128xbf16>
    tpu.vector_store %arg11[%c0_16, %c128], %35 {strides = array<i32>} : memref<256x1152xbf16, #tpu.memory_space<vmem>>, vector<256x128xbf16>,
    %c17 = arith.constant 17 : index
    %c0_17 = arith.constant 0 : index
    %37 = vector.load %arg9[%c17, %c0_17] : memref<320x128xbf16, #tpu.memory_space<vmem>>, vector<256x128xbf16>
    %cst_18 = arith.constant 0.000000e+00 : bf16
    %38 = vector.broadcast %cst_18 : bf16 to vector<256x128xbf16>
    %39 = vector.shape_cast %20 : vector<256x1xi1> to vector<256x1xi1>
    %40 = vector.broadcast %39 : vector<256x1xi1> to vector<256x128xi1>
    %41 = arith.select %40, %38, %37 : vector<256x128xi1>, vector<256x128xbf16>
    %c0_19 = arith.constant 0 : index
    %c256 = arith.constant 256 : index
    %42 = vector.load %arg11[%c0_19, %c256] : memref<256x1152xbf16, #tpu.memory_space<vmem>>, vector<256x128xbf16>
    tpu.vector_store %arg11[%c0_19, %c256], %41 {strides = array<i32>} : memref<256x1152xbf16, #tpu.memory_space<vmem>>, vector<256x128xbf16>,
    %c31 = arith.constant 31 : index
    %c0_20 = arith.constant 0 : index
    %43 = vector.load %arg9[%c31, %c0_20] : memref<320x128xbf16, #tpu.memory_space<vmem>>, vector<256x128xbf16>
    %cst_21 = arith.constant 0.000000e+00 : bf16
    %44 = vector.broadcast %cst_21 : bf16 to vector<256x128xbf16>
    %45 = vector.shape_cast %18 : vector<256x1xi1> to vector<256x1xi1>
    %46 = vector.broadcast %45 : vector<256x1xi1> to vector<256x128xi1>
    %47 = arith.select %46, %44, %43 : vector<256x128xi1>, vector<256x128xbf16>
    %c0_22 = arith.constant 0 : index
    %c384 = arith.constant 384 : index
    %48 = vector.load %arg11[%c0_22, %c384] : memref<256x1152xbf16, #tpu.memory_space<vmem>>, vector<256x128xbf16>
    tpu.vector_store %arg11[%c0_22, %c384], %47 {strides = array<i32>} : memref<256x1152xbf16, #tpu.memory_space<vmem>>, vector<256x128xbf16>,
    %c32_23 = arith.constant 32 : index
    %c0_24 = arith.constant 0 : index
    %49 = vector.load %arg9[%c32_23, %c0_24] : memref<320x128xbf16, #tpu.memory_space<vmem>>, vector<256x128xbf16>
    %c0_25 = arith.constant 0 : index
    %c512 = arith.constant 512 : index
    %50 = vector.load %arg11[%c0_25, %c512] : memref<256x1152xbf16, #tpu.memory_space<vmem>>, vector<256x128xbf16>
    tpu.vector_store %arg11[%c0_25, %c512], %49 {strides = array<i32>} : memref<256x1152xbf16, #tpu.memory_space<vmem>>, vector<256x128xbf16>,
    %c33 = arith.constant 33 : index
    %c0_26 = arith.constant 0 : index
    %51 = vector.load %arg9[%c33, %c0_26] : memref<320x128xbf16, #tpu.memory_space<vmem>>, vector<256x128xbf16>
    %cst_27 = arith.constant 0.000000e+00 : bf16
    %52 = vector.broadcast %cst_27 : bf16 to vector<256x128xbf16>
    %53 = vector.shape_cast %20 : vector<256x1xi1> to vector<256x1xi1>
    %54 = vector.broadcast %53 : vector<256x1xi1> to vector<256x128xi1>
    %55 = arith.select %54, %52, %51 : vector<256x128xi1>, vector<256x128xbf16>
    %c0_28 = arith.constant 0 : index
    %c640 = arith.constant 640 : index
    %56 = vector.load %arg11[%c0_28, %c640] : memref<256x1152xbf16, #tpu.memory_space<vmem>>, vector<256x128xbf16>
    tpu.vector_store %arg11[%c0_28, %c640], %55 {strides = array<i32>} : memref<256x1152xbf16, #tpu.memory_space<vmem>>, vector<256x128xbf16>,
    %c47 = arith.constant 47 : index
    %c0_29 = arith.constant 0 : index
    %57 = vector.load %arg9[%c47, %c0_29] : memref<320x128xbf16, #tpu.memory_space<vmem>>, vector<256x128xbf16>
    %cst_30 = arith.constant 0.000000e+00 : bf16
    %58 = vector.broadcast %cst_30 : bf16 to vector<256x128xbf16>
    %59 = vector.shape_cast %18 : vector<256x1xi1> to vector<256x1xi1>
    %60 = vector.broadcast %59 : vector<256x1xi1> to vector<256x128xi1>
    %61 = arith.select %60, %58, %57 : vector<256x128xi1>, vector<256x128xbf16>
    %c0_31 = arith.constant 0 : index
    %c768 = arith.constant 768 : index
    %62 = vector.load %arg11[%c0_31, %c768] : memref<256x1152xbf16, #tpu.memory_space<vmem>>, vector<256x128xbf16>
    tpu.vector_store %arg11[%c0_31, %c768], %61 {strides = array<i32>} : memref<256x1152xbf16, #tpu.memory_space<vmem>>, vector<256x128xbf16>,
    %c48 = arith.constant 48 : index
    %c0_32 = arith.constant 0 : index
    %63 = vector.load %arg9[%c48, %c0_32] : memref<320x128xbf16, #tpu.memory_space<vmem>>, vector<256x128xbf16>
    %c0_33 = arith.constant 0 : index
    %c896 = arith.constant 896 : index
    %64 = vector.load %arg11[%c0_33, %c896] : memref<256x1152xbf16, #tpu.memory_space<vmem>>, vector<256x128xbf16>
    tpu.vector_store %arg11[%c0_33, %c896], %63 {strides = array<i32>} : memref<256x1152xbf16, #tpu.memory_space<vmem>>, vector<256x128xbf16>,
    %c49 = arith.constant 49 : index
    %c0_34 = arith.constant 0 : index
    %65 = vector.load %arg9[%c49, %c0_34] : memref<320x128xbf16, #tpu.memory_space<vmem>>, vector<256x128xbf16>
    %cst_35 = arith.constant 0.000000e+00 : bf16
    %66 = vector.broadcast %cst_35 : bf16 to vector<256x128xbf16>
    %67 = vector.shape_cast %20 : vector<256x1xi1> to vector<256x1xi1>
    %68 = vector.broadcast %67 : vector<256x1xi1> to vector<256x128xi1>
    %69 = arith.select %68, %66, %65 : vector<256x128xi1>, vector<256x128xbf16>
    %c0_36 = arith.constant 0 : index
    %c1024 = arith.constant 1024 : index
    %70 = vector.load %arg11[%c0_36, %c1024] : memref<256x1152xbf16, #tpu.memory_space<vmem>>, vector<256x128xbf16>
    tpu.vector_store %arg11[%c0_36, %c1024], %69 {strides = array<i32>} : memref<256x1152xbf16, #tpu.memory_space<vmem>>, vector<256x128xbf16>,
    %c0_37 = arith.constant 0 : index
    %c0_38 = arith.constant 0 : index
    %71 = vector.load %arg11[%c0_37, %c0_38] : memref<256x1152xbf16, #tpu.memory_space<vmem>>, vector<256x1152xbf16>
    %c0_39 = arith.constant 0 : index
    %c0_40 = arith.constant 0 : index
    %72 = vector.load %arg2[%c0_39, %c0_40] : memref<1152x128xbf16, #tpu.memory_space<vmem>>, vector<1152x128xbf16>
    %cst_41 = arith.constant dense<0.000000e+00> : vector<256x128xf32>
    %73 = tpu.matmul %71, %72, %cst_41 {dimension_numbers = #tpu.dot_dimension_numbers<[1], [0], [0], [1], [0, 0, 1, 1], [], []>} : vector<256x1152xbf16>, vector<1152x128xbf16>, vector<256x128xf32> -> vector<256x128xf32>
    %c0_42 = arith.constant 0 : index
    %c0_43 = arith.constant 0 : index
    %74 = vector.load %arg3[%c0_42, %c0_43] : memref<1x128xf32, #tpu.memory_space<vmem>>, vector<1x128xf32>
    %75 = vector.broadcast %74 : vector<1x128xf32> to vector<256x128xf32>
    %76 = arith.mulf %73, %75 : vector<256x128xf32>
    %c0_44 = arith.constant 0 : index
    %c0_45 = arith.constant 0 : index
    %77 = vector.load %arg4[%c0_44, %c0_45] : memref<1x128xf32, #tpu.memory_space<vmem>>, vector<1x128xf32>
    %78 = vector.broadcast %77 : vector<1x128xf32> to vector<256x128xf32>
    %79 = arith.addf %76, %78 : vector<256x128xf32>
    %cst_46 = arith.constant 0.000000e+00 : f32
    %80 = vector.broadcast %cst_46 : f32 to vector<256x128xf32>
    %81 = arith.maximumf %79, %80 : vector<256x128xf32>
    %82 = arith.truncf %81 : vector<256x128xf32> to vector<256x128xbf16>
    %c16_47 = arith.constant 16 : index
    %c0_48 = arith.constant 0 : index
    %83 = vector.load %arg10[%c16_47, %c0_48] : memref<320x128xbf16, #tpu.memory_space<vmem>>, vector<16x128xbf16>
    tpu.vector_store %arg10[%c16_47, %c0_48], %21 {strides = array<i32>} : memref<320x128xbf16, #tpu.memory_space<vmem>>, vector<16x128xbf16>,
    %c288_49 = arith.constant 288 : index
    %c0_50 = arith.constant 0 : index
    %84 = vector.load %arg10[%c288_49, %c0_50] : memref<320x128xbf16, #tpu.memory_space<vmem>>, vector<16x128xbf16>
    tpu.vector_store %arg10[%c288_49, %c0_50], %21 {strides = array<i32>} : memref<320x128xbf16, #tpu.memory_space<vmem>>, vector<16x128xbf16>,
    %c32_51 = arith.constant 32 : index
    %c0_52 = arith.constant 0 : index
    %85 = vector.load %arg10[%c32_51, %c0_52] : memref<320x128xbf16, #tpu.memory_space<vmem>>, vector<256x128xbf16>
    tpu.vector_store %arg10[%c32_51, %c0_52], %82 {strides = array<i32>} : memref<320x128xbf16, #tpu.memory_space<vmem>>, vector<256x128xbf16>,
    %c15_53 = arith.constant 15 : index
    %c0_54 = arith.constant 0 : index
    %86 = vector.load %arg10[%c15_53, %c0_54] : memref<320x128xbf16, #tpu.memory_space<vmem>>, vector<256x128xbf16>
    %cst_55 = arith.constant 0.000000e+00 : bf16
    %87 = vector.broadcast %cst_55 : bf16 to vector<256x128xbf16>
    %88 = vector.shape_cast %18 : vector<256x1xi1> to vector<256x1xi1>
    %89 = vector.broadcast %88 : vector<256x1xi1> to vector<256x128xi1>
    %90 = arith.select %89, %87, %86 : vector<256x128xi1>, vector<256x128xbf16>
    %c0_56 = arith.constant 0 : index
    %c0_57 = arith.constant 0 : index
    %91 = vector.load %arg11[%c0_56, %c0_57] : memref<256x1152xbf16, #tpu.memory_space<vmem>>, vector<256x128xbf16>
    tpu.vector_store %arg11[%c0_56, %c0_57], %90 {strides = array<i32>} : memref<256x1152xbf16, #tpu.memory_space<vmem>>, vector<256x128xbf16>,
    %c16_58 = arith.constant 16 : index
    %c0_59 = arith.constant 0 : index
    %92 = vector.load %arg10[%c16_58, %c0_59] : memref<320x128xbf16, #tpu.memory_space<vmem>>, vector<256x128xbf16>
    %c0_60 = arith.constant 0 : index
    %c128_61 = arith.constant 128 : index
    %93 = vector.load %arg11[%c0_60, %c128_61] : memref<256x1152xbf16, #tpu.memory_space<vmem>>, vector<256x128xbf16>
    tpu.vector_store %arg11[%c0_60, %c128_61], %92 {strides = array<i32>} : memref<256x1152xbf16, #tpu.memory_space<vmem>>, vector<256x128xbf16>,
    %c17_62 = arith.constant 17 : index
    %c0_63 = arith.constant 0 : index
    %94 = vector.load %arg10[%c17_62, %c0_63] : memref<320x128xbf16, #tpu.memory_space<vmem>>, vector<256x128xbf16>
    %cst_64 = arith.constant 0.000000e+00 : bf16
    %95 = vector.broadcast %cst_64 : bf16 to vector<256x128xbf16>
    %96 = vector.shape_cast %20 : vector<256x1xi1> to vector<256x1xi1>
    %97 = vector.broadcast %96 : vector<256x1xi1> to vector<256x128xi1>
    %98 = arith.select %97, %95, %94 : vector<256x128xi1>, vector<256x128xbf16>
    %c0_65 = arith.constant 0 : index
    %c256_66 = arith.constant 256 : index
    %99 = vector.load %arg11[%c0_65, %c256_66] : memref<256x1152xbf16, #tpu.memory_space<vmem>>, vector<256x128xbf16>
    tpu.vector_store %arg11[%c0_65, %c256_66], %98 {strides = array<i32>} : memref<256x1152xbf16, #tpu.memory_space<vmem>>, vector<256x128xbf16>,
    %c31_67 = arith.constant 31 : index
    %c0_68 = arith.constant 0 : index
    %100 = vector.load %arg10[%c31_67, %c0_68] : memref<320x128xbf16, #tpu.memory_space<vmem>>, vector<256x128xbf16>
    %cst_69 = arith.constant 0.000000e+00 : bf16
    %101 = vector.broadcast %cst_69 : bf16 to vector<256x128xbf16>
    %102 = vector.shape_cast %18 : vector<256x1xi1> to vector<256x1xi1>
    %103 = vector.broadcast %102 : vector<256x1xi1> to vector<256x128xi1>
    %104 = arith.select %103, %101, %100 : vector<256x128xi1>, vector<256x128xbf16>
    %c0_70 = arith.constant 0 : index
    %c384_71 = arith.constant 384 : index
    %105 = vector.load %arg11[%c0_70, %c384_71] : memref<256x1152xbf16, #tpu.memory_space<vmem>>, vector<256x128xbf16>
    tpu.vector_store %arg11[%c0_70, %c384_71], %104 {strides = array<i32>} : memref<256x1152xbf16, #tpu.memory_space<vmem>>, vector<256x128xbf16>,
    %c32_72 = arith.constant 32 : index
    %c0_73 = arith.constant 0 : index
    %106 = vector.load %arg10[%c32_72, %c0_73] : memref<320x128xbf16, #tpu.memory_space<vmem>>, vector<256x128xbf16>
    %c0_74 = arith.constant 0 : index
    %c512_75 = arith.constant 512 : index
    %107 = vector.load %arg11[%c0_74, %c512_75] : memref<256x1152xbf16, #tpu.memory_space<vmem>>, vector<256x128xbf16>
    tpu.vector_store %arg11[%c0_74, %c512_75], %106 {strides = array<i32>} : memref<256x1152xbf16, #tpu.memory_space<vmem>>, vector<256x128xbf16>,
    %c33_76 = arith.constant 33 : index
    %c0_77 = arith.constant 0 : index
    %108 = vector.load %arg10[%c33_76, %c0_77] : memref<320x128xbf16, #tpu.memory_space<vmem>>, vector<256x128xbf16>
    %cst_78 = arith.constant 0.000000e+00 : bf16
    %109 = vector.broadcast %cst_78 : bf16 to vector<256x128xbf16>
    %110 = vector.shape_cast %20 : vector<256x1xi1> to vector<256x1xi1>
    %111 = vector.broadcast %110 : vector<256x1xi1> to vector<256x128xi1>
    %112 = arith.select %111, %109, %108 : vector<256x128xi1>, vector<256x128xbf16>
    %c0_79 = arith.constant 0 : index
    %c640_80 = arith.constant 640 : index
    %113 = vector.load %arg11[%c0_79, %c640_80] : memref<256x1152xbf16, #tpu.memory_space<vmem>>, vector<256x128xbf16>
    tpu.vector_store %arg11[%c0_79, %c640_80], %112 {strides = array<i32>} : memref<256x1152xbf16, #tpu.memory_space<vmem>>, vector<256x128xbf16>,
    %c47_81 = arith.constant 47 : index
    %c0_82 = arith.constant 0 : index
    %114 = vector.load %arg10[%c47_81, %c0_82] : memref<320x128xbf16, #tpu.memory_space<vmem>>, vector<256x128xbf16>
    %cst_83 = arith.constant 0.000000e+00 : bf16
    %115 = vector.broadcast %cst_83 : bf16 to vector<256x128xbf16>
    %116 = vector.shape_cast %18 : vector<256x1xi1> to vector<256x1xi1>
    %117 = vector.broadcast %116 : vector<256x1xi1> to vector<256x128xi1>
    %118 = arith.select %117, %115, %114 : vector<256x128xi1>, vector<256x128xbf16>
    %c0_84 = arith.constant 0 : index
    %c768_85 = arith.constant 768 : index
    %119 = vector.load %arg11[%c0_84, %c768_85] : memref<256x1152xbf16, #tpu.memory_space<vmem>>, vector<256x128xbf16>
    tpu.vector_store %arg11[%c0_84, %c768_85], %118 {strides = array<i32>} : memref<256x1152xbf16, #tpu.memory_space<vmem>>, vector<256x128xbf16>,
    %c48_86 = arith.constant 48 : index
    %c0_87 = arith.constant 0 : index
    %120 = vector.load %arg10[%c48_86, %c0_87] : memref<320x128xbf16, #tpu.memory_space<vmem>>, vector<256x128xbf16>
    %c0_88 = arith.constant 0 : index
    %c896_89 = arith.constant 896 : index
    %121 = vector.load %arg11[%c0_88, %c896_89] : memref<256x1152xbf16, #tpu.memory_space<vmem>>, vector<256x128xbf16>
    tpu.vector_store %arg11[%c0_88, %c896_89], %120 {strides = array<i32>} : memref<256x1152xbf16, #tpu.memory_space<vmem>>, vector<256x128xbf16>,
    %c49_90 = arith.constant 49 : index
    %c0_91 = arith.constant 0 : index
    %122 = vector.load %arg10[%c49_90, %c0_91] : memref<320x128xbf16, #tpu.memory_space<vmem>>, vector<256x128xbf16>
    %cst_92 = arith.constant 0.000000e+00 : bf16
    %123 = vector.broadcast %cst_92 : bf16 to vector<256x128xbf16>
    %124 = vector.shape_cast %20 : vector<256x1xi1> to vector<256x1xi1>
    %125 = vector.broadcast %124 : vector<256x1xi1> to vector<256x128xi1>
    %126 = arith.select %125, %123, %122 : vector<256x128xi1>, vector<256x128xbf16>
    %c0_93 = arith.constant 0 : index
    %c1024_94 = arith.constant 1024 : index
    %127 = vector.load %arg11[%c0_93, %c1024_94] : memref<256x1152xbf16, #tpu.memory_space<vmem>>, vector<256x128xbf16>
    tpu.vector_store %arg11[%c0_93, %c1024_94], %126 {strides = array<i32>} : memref<256x1152xbf16, #tpu.memory_space<vmem>>, vector<256x128xbf16>,
    %c0_95 = arith.constant 0 : index
    %c0_96 = arith.constant 0 : index
    %128 = vector.load %arg11[%c0_95, %c0_96] : memref<256x1152xbf16, #tpu.memory_space<vmem>>, vector<256x1152xbf16>
    %c0_97 = arith.constant 0 : index
    %c0_98 = arith.constant 0 : index
    %129 = vector.load %arg5[%c0_97, %c0_98] : memref<1152x128xbf16, #tpu.memory_space<vmem>>, vector<1152x128xbf16>
    %cst_99 = arith.constant dense<0.000000e+00> : vector<256x128xf32>
    %130 = tpu.matmul %128, %129, %cst_99 {dimension_numbers = #tpu.dot_dimension_numbers<[1], [0], [0], [1], [0, 0, 1, 1], [], []>} : vector<256x1152xbf16>, vector<1152x128xbf16>, vector<256x128xf32> -> vector<256x128xf32>
    %c0_100 = arith.constant 0 : index
    %c0_101 = arith.constant 0 : index
    %131 = vector.load %arg6[%c0_100, %c0_101] : memref<1x128xf32, #tpu.memory_space<vmem>>, vector<1x128xf32>
    %132 = vector.broadcast %131 : vector<1x128xf32> to vector<256x128xf32>
    %133 = arith.mulf %130, %132 : vector<256x128xf32>
    %c0_102 = arith.constant 0 : index
    %c0_103 = arith.constant 0 : index
    %134 = vector.load %arg7[%c0_102, %c0_103] : memref<1x128xf32, #tpu.memory_space<vmem>>, vector<1x128xf32>
    %135 = vector.broadcast %134 : vector<1x128xf32> to vector<256x128xf32>
    %136 = arith.addf %133, %135 : vector<256x128xf32>
    %c0_104 = arith.constant 0 : index
    %c0_105 = arith.constant 0 : index
    %c0_106 = arith.constant 0 : index
    %c0_107 = arith.constant 0 : index
    %137 = vector.load %arg1[%c0_104, %c0_105, %c0_106, %c0_107] : memref<1x16x16x128xf32, #tpu.memory_space<vmem>>, vector<1x16x16x128xf32>
    %138 = vector.shape_cast %137 : vector<1x16x16x128xf32> to vector<16x16x128xf32>
    %139 = vector.shape_cast %138 : vector<16x16x128xf32> to vector<256x128xf32>
    %140 = arith.addf %136, %139 : vector<256x128xf32>
    %cst_108 = arith.constant 0.000000e+00 : f32
    %141 = vector.broadcast %cst_108 : f32 to vector<256x128xf32>
    %142 = arith.maximumf %140, %141 : vector<256x128xf32>
    %143 = vector.shape_cast %142 : vector<256x128xf32> to vector<16x16x128xf32>
    %c0_109 = arith.constant 0 : index
    %c0_110 = arith.constant 0 : index
    %c0_111 = arith.constant 0 : index
    %c0_112 = arith.constant 0 : index
    %144 = vector.load %arg8[%c0_109, %c0_110, %c0_111, %c0_112] : memref<1x16x16x128xf32, #tpu.memory_space<vmem>>, vector<1x16x16x128xf32>
    %145 = vector.shape_cast %144 : vector<1x16x16x128xf32> to vector<16x16x128xf32>
    %146 = vector.shape_cast %143 : vector<16x16x128xf32> to vector<1x16x16x128xf32>
    tpu.vector_store %arg8[%c0_109, %c0_110, %c0_111, %c0_112], %146 {strides = array<i32>} : memref<1x16x16x128xf32, #tpu.memory_space<vmem>>, vector<1x16x16x128xf32>,
    return
  }
  func.func @transform_0(%arg0: i32) -> (i32, i32, i32, i32) {
    %c0_i32 = arith.constant 0 : i32
    %c0_i32_0 = arith.constant 0 : i32
    %c0_i32_1 = arith.constant 0 : i32
    %c0_i32_2 = arith.constant 0 : i32
    return %arg0, %c0_i32, %c0_i32_0, %c0_i32_1 : i32, i32, i32, i32
  }
  func.func @transform_1(%arg0: i32) -> (i32, i32) {
    %c0_i32 = arith.constant 0 : i32
    %c0_i32_0 = arith.constant 0 : i32
    %c0_i32_1 = arith.constant 0 : i32
    return %c0_i32, %c0_i32_0 : i32, i32
  }
  func.func @transform_2(%arg0: i32) -> (i32, i32) {
    %c0_i32 = arith.constant 0 : i32
    %c0_i32_0 = arith.constant 0 : i32
    %c0_i32_1 = arith.constant 0 : i32
    return %c0_i32, %c0_i32_0 : i32, i32
  }
  func.func @transform_3(%arg0: i32) -> (i32, i32) {
    %c0_i32 = arith.constant 0 : i32
    %c0_i32_0 = arith.constant 0 : i32
    %c0_i32_1 = arith.constant 0 : i32
    return %c0_i32, %c0_i32_0 : i32, i32
  }
  func.func @transform_4(%arg0: i32) -> (i32, i32) {
    %c0_i32 = arith.constant 0 : i32
    %c0_i32_0 = arith.constant 0 : i32
    %c0_i32_1 = arith.constant 0 : i32
    return %c0_i32, %c0_i32_0 : i32, i32
  }
  func.func @transform_5(%arg0: i32) -> (i32, i32) {
    %c0_i32 = arith.constant 0 : i32
    %c0_i32_0 = arith.constant 0 : i32
    %c0_i32_1 = arith.constant 0 : i32
    return %c0_i32, %c0_i32_0 : i32, i32
  }
  func.func @transform_6(%arg0: i32) -> (i32, i32) {
    %c0_i32 = arith.constant 0 : i32
    %c0_i32_0 = arith.constant 0 : i32
    %c0_i32_1 = arith.constant 0 : i32
    return %c0_i32, %c0_i32_0 : i32, i32
  }
  func.func @transform_7(%arg0: i32) -> (i32, i32, i32, i32) {
    %c0_i32 = arith.constant 0 : i32
    %c0_i32_0 = arith.constant 0 : i32
    %c0_i32_1 = arith.constant 0 : i32
    %c0_i32_2 = arith.constant 0 : i32
    return %arg0, %c0_i32, %c0_i32_0, %c0_i32_1 : i32, i32, i32, i32
  }
}

</mosaic_0001>

<llo_original>
// kernel: basic_block_pallas.1
$region0: #{basic_block_pallas.1}
  #allocation0 [shape = 'u32[]', space=smem, size = 0x4, offset = 0x4, fixed_abs, tag = 'smem constant byte address 0x4 - core index']
  #allocation1 [shape = 'u32[144,128]{1,0:T(1,128)}', space=vmem, size = 0x12000, scoped, tag = 'internal scratch']
  #allocation2 [shape = 'bf16[320,128]{1,0:T(8,128)(2,1)}', space=vmem, size = 0x14000, scoped, tag = 'scratch operand']
  #allocation3 [shape = 'bf16[320,128]{1,0:T(8,128)(2,1)}', space=vmem, size = 0x14000, scoped, tag = 'scratch operand']
  #allocation4 [shape = 'bf16[256,1152]{1,0:T(8,128)(2,1)}', space=vmem, size = 0x90000, scoped, tag = 'scratch operand']
  %s0 = inlined_call_operand.hbm [shape: f32[2,16,16,128], index: 0, kind: input, shape index: {}]
  %s1 = inlined_call_operand.hbm [shape: bf16[1152,128], index: 1, kind: input, shape index: {}]
  %s2 = inlined_call_operand.vmem [shape: f32[1,128], index: 2, kind: input, shape index: {}]
  %s3 = inlined_call_operand.vmem [shape: f32[1,128], index: 3, kind: input, shape index: {}]
  %s4 = inlined_call_operand.hbm [shape: bf16[1152,128], index: 4, kind: input, shape index: {}]
  %s5 = inlined_call_operand.vmem [shape: f32[1,128], index: 5, kind: input, shape index: {}]
  %s6 = inlined_call_operand.vmem [shape: f32[1,128], index: 6, kind: input, shape index: {}]
  %s7 = inlined_call_operand.hbm [shape: f32[2,16,16,128], index: 7, kind: output, shape index: {}]
  %s8 = sld [smem:[#allocation0]]
  $region73: #{basic_block_pallas.1} parent=0
    _
  %s10 = ssub.s32 1, %s8
  %s11 = scalar_select 0, %s10, %s8
  $region1: #{basic_block_pallas.1} parent=0
    #allocation5 [shape = 'u8[262144]{0}', space=vmem, size = 0x40000, scoped, tag = 'input window, operand 0']
    #allocation6 [shape = 's32[2]{0}', space=sflag, size = 0x8, scoped, tag = 'scoped memory for basic_block_pallas.1']
    #allocation7 [shape = 's32[2]{0}', space=sflag, size = 0x8, scoped, tag = 'scoped memory for basic_block_pallas.1']
    #allocation8 [shape = 'u8[294912]{0}', space=vmem, size = 0x48000, scoped, tag = 'input window, operand 1, single buffered']
    #allocation9 [shape = 's32[1]{0}', space=sflag, size = 0x4, scoped, tag = 'scoped memory for basic_block_pallas.1']
    #allocation10 [shape = 'u8[294912]{0}', space=vmem, size = 0x48000, scoped, tag = 'input window, operand 4, single buffered']
    #allocation11 [shape = 'u8[262144]{0}', space=vmem, size = 0x40000, scoped, tag = 'output window, operand 0']
    %12 = vsyncpa [#allocation6], 0
    %s13 = scalar_lea.sflag [#allocation6], 1
    %14 = vsyncpa %s13, 0
    %15 = vsyncpa [#allocation9], 0
    %16 = vsyncpa [#allocation7], 0
    %s17 = scalar_lea.sflag [#allocation7], 1
    %18 = vsyncpa %s17, 0
    loop: start=0, step=1, limit=4
    $region2: #{basic_block_pallas.1} parent=1 // loop_pre_header
      _
    $region3: #{basic_block_pallas.1} parent=1 // loop_header
      %s20 = sphi 0, %s24
      %p21 = scmp.ge.s32.totalorder %s20, 4
      %s30 = sphi 0, %s32
      %s33 = sphi 0, %s30
      %s34 = sphi 0, %s33
      %s50 = sphi 0, %s34
      %s54 = sphi 0, %s54
      %s56 = sphi 0, %s54
      %s57 = sphi 0, %s56
      %s71 = sphi 0, %s57
      %s75 = sphi 0, %s75
      %s77 = sphi 0, %s75
      %s78 = sphi 0, %s77
      %s92 = sphi 0, %s78
      %s96 = sphi 0, %s96
      %s98 = sphi 0, %s96
      %s99 = sphi 0, %s98
      %s113 = sphi 0, %s99
      %s117 = sphi 0, %s117
      %s119 = sphi 0, %s117
      %s120 = sphi 0, %s119
      %s134 = sphi 0, %s120
      %s138 = sphi 0, %s138
      %s140 = sphi 0, %s138
      %s141 = sphi 0, %s140
      %s155 = sphi 0, %s141
      %s159 = sphi 0, %s159
      %s161 = sphi 0, %s159
      %s162 = sphi 0, %s161
      %s176 = sphi 0, %s162
      %s182 = sphi 0, %s184
      %s185 = sphi 0, %s182
      %s186 = sphi 0, %s185
      %s202 = sphi 0, %s186
    $region4: #{basic_block_pallas.1} parent=1 // loop_header_branch
      %23 = sbr.rel (%p21) target = $region8
    $region5: #{basic_block_pallas.1} parent=1 // loop_body
      %s25 = ssub.s32 %s20, 1
      %s26 = ssub.s32 %s20, 2
      %s27 = sadd.s32 %s20, 1
      %s28 = ssub.s32 %s20, %s27
      %p29 = scmp.eq.s32.totalorder %s28, 0
      %s31 = sadd.s32 %s30, 1
      %s32 = scalar_select %p29, %s30, %s31
      %p35 = pneg %p29
      %p36 = scmp.eq.s32.totalorder %s20, 1
      %p37 = por %p35, %p36
      %p38 = scmp.ne.s32.totalorder %s30, %s33
      %p39 = scmp.eq.s32.totalorder %s20, 0
      %p40 = por %p38, %p39
      %p41 = scmp.ne.s32.totalorder %s30, %s33
      %p42 = scmp.eq.s32.totalorder %s25, 1
      %p43 = por %p41, %p42
      %p44 = scmp.ne.s32.totalorder %s33, %s34
      %p45 = scmp.eq.s32.totalorder %s25, 0
      %p46 = por %p44, %p45
      %p47 = scmp.ne.s32.totalorder %s33, %s34
      %p48 = scmp.eq.s32.totalorder %s26, 1
      %p49 = por %p47, %p48
      %p51 = scmp.ne.s32.totalorder %s34, %s50
      %p52 = scmp.eq.s32.totalorder %s26, 0
      %p53 = por %p51, %p52
      %s55 = sadd.s32 %s54, 1
      %p58 = scmp.eq.s32.totalorder %s20, 1
      %p59 = scmp.ne.s32.totalorder %s54, %s56
      %p60 = scmp.eq.s32.totalorder %s20, 0
      %p61 = por %p59, %p60
      %p62 = scmp.ne.s32.totalorder %s54, %s56
      %p63 = scmp.eq.s32.totalorder %s25, 1
      %p64 = por %p62, %p63
      %p65 = scmp.ne.s32.totalorder %s56, %s57
      %p66 = scmp.eq.s32.totalorder %s25, 0
      %p67 = por %p65, %p66
      %p68 = scmp.ne.s32.totalorder %s56, %s57
      %p69 = scmp.eq.s32.totalorder %s26, 1
      %p70 = por %p68, %p69
      %p72 = scmp.ne.s32.totalorder %s57, %s71
      %p73 = scmp.eq.s32.totalorder %s26, 0
      %p74 = por %p72, %p73
      %s76 = sadd.s32 %s75, 1
      %p79 = scmp.eq.s32.totalorder %s20, 1
      %p80 = scmp.ne.s32.totalorder %s75, %s77
      %p81 = scmp.eq.s32.totalorder %s20, 0
      %p82 = por %p80, %p81
      %p83 = scmp.ne.s32.totalorder %s75, %s77
      %p84 = scmp.eq.s32.totalorder %s25, 1
      %p85 = por %p83, %p84
      %p86 = scmp.ne.s32.totalorder %s77, %s78
      %p87 = scmp.eq.s32.totalorder %s25, 0
      %p88 = por %p86, %p87
      %p89 = scmp.ne.s32.totalorder %s77, %s78
      %p90 = scmp.eq.s32.totalorder %s26, 1
      %p91 = por %p89, %p90
      %p93 = scmp.ne.s32.totalorder %s78, %s92
      %p94 = scmp.eq.s32.totalorder %s26, 0
      %p95 = por %p93, %p94
      %s97 = sadd.s32 %s96, 1
      %p100 = scmp.eq.s32.totalorder %s20, 1
      %p101 = scmp.ne.s32.totalorder %s96, %s98
      %p102 = scmp.eq.s32.totalorder %s20, 0
      %p103 = por %p101, %p102
      %p104 = scmp.ne.s32.totalorder %s96, %s98
      %p105 = scmp.eq.s32.totalorder %s25, 1
      %p106 = por %p104, %p105
      %p107 = scmp.ne.s32.totalorder %s98, %s99
      %p108 = scmp.eq.s32.totalorder %s25, 0
      %p109 = por %p107, %p108
      %p110 = scmp.ne.s32.totalorder %s98, %s99
      %p111 = scmp.eq.s32.totalorder %s26, 1
      %p112 = por %p110, %p111
      %p114 = scmp.ne.s32.totalorder %s99, %s113
      %p115 = scmp.eq.s32.totalorder %s26, 0
      %p116 = por %p114, %p115
      %s118 = sadd.s32 %s117, 1
      %p121 = scmp.eq.s32.totalorder %s20, 1
      %p122 = scmp.ne.s32.totalorder %s117, %s119
      %p123 = scmp.eq.s32.totalorder %s20, 0
      %p124 = por %p122, %p123
      %p125 = scmp.ne.s32.totalorder %s117, %s119
      %p126 = scmp.eq.s32.totalorder %s25, 1
      %p127 = por %p125, %p126
      %p128 = scmp.ne.s32.totalorder %s119, %s120
      %p129 = scmp.eq.s32.totalorder %s25, 0
      %p130 = por %p128, %p129
      %p131 = scmp.ne.s32.totalorder %s119, %s120
      %p132 = scmp.eq.s32.totalorder %s26, 1
      %p133 = por %p131, %p132
      %p135 = scmp.ne.s32.totalorder %s120, %s134
      %p136 = scmp.eq.s32.totalorder %s26, 0
      %p137 = por %p135, %p136
      %s139 = sadd.s32 %s138, 1
      %p142 = scmp.eq.s32.totalorder %s20, 1
      %p143 = scmp.ne.s32.totalorder %s138, %s140
      %p144 = scmp.eq.s32.totalorder %s20, 0
      %p145 = por %p143, %p144
      %p146 = scmp.ne.s32.totalorder %s138, %s140
      %p147 = scmp.eq.s32.totalorder %s25, 1
      %p148 = por %p146, %p147
      %p149 = scmp.ne.s32.totalorder %s140, %s141
      %p150 = scmp.eq.s32.totalorder %s25, 0
      %p151 = por %p149, %p150
      %p152 = scmp.ne.s32.totalorder %s140, %s141
      %p153 = scmp.eq.s32.totalorder %s26, 1
      %p154 = por %p152, %p153
      %p156 = scmp.ne.s32.totalorder %s141, %s155
      %p157 = scmp.eq.s32.totalorder %s26, 0
      %p158 = por %p156, %p157
      %s160 = sadd.s32 %s159, 1
      %p163 = scmp.eq.s32.totalorder %s20, 1
      %p164 = scmp.ne.s32.totalorder %s159, %s161
      %p165 = scmp.eq.s32.totalorder %s20, 0
      %p166 = por %p164, %p165
      %p167 = scmp.ne.s32.totalorder %s159, %s161
      %p168 = scmp.eq.s32.totalorder %s25, 1
      %p169 = por %p167, %p168
      %p170 = scmp.ne.s32.totalorder %s161, %s162
      %p171 = scmp.eq.s32.totalorder %s25, 0
      %p172 = por %p170, %p171
      %p173 = scmp.ne.s32.totalorder %s161, %s162
      %p174 = scmp.eq.s32.totalorder %s26, 1
      %p175 = por %p173, %p174
      %p177 = scmp.ne.s32.totalorder %s162, %s176
      %p178 = scmp.eq.s32.totalorder %s26, 0
      %p179 = por %p177, %p178
      %s180 = ssub.s32 %s20, %s27
      %p181 = scmp.eq.s32.totalorder %s180, 0
      %s183 = sadd.s32 %s182, 1
      %s184 = scalar_select %p181, %s182, %s183
      %p187 = pneg %p181
      %p188 = scmp.eq.s32.totalorder %s20, 1
      %p189 = por %p187, %p188
      %p190 = scmp.ne.s32.totalorder %s182, %s185
      %p191 = scmp.eq.s32.totalorder %s20, 0
      %p192 = por %p190, %p191
      %p193 = scmp.ne.s32.totalorder %s182, %s185
      %p194 = scmp.eq.s32.totalorder %s25, 1
      %p195 = por %p193, %p194
      %p196 = scmp.ne.s32.totalorder %s185, %s186
      %p197 = scmp.eq.s32.totalorder %s25, 0
      %p198 = por %p196, %p197
      %p199 = scmp.ne.s32.totalorder %s185, %s186
      %p200 = scmp.eq.s32.totalorder %s26, 1
      %p201 = por %p199, %p200
      %p203 = scmp.ne.s32.totalorder %s186, %s202
      %p204 = scmp.eq.s32.totalorder %s26, 0
      %p205 = por %p203, %p204
      %p206 = scmp.le.s32.totalorder 1, %s20
      %p207 = scmp.lt.s32.totalorder %s20, 3
      %p208 = pnand %p206, %p207
      %p209 = pneg %p208
      // Predicated region
      $region9: #{basic_block_pallas.1} parent=5 // pred_check
        _
      $region10: #{basic_block_pallas.1} parent=5 // pred_check_branch
        %211 = sbr.rel (%p208) target = $region12
      $region11: #{basic_block_pallas.1} parent=5 // pred_region
        %s212 = ssub.s32 %s20, 1
        // Predicated region
        $region13: #{basic_block_pallas.1} parent=11 // pred_check
          %p213 = pneg %p67
        $region14: #{basic_block_pallas.1} parent=11 // pred_check_branch
          %215 = sbr.rel (%p213) target = $region16
        $region15: #{basic_block_pallas.1} parent=11 // pred_region
          %s217 = ssub.s32 9216, 9216
          %218 = vsyncadd [#allocation9], %s217
          %s219 = sshll.u32 [#allocation8], 4
          %s220 = int_to_ptr.vmem [resolvable:$true] %s219
          %225 = dma.hbm_to_vmem [thread:$0]  %s1, 9216, %s220, [#allocation9], 64, 64, 4
        $region16: #{basic_block_pallas.1} parent=11 // pred_fallthru
          _
        // Predicated region
        $region17: #{basic_block_pallas.1} parent=11 // pred_check
          %p226 = pneg %p88
        $region18: #{basic_block_pallas.1} parent=11 // pred_check_branch
          %228 = sbr.rel (%p226) target = $region20
        $region19: #{basic_block_pallas.1} parent=11 // pred_region
          _
        $region20: #{basic_block_pallas.1} parent=11 // pred_fallthru
          _
        // Predicated region
        $region21: #{basic_block_pallas.1} parent=11 // pred_check
          %p229 = pneg %p109
        $region22: #{basic_block_pallas.1} parent=11 // pred_check_branch
          %231 = sbr.rel (%p229) target = $region24
        $region23: #{basic_block_pallas.1} parent=11 // pred_region
          _
        $region24: #{basic_block_pallas.1} parent=11 // pred_fallthru
          _
        // Predicated region
        $region25: #{basic_block_pallas.1} parent=11 // pred_check
          %p232 = pneg %p130
        $region26: #{basic_block_pallas.1} parent=11 // pred_check_branch
          %234 = sbr.rel (%p232) target = $region28
        $region27: #{basic_block_pallas.1} parent=11 // pred_region
          %s236 = ssub.s32 9216, 9216
          %237 = vsyncadd [#allocation9], %s236
          %s238 = sshll.u32 [#allocation10], 4
          %s239 = int_to_ptr.vmem [resolvable:$true] %s238
          %244 = dma.hbm_to_vmem [thread:$0]  %s4, 9216, %s239, [#allocation9], 64, 64, 4
        $region28: #{basic_block_pallas.1} parent=11 // pred_fallthru
          _
        // Predicated region
        $region29: #{basic_block_pallas.1} parent=11 // pred_check
          %p245 = pneg %p151
        $region30: #{basic_block_pallas.1} parent=11 // pred_check_branch
          %247 = sbr.rel (%p245) target = $region32
        $region31: #{basic_block_pallas.1} parent=11 // pred_region
          _
        $region32: #{basic_block_pallas.1} parent=11 // pred_fallthru
          _
        // Predicated region
        $region33: #{basic_block_pallas.1} parent=11 // pred_check
          %p248 = pneg %p172
        $region34: #{basic_block_pallas.1} parent=11 // pred_check_branch
          %250 = sbr.rel (%p248) target = $region36
        $region35: #{basic_block_pallas.1} parent=11 // pred_region
          _
        $region36: #{basic_block_pallas.1} parent=11 // pred_fallthru
          _
      $region12: #{basic_block_pallas.1} parent=5 // pred_fallthru
        _
      %p251 = scmp.lt.s32.totalorder %s20, 2
      // Predicated region
      $region37: #{basic_block_pallas.1} parent=5 // pred_check
        %p252 = pneg %p251
      $region38: #{basic_block_pallas.1} parent=5 // pred_check_branch
        %254 = sbr.rel (%p252) target = $region40
      $region39: #{basic_block_pallas.1} parent=5 // pred_region
        // Predicated region
        $region41: #{basic_block_pallas.1} parent=39 // pred_check
          %p255 = pneg %p40
        $region42: #{basic_block_pallas.1} parent=39 // pred_check_branch
          %257 = sbr.rel (%p255) target = $region44
        $region43: #{basic_block_pallas.1} parent=39 // pred_region
          %s258 = sand.u32 %s30, 1
          %s259 = scalar_lea.sflag [#allocation6], %s258
          %s260 = sand.u32 %s30, 1
          %s261 = smul.addr %s260, 256
          %s262 = scalar_lea.vmem [#allocation5], %s261
          %s264 = ssub.s32 4096, 4096
          %265 = vsyncadd %s259, %s264
          %s266 = smul.addr %s20, 32
          %s267 = smul.addr %s266, 128
          %s268 = scalar_lea.hbm %s0, %s267
          %s269 = sshll.u32 %s262, 4
          %s270 = int_to_ptr.vmem [resolvable:$true] %s269
          %275 = dma.hbm_to_vmem [thread:$0]  %s268, 4096, %s270, %s259, 128, 128, 8
        $region44: #{basic_block_pallas.1} parent=39 // pred_fallthru
          _
      $region40: #{basic_block_pallas.1} parent=5 // pred_fallthru
        _
      %p276 = scmp.le.s32.totalorder 1, %s20
      %p277 = scmp.lt.s32.totalorder %s20, 3
      %p278 = pnand %p276, %p277
      %p279 = pneg %p278
      // Predicated region
      $region45: #{basic_block_pallas.1} parent=5 // pred_check
        _
      $region46: #{basic_block_pallas.1} parent=5 // pred_check_branch
        %281 = sbr.rel (%p278) target = $region48
      $region47: #{basic_block_pallas.1} parent=5 // pred_region
        %s282 = ssub.s32 %s20, 1
        %s283 = sand.u32 %s33, 1
        %s284 = scalar_lea.sflag [#allocation6], %s283
        %s285 = sand.u32 %s33, 1
        %s286 = smul.addr %s285, 256
        %s287 = scalar_lea.vmem [#allocation5], %s286
        // Predicated region
        $region49: #{basic_block_pallas.1} parent=47 // pred_check
          %p288 = pneg %p46
        $region50: #{basic_block_pallas.1} parent=47 // pred_check_branch
          %290 = sbr.rel (%p288) target = $region52
        $region51: #{basic_block_pallas.1} parent=47 // pred_region
          %291 = dma.done %s284, 4096
        $region52: #{basic_block_pallas.1} parent=47 // pred_fallthru
          _
        // Predicated region
        $region53: #{basic_block_pallas.1} parent=47 // pred_check
          %p292 = pneg %p67
        $region54: #{basic_block_pallas.1} parent=47 // pred_check_branch
          %294 = sbr.rel (%p292) target = $region56
        $region55: #{basic_block_pallas.1} parent=47 // pred_region
          %295 = dma.done [#allocation9], 9216
        $region56: #{basic_block_pallas.1} parent=47 // pred_fallthru
          _
        // Predicated region
        $region57: #{basic_block_pallas.1} parent=47 // pred_check
          %p296 = pneg %p130
        $region58: #{basic_block_pallas.1} parent=47 // pred_check_branch
          %298 = sbr.rel (%p296) target = $region60
        $region59: #{basic_block_pallas.1} parent=47 // pred_region
          %299 = dma.done [#allocation9], 9216
        $region60: #{basic_block_pallas.1} parent=47 // pred_fallthru
          _
        %s300 = sand.u32 %s33, 1
        %s301 = scalar_lea.sflag [#allocation6], %s300
        %s302 = sand.u32 %s33, 1
        %s303 = smul.addr %s302, 256
        %s304 = scalar_lea.vmem [#allocation5], %s303
        %p305 = pneg %p46
        %p306 = pneg %p43
        %p307 = pneg %p67
        %p308 = pneg %p64
        %p309 = pneg %p88
        %p310 = pneg %p85
        %p311 = pneg %p109
        %p312 = pneg %p106
        %p313 = pneg %p130
        %p314 = pneg %p127
        %p315 = pneg %p151
        %p316 = pneg %p148
        %p317 = pneg %p172
        %p318 = pneg %p169
        %p319 = pneg %p198
        %p320 = pneg %p195
        %s321 = sand.u32 %s185, 1
        %s322 = scalar_lea.sflag [#allocation7], %s321
        %s323 = sand.u32 %s185, 1
        %s324 = smul.addr %s323, 256
        %s325 = scalar_lea.vmem [#allocation11], %s324
        %v329 = vlaneseq
        %v330 = vshrl.u32 %v329, 7
        %v331 = vadd.s32 %v330, 8
        %v332 = vadd.s32 %v330, 16
        %v333 = vadd.s32 %v330, 24
        %v334 = vadd.s32 %v330, 32
        %v335 = vadd.s32 %v330, 40
        %v336 = vadd.s32 %v330, 48
        %v337 = vadd.s32 %v330, 56
        %v338 = vadd.s32 %v330, 64
        %v339 = vadd.s32 %v330, 72
        %v340 = vadd.s32 %v330, 80
        %v341 = vadd.s32 %v330, 88
        %v342 = vadd.s32 %v330, 96
        %v343 = vadd.s32 %v330, 104
        %v344 = vadd.s32 %v330, 112
        %v345 = vadd.s32 %v330, 120
        %v346 = vadd.s32 %v330, 128
        %v347 = vadd.s32 %v330, 136
        %v348 = vadd.s32 %v330, 144
        %v349 = vadd.s32 %v330, 152
        %v350 = vadd.s32 %v330, 160
        %v351 = vadd.s32 %v330, 168
        %v352 = vadd.s32 %v330, 176
        %v353 = vadd.s32 %v330, 184
        %v354 = vadd.s32 %v330, 192
        %v355 = vadd.s32 %v330, 200
        %v356 = vadd.s32 %v330, 208
        %v357 = vadd.s32 %v330, 216
        %v358 = vadd.s32 %v330, 224
        %v359 = vadd.s32 %v330, 232
        %v360 = vadd.s32 %v330, 240
        %v361 = vadd.s32 %v330, 248
        %vm362 = vcmp.lt.s32.totalorder %v330, 0
        %v363 = vsub.s32 0, %v330
        %v364 = vsel %vm362, %v363, %v330
        %v365 = vshrl.u32 %v364, 4
        %v366 = vand.u32 %v364, 15
        %v367 = vsub.s32 0, %v366
        %v368 = vsel %vm362, %v367, %v366
        %vm369 = vcmp.lt.s32.totalorder %v331, 0
        %v370 = vsub.s32 0, %v331
        %v371 = vsel %vm369, %v370, %v331
        %v372 = vshrl.u32 %v371, 4
        %v373 = vand.u32 %v371, 15
        %v374 = vsub.s32 0, %v373
        %v375 = vsel %vm369, %v374, %v373
        %vm376 = vcmp.lt.s32.totalorder %v332, 0
        %v377 = vsub.s32 0, %v332
        %v378 = vsel %vm376, %v377, %v332
        %v379 = vshrl.u32 %v378, 4
        %v380 = vand.u32 %v378, 15
        %v381 = vsub.s32 0, %v380
        %v382 = vsel %vm376, %v381, %v380
        %vm383 = vcmp.lt.s32.totalorder %v333, 0
        %v384 = vsub.s32 0, %v333
        %v385 = vsel %vm383, %v384, %v333
        %v386 = vshrl.u32 %v385, 4
        %v387 = vand.u32 %v385, 15
        %v388 = vsub.s32 0, %v387
        %v389 = vsel %vm383, %v388, %v387
        %vm390 = vcmp.lt.s32.totalorder %v334, 0
        %v391 = vsub.s32 0, %v334
        %v392 = vsel %vm390, %v391, %v334
        %v393 = vshrl.u32 %v392, 4
        %v394 = vand.u32 %v392, 15
        %v395 = vsub.s32 0, %v394
        %v396 = vsel %vm390, %v395, %v394
        %vm397 = vcmp.lt.s32.totalorder %v335, 0
        %v398 = vsub.s32 0, %v335
        %v399 = vsel %vm397, %v398, %v335
        %v400 = vshrl.u32 %v399, 4
        %v401 = vand.u32 %v399, 15
        %v402 = vsub.s32 0, %v401
        %v403 = vsel %vm397, %v402, %v401
        %vm404 = vcmp.lt.s32.totalorder %v336, 0
        %v405 = vsub.s32 0, %v336
        %v406 = vsel %vm404, %v405, %v336
        %v407 = vshrl.u32 %v406, 4
        %v408 = vand.u32 %v406, 15
        %v409 = vsub.s32 0, %v408
        %v410 = vsel %vm404, %v409, %v408
        %vm411 = vcmp.lt.s32.totalorder %v337, 0
        %v412 = vsub.s32 0, %v337
        %v413 = vsel %vm411, %v412, %v337
        %v414 = vshrl.u32 %v413, 4
        %v415 = vand.u32 %v413, 15
        %v416 = vsub.s32 0, %v415
        %v417 = vsel %vm411, %v416, %v415
        %vm418 = vcmp.lt.s32.totalorder %v338, 0
        %v419 = vsub.s32 0, %v338
        %v420 = vsel %vm418, %v419, %v338
        %v421 = vshrl.u32 %v420, 4
        %v422 = vand.u32 %v420, 15
        %v423 = vsub.s32 0, %v422
        %v424 = vsel %vm418, %v423, %v422
        %vm425 = vcmp.lt.s32.totalorder %v339, 0
        %v426 = vsub.s32 0, %v339
        %v427 = vsel %vm425, %v426, %v339
        %v428 = vshrl.u32 %v427, 4
        %v429 = vand.u32 %v427, 15
        %v430 = vsub.s32 0, %v429
        %v431 = vsel %vm425, %v430, %v429
        %vm432 = vcmp.lt.s32.totalorder %v340, 0
        %v433 = vsub.s32 0, %v340
        %v434 = vsel %vm432, %v433, %v340
        %v435 = vshrl.u32 %v434, 4
        %v436 = vand.u32 %v434, 15
        %v437 = vsub.s32 0, %v436
        %v438 = vsel %vm432, %v437, %v436
        %vm439 = vcmp.lt.s32.totalorder %v341, 0
        %v440 = vsub.s32 0, %v341
        %v441 = vsel %vm439, %v440, %v341
        %v442 = vshrl.u32 %v441, 4
        %v443 = vand.u32 %v441, 15
        %v444 = vsub.s32 0, %v443
        %v445 = vsel %vm439, %v444, %v443
        %vm446 = vcmp.lt.s32.totalorder %v342, 0
        %v447 = vsub.s32 0, %v342
        %v448 = vsel %vm446, %v447, %v342
        %v449 = vshrl.u32 %v448, 4
        %v450 = vand.u32 %v448, 15
        %v451 = vsub.s32 0, %v450
        %v452 = vsel %vm446, %v451, %v450
        %vm453 = vcmp.lt.s32.totalorder %v343, 0
        %v454 = vsub.s32 0, %v343
        %v455 = vsel %vm453, %v454, %v343
        %v456 = vshrl.u32 %v455, 4
        %v457 = vand.u32 %v455, 15
        %v458 = vsub.s32 0, %v457
        %v459 = vsel %vm453, %v458, %v457
        %vm460 = vcmp.lt.s32.totalorder %v344, 0
        %v461 = vsub.s32 0, %v344
        %v462 = vsel %vm460, %v461, %v344
        %v463 = vshrl.u32 %v462, 4
        %v464 = vand.u32 %v462, 15
        %v465 = vsub.s32 0, %v464
        %v466 = vsel %vm460, %v465, %v464
        %vm467 = vcmp.lt.s32.totalorder %v345, 0
        %v468 = vsub.s32 0, %v345
        %v469 = vsel %vm467, %v468, %v345
        %v470 = vshrl.u32 %v469, 4
        %v471 = vand.u32 %v469, 15
        %v472 = vsub.s32 0, %v471
        %v473 = vsel %vm467, %v472, %v471
        %vm474 = vcmp.lt.s32.totalorder %v346, 0
        %v475 = vsub.s32 0, %v346
        %v476 = vsel %vm474, %v475, %v346
        %v477 = vshrl.u32 %v476, 4
        %v478 = vand.u32 %v476, 15
        %v479 = vsub.s32 0, %v478
        %v480 = vsel %vm474, %v479, %v478
        %vm481 = vcmp.lt.s32.totalorder %v347, 0
        %v482 = vsub.s32 0, %v347
        %v483 = vsel %vm481, %v482, %v347
        %v484 = vshrl.u32 %v483, 4
        %v485 = vand.u32 %v483, 15
        %v486 = vsub.s32 0, %v485
        %v487 = vsel %vm481, %v486, %v485
        %vm488 = vcmp.lt.s32.totalorder %v348, 0
        %v489 = vsub.s32 0, %v348
        %v490 = vsel %vm488, %v489, %v348
        %v491 = vshrl.u32 %v490, 4
        %v492 = vand.u32 %v490, 15
        %v493 = vsub.s32 0, %v492
        %v494 = vsel %vm488, %v493, %v492
        %vm495 = vcmp.lt.s32.totalorder %v349, 0
        %v496 = vsub.s32 0, %v349
        %v497 = vsel %vm495, %v496, %v349
        %v498 = vshrl.u32 %v497, 4
        %v499 = vand.u32 %v497, 15
        %v500 = vsub.s32 0, %v499
        %v501 = vsel %vm495, %v500, %v499
        %vm502 = vcmp.lt.s32.totalorder %v350, 0
        %v503 = vsub.s32 0, %v350
        %v504 = vsel %vm502, %v503, %v350
        %v505 = vshrl.u32 %v504, 4
        %v506 = vand.u32 %v504, 15
        %v507 = vsub.s32 0, %v506
        %v508 = vsel %vm502, %v507, %v506
        %vm509 = vcmp.lt.s32.totalorder %v351, 0
        %v510 = vsub.s32 0, %v351
        %v511 = vsel %vm509, %v510, %v351
        %v512 = vshrl.u32 %v511, 4
        %v513 = vand.u32 %v511, 15
        %v514 = vsub.s32 0, %v513
        %v515 = vsel %vm509, %v514, %v513
        %vm516 = vcmp.lt.s32.totalorder %v352, 0
        %v517 = vsub.s32 0, %v352
        %v518 = vsel %vm516, %v517, %v352
        %v519 = vshrl.u32 %v518, 4
        %v520 = vand.u32 %v518, 15
        %v521 = vsub.s32 0, %v520
        %v522 = vsel %vm516, %v521, %v520
        %vm523 = vcmp.lt.s32.totalorder %v353, 0
        %v524 = vsub.s32 0, %v353
        %v525 = vsel %vm523, %v524, %v353
        %v526 = vshrl.u32 %v525, 4
        %v527 = vand.u32 %v525, 15
        %v528 = vsub.s32 0, %v527
        %v529 = vsel %vm523, %v528, %v527
        %vm530 = vcmp.lt.s32.totalorder %v354, 0
        %v531 = vsub.s32 0, %v354
        %v532 = vsel %vm530, %v531, %v354
        %v533 = vshrl.u32 %v532, 4
        %v534 = vand.u32 %v532, 15
        %v535 = vsub.s32 0, %v534
        %v536 = vsel %vm530, %v535, %v534
        %vm537 = vcmp.lt.s32.totalorder %v355, 0
        %v538 = vsub.s32 0, %v355
        %v539 = vsel %vm537, %v538, %v355
        %v540 = vshrl.u32 %v539, 4
        %v541 = vand.u32 %v539, 15
        %v542 = vsub.s32 0, %v541
        %v543 = vsel %vm537, %v542, %v541
        %vm544 = vcmp.lt.s32.totalorder %v356, 0
        %v545 = vsub.s32 0, %v356
        %v546 = vsel %vm544, %v545, %v356
        %v547 = vshrl.u32 %v546, 4
        %v548 = vand.u32 %v546, 15
        %v549 = vsub.s32 0, %v548
        %v550 = vsel %vm544, %v549, %v548
        %vm551 = vcmp.lt.s32.totalorder %v357, 0
        %v552 = vsub.s32 0, %v357
        %v553 = vsel %vm551, %v552, %v357
        %v554 = vshrl.u32 %v553, 4
        %v555 = vand.u32 %v553, 15
        %v556 = vsub.s32 0, %v555
        %v557 = vsel %vm551, %v556, %v555
        %vm558 = vcmp.lt.s32.totalorder %v358, 0
        %v559 = vsub.s32 0, %v358
        %v560 = vsel %vm558, %v559, %v358
        %v561 = vshrl.u32 %v560, 4
        %v562 = vand.u32 %v560, 15
        %v563 = vsub.s32 0, %v562
        %v564 = vsel %vm558, %v563, %v562
        %vm565 = vcmp.lt.s32.totalorder %v359, 0
        %v566 = vsub.s32 0, %v359
        %v567 = vsel %vm565, %v566, %v359
        %v568 = vshrl.u32 %v567, 4
        %v569 = vand.u32 %v567, 15
        %v570 = vsub.s32 0, %v569
        %v571 = vsel %vm565, %v570, %v569
        %vm572 = vcmp.lt.s32.totalorder %v360, 0
        %v573 = vsub.s32 0, %v360
        %v574 = vsel %vm572, %v573, %v360
        %v575 = vshrl.u32 %v574, 4
        %v576 = vand.u32 %v574, 15
        %v577 = vsub.s32 0, %v576
        %v578 = vsel %vm572, %v577, %v576
        %vm579 = vcmp.lt.s32.totalorder %v361, 0
        %v580 = vsub.s32 0, %v361
        %v581 = vsel %vm579, %v580, %v361
        %v582 = vshrl.u32 %v581, 4
        %v583 = vand.u32 %v581, 15
        %v584 = vsub.s32 0, %v583
        %v585 = vsel %vm579, %v584, %v583
        %vm586 = vcmp.ne.s32.totalorder %v368, 0
        %vm587 = vcmp.ne.s32.totalorder %v375, 0
        %vm588 = vcmp.ne.s32.totalorder %v382, 0
        %vm589 = vcmp.ne.s32.totalorder %v389, 0
        %vm590 = vcmp.ne.s32.totalorder %v396, 0
        %vm591 = vcmp.ne.s32.totalorder %v403, 0
        %vm592 = vcmp.ne.s32.totalorder %v410, 0
        %vm593 = vcmp.ne.s32.totalorder %v417, 0
        %vm594 = vcmp.ne.s32.totalorder %v424, 0
        %vm595 = vcmp.ne.s32.totalorder %v431, 0
        %vm596 = vcmp.ne.s32.totalorder %v438, 0
        %vm597 = vcmp.ne.s32.totalorder %v445, 0
        %vm598 = vcmp.ne.s32.totalorder %v452, 0
        %vm599 = vcmp.ne.s32.totalorder %v459, 0
        %vm600 = vcmp.ne.s32.totalorder %v466, 0
        %vm601 = vcmp.ne.s32.totalorder %v473, 0
        %vm602 = vcmp.ne.s32.totalorder %v480, 0
        %vm603 = vcmp.ne.s32.totalorder %v487, 0
        %vm604 = vcmp.ne.s32.totalorder %v494, 0
        %vm605 = vcmp.ne.s32.totalorder %v501, 0
        %vm606 = vcmp.ne.s32.totalorder %v508, 0
        %vm607 = vcmp.ne.s32.totalorder %v515, 0
        %vm608 = vcmp.ne.s32.totalorder %v522, 0
        %vm609 = vcmp.ne.s32.totalorder %v529, 0
        %vm610 = vcmp.ne.s32.totalorder %v536, 0
        %vm611 = vcmp.ne.s32.totalorder %v543, 0
        %vm612 = vcmp.ne.s32.totalorder %v550, 0
        %vm613 = vcmp.ne.s32.totalorder %v557, 0
        %vm614 = vcmp.ne.s32.totalorder %v564, 0
        %vm615 = vcmp.ne.s32.totalorder %v571, 0
        %vm616 = vcmp.ne.s32.totalorder %v578, 0
        %vm617 = vcmp.ne.s32.totalorder %v585, 0
        %vm618 = vcmp.lt.s32.totalorder %v368, 0
        %vm619 = vcmp.lt.s32.totalorder %v375, 0
        %vm620 = vcmp.lt.s32.totalorder %v382, 0
        %vm621 = vcmp.lt.s32.totalorder %v389, 0
        %vm622 = vcmp.lt.s32.totalorder %v396, 0
        %vm623 = vcmp.lt.s32.totalorder %v403, 0
        %vm624 = vcmp.lt.s32.totalorder %v410, 0
        %vm625 = vcmp.lt.s32.totalorder %v417, 0
        %vm626 = vcmp.lt.s32.totalorder %v424, 0
        %vm627 = vcmp.lt.s32.totalorder %v431, 0
        %vm628 = vcmp.lt.s32.totalorder %v438, 0
        %vm629 = vcmp.lt.s32.totalorder %v445, 0
        %vm630 = vcmp.lt.s32.totalorder %v452, 0
        %vm631 = vcmp.lt.s32.totalorder %v459, 0
        %vm632 = vcmp.lt.s32.totalorder %v466, 0
        %vm633 = vcmp.lt.s32.totalorder %v473, 0
        %vm634 = vcmp.lt.s32.totalorder %v480, 0
        %vm635 = vcmp.lt.s32.totalorder %v487, 0
        %vm636 = vcmp.lt.s32.totalorder %v494, 0
        %vm637 = vcmp.lt.s32.totalorder %v501, 0
        %vm638 = vcmp.lt.s32.totalorder %v508, 0
        %vm639 = vcmp.lt.s32.totalorder %v515, 0
        %vm640 = vcmp.lt.s32.totalorder %v522, 0
        %vm641 = vcmp.lt.s32.totalorder %v529, 0
        %vm642 = vcmp.lt.s32.totalorder %v536, 0
        %vm643 = vcmp.lt.s32.totalorder %v543, 0
        %vm644 = vcmp.lt.s32.totalorder %v550, 0
        %vm645 = vcmp.lt.s32.totalorder %v557, 0
        %vm646 = vcmp.lt.s32.totalorder %v564, 0
        %vm647 = vcmp.lt.s32.totalorder %v571, 0
        %vm648 = vcmp.lt.s32.totalorder %v578, 0
        %vm649 = vcmp.lt.s32.totalorder %v585, 0
        %vm650 = vmand %vm618, %vm586
        %vm651 = vmand %vm619, %vm587
        %vm652 = vmand %vm620, %vm588
        %vm653 = vmand %vm621, %vm589
        %vm654 = vmand %vm622, %vm590
        %vm655 = vmand %vm623, %vm591
        %vm656 = vmand %vm624, %vm592
        %vm657 = vmand %vm625, %vm593
        %vm658 = vmand %vm626, %vm594
        %vm659 = vmand %vm627, %vm595
        %vm660 = vmand %vm628, %vm596
        %vm661 = vmand %vm629, %vm597
        %vm662 = vmand %vm630, %vm598
        %vm663 = vmand %vm631, %vm599
        %vm664 = vmand %vm632, %vm600
        %vm665 = vmand %vm633, %vm601
        %vm666 = vmand %vm634, %vm602
        %vm667 = vmand %vm635, %vm603
        %vm668 = vmand %vm636, %vm604
        %vm669 = vmand %vm637, %vm605
        %vm670 = vmand %vm638, %vm606
        %vm671 = vmand %vm639, %vm607
        %vm672 = vmand %vm640, %vm608
        %vm673 = vmand %vm641, %vm609
        %vm674 = vmand %vm642, %vm610
        %vm675 = vmand %vm643, %vm611
        %vm676 = vmand %vm644, %vm612
        %vm677 = vmand %vm645, %vm613
        %vm678 = vmand %vm646, %vm614
        %vm679 = vmand %vm647, %vm615
        %vm680 = vmand %vm648, %vm616
        %vm681 = vmand %vm649, %vm617
        %v682 = vadd.s32 %v368, 16
        %v683 = vadd.s32 %v375, 16
        %v684 = vadd.s32 %v382, 16
        %v685 = vadd.s32 %v389, 16
        %v686 = vadd.s32 %v396, 16
        %v687 = vadd.s32 %v403, 16
        %v688 = vadd.s32 %v410, 16
        %v689 = vadd.s32 %v417, 16
        %v690 = vadd.s32 %v424, 16
        %v691 = vadd.s32 %v431, 16
        %v692 = vadd.s32 %v438, 16
        %v693 = vadd.s32 %v445, 16
        %v694 = vadd.s32 %v452, 16
        %v695 = vadd.s32 %v459, 16
        %v696 = vadd.s32 %v466, 16
        %v697 = vadd.s32 %v473, 16
        %v698 = vadd.s32 %v480, 16
        %v699 = vadd.s32 %v487, 16
        %v700 = vadd.s32 %v494, 16
        %v701 = vadd.s32 %v501, 16
        %v702 = vadd.s32 %v508, 16
        %v703 = vadd.s32 %v515, 16
        %v704 = vadd.s32 %v522, 16
        %v705 = vadd.s32 %v529, 16
        %v706 = vadd.s32 %v536, 16
        %v707 = vadd.s32 %v543, 16
        %v708 = vadd.s32 %v550, 16
        %v709 = vadd.s32 %v557, 16
        %v710 = vadd.s32 %v564, 16
        %v711 = vadd.s32 %v571, 16
        %v712 = vadd.s32 %v578, 16
        %v713 = vadd.s32 %v585, 16
        %v714 = vsel %vm650, %v682, %v368
        %v715 = vsel %vm651, %v683, %v375
        %v716 = vsel %vm652, %v684, %v382
        %v717 = vsel %vm653, %v685, %v389
        %v718 = vsel %vm654, %v686, %v396
        %v719 = vsel %vm655, %v687, %v403
        %v720 = vsel %vm656, %v688, %v410
        %v721 = vsel %vm657, %v689, %v417
        %v722 = vsel %vm658, %v690, %v424
        %v723 = vsel %vm659, %v691, %v431
        %v724 = vsel %vm660, %v692, %v438
        %v725 = vsel %vm661, %v693, %v445
        %v726 = vsel %vm662, %v694, %v452
        %v727 = vsel %vm663, %v695, %v459
        %v728 = vsel %vm664, %v696, %v466
        %v729 = vsel %vm665, %v697, %v473
        %v730 = vsel %vm666, %v698, %v480
        %v731 = vsel %vm667, %v699, %v487
        %v732 = vsel %vm668, %v700, %v494
        %v733 = vsel %vm669, %v701, %v501
        %v734 = vsel %vm670, %v702, %v508
        %v735 = vsel %vm671, %v703, %v515
        %v736 = vsel %vm672, %v704, %v522
        %v737 = vsel %vm673, %v705, %v529
        %v738 = vsel %vm674, %v706, %v536
        %v739 = vsel %vm675, %v707, %v543
        %v740 = vsel %vm676, %v708, %v550
        %v741 = vsel %vm677, %v709, %v557
        %v742 = vsel %vm678, %v710, %v564
        %v743 = vsel %vm679, %v711, %v571
        %v744 = vsel %vm680, %v712, %v578
        %v745 = vsel %vm681, %v713, %v585
        %vm746 = vcmp.eq.s32.totalorder %v714, 0
        %vm747 = vcmp.eq.s32.totalorder %v715, 0
        %vm748 = vcmp.eq.s32.totalorder %v716, 0
        %vm749 = vcmp.eq.s32.totalorder %v717, 0
        %vm750 = vcmp.eq.s32.totalorder %v718, 0
        %vm751 = vcmp.eq.s32.totalorder %v719, 0
        %vm752 = vcmp.eq.s32.totalorder %v720, 0
        %vm753 = vcmp.eq.s32.totalorder %v721, 0
        %vm754 = vcmp.eq.s32.totalorder %v722, 0
        %vm755 = vcmp.eq.s32.totalorder %v723, 0
        %vm756 = vcmp.eq.s32.totalorder %v724, 0
        %vm757 = vcmp.eq.s32.totalorder %v725, 0
        %vm758 = vcmp.eq.s32.totalorder %v726, 0
        %vm759 = vcmp.eq.s32.totalorder %v727, 0
        %vm760 = vcmp.eq.s32.totalorder %v728, 0
        %vm761 = vcmp.eq.s32.totalorder %v729, 0
        %vm762 = vcmp.eq.s32.totalorder %v730, 0
        %vm763 = vcmp.eq.s32.totalorder %v731, 0
        %vm764 = vcmp.eq.s32.totalorder %v732, 0
        %vm765 = vcmp.eq.s32.totalorder %v733, 0
        %vm766 = vcmp.eq.s32.totalorder %v734, 0
        %vm767 = vcmp.eq.s32.totalorder %v735, 0
        %vm768 = vcmp.eq.s32.totalorder %v736, 0
        %vm769 = vcmp.eq.s32.totalorder %v737, 0
        %vm770 = vcmp.eq.s32.totalorder %v738, 0
        %vm771 = vcmp.eq.s32.totalorder %v739, 0
        %vm772 = vcmp.eq.s32.totalorder %v740, 0
        %vm773 = vcmp.eq.s32.totalorder %v741, 0
        %vm774 = vcmp.eq.s32.totalorder %v742, 0
        %vm775 = vcmp.eq.s32.totalorder %v743, 0
        %vm776 = vcmp.eq.s32.totalorder %v744, 0
        %vm777 = vcmp.eq.s32.totalorder %v745, 0
        %vm778 = vcmp.eq.s32.totalorder %v714, 15
        %vm779 = vcmp.eq.s32.totalorder %v715, 15
        %vm780 = vcmp.eq.s32.totalorder %v716, 15
        %vm781 = vcmp.eq.s32.totalorder %v717, 15
        %vm782 = vcmp.eq.s32.totalorder %v718, 15
        %vm783 = vcmp.eq.s32.totalorder %v719, 15
        %vm784 = vcmp.eq.s32.totalorder %v720, 15
        %vm785 = vcmp.eq.s32.totalorder %v721, 15
        %vm786 = vcmp.eq.s32.totalorder %v722, 15
        %vm787 = vcmp.eq.s32.totalorder %v723, 15
        %vm788 = vcmp.eq.s32.totalorder %v724, 15
        %vm789 = vcmp.eq.s32.totalorder %v725, 15
        %vm790 = vcmp.eq.s32.totalorder %v726, 15
        %vm791 = vcmp.eq.s32.totalorder %v727, 15
        %vm792 = vcmp.eq.s32.totalorder %v728, 15
        %vm793 = vcmp.eq.s32.totalorder %v729, 15
        %vm794 = vcmp.eq.s32.totalorder %v730, 15
        %vm795 = vcmp.eq.s32.totalorder %v731, 15
        %vm796 = vcmp.eq.s32.totalorder %v732, 15
        %vm797 = vcmp.eq.s32.totalorder %v733, 15
        %vm798 = vcmp.eq.s32.totalorder %v734, 15
        %vm799 = vcmp.eq.s32.totalorder %v735, 15
        %vm800 = vcmp.eq.s32.totalorder %v736, 15
        %vm801 = vcmp.eq.s32.totalorder %v737, 15
        %vm802 = vcmp.eq.s32.totalorder %v738, 15
        %vm803 = vcmp.eq.s32.totalorder %v739, 15
        %vm804 = vcmp.eq.s32.totalorder %v740, 15
        %vm805 = vcmp.eq.s32.totalorder %v741, 15
        %vm806 = vcmp.eq.s32.totalorder %v742, 15
        %vm807 = vcmp.eq.s32.totalorder %v743, 15
        %vm808 = vcmp.eq.s32.totalorder %v744, 15
        %vm809 = vcmp.eq.s32.totalorder %v745, 15
        %v810 = vld [vmem:[%s287] sm:$0xff]
        %v811 = vld [vmem:[%s287 + $0x8] sm:$0xff]
        %v812 = vld [vmem:[%s287 + $0x10] sm:$0xff]
        %v813 = vld [vmem:[%s287 + $0x18] sm:$0xff]
        %v814 = vld [vmem:[%s287 + $0x20] sm:$0xff]
        %v815 = vld [vmem:[%s287 + $0x28] sm:$0xff]
        %v816 = vld [vmem:[%s287 + $0x30] sm:$0xff]
        %v817 = vld [vmem:[%s287 + $0x38] sm:$0xff]
        %v818 = vld [vmem:[%s287 + $0x40] sm:$0xff]
        %v819 = vld [vmem:[%s287 + $0x48] sm:$0xff]
        %v820 = vld [vmem:[%s287 + $0x50] sm:$0xff]
        %v821 = vld [vmem:[%s287 + $0x58] sm:$0xff]
        %v822 = vld [vmem:[%s287 + $0x60] sm:$0xff]
        %v823 = vld [vmem:[%s287 + $0x68] sm:$0xff]
        %v824 = vld [vmem:[%s287 + $0x70] sm:$0xff]
        %v825 = vld [vmem:[%s287 + $0x78] sm:$0xff]
        %v826 = vld [vmem:[%s287 + $0x80] sm:$0xff]
        %v827 = vld [vmem:[%s287 + $0x88] sm:$0xff]
        %v828 = vld [vmem:[%s287 + $0x90] sm:$0xff]
        %v829 = vld [vmem:[%s287 + $0x98] sm:$0xff]
        %v830 = vld [vmem:[%s287 + $0xa0] sm:$0xff]
        %v831 = vld [vmem:[%s287 + $0xa8] sm:$0xff]
        %v832 = vld [vmem:[%s287 + $0xb0] sm:$0xff]
        %v833 = vld [vmem:[%s287 + $0xb8] sm:$0xff]
        %v834 = vld [vmem:[%s287 + $0xc0] sm:$0xff]
        %v835 = vld [vmem:[%s287 + $0xc8] sm:$0xff]
        %v836 = vld [vmem:[%s287 + $0xd0] sm:$0xff]
        %v837 = vld [vmem:[%s287 + $0xd8] sm:$0xff]
        %v838 = vld [vmem:[%s287 + $0xe0] sm:$0xff]
        %v839 = vld [vmem:[%s287 + $0xe8] sm:$0xff]
        %v840 = vld [vmem:[%s287 + $0xf0] sm:$0xff]
        %v841 = vld [vmem:[%s287 + $0xf8] sm:$0xff]
        %v842 = vpack.c.bf16 %v811, %v810
        %v843 = vpack.c.bf16 %v813, %v812
        %v844 = vpack.c.bf16 %v815, %v814
        %v845 = vpack.c.bf16 %v817, %v816
        %v846 = vpack.c.bf16 %v819, %v818
        %v847 = vpack.c.bf16 %v821, %v820
        %v848 = vpack.c.bf16 %v823, %v822
        %v849 = vpack.c.bf16 %v825, %v824
        %v850 = vpack.c.bf16 %v827, %v826
        %v851 = vpack.c.bf16 %v829, %v828
        %v852 = vpack.c.bf16 %v831, %v830
        %v853 = vpack.c.bf16 %v833, %v832
        %v854 = vpack.c.bf16 %v835, %v834
        %v855 = vpack.c.bf16 %v837, %v836
        %v856 = vpack.c.bf16 %v839, %v838
        %v857 = vpack.c.bf16 %v841, %v840
        %858 = vst [vmem:[#allocation2 + $0x8] sm:$0xf] 0
        %859 = vst [vmem:[#allocation2 + $0xc] sm:$0xf] 0
        %860 = vst [vmem:[#allocation2 + $0x90] sm:$0xf] 0
        %861 = vst [vmem:[#allocation2 + $0x94] sm:$0xf] 0
        %v878 = vunpack.c.l.b16 %v842
        %v879 = vunpack.c.h.b16 %v842
        %v880 = vunpack.c.l.b16 %v843
        %v881 = vunpack.c.h.b16 %v843
        %v882 = vunpack.c.l.b16 %v844
        %v883 = vunpack.c.h.b16 %v844
        %v884 = vunpack.c.l.b16 %v845
        %v885 = vunpack.c.h.b16 %v845
        %v886 = vunpack.c.l.b16 %v846
        %v887 = vunpack.c.h.b16 %v846
        %v888 = vunpack.c.l.b16 %v847
        %v889 = vunpack.c.h.b16 %v847
        %v890 = vunpack.c.l.b16 %v848
        %v891 = vunpack.c.h.b16 %v848
        %v892 = vunpack.c.l.b16 %v849
        %v893 = vunpack.c.h.b16 %v849
        %v894 = vunpack.c.l.b16 %v850
        %v895 = vunpack.c.h.b16 %v850
        %v896 = vunpack.c.l.b16 %v851
        %v897 = vunpack.c.h.b16 %v851
        %v898 = vunpack.c.l.b16 %v852
        %v899 = vunpack.c.h.b16 %v852
        %v900 = vunpack.c.l.b16 %v853
        %v901 = vunpack.c.h.b16 %v853
        %v902 = vunpack.c.l.b16 %v854
        %v903 = vunpack.c.h.b16 %v854
        %v904 = vunpack.c.l.b16 %v855
        %v905 = vunpack.c.h.b16 %v855
        %v906 = vunpack.c.l.b16 %v856
        %v907 = vunpack.c.h.b16 %v856
        %v908 = vunpack.c.l.b16 %v857
        %v909 = vunpack.c.h.b16 %v857
        %v910 = vpack.c.b16 %v878, %v878
        %v911 = vpack.c.b16 %v879, %v879
        %v912 = vpack.c.b16 %v880, %v880
        %v913 = vpack.c.b16 %v881, %v881
        %v914 = vpack.c.b16 %v882, %v882
        %v915 = vpack.c.b16 %v883, %v883
        %v916 = vpack.c.b16 %v884, %v884
        %v917 = vpack.c.b16 %v885, %v885
        %v918 = vpack.c.b16 %v886, %v886
        %v919 = vpack.c.b16 %v887, %v887
        %v920 = vpack.c.b16 %v888, %v888
        %v921 = vpack.c.b16 %v889, %v889
        %v922 = vpack.c.b16 %v890, %v890
        %v923 = vpack.c.b16 %v891, %v891
        %v924 = vpack.c.b16 %v892, %v892
        %v925 = vpack.c.b16 %v893, %v893
        %v926 = vpack.c.b16 %v894, %v894
        %v927 = vpack.c.b16 %v895, %v895
        %v928 = vpack.c.b16 %v896, %v896
        %v929 = vpack.c.b16 %v897, %v897
        %v930 = vpack.c.b16 %v898, %v898
        %v931 = vpack.c.b16 %v899, %v899
        %v932 = vpack.c.b16 %v900, %v900
        %v933 = vpack.c.b16 %v901, %v901
        %v934 = vpack.c.b16 %v902, %v902
        %v935 = vpack.c.b16 %v903, %v903
        %v936 = vpack.c.b16 %v904, %v904
        %v937 = vpack.c.b16 %v905, %v905
        %v938 = vpack.c.b16 %v906, %v906
        %v939 = vpack.c.b16 %v907, %v907
        %v940 = vpack.c.b16 %v908, %v908
        %v941 = vpack.c.b16 %v909, %v909
        %974 = vst [vmem:[#allocation2 + $0x10] sm:$0xf] %v910
        %975 = vst [vmem:[#allocation2 + $0x14] sm:$0xf] %v911
        %976 = vst [vmem:[#allocation2 + $0x18] sm:$0xf] %v912
        %977 = vst [vmem:[#allocation2 + $0x1c] sm:$0xf] %v913
        %978 = vst [vmem:[#allocation2 + $0x20] sm:$0xf] %v914
        %979 = vst [vmem:[#allocation2 + $0x24] sm:$0xf] %v915
        %980 = vst [vmem:[#allocation2 + $0x28] sm:$0xf] %v916
        %981 = vst [vmem:[#allocation2 + $0x2c] sm:$0xf] %v917
        %982 = vst [vmem:[#allocation2 + $0x30] sm:$0xf] %v918
        %983 = vst [vmem:[#allocation2 + $0x34] sm:$0xf] %v919
        %984 = vst [vmem:[#allocation2 + $0x38] sm:$0xf] %v920
        %985 = vst [vmem:[#allocation2 + $0x3c] sm:$0xf] %v921
        %986 = vst [vmem:[#allocation2 + $0x40] sm:$0xf] %v922
        %987 = vst [vmem:[#allocation2 + $0x44] sm:$0xf] %v923
        %988 = vst [vmem:[#allocation2 + $0x48] sm:$0xf] %v924
        %989 = vst [vmem:[#allocation2 + $0x4c] sm:$0xf] %v925
        %990 = vst [vmem:[#allocation2 + $0x50] sm:$0xf] %v926
        %991 = vst [vmem:[#allocation2 + $0x54] sm:$0xf] %v927
        %992 = vst [vmem:[#allocation2 + $0x58] sm:$0xf] %v928
        %993 = vst [vmem:[#allocation2 + $0x5c] sm:$0xf] %v929
        %994 = vst [vmem:[#allocation2 + $0x60] sm:$0xf] %v930
        %995 = vst [vmem:[#allocation2 + $0x64] sm:$0xf] %v931
        %996 = vst [vmem:[#allocation2 + $0x68] sm:$0xf] %v932
        %997 = vst [vmem:[#allocation2 + $0x6c] sm:$0xf] %v933
        %998 = vst [vmem:[#allocation2 + $0x70] sm:$0xf] %v934
        %999 = vst [vmem:[#allocation2 + $0x74] sm:$0xf] %v935
        %1000 = vst [vmem:[#allocation2 + $0x78] sm:$0xf] %v936
        %1001 = vst [vmem:[#allocation2 + $0x7c] sm:$0xf] %v937
        %1002 = vst [vmem:[#allocation2 + $0x80] sm:$0xf] %v938
        %1003 = vst [vmem:[#allocation2 + $0x84] sm:$0xf] %v939
        %1004 = vst [vmem:[#allocation2 + $0x88] sm:$0xf] %v940
        %1005 = vst [vmem:[#allocation2 + $0x8c] sm:$0xf] %v941
        %v1006 = vld [vmem:[#allocation2 + $0x4] sm:$0x8]
        %v1007 = vld [vmem:[#allocation2 + $0x8] sm:$0xf]
        %v1008 = vld [vmem:[#allocation2 + $0xc] sm:$0xf]
        %v1009 = vld [vmem:[#allocation2 + $0x10] sm:$0xf]
        %v1010 = vld [vmem:[#allocation2 + $0x14] sm:$0xf]
        %v1011 = vld [vmem:[#allocation2 + $0x18] sm:$0xf]
        %v1012 = vld [vmem:[#allocation2 + $0x1c] sm:$0xf]
        %v1013 = vld [vmem:[#allocation2 + $0x20] sm:$0xf]
        %v1014 = vld [vmem:[#allocation2 + $0x24] sm:$0xf]
        %v1015 = vld [vmem:[#allocation2 + $0x28] sm:$0xf]
        %v1016 = vld [vmem:[#allocation2 + $0x2c] sm:$0xf]
        %v1017 = vld [vmem:[#allocation2 + $0x30] sm:$0xf]
        %v1018 = vld [vmem:[#allocation2 + $0x34] sm:$0xf]
        %v1019 = vld [vmem:[#allocation2 + $0x38] sm:$0xf]
        %v1020 = vld [vmem:[#allocation2 + $0x3c] sm:$0xf]
        %v1021 = vld [vmem:[#allocation2 + $0x40] sm:$0xf]
        %v1022 = vld [vmem:[#allocation2 + $0x44] sm:$0xf]
        %v1023 = vld [vmem:[#allocation2 + $0x48] sm:$0xf]
        %v1024 = vld [vmem:[#allocation2 + $0x4c] sm:$0xf]
        %v1025 = vld [vmem:[#allocation2 + $0x50] sm:$0xf]
        %v1026 = vld [vmem:[#allocation2 + $0x54] sm:$0xf]
        %v1027 = vld [vmem:[#allocation2 + $0x58] sm:$0xf]
        %v1028 = vld [vmem:[#allocation2 + $0x5c] sm:$0xf]
        %v1029 = vld [vmem:[#allocation2 + $0x60] sm:$0xf]
        %v1030 = vld [vmem:[#allocation2 + $0x64] sm:$0xf]
        %v1031 = vld [vmem:[#allocation2 + $0x68] sm:$0xf]
        %v1032 = vld [vmem:[#allocation2 + $0x6c] sm:$0xf]
        %v1033 = vld [vmem:[#allocation2 + $0x70] sm:$0xf]
        %v1034 = vld [vmem:[#allocation2 + $0x74] sm:$0xf]
        %v1035 = vld [vmem:[#allocation2 + $0x78] sm:$0xf]
        %v1036 = vld [vmem:[#allocation2 + $0x7c] sm:$0xf]
        %v1037 = vld [vmem:[#allocation2 + $0x80] sm:$0xf]
        %v1038 = vld [vmem:[#allocation2 + $0x84] sm:$0xf]
        %v1039 = vsel %vm746, 1, 0
        %v1040 = vsel %vm747, 1, 0
        %v1041 = vsel %vm748, 1, 0
        %v1042 = vsel %vm749, 1, 0
        %v1043 = vsel %vm750, 1, 0
        %v1044 = vsel %vm751, 1, 0
        %v1045 = vsel %vm752, 1, 0
        %v1046 = vsel %vm753, 1, 0
        %v1047 = vsel %vm754, 1, 0
        %v1048 = vsel %vm755, 1, 0
        %v1049 = vsel %vm756, 1, 0
        %v1050 = vsel %vm757, 1, 0
        %v1051 = vsel %vm758, 1, 0
        %v1052 = vsel %vm759, 1, 0
        %v1053 = vsel %vm760, 1, 0
        %v1054 = vsel %vm761, 1, 0
        %v1055 = vsel %vm762, 1, 0
        %v1056 = vsel %vm763, 1, 0
        %v1057 = vsel %vm764, 1, 0
        %v1058 = vsel %vm765, 1, 0
        %v1059 = vsel %vm766, 1, 0
        %v1060 = vsel %vm767, 1, 0
        %v1061 = vsel %vm768, 1, 0
        %v1062 = vsel %vm769, 1, 0
        %v1063 = vsel %vm770, 1, 0
        %v1064 = vsel %vm771, 1, 0
        %v1065 = vsel %vm772, 1, 0
        %v1066 = vsel %vm773, 1, 0
        %v1067 = vsel %vm774, 1, 0
        %v1068 = vsel %vm775, 1, 0
        %v1069 = vsel %vm776, 1, 0
        %v1070 = vsel %vm777, 1, 0
        %vm1071 = vcmp.eq.s32.totalorder %v1039, 1
        %vm1072 = vcmp.eq.s32.totalorder %v1040, 1
        %vm1073 = vcmp.eq.s32.totalorder %v1041, 1
        %vm1074 = vcmp.eq.s32.totalorder %v1042, 1
        %vm1075 = vcmp.eq.s32.totalorder %v1043, 1
        %vm1076 = vcmp.eq.s32.totalorder %v1044, 1
        %vm1077 = vcmp.eq.s32.totalorder %v1045, 1
        %vm1078 = vcmp.eq.s32.totalorder %v1046, 1
        %vm1079 = vcmp.eq.s32.totalorder %v1047, 1
        %vm1080 = vcmp.eq.s32.totalorder %v1048, 1
        %vm1081 = vcmp.eq.s32.totalorder %v1049, 1
        %vm1082 = vcmp.eq.s32.totalorder %v1050, 1
        %vm1083 = vcmp.eq.s32.totalorder %v1051, 1
        %vm1084 = vcmp.eq.s32.totalorder %v1052, 1
        %vm1085 = vcmp.eq.s32.totalorder %v1053, 1
        %vm1086 = vcmp.eq.s32.totalorder %v1054, 1
        %vm1087 = vcmp.eq.s32.totalorder %v1055, 1
        %vm1088 = vcmp.eq.s32.totalorder %v1056, 1
        %vm1089 = vcmp.eq.s32.totalorder %v1057, 1
        %vm1090 = vcmp.eq.s32.totalorder %v1058, 1
        %vm1091 = vcmp.eq.s32.totalorder %v1059, 1
        %vm1092 = vcmp.eq.s32.totalorder %v1060, 1
        %vm1093 = vcmp.eq.s32.totalorder %v1061, 1
        %vm1094 = vcmp.eq.s32.totalorder %v1062, 1
        %vm1095 = vcmp.eq.s32.totalorder %v1063, 1
        %vm1096 = vcmp.eq.s32.totalorder %v1064, 1
        %vm1097 = vcmp.eq.s32.totalorder %v1065, 1
        %vm1098 = vcmp.eq.s32.totalorder %v1066, 1
        %vm1099 = vcmp.eq.s32.totalorder %v1067, 1
        %vm1100 = vcmp.eq.s32.totalorder %v1068, 1
        %vm1101 = vcmp.eq.s32.totalorder %v1069, 1
        %vm1102 = vcmp.eq.s32.totalorder %v1070, 1
        %vm1103 = vmpackc.low %vm1071, %vm1071
        %vm1104 = vmpackc.low %vm1072, %vm1072
        %vm1105 = vmpackc.low %vm1073, %vm1073
        %vm1106 = vmpackc.low %vm1074, %vm1074
        %vm1107 = vmpackc.low %vm1075, %vm1075
        %vm1108 = vmpackc.low %vm1076, %vm1076
        %vm1109 = vmpackc.low %vm1077, %vm1077
        %vm1110 = vmpackc.low %vm1078, %vm1078
        %vm1111 = vmpackc.low %vm1079, %vm1079
        %vm1112 = vmpackc.low %vm1080, %vm1080
        %vm1113 = vmpackc.low %vm1081, %vm1081
        %vm1114 = vmpackc.low %vm1082, %vm1082
        %vm1115 = vmpackc.low %vm1083, %vm1083
        %vm1116 = vmpackc.low %vm1084, %vm1084
        %vm1117 = vmpackc.low %vm1085, %vm1085
        %vm1118 = vmpackc.low %vm1086, %vm1086
        %vm1119 = vmpackc.low %vm1087, %vm1087
        %vm1120 = vmpackc.low %vm1088, %vm1088
        %vm1121 = vmpackc.low %vm1089, %vm1089
        %vm1122 = vmpackc.low %vm1090, %vm1090
        %vm1123 = vmpackc.low %vm1091, %vm1091
        %vm1124 = vmpackc.low %vm1092, %vm1092
        %vm1125 = vmpackc.low %vm1093, %vm1093
        %vm1126 = vmpackc.low %vm1094, %vm1094
        %vm1127 = vmpackc.low %vm1095, %vm1095
        %vm1128 = vmpackc.low %vm1096, %vm1096
        %vm1129 = vmpackc.low %vm1097, %vm1097
        %vm1130 = vmpackc.low %vm1098, %vm1098
        %vm1131 = vmpackc.low %vm1099, %vm1099
        %vm1132 = vmpackc.low %vm1100, %vm1100
        %vm1133 = vmpackc.low %vm1101, %vm1101
        %vm1134 = vmpackc.low %vm1102, %vm1102
        %v1135 = vsel %vm1103, 65537, 0
        %v1136 = vsel %vm1104, 65537, 0
        %v1137 = vsel %vm1105, 65537, 0
        %v1138 = vsel %vm1106, 65537, 0
        %v1139 = vsel %vm1107, 65537, 0
        %v1140 = vsel %vm1108, 65537, 0
        %v1141 = vsel %vm1109, 65537, 0
        %v1142 = vsel %vm1110, 65537, 0
        %v1143 = vsel %vm1111, 65537, 0
        %v1144 = vsel %vm1112, 65537, 0
        %v1145 = vsel %vm1113, 65537, 0
        %v1146 = vsel %vm1114, 65537, 0
        %v1147 = vsel %vm1115, 65537, 0
        %v1148 = vsel %vm1116, 65537, 0
        %v1149 = vsel %vm1117, 65537, 0
        %v1150 = vsel %vm1118, 65537, 0
        %v1151 = vsel %vm1119, 65537, 0
        %v1152 = vsel %vm1120, 65537, 0
        %v1153 = vsel %vm1121, 65537, 0
        %v1154 = vsel %vm1122, 65537, 0
        %v1155 = vsel %vm1123, 65537, 0
        %v1156 = vsel %vm1124, 65537, 0
        %v1157 = vsel %vm1125, 65537, 0
        %v1158 = vsel %vm1126, 65537, 0
        %v1159 = vsel %vm1127, 65537, 0
        %v1160 = vsel %vm1128, 65537, 0
        %v1161 = vsel %vm1129, 65537, 0
        %v1162 = vsel %vm1130, 65537, 0
        %v1163 = vsel %vm1131, 65537, 0
        %v1164 = vsel %vm1132, 65537, 0
        %v1165 = vsel %vm1133, 65537, 0
        %v1166 = vsel %vm1134, 65537, 0
        %vm1167 = vsmask.f32 3328
        %vm1168 = vsmask.f32 7440
        %vm1169 = vmor %vm1167, %vm1168
        %v1171 = vshll.u32 %v1135, 16
        %v1173 = vrot.slane %v1171, 5
        %v1174 = vshrl.u32 %v1135, 16
        %v1176 = vrot.slane %v1174, 4
        %v1177 = vor.u32 %v1176, %v1173
        %v1178 = vrot.slane %v1177, 4
        %v1180 = vshll.u32 %v1136, 16
        %v1182 = vrot.slane %v1180, 5
        %v1183 = vsel %vm1169, %v1178, %v1182
        %v1184 = vshrl.u32 %v1136, 16
        %v1186 = vrot.slane %v1184, 4
        %v1187 = vor.u32 %v1186, %v1182
        %v1188 = vrot.slane %v1187, 4
        %v1190 = vshll.u32 %v1137, 16
        %v1192 = vrot.slane %v1190, 5
        %v1193 = vsel %vm1169, %v1188, %v1192
        %v1194 = vshrl.u32 %v1137, 16
        %v1196 = vrot.slane %v1194, 4
        %v1197 = vor.u32 %v1196, %v1192
        %v1198 = vrot.slane %v1197, 4
        %v1200 = vshll.u32 %v1138, 16
        %v1202 = vrot.slane %v1200, 5
        %v1203 = vsel %vm1169, %v1198, %v1202
        %v1204 = vshrl.u32 %v1138, 16
        %v1206 = vrot.slane %v1204, 4
        %v1207 = vor.u32 %v1206, %v1202
        %v1208 = vrot.slane %v1207, 4
        %v1210 = vshll.u32 %v1139, 16
        %v1212 = vrot.slane %v1210, 5
        %v1213 = vsel %vm1169, %v1208, %v1212
        %v1214 = vshrl.u32 %v1139, 16
        %v1216 = vrot.slane %v1214, 4
        %v1217 = vor.u32 %v1216, %v1212
        %v1218 = vrot.slane %v1217, 4
        %v1220 = vshll.u32 %v1140, 16
        %v1222 = vrot.slane %v1220, 5
        %v1223 = vsel %vm1169, %v1218, %v1222
        %v1224 = vshrl.u32 %v1140, 16
        %v1226 = vrot.slane %v1224, 4
        %v1227 = vor.u32 %v1226, %v1222
        %v1228 = vrot.slane %v1227, 4
        %v1230 = vshll.u32 %v1141, 16
        %v1232 = vrot.slane %v1230, 5
        %v1233 = vsel %vm1169, %v1228, %v1232
        %v1234 = vshrl.u32 %v1141, 16
        %v1236 = vrot.slane %v1234, 4
        %v1237 = vor.u32 %v1236, %v1232
        %v1238 = vrot.slane %v1237, 4
        %v1240 = vshll.u32 %v1142, 16
        %v1242 = vrot.slane %v1240, 5
        %v1243 = vsel %vm1169, %v1238, %v1242
        %v1244 = vshrl.u32 %v1142, 16
        %v1246 = vrot.slane %v1244, 4
        %v1247 = vor.u32 %v1246, %v1242
        %v1248 = vrot.slane %v1247, 4
        %v1250 = vshll.u32 %v1143, 16
        %v1252 = vrot.slane %v1250, 5
        %v1253 = vsel %vm1169, %v1248, %v1252
        %v1254 = vshrl.u32 %v1143, 16
        %v1256 = vrot.slane %v1254, 4
        %v1257 = vor.u32 %v1256, %v1252
        %v1258 = vrot.slane %v1257, 4
        %v1260 = vshll.u32 %v1144, 16
        %v1262 = vrot.slane %v1260, 5
        %v1263 = vsel %vm1169, %v1258, %v1262
        %v1264 = vshrl.u32 %v1144, 16
        %v1266 = vrot.slane %v1264, 4
        %v1267 = vor.u32 %v1266, %v1262
        %v1268 = vrot.slane %v1267, 4
        %v1270 = vshll.u32 %v1145, 16
        %v1272 = vrot.slane %v1270, 5
        %v1273 = vsel %vm1169, %v1268, %v1272
        %v1274 = vshrl.u32 %v1145, 16
        %v1276 = vrot.slane %v1274, 4
        %v1277 = vor.u32 %v1276, %v1272
        %v1278 = vrot.slane %v1277, 4
        %v1280 = vshll.u32 %v1146, 16
        %v1282 = vrot.slane %v1280, 5
        %v1283 = vsel %vm1169, %v1278, %v1282
        %v1284 = vshrl.u32 %v1146, 16
        %v1286 = vrot.slane %v1284, 4
        %v1287 = vor.u32 %v1286, %v1282
        %v1288 = vrot.slane %v1287, 4
        %v1290 = vshll.u32 %v1147, 16
        %v1292 = vrot.slane %v1290, 5
        %v1293 = vsel %vm1169, %v1288, %v1292
        %v1294 = vshrl.u32 %v1147, 16
        %v1296 = vrot.slane %v1294, 4
        %v1297 = vor.u32 %v1296, %v1292
        %v1298 = vrot.slane %v1297, 4
        %v1300 = vshll.u32 %v1148, 16
        %v1302 = vrot.slane %v1300, 5
        %v1303 = vsel %vm1169, %v1298, %v1302
        %v1304 = vshrl.u32 %v1148, 16
        %v1306 = vrot.slane %v1304, 4
        %v1307 = vor.u32 %v1306, %v1302
        %v1308 = vrot.slane %v1307, 4
        %v1310 = vshll.u32 %v1149, 16
        %v1312 = vrot.slane %v1310, 5
        %v1313 = vsel %vm1169, %v1308, %v1312
        %v1314 = vshrl.u32 %v1149, 16
        %v1316 = vrot.slane %v1314, 4
        %v1317 = vor.u32 %v1316, %v1312
        %v1318 = vrot.slane %v1317, 4
        %v1320 = vshll.u32 %v1150, 16
        %v1322 = vrot.slane %v1320, 5
        %v1323 = vsel %vm1169, %v1318, %v1322
        %v1324 = vshrl.u32 %v1150, 16
        %v1326 = vrot.slane %v1324, 4
        %v1327 = vor.u32 %v1326, %v1322
        %v1328 = vrot.slane %v1327, 4
        %v1330 = vshll.u32 %v1151, 16
        %v1332 = vrot.slane %v1330, 5
        %v1333 = vsel %vm1169, %v1328, %v1332
        %v1334 = vshrl.u32 %v1151, 16
        %v1336 = vrot.slane %v1334, 4
        %v1337 = vor.u32 %v1336, %v1332
        %v1338 = vrot.slane %v1337, 4
        %v1340 = vshll.u32 %v1152, 16
        %v1342 = vrot.slane %v1340, 5
        %v1343 = vsel %vm1169, %v1338, %v1342
        %v1344 = vshrl.u32 %v1152, 16
        %v1346 = vrot.slane %v1344, 4
        %v1347 = vor.u32 %v1346, %v1342
        %v1348 = vrot.slane %v1347, 4
        %v1350 = vshll.u32 %v1153, 16
        %v1352 = vrot.slane %v1350, 5
        %v1353 = vsel %vm1169, %v1348, %v1352
        %v1354 = vshrl.u32 %v1153, 16
        %v1356 = vrot.slane %v1354, 4
        %v1357 = vor.u32 %v1356, %v1352
        %v1358 = vrot.slane %v1357, 4
        %v1360 = vshll.u32 %v1154, 16
        %v1362 = vrot.slane %v1360, 5
        %v1363 = vsel %vm1169, %v1358, %v1362
        %v1364 = vshrl.u32 %v1154, 16
        %v1366 = vrot.slane %v1364, 4
        %v1367 = vor.u32 %v1366, %v1362
        %v1368 = vrot.slane %v1367, 4
        %v1370 = vshll.u32 %v1155, 16
        %v1372 = vrot.slane %v1370, 5
        %v1373 = vsel %vm1169, %v1368, %v1372
        %v1374 = vshrl.u32 %v1155, 16
        %v1376 = vrot.slane %v1374, 4
        %v1377 = vor.u32 %v1376, %v1372
        %v1378 = vrot.slane %v1377, 4
        %v1380 = vshll.u32 %v1156, 16
        %v1382 = vrot.slane %v1380, 5
        %v1383 = vsel %vm1169, %v1378, %v1382
        %v1384 = vshrl.u32 %v1156, 16
        %v1386 = vrot.slane %v1384, 4
        %v1387 = vor.u32 %v1386, %v1382
        %v1388 = vrot.slane %v1387, 4
        %v1390 = vshll.u32 %v1157, 16
        %v1392 = vrot.slane %v1390, 5
        %v1393 = vsel %vm1169, %v1388, %v1392
        %v1394 = vshrl.u32 %v1157, 16
        %v1396 = vrot.slane %v1394, 4
        %v1397 = vor.u32 %v1396, %v1392
        %v1398 = vrot.slane %v1397, 4
        %v1400 = vshll.u32 %v1158, 16
        %v1402 = vrot.slane %v1400, 5
        %v1403 = vsel %vm1169, %v1398, %v1402
        %v1404 = vshrl.u32 %v1158, 16
        %v1406 = vrot.slane %v1404, 4
        %v1407 = vor.u32 %v1406, %v1402
        %v1408 = vrot.slane %v1407, 4
        %v1410 = vshll.u32 %v1159, 16
        %v1412 = vrot.slane %v1410, 5
        %v1413 = vsel %vm1169, %v1408, %v1412
        %v1414 = vshrl.u32 %v1159, 16
        %v1416 = vrot.slane %v1414, 4
        %v1417 = vor.u32 %v1416, %v1412
        %v1418 = vrot.slane %v1417, 4
        %v1420 = vshll.u32 %v1160, 16
        %v1422 = vrot.slane %v1420, 5
        %v1423 = vsel %vm1169, %v1418, %v1422
        %v1424 = vshrl.u32 %v1160, 16
        %v1426 = vrot.slane %v1424, 4
        %v1427 = vor.u32 %v1426, %v1422
        %v1428 = vrot.slane %v1427, 4
        %v1430 = vshll.u32 %v1161, 16
        %v1432 = vrot.slane %v1430, 5
        %v1433 = vsel %vm1169, %v1428, %v1432
        %v1434 = vshrl.u32 %v1161, 16
        %v1436 = vrot.slane %v1434, 4
        %v1437 = vor.u32 %v1436, %v1432
        %v1438 = vrot.slane %v1437, 4
        %v1440 = vshll.u32 %v1162, 16
        %v1442 = vrot.slane %v1440, 5
        %v1443 = vsel %vm1169, %v1438, %v1442
        %v1444 = vshrl.u32 %v1162, 16
        %v1446 = vrot.slane %v1444, 4
        %v1447 = vor.u32 %v1446, %v1442
        %v1448 = vrot.slane %v1447, 4
        %v1450 = vshll.u32 %v1163, 16
        %v1452 = vrot.slane %v1450, 5
        %v1453 = vsel %vm1169, %v1448, %v1452
        %v1454 = vshrl.u32 %v1163, 16
        %v1456 = vrot.slane %v1454, 4
        %v1457 = vor.u32 %v1456, %v1452
        %v1458 = vrot.slane %v1457, 4
        %v1460 = vshll.u32 %v1164, 16
        %v1462 = vrot.slane %v1460, 5
        %v1463 = vsel %vm1169, %v1458, %v1462
        %v1464 = vshrl.u32 %v1164, 16
        %v1466 = vrot.slane %v1464, 4
        %v1467 = vor.u32 %v1466, %v1462
        %v1468 = vrot.slane %v1467, 4
        %v1470 = vshll.u32 %v1165, 16
        %v1472 = vrot.slane %v1470, 5
        %v1473 = vsel %vm1169, %v1468, %v1472
        %v1474 = vshrl.u32 %v1165, 16
        %v1476 = vrot.slane %v1474, 4
        %v1477 = vor.u32 %v1476, %v1472
        %v1478 = vrot.slane %v1477, 4
        %v1480 = vshll.u32 %v1166, 16
        %v1482 = vrot.slane %v1480, 5
        %v1483 = vsel %vm1169, %v1478, %v1482
        %v1484 = vshrl.u32 %v1166, 16
        %v1486 = vrot.slane %v1484, 4
        %v1487 = vor.u32 %v1486, %v1482
        %v1488 = vrot.slane %v1487, 4
        %vm1489 = vcmp.ne.s16.totalorder %v1173, 0
        %vm1490 = vcmp.ne.s16.totalorder %v1183, 0
        %vm1491 = vcmp.ne.s16.totalorder %v1193, 0
        %vm1492 = vcmp.ne.s16.totalorder %v1203, 0
        %vm1493 = vcmp.ne.s16.totalorder %v1213, 0
        %vm1494 = vcmp.ne.s16.totalorder %v1223, 0
        %vm1495 = vcmp.ne.s16.totalorder %v1233, 0
        %vm1496 = vcmp.ne.s16.totalorder %v1243, 0
        %vm1497 = vcmp.ne.s16.totalorder %v1253, 0
        %vm1498 = vcmp.ne.s16.totalorder %v1263, 0
        %vm1499 = vcmp.ne.s16.totalorder %v1273, 0
        %vm1500 = vcmp.ne.s16.totalorder %v1283, 0
        %vm1501 = vcmp.ne.s16.totalorder %v1293, 0
        %vm1502 = vcmp.ne.s16.totalorder %v1303, 0
        %vm1503 = vcmp.ne.s16.totalorder %v1313, 0
        %vm1504 = vcmp.ne.s16.totalorder %v1323, 0
        %vm1505 = vcmp.ne.s16.totalorder %v1333, 0
        %vm1506 = vcmp.ne.s16.totalorder %v1343, 0
        %vm1507 = vcmp.ne.s16.totalorder %v1353, 0
        %vm1508 = vcmp.ne.s16.totalorder %v1363, 0
        %vm1509 = vcmp.ne.s16.totalorder %v1373, 0
        %vm1510 = vcmp.ne.s16.totalorder %v1383, 0
        %vm1511 = vcmp.ne.s16.totalorder %v1393, 0
        %vm1512 = vcmp.ne.s16.totalorder %v1403, 0
        %vm1513 = vcmp.ne.s16.totalorder %v1413, 0
        %vm1514 = vcmp.ne.s16.totalorder %v1423, 0
        %vm1515 = vcmp.ne.s16.totalorder %v1433, 0
        %vm1516 = vcmp.ne.s16.totalorder %v1443, 0
        %vm1517 = vcmp.ne.s16.totalorder %v1453, 0
        %vm1518 = vcmp.ne.s16.totalorder %v1463, 0
        %vm1519 = vcmp.ne.s16.totalorder %v1473, 0
        %vm1520 = vcmp.ne.s16.totalorder %v1483, 0
        %vm1521 = vcmp.ne.s16.totalorder %v1488, 0
        %v1522 = vsel %vm1489, 0, %v1006
        %v1523 = vsel %vm1490, 0, %v1007
        %v1524 = vsel %vm1491, 0, %v1008
        %v1525 = vsel %vm1492, 0, %v1009
        %v1526 = vsel %vm1493, 0, %v1010
        %v1527 = vsel %vm1494, 0, %v1011
        %v1528 = vsel %vm1495, 0, %v1012
        %v1529 = vsel %vm1496, 0, %v1013
        %v1530 = vsel %vm1497, 0, %v1014
        %v1531 = vsel %vm1498, 0, %v1015
        %v1532 = vsel %vm1499, 0, %v1016
        %v1533 = vsel %vm1500, 0, %v1017
        %v1534 = vsel %vm1501, 0, %v1018
        %v1535 = vsel %vm1502, 0, %v1019
        %v1536 = vsel %vm1503, 0, %v1020
        %v1537 = vsel %vm1504, 0, %v1021
        %v1538 = vsel %vm1505, 0, %v1022
        %v1539 = vsel %vm1506, 0, %v1023
        %v1540 = vsel %vm1507, 0, %v1024
        %v1541 = vsel %vm1508, 0, %v1025
        %v1542 = vsel %vm1509, 0, %v1026
        %v1543 = vsel %vm1510, 0, %v1027
        %v1544 = vsel %vm1511, 0, %v1028
        %v1545 = vsel %vm1512, 0, %v1029
        %v1546 = vsel %vm1513, 0, %v1030
        %v1547 = vsel %vm1514, 0, %v1031
        %v1548 = vsel %vm1515, 0, %v1032
        %v1549 = vsel %vm1516, 0, %v1033
        %v1550 = vsel %vm1517, 0, %v1034
        %v1551 = vsel %vm1518, 0, %v1035
        %v1552 = vsel %vm1519, 0, %v1036
        %v1553 = vsel %vm1520, 0, %v1037
        %v1554 = vsel %vm1521, 0, %v1038
        %vm1555 = vsmask.f32 256
        %vm1556 = vsmask.f32 4368
        %vm1557 = vmor %vm1555, %vm1556
        %v1559 = vshrl.u32 %v1522, 16
        %v1561 = vrot.slane %v1559, 7
        %v1562 = vrot.slane %v1561, 4
        %v1564 = vshrl.u32 %v1523, 16
        %v1566 = vrot.slane %v1564, 7
        %v1567 = vshll.u32 %v1523, 16
        %v1569 = vor.u32 %v1566, %v1567
        %v1570 = vsel %vm1557, %v1562, %v1569
        %v1571 = vrot.slane %v1566, 4
        %v1573 = vshrl.u32 %v1524, 16
        %v1575 = vrot.slane %v1573, 7
        %v1576 = vshll.u32 %v1524, 16
        %v1578 = vor.u32 %v1575, %v1576
        %v1579 = vsel %vm1557, %v1571, %v1578
        %v1580 = vrot.slane %v1575, 4
        %v1582 = vshrl.u32 %v1525, 16
        %v1584 = vrot.slane %v1582, 7
        %v1585 = vshll.u32 %v1525, 16
        %v1587 = vor.u32 %v1584, %v1585
        %v1588 = vsel %vm1557, %v1580, %v1587
        %v1589 = vrot.slane %v1584, 4
        %v1591 = vshrl.u32 %v1526, 16
        %v1593 = vrot.slane %v1591, 7
        %v1594 = vshll.u32 %v1526, 16
        %v1596 = vor.u32 %v1593, %v1594
        %v1597 = vsel %vm1557, %v1589, %v1596
        %v1598 = vrot.slane %v1593, 4
        %v1600 = vshrl.u32 %v1527, 16
        %v1602 = vrot.slane %v1600, 7
        %v1603 = vshll.u32 %v1527, 16
        %v1605 = vor.u32 %v1602, %v1603
        %v1606 = vsel %vm1557, %v1598, %v1605
        %v1607 = vrot.slane %v1602, 4
        %v1609 = vshrl.u32 %v1528, 16
        %v1611 = vrot.slane %v1609, 7
        %v1612 = vshll.u32 %v1528, 16
        %v1614 = vor.u32 %v1611, %v1612
        %v1615 = vsel %vm1557, %v1607, %v1614
        %v1616 = vrot.slane %v1611, 4
        %v1618 = vshrl.u32 %v1529, 16
        %v1620 = vrot.slane %v1618, 7
        %v1621 = vshll.u32 %v1529, 16
        %v1623 = vor.u32 %v1620, %v1621
        %v1624 = vsel %vm1557, %v1616, %v1623
        %v1625 = vrot.slane %v1620, 4
        %v1627 = vshrl.u32 %v1530, 16
        %v1629 = vrot.slane %v1627, 7
        %v1630 = vshll.u32 %v1530, 16
        %v1632 = vor.u32 %v1629, %v1630
        %v1633 = vsel %vm1557, %v1625, %v1632
        %v1634 = vrot.slane %v1629, 4
        %v1636 = vshrl.u32 %v1531, 16
        %v1638 = vrot.slane %v1636, 7
        %v1639 = vshll.u32 %v1531, 16
        %v1641 = vor.u32 %v1638, %v1639
        %v1642 = vsel %vm1557, %v1634, %v1641
        %v1643 = vrot.slane %v1638, 4
        %v1645 = vshrl.u32 %v1532, 16
        %v1647 = vrot.slane %v1645, 7
        %v1648 = vshll.u32 %v1532, 16
        %v1650 = vor.u32 %v1647, %v1648
        %v1651 = vsel %vm1557, %v1643, %v1650
        %v1652 = vrot.slane %v1647, 4
        %v1654 = vshrl.u32 %v1533, 16
        %v1656 = vrot.slane %v1654, 7
        %v1657 = vshll.u32 %v1533, 16
        %v1659 = vor.u32 %v1656, %v1657
        %v1660 = vsel %vm1557, %v1652, %v1659
        %v1661 = vrot.slane %v1656, 4
        %v1663 = vshrl.u32 %v1534, 16
        %v1665 = vrot.slane %v1663, 7
        %v1666 = vshll.u32 %v1534, 16
        %v1668 = vor.u32 %v1665, %v1666
        %v1669 = vsel %vm1557, %v1661, %v1668
        %v1670 = vrot.slane %v1665, 4
        %v1672 = vshrl.u32 %v1535, 16
        %v1674 = vrot.slane %v1672, 7
        %v1675 = vshll.u32 %v1535, 16
        %v1677 = vor.u32 %v1674, %v1675
        %v1678 = vsel %vm1557, %v1670, %v1677
        %v1679 = vrot.slane %v1674, 4
        %v1681 = vshrl.u32 %v1536, 16
        %v1683 = vrot.slane %v1681, 7
        %v1684 = vshll.u32 %v1536, 16
        %v1686 = vor.u32 %v1683, %v1684
        %v1687 = vsel %vm1557, %v1679, %v1686
        %v1688 = vrot.slane %v1683, 4
        %v1690 = vshrl.u32 %v1537, 16
        %v1692 = vrot.slane %v1690, 7
        %v1693 = vshll.u32 %v1537, 16
        %v1695 = vor.u32 %v1692, %v1693
        %v1696 = vsel %vm1557, %v1688, %v1695
        %v1697 = vrot.slane %v1692, 4
        %v1699 = vshrl.u32 %v1538, 16
        %v1701 = vrot.slane %v1699, 7
        %v1702 = vshll.u32 %v1538, 16
        %v1704 = vor.u32 %v1701, %v1702
        %v1705 = vsel %vm1557, %v1697, %v1704
        %v1706 = vrot.slane %v1701, 4
        %v1708 = vshrl.u32 %v1539, 16
        %v1710 = vrot.slane %v1708, 7
        %v1711 = vshll.u32 %v1539, 16
        %v1713 = vor.u32 %v1710, %v1711
        %v1714 = vsel %vm1557, %v1706, %v1713
        %v1715 = vrot.slane %v1710, 4
        %v1717 = vshrl.u32 %v1540, 16
        %v1719 = vrot.slane %v1717, 7
        %v1720 = vshll.u32 %v1540, 16
        %v1722 = vor.u32 %v1719, %v1720
        %v1723 = vsel %vm1557, %v1715, %v1722
        %v1724 = vrot.slane %v1719, 4
        %v1726 = vshrl.u32 %v1541, 16
        %v1728 = vrot.slane %v1726, 7
        %v1729 = vshll.u32 %v1541, 16
        %v1731 = vor.u32 %v1728, %v1729
        %v1732 = vsel %vm1557, %v1724, %v1731
        %v1733 = vrot.slane %v1728, 4
        %v1735 = vshrl.u32 %v1542, 16
        %v1737 = vrot.slane %v1735, 7
        %v1738 = vshll.u32 %v1542, 16
        %v1740 = vor.u32 %v1737, %v1738
        %v1741 = vsel %vm1557, %v1733, %v1740
        %v1742 = vrot.slane %v1737, 4
        %v1744 = vshrl.u32 %v1543, 16
        %v1746 = vrot.slane %v1744, 7
        %v1747 = vshll.u32 %v1543, 16
        %v1749 = vor.u32 %v1746, %v1747
        %v1750 = vsel %vm1557, %v1742, %v1749
        %v1751 = vrot.slane %v1746, 4
        %v1753 = vshrl.u32 %v1544, 16
        %v1755 = vrot.slane %v1753, 7
        %v1756 = vshll.u32 %v1544, 16
        %v1758 = vor.u32 %v1755, %v1756
        %v1759 = vsel %vm1557, %v1751, %v1758
        %v1760 = vrot.slane %v1755, 4
        %v1762 = vshrl.u32 %v1545, 16
        %v1764 = vrot.slane %v1762, 7
        %v1765 = vshll.u32 %v1545, 16
        %v1767 = vor.u32 %v1764, %v1765
        %v1768 = vsel %vm1557, %v1760, %v1767
        %v1769 = vrot.slane %v1764, 4
        %v1771 = vshrl.u32 %v1546, 16
        %v1773 = vrot.slane %v1771, 7
        %v1774 = vshll.u32 %v1546, 16
        %v1776 = vor.u32 %v1773, %v1774
        %v1777 = vsel %vm1557, %v1769, %v1776
        %v1778 = vrot.slane %v1773, 4
        %v1780 = vshrl.u32 %v1547, 16
        %v1782 = vrot.slane %v1780, 7
        %v1783 = vshll.u32 %v1547, 16
        %v1785 = vor.u32 %v1782, %v1783
        %v1786 = vsel %vm1557, %v1778, %v1785
        %v1787 = vrot.slane %v1782, 4
        %v1789 = vshrl.u32 %v1548, 16
        %v1791 = vrot.slane %v1789, 7
        %v1792 = vshll.u32 %v1548, 16
        %v1794 = vor.u32 %v1791, %v1792
        %v1795 = vsel %vm1557, %v1787, %v1794
        %v1796 = vrot.slane %v1791, 4
        %v1798 = vshrl.u32 %v1549, 16
        %v1800 = vrot.slane %v1798, 7
        %v1801 = vshll.u32 %v1549, 16
        %v1803 = vor.u32 %v1800, %v1801
        %v1804 = vsel %vm1557, %v1796, %v1803
        %v1805 = vrot.slane %v1800, 4
        %v1807 = vshrl.u32 %v1550, 16
        %v1809 = vrot.slane %v1807, 7
        %v1810 = vshll.u32 %v1550, 16
        %v1812 = vor.u32 %v1809, %v1810
        %v1813 = vsel %vm1557, %v1805, %v1812
        %v1814 = vrot.slane %v1809, 4
        %v1816 = vshrl.u32 %v1551, 16
        %v1818 = vrot.slane %v1816, 7
        %v1819 = vshll.u32 %v1551, 16
        %v1821 = vor.u32 %v1818, %v1819
        %v1822 = vsel %vm1557, %v1814, %v1821
        %v1823 = vrot.slane %v1818, 4
        %v1825 = vshrl.u32 %v1552, 16
        %v1827 = vrot.slane %v1825, 7
        %v1828 = vshll.u32 %v1552, 16
        %v1830 = vor.u32 %v1827, %v1828
        %v1831 = vsel %vm1557, %v1823, %v1830
        %v1832 = vrot.slane %v1827, 4
        %v1834 = vshrl.u32 %v1553, 16
        %v1836 = vrot.slane %v1834, 7
        %v1837 = vshll.u32 %v1553, 16
        %v1839 = vor.u32 %v1836, %v1837
        %v1840 = vsel %vm1557, %v1832, %v1839
        %v1841 = vrot.slane %v1836, 4
        %v1843 = vshrl.u32 %v1554, 16
        %v1845 = vrot.slane %v1843, 7
        %v1846 = vshll.u32 %v1554, 16
        %v1848 = vor.u32 %v1845, %v1846
        %v1849 = vsel %vm1557, %v1841, %v1848
        %1882 = vst [vmem:[#allocation4] sm:$0xf] %v1570
        %1883 = vst [vmem:[#allocation4 + $0x24] sm:$0xf] %v1579
        %1884 = vst [vmem:[#allocation4 + $0x48] sm:$0xf] %v1588
        %1885 = vst [vmem:[#allocation4 + $0x6c] sm:$0xf] %v1597
        %1886 = vst [vmem:[#allocation4 + $0x90] sm:$0xf] %v1606
        %1887 = vst [vmem:[#allocation4 + $0xb4] sm:$0xf] %v1615
        %1888 = vst [vmem:[#allocation4 + $0xd8] sm:$0xf] %v1624
        %1889 = vst [vmem:[#allocation4 + $0xfc] sm:$0xf] %v1633
        %1890 = vst [vmem:[#allocation4 + $0x120] sm:$0xf] %v1642
        %1891 = vst [vmem:[#allocation4 + $0x144] sm:$0xf] %v1651
        %1892 = vst [vmem:[#allocation4 + $0x168] sm:$0xf] %v1660
        %1893 = vst [vmem:[#allocation4 + $0x18c] sm:$0xf] %v1669
        %1894 = vst [vmem:[#allocation4 + $0x1b0] sm:$0xf] %v1678
        %1895 = vst [vmem:[#allocation4 + $0x1d4] sm:$0xf] %v1687
        %1896 = vst [vmem:[#allocation4 + $0x1f8] sm:$0xf] %v1696
        %1897 = vst [vmem:[#allocation4 + $0x21c] sm:$0xf] %v1705
        %1898 = vst [vmem:[#allocation4 + $0x240] sm:$0xf] %v1714
        %1899 = vst [vmem:[#allocation4 + $0x264] sm:$0xf] %v1723
        %1900 = vst [vmem:[#allocation4 + $0x288] sm:$0xf] %v1732
        %1901 = vst [vmem:[#allocation4 + $0x2ac] sm:$0xf] %v1741
        %1902 = vst [vmem:[#allocation4 + $0x2d0] sm:$0xf] %v1750
        %1903 = vst [vmem:[#allocation4 + $0x2f4] sm:$0xf] %v1759
        %1904 = vst [vmem:[#allocation4 + $0x318] sm:$0xf] %v1768
        %1905 = vst [vmem:[#allocation4 + $0x33c] sm:$0xf] %v1777
        %1906 = vst [vmem:[#allocation4 + $0x360] sm:$0xf] %v1786
        %1907 = vst [vmem:[#allocation4 + $0x384] sm:$0xf] %v1795
        %1908 = vst [vmem:[#allocation4 + $0x3a8] sm:$0xf] %v1804
        %1909 = vst [vmem:[#allocation4 + $0x3cc] sm:$0xf] %v1813
        %1910 = vst [vmem:[#allocation4 + $0x3f0] sm:$0xf] %v1822
        %1911 = vst [vmem:[#allocation4 + $0x414] sm:$0xf] %v1831
        %1912 = vst [vmem:[#allocation4 + $0x438] sm:$0xf] %v1840
        %1913 = vst [vmem:[#allocation4 + $0x45c] sm:$0xf] %v1849
        %v1914 = vld [vmem:[#allocation2 + $0x8] sm:$0xf]
        %v1915 = vld [vmem:[#allocation2 + $0xc] sm:$0xf]
        %v1916 = vld [vmem:[#allocation2 + $0x10] sm:$0xf]
        %v1917 = vld [vmem:[#allocation2 + $0x14] sm:$0xf]
        %v1918 = vld [vmem:[#allocation2 + $0x18] sm:$0xf]
        %v1919 = vld [vmem:[#allocation2 + $0x1c] sm:$0xf]
        %v1920 = vld [vmem:[#allocation2 + $0x20] sm:$0xf]
        %v1921 = vld [vmem:[#allocation2 + $0x24] sm:$0xf]
        %v1922 = vld [vmem:[#allocation2 + $0x28] sm:$0xf]
        %v1923 = vld [vmem:[#allocation2 + $0x2c] sm:$0xf]
        %v1924 = vld [vmem:[#allocation2 + $0x30] sm:$0xf]
        %v1925 = vld [vmem:[#allocation2 + $0x34] sm:$0xf]
        %v1926 = vld [vmem:[#allocation2 + $0x38] sm:$0xf]
        %v1927 = vld [vmem:[#allocation2 + $0x3c] sm:$0xf]
        %v1928 = vld [vmem:[#allocation2 + $0x40] sm:$0xf]
        %v1929 = vld [vmem:[#allocation2 + $0x44] sm:$0xf]
        %v1930 = vld [vmem:[#allocation2 + $0x48] sm:$0xf]
        %v1931 = vld [vmem:[#allocation2 + $0x4c] sm:$0xf]
        %v1932 = vld [vmem:[#allocation2 + $0x50] sm:$0xf]
        %v1933 = vld [vmem:[#allocation2 + $0x54] sm:$0xf]
        %v1934 = vld [vmem:[#allocation2 + $0x58] sm:$0xf]
        %v1935 = vld [vmem:[#allocation2 + $0x5c] sm:$0xf]
        %v1936 = vld [vmem:[#allocation2 + $0x60] sm:$0xf]
        %v1937 = vld [vmem:[#allocation2 + $0x64] sm:$0xf]
        %v1938 = vld [vmem:[#allocation2 + $0x68] sm:$0xf]
        %v1939 = vld [vmem:[#allocation2 + $0x6c] sm:$0xf]
        %v1940 = vld [vmem:[#allocation2 + $0x70] sm:$0xf]
        %v1941 = vld [vmem:[#allocation2 + $0x74] sm:$0xf]
        %v1942 = vld [vmem:[#allocation2 + $0x78] sm:$0xf]
        %v1943 = vld [vmem:[#allocation2 + $0x7c] sm:$0xf]
        %v1944 = vld [vmem:[#allocation2 + $0x80] sm:$0xf]
        %v1945 = vld [vmem:[#allocation2 + $0x84] sm:$0xf]
        %1946 = vst [vmem:[#allocation4 + $0x4] sm:$0xf] %v1914
        %1947 = vst [vmem:[#allocation4 + $0x28] sm:$0xf] %v1915
        %1948 = vst [vmem:[#allocation4 + $0x4c] sm:$0xf] %v1916
        %1949 = vst [vmem:[#allocation4 + $0x70] sm:$0xf] %v1917
        %1950 = vst [vmem:[#allocation4 + $0x94] sm:$0xf] %v1918
        %1951 = vst [vmem:[#allocation4 + $0xb8] sm:$0xf] %v1919
        %1952 = vst [vmem:[#allocation4 + $0xdc] sm:$0xf] %v1920
        %1953 = vst [vmem:[#allocation4 + $0x100] sm:$0xf] %v1921
        %1954 = vst [vmem:[#allocation4 + $0x124] sm:$0xf] %v1922
        %1955 = vst [vmem:[#allocation4 + $0x148] sm:$0xf] %v1923
        %1956 = vst [vmem:[#allocation4 + $0x16c] sm:$0xf] %v1924
        %1957 = vst [vmem:[#allocation4 + $0x190] sm:$0xf] %v1925
        %1958 = vst [vmem:[#allocation4 + $0x1b4] sm:$0xf] %v1926
        %1959 = vst [vmem:[#allocation4 + $0x1d8] sm:$0xf] %v1927
        %1960 = vst [vmem:[#allocation4 + $0x1fc] sm:$0xf] %v1928
        %1961 = vst [vmem:[#allocation4 + $0x220] sm:$0xf] %v1929
        %1962 = vst [vmem:[#allocation4 + $0x244] sm:$0xf] %v1930
        %1963 = vst [vmem:[#allocation4 + $0x268] sm:$0xf] %v1931
        %1964 = vst [vmem:[#allocation4 + $0x28c] sm:$0xf] %v1932
        %1965 = vst [vmem:[#allocation4 + $0x2b0] sm:$0xf] %v1933
        %1966 = vst [vmem:[#allocation4 + $0x2d4] sm:$0xf] %v1934
        %1967 = vst [vmem:[#allocation4 + $0x2f8] sm:$0xf] %v1935
        %1968 = vst [vmem:[#allocation4 + $0x31c] sm:$0xf] %v1936
        %1969 = vst [vmem:[#allocation4 + $0x340] sm:$0xf] %v1937
        %1970 = vst [vmem:[#allocation4 + $0x364] sm:$0xf] %v1938
        %1971 = vst [vmem:[#allocation4 + $0x388] sm:$0xf] %v1939
        %1972 = vst [vmem:[#allocation4 + $0x3ac] sm:$0xf] %v1940
        %1973 = vst [vmem:[#allocation4 + $0x3d0] sm:$0xf] %v1941
        %1974 = vst [vmem:[#allocation4 + $0x3f4] sm:$0xf] %v1942
        %1975 = vst [vmem:[#allocation4 + $0x418] sm:$0xf] %v1943
        %1976 = vst [vmem:[#allocation4 + $0x43c] sm:$0xf] %v1944
        %1977 = vst [vmem:[#allocation4 + $0x460] sm:$0xf] %v1945
        %v1978 = vld [vmem:[#allocation2 + $0x8] sm:$0xf]
        %v1979 = vld [vmem:[#allocation2 + $0xc] sm:$0xf]
        %v1980 = vld [vmem:[#allocation2 + $0x10] sm:$0xf]
        %v1981 = vld [vmem:[#allocation2 + $0x14] sm:$0xf]
        %v1982 = vld [vmem:[#allocation2 + $0x18] sm:$0xf]
        %v1983 = vld [vmem:[#allocation2 + $0x1c] sm:$0xf]
        %v1984 = vld [vmem:[#allocation2 + $0x20] sm:$0xf]
        %v1985 = vld [vmem:[#allocation2 + $0x24] sm:$0xf]
        %v1986 = vld [vmem:[#allocation2 + $0x28] sm:$0xf]
        %v1987 = vld [vmem:[#allocation2 + $0x2c] sm:$0xf]
        %v1988 = vld [vmem:[#allocation2 + $0x30] sm:$0xf]
        %v1989 = vld [vmem:[#allocation2 + $0x34] sm:$0xf]
        %v1990 = vld [vmem:[#allocation2 + $0x38] sm:$0xf]
        %v1991 = vld [vmem:[#allocation2 + $0x3c] sm:$0xf]
        %v1992 = vld [vmem:[#allocation2 + $0x40] sm:$0xf]
        %v1993 = vld [vmem:[#allocation2 + $0x44] sm:$0xf]
        %v1994 = vld [vmem:[#allocation2 + $0x48] sm:$0xf]
        %v1995 = vld [vmem:[#allocation2 + $0x4c] sm:$0xf]
        %v1996 = vld [vmem:[#allocation2 + $0x50] sm:$0xf]
        %v1997 = vld [vmem:[#allocation2 + $0x54] sm:$0xf]
        %v1998 = vld [vmem:[#allocation2 + $0x58] sm:$0xf]
        %v1999 = vld [vmem:[#allocation2 + $0x5c] sm:$0xf]
        %v2000 = vld [vmem:[#allocation2 + $0x60] sm:$0xf]
        %v2001 = vld [vmem:[#allocation2 + $0x64] sm:$0xf]
        %v2002 = vld [vmem:[#allocation2 + $0x68] sm:$0xf]
        %v2003 = vld [vmem:[#allocation2 + $0x6c] sm:$0xf]
        %v2004 = vld [vmem:[#allocation2 + $0x70] sm:$0xf]
        %v2005 = vld [vmem:[#allocation2 + $0x74] sm:$0xf]
        %v2006 = vld [vmem:[#allocation2 + $0x78] sm:$0xf]
        %v2007 = vld [vmem:[#allocation2 + $0x7c] sm:$0xf]
        %v2008 = vld [vmem:[#allocation2 + $0x80] sm:$0xf]
        %v2009 = vld [vmem:[#allocation2 + $0x84] sm:$0xf]
        %v2010 = vld [vmem:[#allocation2 + $0x88] sm:$0x1]
        %v2011 = vsel %vm778, 1, 0
        %v2012 = vsel %vm779, 1, 0
        %v2013 = vsel %vm780, 1, 0
        %v2014 = vsel %vm781, 1, 0
        %v2015 = vsel %vm782, 1, 0
        %v2016 = vsel %vm783, 1, 0
        %v2017 = vsel %vm784, 1, 0
        %v2018 = vsel %vm785, 1, 0
        %v2019 = vsel %vm786, 1, 0
        %v2020 = vsel %vm787, 1, 0
        %v2021 = vsel %vm788, 1, 0
        %v2022 = vsel %vm789, 1, 0
        %v2023 = vsel %vm790, 1, 0
        %v2024 = vsel %vm791, 1, 0
        %v2025 = vsel %vm792, 1, 0
        %v2026 = vsel %vm793, 1, 0
        %v2027 = vsel %vm794, 1, 0
        %v2028 = vsel %vm795, 1, 0
        %v2029 = vsel %vm796, 1, 0
        %v2030 = vsel %vm797, 1, 0
        %v2031 = vsel %vm798, 1, 0
        %v2032 = vsel %vm799, 1, 0
        %v2033 = vsel %vm800, 1, 0
        %v2034 = vsel %vm801, 1, 0
        %v2035 = vsel %vm802, 1, 0
        %v2036 = vsel %vm803, 1, 0
        %v2037 = vsel %vm804, 1, 0
        %v2038 = vsel %vm805, 1, 0
        %v2039 = vsel %vm806, 1, 0
        %v2040 = vsel %vm807, 1, 0
        %v2041 = vsel %vm808, 1, 0
        %v2042 = vsel %vm809, 1, 0
        %vm2043 = vcmp.eq.s32.totalorder %v2011, 1
        %vm2044 = vcmp.eq.s32.totalorder %v2012, 1
        %vm2045 = vcmp.eq.s32.totalorder %v2013, 1
        %vm2046 = vcmp.eq.s32.totalorder %v2014, 1
        %vm2047 = vcmp.eq.s32.totalorder %v2015, 1
        %vm2048 = vcmp.eq.s32.totalorder %v2016, 1
        %vm2049 = vcmp.eq.s32.totalorder %v2017, 1
        %vm2050 = vcmp.eq.s32.totalorder %v2018, 1
        %vm2051 = vcmp.eq.s32.totalorder %v2019, 1
        %vm2052 = vcmp.eq.s32.totalorder %v2020, 1
        %vm2053 = vcmp.eq.s32.totalorder %v2021, 1
        %vm2054 = vcmp.eq.s32.totalorder %v2022, 1
        %vm2055 = vcmp.eq.s32.totalorder %v2023, 1
        %vm2056 = vcmp.eq.s32.totalorder %v2024, 1
        %vm2057 = vcmp.eq.s32.totalorder %v2025, 1
        %vm2058 = vcmp.eq.s32.totalorder %v2026, 1
        %vm2059 = vcmp.eq.s32.totalorder %v2027, 1
        %vm2060 = vcmp.eq.s32.totalorder %v2028, 1
        %vm2061 = vcmp.eq.s32.totalorder %v2029, 1
        %vm2062 = vcmp.eq.s32.totalorder %v2030, 1
        %vm2063 = vcmp.eq.s32.totalorder %v2031, 1
        %vm2064 = vcmp.eq.s32.totalorder %v2032, 1
        %vm2065 = vcmp.eq.s32.totalorder %v2033, 1
        %vm2066 = vcmp.eq.s32.totalorder %v2034, 1
        %vm2067 = vcmp.eq.s32.totalorder %v2035, 1
        %vm2068 = vcmp.eq.s32.totalorder %v2036, 1
        %vm2069 = vcmp.eq.s32.totalorder %v2037, 1
        %vm2070 = vcmp.eq.s32.totalorder %v2038, 1
        %vm2071 = vcmp.eq.s32.totalorder %v2039, 1
        %vm2072 = vcmp.eq.s32.totalorder %v2040, 1
        %vm2073 = vcmp.eq.s32.totalorder %v2041, 1
        %vm2074 = vcmp.eq.s32.totalorder %v2042, 1
        %vm2075 = vmpackc.low %vm2043, %vm2043
        %vm2076 = vmpackc.low %vm2044, %vm2044
        %vm2077 = vmpackc.low %vm2045, %vm2045
        %vm2078 = vmpackc.low %vm2046, %vm2046
        %vm2079 = vmpackc.low %vm2047, %vm2047
        %vm2080 = vmpackc.low %vm2048, %vm2048
        %vm2081 = vmpackc.low %vm2049, %vm2049
        %vm2082 = vmpackc.low %vm2050, %vm2050
        %vm2083 = vmpackc.low %vm2051, %vm2051
        %vm2084 = vmpackc.low %vm2052, %vm2052
        %vm2085 = vmpackc.low %vm2053, %vm2053
        %vm2086 = vmpackc.low %vm2054, %vm2054
        %vm2087 = vmpackc.low %vm2055, %vm2055
        %vm2088 = vmpackc.low %vm2056, %vm2056
        %vm2089 = vmpackc.low %vm2057, %vm2057
        %vm2090 = vmpackc.low %vm2058, %vm2058
        %vm2091 = vmpackc.low %vm2059, %vm2059
        %vm2092 = vmpackc.low %vm2060, %vm2060
        %vm2093 = vmpackc.low %vm2061, %vm2061
        %vm2094 = vmpackc.low %vm2062, %vm2062
        %vm2095 = vmpackc.low %vm2063, %vm2063
        %vm2096 = vmpackc.low %vm2064, %vm2064
        %vm2097 = vmpackc.low %vm2065, %vm2065
        %vm2098 = vmpackc.low %vm2066, %vm2066
        %vm2099 = vmpackc.low %vm2067, %vm2067
        %vm2100 = vmpackc.low %vm2068, %vm2068
        %vm2101 = vmpackc.low %vm2069, %vm2069
        %vm2102 = vmpackc.low %vm2070, %vm2070
        %vm2103 = vmpackc.low %vm2071, %vm2071
        %vm2104 = vmpackc.low %vm2072, %vm2072
        %vm2105 = vmpackc.low %vm2073, %vm2073
        %vm2106 = vmpackc.low %vm2074, %vm2074
        %v2107 = vsel %vm2075, 65537, 0
        %v2108 = vsel %vm2076, 65537, 0
        %v2109 = vsel %vm2077, 65537, 0
        %v2110 = vsel %vm2078, 65537, 0
        %v2111 = vsel %vm2079, 65537, 0
        %v2112 = vsel %vm2080, 65537, 0
        %v2113 = vsel %vm2081, 65537, 0
        %v2114 = vsel %vm2082, 65537, 0
        %v2115 = vsel %vm2083, 65537, 0
        %v2116 = vsel %vm2084, 65537, 0
        %v2117 = vsel %vm2085, 65537, 0
        %v2118 = vsel %vm2086, 65537, 0
        %v2119 = vsel %vm2087, 65537, 0
        %v2120 = vsel %vm2088, 65537, 0
        %v2121 = vsel %vm2089, 65537, 0
        %v2122 = vsel %vm2090, 65537, 0
        %v2123 = vsel %vm2091, 65537, 0
        %v2124 = vsel %vm2092, 65537, 0
        %v2125 = vsel %vm2093, 65537, 0
        %v2126 = vsel %vm2094, 65537, 0
        %v2127 = vsel %vm2095, 65537, 0
        %v2128 = vsel %vm2096, 65537, 0
        %v2129 = vsel %vm2097, 65537, 0
        %v2130 = vsel %vm2098, 65537, 0
        %v2131 = vsel %vm2099, 65537, 0
        %v2132 = vsel %vm2100, 65537, 0
        %v2133 = vsel %vm2101, 65537, 0
        %v2134 = vsel %vm2102, 65537, 0
        %v2135 = vsel %vm2103, 65537, 0
        %v2136 = vsel %vm2104, 65537, 0
        %v2137 = vsel %vm2105, 65537, 0
        %v2138 = vsel %vm2106, 65537, 0
        %v2140 = vshrl.u32 %v2107, 16
        %v2142 = vrot.slane %v2140, 7
        %v2143 = vshll.u32 %v2107, 16
        %v2145 = vor.u32 %v2142, %v2143
        %v2146 = vrot.slane %v2142, 4
        %v2148 = vshrl.u32 %v2108, 16
        %v2150 = vrot.slane %v2148, 7
        %v2151 = vshll.u32 %v2108, 16
        %v2153 = vor.u32 %v2150, %v2151
        %v2154 = vsel %vm1557, %v2146, %v2153
        %v2155 = vrot.slane %v2150, 4
        %v2157 = vshrl.u32 %v2109, 16
        %v2159 = vrot.slane %v2157, 7
        %v2160 = vshll.u32 %v2109, 16
        %v2162 = vor.u32 %v2159, %v2160
        %v2163 = vsel %vm1557, %v2155, %v2162
        %v2164 = vrot.slane %v2159, 4
        %v2166 = vshrl.u32 %v2110, 16
        %v2168 = vrot.slane %v2166, 7
        %v2169 = vshll.u32 %v2110, 16
        %v2171 = vor.u32 %v2168, %v2169
        %v2172 = vsel %vm1557, %v2164, %v2171
        %v2173 = vrot.slane %v2168, 4
        %v2175 = vshrl.u32 %v2111, 16
        %v2177 = vrot.slane %v2175, 7
        %v2178 = vshll.u32 %v2111, 16
        %v2180 = vor.u32 %v2177, %v2178
        %v2181 = vsel %vm1557, %v2173, %v2180
        %v2182 = vrot.slane %v2177, 4
        %v2184 = vshrl.u32 %v2112, 16
        %v2186 = vrot.slane %v2184, 7
        %v2187 = vshll.u32 %v2112, 16
        %v2189 = vor.u32 %v2186, %v2187
        %v2190 = vsel %vm1557, %v2182, %v2189
        %v2191 = vrot.slane %v2186, 4
        %v2193 = vshrl.u32 %v2113, 16
        %v2195 = vrot.slane %v2193, 7
        %v2196 = vshll.u32 %v2113, 16
        %v2198 = vor.u32 %v2195, %v2196
        %v2199 = vsel %vm1557, %v2191, %v2198
        %v2200 = vrot.slane %v2195, 4
        %v2202 = vshrl.u32 %v2114, 16
        %v2204 = vrot.slane %v2202, 7
        %v2205 = vshll.u32 %v2114, 16
        %v2207 = vor.u32 %v2204, %v2205
        %v2208 = vsel %vm1557, %v2200, %v2207
        %v2209 = vrot.slane %v2204, 4
        %v2211 = vshrl.u32 %v2115, 16
        %v2213 = vrot.slane %v2211, 7
        %v2214 = vshll.u32 %v2115, 16
        %v2216 = vor.u32 %v2213, %v2214
        %v2217 = vsel %vm1557, %v2209, %v2216
        %v2218 = vrot.slane %v2213, 4
        %v2220 = vshrl.u32 %v2116, 16
        %v2222 = vrot.slane %v2220, 7
        %v2223 = vshll.u32 %v2116, 16
        %v2225 = vor.u32 %v2222, %v2223
        %v2226 = vsel %vm1557, %v2218, %v2225
        %v2227 = vrot.slane %v2222, 4
        %v2229 = vshrl.u32 %v2117, 16
        %v2231 = vrot.slane %v2229, 7
        %v2232 = vshll.u32 %v2117, 16
        %v2234 = vor.u32 %v2231, %v2232
        %v2235 = vsel %vm1557, %v2227, %v2234
        %v2236 = vrot.slane %v2231, 4
        %v2238 = vshrl.u32 %v2118, 16
        %v2240 = vrot.slane %v2238, 7
        %v2241 = vshll.u32 %v2118, 16
        %v2243 = vor.u32 %v2240, %v2241
        %v2244 = vsel %vm1557, %v2236, %v2243
        %v2245 = vrot.slane %v2240, 4
        %v2247 = vshrl.u32 %v2119, 16
        %v2249 = vrot.slane %v2247, 7
        %v2250 = vshll.u32 %v2119, 16
        %v2252 = vor.u32 %v2249, %v2250
        %v2253 = vsel %vm1557, %v2245, %v2252
        %v2254 = vrot.slane %v2249, 4
        %v2256 = vshrl.u32 %v2120, 16
        %v2258 = vrot.slane %v2256, 7
        %v2259 = vshll.u32 %v2120, 16
        %v2261 = vor.u32 %v2258, %v2259
        %v2262 = vsel %vm1557, %v2254, %v2261
        %v2263 = vrot.slane %v2258, 4
        %v2265 = vshrl.u32 %v2121, 16
        %v2267 = vrot.slane %v2265, 7
        %v2268 = vshll.u32 %v2121, 16
        %v2270 = vor.u32 %v2267, %v2268
        %v2271 = vsel %vm1557, %v2263, %v2270
        %v2272 = vrot.slane %v2267, 4
        %v2274 = vshrl.u32 %v2122, 16
        %v2276 = vrot.slane %v2274, 7
        %v2277 = vshll.u32 %v2122, 16
        %v2279 = vor.u32 %v2276, %v2277
        %v2280 = vsel %vm1557, %v2272, %v2279
        %v2281 = vrot.slane %v2276, 4
        %v2283 = vshrl.u32 %v2123, 16
        %v2285 = vrot.slane %v2283, 7
        %v2286 = vshll.u32 %v2123, 16
        %v2288 = vor.u32 %v2285, %v2286
        %v2289 = vsel %vm1557, %v2281, %v2288
        %v2290 = vrot.slane %v2285, 4
        %v2292 = vshrl.u32 %v2124, 16
        %v2294 = vrot.slane %v2292, 7
        %v2295 = vshll.u32 %v2124, 16
        %v2297 = vor.u32 %v2294, %v2295
        %v2298 = vsel %vm1557, %v2290, %v2297
        %v2299 = vrot.slane %v2294, 4
        %v2301 = vshrl.u32 %v2125, 16
        %v2303 = vrot.slane %v2301, 7
        %v2304 = vshll.u32 %v2125, 16
        %v2306 = vor.u32 %v2303, %v2304
        %v2307 = vsel %vm1557, %v2299, %v2306
        %v2308 = vrot.slane %v2303, 4
        %v2310 = vshrl.u32 %v2126, 16
        %v2312 = vrot.slane %v2310, 7
        %v2313 = vshll.u32 %v2126, 16
        %v2315 = vor.u32 %v2312, %v2313
        %v2316 = vsel %vm1557, %v2308, %v2315
        %v2317 = vrot.slane %v2312, 4
        %v2319 = vshrl.u32 %v2127, 16
        %v2321 = vrot.slane %v2319, 7
        %v2322 = vshll.u32 %v2127, 16
        %v2324 = vor.u32 %v2321, %v2322
        %v2325 = vsel %vm1557, %v2317, %v2324
        %v2326 = vrot.slane %v2321, 4
        %v2328 = vshrl.u32 %v2128, 16
        %v2330 = vrot.slane %v2328, 7
        %v2331 = vshll.u32 %v2128, 16
        %v2333 = vor.u32 %v2330, %v2331
        %v2334 = vsel %vm1557, %v2326, %v2333
        %v2335 = vrot.slane %v2330, 4
        %v2337 = vshrl.u32 %v2129, 16
        %v2339 = vrot.slane %v2337, 7
        %v2340 = vshll.u32 %v2129, 16
        %v2342 = vor.u32 %v2339, %v2340
        %v2343 = vsel %vm1557, %v2335, %v2342
        %v2344 = vrot.slane %v2339, 4
        %v2346 = vshrl.u32 %v2130, 16
        %v2348 = vrot.slane %v2346, 7
        %v2349 = vshll.u32 %v2130, 16
        %v2351 = vor.u32 %v2348, %v2349
        %v2352 = vsel %vm1557, %v2344, %v2351
        %v2353 = vrot.slane %v2348, 4
        %v2355 = vshrl.u32 %v2131, 16
        %v2357 = vrot.slane %v2355, 7
        %v2358 = vshll.u32 %v2131, 16
        %v2360 = vor.u32 %v2357, %v2358
        %v2361 = vsel %vm1557, %v2353, %v2360
        %v2362 = vrot.slane %v2357, 4
        %v2364 = vshrl.u32 %v2132, 16
        %v2366 = vrot.slane %v2364, 7
        %v2367 = vshll.u32 %v2132, 16
        %v2369 = vor.u32 %v2366, %v2367
        %v2370 = vsel %vm1557, %v2362, %v2369
        %v2371 = vrot.slane %v2366, 4
        %v2373 = vshrl.u32 %v2133, 16
        %v2375 = vrot.slane %v2373, 7
        %v2376 = vshll.u32 %v2133, 16
        %v2378 = vor.u32 %v2375, %v2376
        %v2379 = vsel %vm1557, %v2371, %v2378
        %v2380 = vrot.slane %v2375, 4
        %v2382 = vshrl.u32 %v2134, 16
        %v2384 = vrot.slane %v2382, 7
        %v2385 = vshll.u32 %v2134, 16
        %v2387 = vor.u32 %v2384, %v2385
        %v2388 = vsel %vm1557, %v2380, %v2387
        %v2389 = vrot.slane %v2384, 4
        %v2391 = vshrl.u32 %v2135, 16
        %v2393 = vrot.slane %v2391, 7
        %v2394 = vshll.u32 %v2135, 16
        %v2396 = vor.u32 %v2393, %v2394
        %v2397 = vsel %vm1557, %v2389, %v2396
        %v2398 = vrot.slane %v2393, 4
        %v2400 = vshrl.u32 %v2136, 16
        %v2402 = vrot.slane %v2400, 7
        %v2403 = vshll.u32 %v2136, 16
        %v2405 = vor.u32 %v2402, %v2403
        %v2406 = vsel %vm1557, %v2398, %v2405
        %v2407 = vrot.slane %v2402, 4
        %v2409 = vshrl.u32 %v2137, 16
        %v2411 = vrot.slane %v2409, 7
        %v2412 = vshll.u32 %v2137, 16
        %v2414 = vor.u32 %v2411, %v2412
        %v2415 = vsel %vm1557, %v2407, %v2414
        %v2416 = vrot.slane %v2411, 4
        %v2418 = vshrl.u32 %v2138, 16
        %v2420 = vrot.slane %v2418, 7
        %v2421 = vshll.u32 %v2138, 16
        %v2423 = vor.u32 %v2420, %v2421
        %v2424 = vsel %vm1557, %v2416, %v2423
        %v2425 = vrot.slane %v2420, 4
        %vm2426 = vcmp.ne.s16.totalorder %v2145, 0
        %vm2427 = vcmp.ne.s16.totalorder %v2154, 0
        %vm2428 = vcmp.ne.s16.totalorder %v2163, 0
        %vm2429 = vcmp.ne.s16.totalorder %v2172, 0
        %vm2430 = vcmp.ne.s16.totalorder %v2181, 0
        %vm2431 = vcmp.ne.s16.totalorder %v2190, 0
        %vm2432 = vcmp.ne.s16.totalorder %v2199, 0
        %vm2433 = vcmp.ne.s16.totalorder %v2208, 0
        %vm2434 = vcmp.ne.s16.totalorder %v2217, 0
        %vm2435 = vcmp.ne.s16.totalorder %v2226, 0
        %vm2436 = vcmp.ne.s16.totalorder %v2235, 0
        %vm2437 = vcmp.ne.s16.totalorder %v2244, 0
        %vm2438 = vcmp.ne.s16.totalorder %v2253, 0
        %vm2439 = vcmp.ne.s16.totalorder %v2262, 0
        %vm2440 = vcmp.ne.s16.totalorder %v2271, 0
        %vm2441 = vcmp.ne.s16.totalorder %v2280, 0
        %vm2442 = vcmp.ne.s16.totalorder %v2289, 0
        %vm2443 = vcmp.ne.s16.totalorder %v2298, 0
        %vm2444 = vcmp.ne.s16.totalorder %v2307, 0
        %vm2445 = vcmp.ne.s16.totalorder %v2316, 0
        %vm2446 = vcmp.ne.s16.totalorder %v2325, 0
        %vm2447 = vcmp.ne.s16.totalorder %v2334, 0
        %vm2448 = vcmp.ne.s16.totalorder %v2343, 0
        %vm2449 = vcmp.ne.s16.totalorder %v2352, 0
        %vm2450 = vcmp.ne.s16.totalorder %v2361, 0
        %vm2451 = vcmp.ne.s16.totalorder %v2370, 0
        %vm2452 = vcmp.ne.s16.totalorder %v2379, 0
        %vm2453 = vcmp.ne.s16.totalorder %v2388, 0
        %vm2454 = vcmp.ne.s16.totalorder %v2397, 0
        %vm2455 = vcmp.ne.s16.totalorder %v2406, 0
        %vm2456 = vcmp.ne.s16.totalorder %v2415, 0
        %vm2457 = vcmp.ne.s16.totalorder %v2424, 0
        %vm2458 = vcmp.ne.s16.totalorder %v2425, 0
        %v2459 = vsel %vm2426, 0, %v1978
        %v2460 = vsel %vm2427, 0, %v1979
        %v2461 = vsel %vm2428, 0, %v1980
        %v2462 = vsel %vm2429, 0, %v1981
        %v2463 = vsel %vm2430, 0, %v1982
        %v2464 = vsel %vm2431, 0, %v1983
        %v2465 = vsel %vm2432, 0, %v1984
        %v2466 = vsel %vm2433, 0, %v1985
        %v2467 = vsel %vm2434, 0, %v1986
        %v2468 = vsel %vm2435, 0, %v1987
        %v2469 = vsel %vm2436, 0, %v1988
        %v2470 = vsel %vm2437, 0, %v1989
        %v2471 = vsel %vm2438, 0, %v1990
        %v2472 = vsel %vm2439, 0, %v1991
        %v2473 = vsel %vm2440, 0, %v1992
        %v2474 = vsel %vm2441, 0, %v1993
        %v2475 = vsel %vm2442, 0, %v1994
        %v2476 = vsel %vm2443, 0, %v1995
        %v2477 = vsel %vm2444, 0, %v1996
        %v2478 = vsel %vm2445, 0, %v1997
        %v2479 = vsel %vm2446, 0, %v1998
        %v2480 = vsel %vm2447, 0, %v1999
        %v2481 = vsel %vm2448, 0, %v2000
        %v2482 = vsel %vm2449, 0, %v2001
        %v2483 = vsel %vm2450, 0, %v2002
        %v2484 = vsel %vm2451, 0, %v2003
        %v2485 = vsel %vm2452, 0, %v2004
        %v2486 = vsel %vm2453, 0, %v2005
        %v2487 = vsel %vm2454, 0, %v2006
        %v2488 = vsel %vm2455, 0, %v2007
        %v2489 = vsel %vm2456, 0, %v2008
        %v2490 = vsel %vm2457, 0, %v2009
        %v2491 = vsel %vm2458, 0, %v2010
        %v2493 = vshrl.u32 %v2459, 16
        %v2495 = vrot.slane %v2493, 4
        %v2496 = vshll.u32 %v2459, 16
        %v2498 = vrot.slane %v2496, 5
        %v2499 = vor.u32 %v2495, %v2498
        %v2500 = vrot.slane %v2499, 4
        %v2502 = vshll.u32 %v2460, 16
        %v2504 = vrot.slane %v2502, 5
        %v2505 = vsel %vm1169, %v2500, %v2504
        %v2506 = vshrl.u32 %v2460, 16
        %v2508 = vrot.slane %v2506, 4
        %v2509 = vor.u32 %v2508, %v2504
        %v2510 = vrot.slane %v2509, 4
        %v2512 = vshll.u32 %v2461, 16
        %v2514 = vrot.slane %v2512, 5
        %v2515 = vsel %vm1169, %v2510, %v2514
        %v2516 = vshrl.u32 %v2461, 16
        %v2518 = vrot.slane %v2516, 4
        %v2519 = vor.u32 %v2518, %v2514
        %v2520 = vrot.slane %v2519, 4
        %v2522 = vshll.u32 %v2462, 16
        %v2524 = vrot.slane %v2522, 5
        %v2525 = vsel %vm1169, %v2520, %v2524
        %v2526 = vshrl.u32 %v2462, 16
        %v2528 = vrot.slane %v2526, 4
        %v2529 = vor.u32 %v2528, %v2524
        %v2530 = vrot.slane %v2529, 4
        %v2532 = vshll.u32 %v2463, 16
        %v2534 = vrot.slane %v2532, 5
        %v2535 = vsel %vm1169, %v2530, %v2534
        %v2536 = vshrl.u32 %v2463, 16
        %v2538 = vrot.slane %v2536, 4
        %v2539 = vor.u32 %v2538, %v2534
        %v2540 = vrot.slane %v2539, 4
        %v2542 = vshll.u32 %v2464, 16
        %v2544 = vrot.slane %v2542, 5
        %v2545 = vsel %vm1169, %v2540, %v2544
        %v2546 = vshrl.u32 %v2464, 16
        %v2548 = vrot.slane %v2546, 4
        %v2549 = vor.u32 %v2548, %v2544
        %v2550 = vrot.slane %v2549, 4
        %v2552 = vshll.u32 %v2465, 16
        %v2554 = vrot.slane %v2552, 5
        %v2555 = vsel %vm1169, %v2550, %v2554
        %v2556 = vshrl.u32 %v2465, 16
        %v2558 = vrot.slane %v2556, 4
        %v2559 = vor.u32 %v2558, %v2554
        %v2560 = vrot.slane %v2559, 4
        %v2562 = vshll.u32 %v2466, 16
        %v2564 = vrot.slane %v2562, 5
        %v2565 = vsel %vm1169, %v2560, %v2564
        %v2566 = vshrl.u32 %v2466, 16
        %v2568 = vrot.slane %v2566, 4
        %v2569 = vor.u32 %v2568, %v2564
        %v2570 = vrot.slane %v2569, 4
        %v2572 = vshll.u32 %v2467, 16
        %v2574 = vrot.slane %v2572, 5
        %v2575 = vsel %vm1169, %v2570, %v2574
        %v2576 = vshrl.u32 %v2467, 16
        %v2578 = vrot.slane %v2576, 4
        %v2579 = vor.u32 %v2578, %v2574
        %v2580 = vrot.slane %v2579, 4
        %v2582 = vshll.u32 %v2468, 16
        %v2584 = vrot.slane %v2582, 5
        %v2585 = vsel %vm1169, %v2580, %v2584
        %v2586 = vshrl.u32 %v2468, 16
        %v2588 = vrot.slane %v2586, 4
        %v2589 = vor.u32 %v2588, %v2584
        %v2590 = vrot.slane %v2589, 4
        %v2592 = vshll.u32 %v2469, 16
        %v2594 = vrot.slane %v2592, 5
        %v2595 = vsel %vm1169, %v2590, %v2594
        %v2596 = vshrl.u32 %v2469, 16
        %v2598 = vrot.slane %v2596, 4
        %v2599 = vor.u32 %v2598, %v2594
        %v2600 = vrot.slane %v2599, 4
        %v2602 = vshll.u32 %v2470, 16
        %v2604 = vrot.slane %v2602, 5
        %v2605 = vsel %vm1169, %v2600, %v2604
        %v2606 = vshrl.u32 %v2470, 16
        %v2608 = vrot.slane %v2606, 4
        %v2609 = vor.u32 %v2608, %v2604
        %v2610 = vrot.slane %v2609, 4
        %v2612 = vshll.u32 %v2471, 16
        %v2614 = vrot.slane %v2612, 5
        %v2615 = vsel %vm1169, %v2610, %v2614
        %v2616 = vshrl.u32 %v2471, 16
        %v2618 = vrot.slane %v2616, 4
        %v2619 = vor.u32 %v2618, %v2614
        %v2620 = vrot.slane %v2619, 4
        %v2622 = vshll.u32 %v2472, 16
        %v2624 = vrot.slane %v2622, 5
        %v2625 = vsel %vm1169, %v2620, %v2624
        %v2626 = vshrl.u32 %v2472, 16
        %v2628 = vrot.slane %v2626, 4
        %v2629 = vor.u32 %v2628, %v2624
        %v2630 = vrot.slane %v2629, 4
        %v2632 = vshll.u32 %v2473, 16
        %v2634 = vrot.slane %v2632, 5
        %v2635 = vsel %vm1169, %v2630, %v2634
        %v2636 = vshrl.u32 %v2473, 16
        %v2638 = vrot.slane %v2636, 4
        %v2639 = vor.u32 %v2638, %v2634
        %v2640 = vrot.slane %v2639, 4
        %v2642 = vshll.u32 %v2474, 16
        %v2644 = vrot.slane %v2642, 5
        %v2645 = vsel %vm1169, %v2640, %v2644
        %v2646 = vshrl.u32 %v2474, 16
        %v2648 = vrot.slane %v2646, 4
        %v2649 = vor.u32 %v2648, %v2644
        %v2650 = vrot.slane %v2649, 4
        %v2652 = vshll.u32 %v2475, 16
        %v2654 = vrot.slane %v2652, 5
        %v2655 = vsel %vm1169, %v2650, %v2654
        %v2656 = vshrl.u32 %v2475, 16
        %v2658 = vrot.slane %v2656, 4
        %v2659 = vor.u32 %v2658, %v2654
        %v2660 = vrot.slane %v2659, 4
        %v2662 = vshll.u32 %v2476, 16
        %v2664 = vrot.slane %v2662, 5
        %v2665 = vsel %vm1169, %v2660, %v2664
        %v2666 = vshrl.u32 %v2476, 16
        %v2668 = vrot.slane %v2666, 4
        %v2669 = vor.u32 %v2668, %v2664
        %v2670 = vrot.slane %v2669, 4
        %v2672 = vshll.u32 %v2477, 16
        %v2674 = vrot.slane %v2672, 5
        %v2675 = vsel %vm1169, %v2670, %v2674
        %v2676 = vshrl.u32 %v2477, 16
        %v2678 = vrot.slane %v2676, 4
        %v2679 = vor.u32 %v2678, %v2674
        %v2680 = vrot.slane %v2679, 4
        %v2682 = vshll.u32 %v2478, 16
        %v2684 = vrot.slane %v2682, 5
        %v2685 = vsel %vm1169, %v2680, %v2684
        %v2686 = vshrl.u32 %v2478, 16
        %v2688 = vrot.slane %v2686, 4
        %v2689 = vor.u32 %v2688, %v2684
        %v2690 = vrot.slane %v2689, 4
        %v2692 = vshll.u32 %v2479, 16
        %v2694 = vrot.slane %v2692, 5
        %v2695 = vsel %vm1169, %v2690, %v2694
        %v2696 = vshrl.u32 %v2479, 16
        %v2698 = vrot.slane %v2696, 4
        %v2699 = vor.u32 %v2698, %v2694
        %v2700 = vrot.slane %v2699, 4
        %v2702 = vshll.u32 %v2480, 16
        %v2704 = vrot.slane %v2702, 5
        %v2705 = vsel %vm1169, %v2700, %v2704
        %v2706 = vshrl.u32 %v2480, 16
        %v2708 = vrot.slane %v2706, 4
        %v2709 = vor.u32 %v2708, %v2704
        %v2710 = vrot.slane %v2709, 4
        %v2712 = vshll.u32 %v2481, 16
        %v2714 = vrot.slane %v2712, 5
        %v2715 = vsel %vm1169, %v2710, %v2714
        %v2716 = vshrl.u32 %v2481, 16
        %v2718 = vrot.slane %v2716, 4
        %v2719 = vor.u32 %v2718, %v2714
        %v2720 = vrot.slane %v2719, 4
        %v2722 = vshll.u32 %v2482, 16
        %v2724 = vrot.slane %v2722, 5
        %v2725 = vsel %vm1169, %v2720, %v2724
        %v2726 = vshrl.u32 %v2482, 16
        %v2728 = vrot.slane %v2726, 4
        %v2729 = vor.u32 %v2728, %v2724
        %v2730 = vrot.slane %v2729, 4
        %v2732 = vshll.u32 %v2483, 16
        %v2734 = vrot.slane %v2732, 5
        %v2735 = vsel %vm1169, %v2730, %v2734
        %v2736 = vshrl.u32 %v2483, 16
        %v2738 = vrot.slane %v2736, 4
        %v2739 = vor.u32 %v2738, %v2734
        %v2740 = vrot.slane %v2739, 4
        %v2742 = vshll.u32 %v2484, 16
        %v2744 = vrot.slane %v2742, 5
        %v2745 = vsel %vm1169, %v2740, %v2744
        %v2746 = vshrl.u32 %v2484, 16
        %v2748 = vrot.slane %v2746, 4
        %v2749 = vor.u32 %v2748, %v2744
        %v2750 = vrot.slane %v2749, 4
        %v2752 = vshll.u32 %v2485, 16
        %v2754 = vrot.slane %v2752, 5
        %v2755 = vsel %vm1169, %v2750, %v2754
        %v2756 = vshrl.u32 %v2485, 16
        %v2758 = vrot.slane %v2756, 4
        %v2759 = vor.u32 %v2758, %v2754
        %v2760 = vrot.slane %v2759, 4
        %v2762 = vshll.u32 %v2486, 16
        %v2764 = vrot.slane %v2762, 5
        %v2765 = vsel %vm1169, %v2760, %v2764
        %v2766 = vshrl.u32 %v2486, 16
        %v2768 = vrot.slane %v2766, 4
        %v2769 = vor.u32 %v2768, %v2764
        %v2770 = vrot.slane %v2769, 4
        %v2772 = vshll.u32 %v2487, 16
        %v2774 = vrot.slane %v2772, 5
        %v2775 = vsel %vm1169, %v2770, %v2774
        %v2776 = vshrl.u32 %v2487, 16
        %v2778 = vrot.slane %v2776, 4
        %v2779 = vor.u32 %v2778, %v2774
        %v2780 = vrot.slane %v2779, 4
        %v2782 = vshll.u32 %v2488, 16
        %v2784 = vrot.slane %v2782, 5
        %v2785 = vsel %vm1169, %v2780, %v2784
        %v2786 = vshrl.u32 %v2488, 16
        %v2788 = vrot.slane %v2786, 4
        %v2789 = vor.u32 %v2788, %v2784
        %v2790 = vrot.slane %v2789, 4
        %v2792 = vshll.u32 %v2489, 16
        %v2794 = vrot.slane %v2792, 5
        %v2795 = vsel %vm1169, %v2790, %v2794
        %v2796 = vshrl.u32 %v2489, 16
        %v2798 = vrot.slane %v2796, 4
        %v2799 = vor.u32 %v2798, %v2794
        %v2800 = vrot.slane %v2799, 4
        %v2802 = vshll.u32 %v2490, 16
        %v2804 = vrot.slane %v2802, 5
        %v2805 = vsel %vm1169, %v2800, %v2804
        %v2806 = vshrl.u32 %v2490, 16
        %v2808 = vrot.slane %v2806, 4
        %v2809 = vor.u32 %v2808, %v2804
        %v2810 = vrot.slane %v2809, 4
        %v2812 = vshll.u32 %v2491, 16
        %v2814 = vrot.slane %v2812, 5
        %v2815 = vsel %vm1169, %v2810, %v2814
        %2848 = vst [vmem:[#allocation4 + $0x8] sm:$0xf] %v2505
        %2849 = vst [vmem:[#allocation4 + $0x2c] sm:$0xf] %v2515
        %2850 = vst [vmem:[#allocation4 + $0x50] sm:$0xf] %v2525
        %2851 = vst [vmem:[#allocation4 + $0x74] sm:$0xf] %v2535
        %2852 = vst [vmem:[#allocation4 + $0x98] sm:$0xf] %v2545
        %2853 = vst [vmem:[#allocation4 + $0xbc] sm:$0xf] %v2555
        %2854 = vst [vmem:[#allocation4 + $0xe0] sm:$0xf] %v2565
        %2855 = vst [vmem:[#allocation4 + $0x104] sm:$0xf] %v2575
        %2856 = vst [vmem:[#allocation4 + $0x128] sm:$0xf] %v2585
        %2857 = vst [vmem:[#allocation4 + $0x14c] sm:$0xf] %v2595
        %2858 = vst [vmem:[#allocation4 + $0x170] sm:$0xf] %v2605
        %2859 = vst [vmem:[#allocation4 + $0x194] sm:$0xf] %v2615
        %2860 = vst [vmem:[#allocation4 + $0x1b8] sm:$0xf] %v2625
        %2861 = vst [vmem:[#allocation4 + $0x1dc] sm:$0xf] %v2635
        %2862 = vst [vmem:[#allocation4 + $0x200] sm:$0xf] %v2645
        %2863 = vst [vmem:[#allocation4 + $0x224] sm:$0xf] %v2655
        %2864 = vst [vmem:[#allocation4 + $0x248] sm:$0xf] %v2665
        %2865 = vst [vmem:[#allocation4 + $0x26c] sm:$0xf] %v2675
        %2866 = vst [vmem:[#allocation4 + $0x290] sm:$0xf] %v2685
        %2867 = vst [vmem:[#allocation4 + $0x2b4] sm:$0xf] %v2695
        %2868 = vst [vmem:[#allocation4 + $0x2d8] sm:$0xf] %v2705
        %2869 = vst [vmem:[#allocation4 + $0x2fc] sm:$0xf] %v2715
        %2870 = vst [vmem:[#allocation4 + $0x320] sm:$0xf] %v2725
        %2871 = vst [vmem:[#allocation4 + $0x344] sm:$0xf] %v2735
        %2872 = vst [vmem:[#allocation4 + $0x368] sm:$0xf] %v2745
        %2873 = vst [vmem:[#allocation4 + $0x38c] sm:$0xf] %v2755
        %2874 = vst [vmem:[#allocation4 + $0x3b0] sm:$0xf] %v2765
        %2875 = vst [vmem:[#allocation4 + $0x3d4] sm:$0xf] %v2775
        %2876 = vst [vmem:[#allocation4 + $0x3f8] sm:$0xf] %v2785
        %2877 = vst [vmem:[#allocation4 + $0x41c] sm:$0xf] %v2795
        %2878 = vst [vmem:[#allocation4 + $0x440] sm:$0xf] %v2805
        %2879 = vst [vmem:[#allocation4 + $0x464] sm:$0xf] %v2815
        %v2880 = vld [vmem:[#allocation2 + $0xc] sm:$0x8]
        %v2881 = vld [vmem:[#allocation2 + $0x10] sm:$0xf]
        %v2882 = vld [vmem:[#allocation2 + $0x14] sm:$0xf]
        %v2883 = vld [vmem:[#allocation2 + $0x18] sm:$0xf]
        %v2884 = vld [vmem:[#allocation2 + $0x1c] sm:$0xf]
        %v2885 = vld [vmem:[#allocation2 + $0x20] sm:$0xf]
        %v2886 = vld [vmem:[#allocation2 + $0x24] sm:$0xf]
        %v2887 = vld [vmem:[#allocation2 + $0x28] sm:$0xf]
        %v2888 = vld [vmem:[#allocation2 + $0x2c] sm:$0xf]
        %v2889 = vld [vmem:[#allocation2 + $0x30] sm:$0xf]
        %v2890 = vld [vmem:[#allocation2 + $0x34] sm:$0xf]
        %v2891 = vld [vmem:[#allocation2 + $0x38] sm:$0xf]
        %v2892 = vld [vmem:[#allocation2 + $0x3c] sm:$0xf]
        %v2893 = vld [vmem:[#allocation2 + $0x40] sm:$0xf]
        %v2894 = vld [vmem:[#allocation2 + $0x44] sm:$0xf]
        %v2895 = vld [vmem:[#allocation2 + $0x48] sm:$0xf]
        %v2896 = vld [vmem:[#allocation2 + $0x4c] sm:$0xf]
        %v2897 = vld [vmem:[#allocation2 + $0x50] sm:$0xf]
        %v2898 = vld [vmem:[#allocation2 + $0x54] sm:$0xf]
        %v2899 = vld [vmem:[#allocation2 + $0x58] sm:$0xf]
        %v2900 = vld [vmem:[#allocation2 + $0x5c] sm:$0xf]
        %v2901 = vld [vmem:[#allocation2 + $0x60] sm:$0xf]
        %v2902 = vld [vmem:[#allocation2 + $0x64] sm:$0xf]
        %v2903 = vld [vmem:[#allocation2 + $0x68] sm:$0xf]
        %v2904 = vld [vmem:[#allocation2 + $0x6c] sm:$0xf]
        %v2905 = vld [vmem:[#allocation2 + $0x70] sm:$0xf]
        %v2906 = vld [vmem:[#allocation2 + $0x74] sm:$0xf]
        %v2907 = vld [vmem:[#allocation2 + $0x78] sm:$0xf]
        %v2908 = vld [vmem:[#allocation2 + $0x7c] sm:$0xf]
        %v2909 = vld [vmem:[#allocation2 + $0x80] sm:$0xf]
        %v2910 = vld [vmem:[#allocation2 + $0x84] sm:$0xf]
        %v2911 = vld [vmem:[#allocation2 + $0x88] sm:$0xf]
        %v2912 = vld [vmem:[#allocation2 + $0x8c] sm:$0xf]
        %v2913 = vsel %vm1489, 0, %v2880
        %v2914 = vsel %vm1490, 0, %v2881
        %v2915 = vsel %vm1491, 0, %v2882
        %v2916 = vsel %vm1492, 0, %v2883
        %v2917 = vsel %vm1493, 0, %v2884
        %v2918 = vsel %vm1494, 0, %v2885
        %v2919 = vsel %vm1495, 0, %v2886
        %v2920 = vsel %vm1496, 0, %v2887
        %v2921 = vsel %vm1497, 0, %v2888
        %v2922 = vsel %vm1498, 0, %v2889
        %v2923 = vsel %vm1499, 0, %v2890
        %v2924 = vsel %vm1500, 0, %v2891
        %v2925 = vsel %vm1501, 0, %v2892
        %v2926 = vsel %vm1502, 0, %v2893
        %v2927 = vsel %vm1503, 0, %v2894
        %v2928 = vsel %vm1504, 0, %v2895
        %v2929 = vsel %vm1505, 0, %v2896
        %v2930 = vsel %vm1506, 0, %v2897
        %v2931 = vsel %vm1507, 0, %v2898
        %v2932 = vsel %vm1508, 0, %v2899
        %v2933 = vsel %vm1509, 0, %v2900
        %v2934 = vsel %vm1510, 0, %v2901
        %v2935 = vsel %vm1511, 0, %v2902
        %v2936 = vsel %vm1512, 0, %v2903
        %v2937 = vsel %vm1513, 0, %v2904
        %v2938 = vsel %vm1514, 0, %v2905
        %v2939 = vsel %vm1515, 0, %v2906
        %v2940 = vsel %vm1516, 0, %v2907
        %v2941 = vsel %vm1517, 0, %v2908
        %v2942 = vsel %vm1518, 0, %v2909
        %v2943 = vsel %vm1519, 0, %v2910
        %v2944 = vsel %vm1520, 0, %v2911
        %v2945 = vsel %vm1521, 0, %v2912
        %v2947 = vshrl.u32 %v2913, 16
        %v2949 = vrot.slane %v2947, 7
        %v2950 = vrot.slane %v2949, 4
        %v2952 = vshrl.u32 %v2914, 16
        %v2954 = vrot.slane %v2952, 7
        %v2955 = vshll.u32 %v2914, 16
        %v2957 = vor.u32 %v2954, %v2955
        %v2958 = vsel %vm1557, %v2950, %v2957
        %v2959 = vrot.slane %v2954, 4
        %v2961 = vshrl.u32 %v2915, 16
        %v2963 = vrot.slane %v2961, 7
        %v2964 = vshll.u32 %v2915, 16
        %v2966 = vor.u32 %v2963, %v2964
        %v2967 = vsel %vm1557, %v2959, %v2966
        %v2968 = vrot.slane %v2963, 4
        %v2970 = vshrl.u32 %v2916, 16
        %v2972 = vrot.slane %v2970, 7
        %v2973 = vshll.u32 %v2916, 16
        %v2975 = vor.u32 %v2972, %v2973
        %v2976 = vsel %vm1557, %v2968, %v2975
        %v2977 = vrot.slane %v2972, 4
        %v2979 = vshrl.u32 %v2917, 16
        %v2981 = vrot.slane %v2979, 7
        %v2982 = vshll.u32 %v2917, 16
        %v2984 = vor.u32 %v2981, %v2982
        %v2985 = vsel %vm1557, %v2977, %v2984
        %v2986 = vrot.slane %v2981, 4
        %v2988 = vshrl.u32 %v2918, 16
        %v2990 = vrot.slane %v2988, 7
        %v2991 = vshll.u32 %v2918, 16
        %v2993 = vor.u32 %v2990, %v2991
        %v2994 = vsel %vm1557, %v2986, %v2993
        %v2995 = vrot.slane %v2990, 4
        %v2997 = vshrl.u32 %v2919, 16
        %v2999 = vrot.slane %v2997, 7
        %v3000 = vshll.u32 %v2919, 16
        %v3002 = vor.u32 %v2999, %v3000
        %v3003 = vsel %vm1557, %v2995, %v3002
        %v3004 = vrot.slane %v2999, 4
        %v3006 = vshrl.u32 %v2920, 16
        %v3008 = vrot.slane %v3006, 7
        %v3009 = vshll.u32 %v2920, 16
        %v3011 = vor.u32 %v3008, %v3009
        %v3012 = vsel %vm1557, %v3004, %v3011
        %v3013 = vrot.slane %v3008, 4
        %v3015 = vshrl.u32 %v2921, 16
        %v3017 = vrot.slane %v3015, 7
        %v3018 = vshll.u32 %v2921, 16
        %v3020 = vor.u32 %v3017, %v3018
        %v3021 = vsel %vm1557, %v3013, %v3020
        %v3022 = vrot.slane %v3017, 4
        %v3024 = vshrl.u32 %v2922, 16
        %v3026 = vrot.slane %v3024, 7
        %v3027 = vshll.u32 %v2922, 16
        %v3029 = vor.u32 %v3026, %v3027
        %v3030 = vsel %vm1557, %v3022, %v3029
        %v3031 = vrot.slane %v3026, 4
        %v3033 = vshrl.u32 %v2923, 16
        %v3035 = vrot.slane %v3033, 7
        %v3036 = vshll.u32 %v2923, 16
        %v3038 = vor.u32 %v3035, %v3036
        %v3039 = vsel %vm1557, %v3031, %v3038
        %v3040 = vrot.slane %v3035, 4
        %v3042 = vshrl.u32 %v2924, 16
        %v3044 = vrot.slane %v3042, 7
        %v3045 = vshll.u32 %v2924, 16
        %v3047 = vor.u32 %v3044, %v3045
        %v3048 = vsel %vm1557, %v3040, %v3047
        %v3049 = vrot.slane %v3044, 4
        %v3051 = vshrl.u32 %v2925, 16
        %v3053 = vrot.slane %v3051, 7
        %v3054 = vshll.u32 %v2925, 16
        %v3056 = vor.u32 %v3053, %v3054
        %v3057 = vsel %vm1557, %v3049, %v3056
        %v3058 = vrot.slane %v3053, 4
        %v3060 = vshrl.u32 %v2926, 16
        %v3062 = vrot.slane %v3060, 7
        %v3063 = vshll.u32 %v2926, 16
        %v3065 = vor.u32 %v3062, %v3063
        %v3066 = vsel %vm1557, %v3058, %v3065
        %v3067 = vrot.slane %v3062, 4
        %v3069 = vshrl.u32 %v2927, 16
        %v3071 = vrot.slane %v3069, 7
        %v3072 = vshll.u32 %v2927, 16
        %v3074 = vor.u32 %v3071, %v3072
        %v3075 = vsel %vm1557, %v3067, %v3074
        %v3076 = vrot.slane %v3071, 4
        %v3078 = vshrl.u32 %v2928, 16
        %v3080 = vrot.slane %v3078, 7
        %v3081 = vshll.u32 %v2928, 16
        %v3083 = vor.u32 %v3080, %v3081
        %v3084 = vsel %vm1557, %v3076, %v3083
        %v3085 = vrot.slane %v3080, 4
        %v3087 = vshrl.u32 %v2929, 16
        %v3089 = vrot.slane %v3087, 7
        %v3090 = vshll.u32 %v2929, 16
        %v3092 = vor.u32 %v3089, %v3090
        %v3093 = vsel %vm1557, %v3085, %v3092
        %v3094 = vrot.slane %v3089, 4
        %v3096 = vshrl.u32 %v2930, 16
        %v3098 = vrot.slane %v3096, 7
        %v3099 = vshll.u32 %v2930, 16
        %v3101 = vor.u32 %v3098, %v3099
        %v3102 = vsel %vm1557, %v3094, %v3101
        %v3103 = vrot.slane %v3098, 4
        %v3105 = vshrl.u32 %v2931, 16
        %v3107 = vrot.slane %v3105, 7
        %v3108 = vshll.u32 %v2931, 16
        %v3110 = vor.u32 %v3107, %v3108
        %v3111 = vsel %vm1557, %v3103, %v3110
        %v3112 = vrot.slane %v3107, 4
        %v3114 = vshrl.u32 %v2932, 16
        %v3116 = vrot.slane %v3114, 7
        %v3117 = vshll.u32 %v2932, 16
        %v3119 = vor.u32 %v3116, %v3117
        %v3120 = vsel %vm1557, %v3112, %v3119
        %v3121 = vrot.slane %v3116, 4
        %v3123 = vshrl.u32 %v2933, 16
        %v3125 = vrot.slane %v3123, 7
        %v3126 = vshll.u32 %v2933, 16
        %v3128 = vor.u32 %v3125, %v3126
        %v3129 = vsel %vm1557, %v3121, %v3128
        %v3130 = vrot.slane %v3125, 4
        %v3132 = vshrl.u32 %v2934, 16
        %v3134 = vrot.slane %v3132, 7
        %v3135 = vshll.u32 %v2934, 16
        %v3137 = vor.u32 %v3134, %v3135
        %v3138 = vsel %vm1557, %v3130, %v3137
        %v3139 = vrot.slane %v3134, 4
        %v3141 = vshrl.u32 %v2935, 16
        %v3143 = vrot.slane %v3141, 7
        %v3144 = vshll.u32 %v2935, 16
        %v3146 = vor.u32 %v3143, %v3144
        %v3147 = vsel %vm1557, %v3139, %v3146
        %v3148 = vrot.slane %v3143, 4
        %v3150 = vshrl.u32 %v2936, 16
        %v3152 = vrot.slane %v3150, 7
        %v3153 = vshll.u32 %v2936, 16
        %v3155 = vor.u32 %v3152, %v3153
        %v3156 = vsel %vm1557, %v3148, %v3155
        %v3157 = vrot.slane %v3152, 4
        %v3159 = vshrl.u32 %v2937, 16
        %v3161 = vrot.slane %v3159, 7
        %v3162 = vshll.u32 %v2937, 16
        %v3164 = vor.u32 %v3161, %v3162
        %v3165 = vsel %vm1557, %v3157, %v3164
        %v3166 = vrot.slane %v3161, 4
        %v3168 = vshrl.u32 %v2938, 16
        %v3170 = vrot.slane %v3168, 7
        %v3171 = vshll.u32 %v2938, 16
        %v3173 = vor.u32 %v3170, %v3171
        %v3174 = vsel %vm1557, %v3166, %v3173
        %v3175 = vrot.slane %v3170, 4
        %v3177 = vshrl.u32 %v2939, 16
        %v3179 = vrot.slane %v3177, 7
        %v3180 = vshll.u32 %v2939, 16
        %v3182 = vor.u32 %v3179, %v3180
        %v3183 = vsel %vm1557, %v3175, %v3182
        %v3184 = vrot.slane %v3179, 4
        %v3186 = vshrl.u32 %v2940, 16
        %v3188 = vrot.slane %v3186, 7
        %v3189 = vshll.u32 %v2940, 16
        %v3191 = vor.u32 %v3188, %v3189
        %v3192 = vsel %vm1557, %v3184, %v3191
        %v3193 = vrot.slane %v3188, 4
        %v3195 = vshrl.u32 %v2941, 16
        %v3197 = vrot.slane %v3195, 7
        %v3198 = vshll.u32 %v2941, 16
        %v3200 = vor.u32 %v3197, %v3198
        %v3201 = vsel %vm1557, %v3193, %v3200
        %v3202 = vrot.slane %v3197, 4
        %v3204 = vshrl.u32 %v2942, 16
        %v3206 = vrot.slane %v3204, 7
        %v3207 = vshll.u32 %v2942, 16
        %v3209 = vor.u32 %v3206, %v3207
        %v3210 = vsel %vm1557, %v3202, %v3209
        %v3211 = vrot.slane %v3206, 4
        %v3213 = vshrl.u32 %v2943, 16
        %v3215 = vrot.slane %v3213, 7
        %v3216 = vshll.u32 %v2943, 16
        %v3218 = vor.u32 %v3215, %v3216
        %v3219 = vsel %vm1557, %v3211, %v3218
        %v3220 = vrot.slane %v3215, 4
        %v3222 = vshrl.u32 %v2944, 16
        %v3224 = vrot.slane %v3222, 7
        %v3225 = vshll.u32 %v2944, 16
        %v3227 = vor.u32 %v3224, %v3225
        %v3228 = vsel %vm1557, %v3220, %v3227
        %v3229 = vrot.slane %v3224, 4
        %v3231 = vshrl.u32 %v2945, 16
        %v3233 = vrot.slane %v3231, 7
        %v3234 = vshll.u32 %v2945, 16
        %v3236 = vor.u32 %v3233, %v3234
        %v3237 = vsel %vm1557, %v3229, %v3236
        %3270 = vst [vmem:[#allocation4 + $0xc] sm:$0xf] %v2958
        %3271 = vst [vmem:[#allocation4 + $0x30] sm:$0xf] %v2967
        %3272 = vst [vmem:[#allocation4 + $0x54] sm:$0xf] %v2976
        %3273 = vst [vmem:[#allocation4 + $0x78] sm:$0xf] %v2985
        %3274 = vst [vmem:[#allocation4 + $0x9c] sm:$0xf] %v2994
        %3275 = vst [vmem:[#allocation4 + $0xc0] sm:$0xf] %v3003
        %3276 = vst [vmem:[#allocation4 + $0xe4] sm:$0xf] %v3012
        %3277 = vst [vmem:[#allocation4 + $0x108] sm:$0xf] %v3021
        %3278 = vst [vmem:[#allocation4 + $0x12c] sm:$0xf] %v3030
        %3279 = vst [vmem:[#allocation4 + $0x150] sm:$0xf] %v3039
        %3280 = vst [vmem:[#allocation4 + $0x174] sm:$0xf] %v3048
        %3281 = vst [vmem:[#allocation4 + $0x198] sm:$0xf] %v3057
        %3282 = vst [vmem:[#allocation4 + $0x1bc] sm:$0xf] %v3066
        %3283 = vst [vmem:[#allocation4 + $0x1e0] sm:$0xf] %v3075
        %3284 = vst [vmem:[#allocation4 + $0x204] sm:$0xf] %v3084
        %3285 = vst [vmem:[#allocation4 + $0x228] sm:$0xf] %v3093
        %3286 = vst [vmem:[#allocation4 + $0x24c] sm:$0xf] %v3102
        %3287 = vst [vmem:[#allocation4 + $0x270] sm:$0xf] %v3111
        %3288 = vst [vmem:[#allocation4 + $0x294] sm:$0xf] %v3120
        %3289 = vst [vmem:[#allocation4 + $0x2b8] sm:$0xf] %v3129
        %3290 = vst [vmem:[#allocation4 + $0x2dc] sm:$0xf] %v3138
        %3291 = vst [vmem:[#allocation4 + $0x300] sm:$0xf] %v3147
        %3292 = vst [vmem:[#allocation4 + $0x324] sm:$0xf] %v3156
        %3293 = vst [vmem:[#allocation4 + $0x348] sm:$0xf] %v3165
        %3294 = vst [vmem:[#allocation4 + $0x36c] sm:$0xf] %v3174
        %3295 = vst [vmem:[#allocation4 + $0x390] sm:$0xf] %v3183
        %3296 = vst [vmem:[#allocation4 + $0x3b4] sm:$0xf] %v3192
        %3297 = vst [vmem:[#allocation4 + $0x3d8] sm:$0xf] %v3201
        %3298 = vst [vmem:[#allocation4 + $0x3fc] sm:$0xf] %v3210
        %3299 = vst [vmem:[#allocation4 + $0x420] sm:$0xf] %v3219
        %3300 = vst [vmem:[#allocation4 + $0x444] sm:$0xf] %v3228
        %3301 = vst [vmem:[#allocation4 + $0x468] sm:$0xf] %v3237
        %v3302 = vld [vmem:[#allocation2 + $0x10] sm:$0xf]
        %v3303 = vld [vmem:[#allocation2 + $0x14] sm:$0xf]
        %v3304 = vld [vmem:[#allocation2 + $0x18] sm:$0xf]
        %v3305 = vld [vmem:[#allocation2 + $0x1c] sm:$0xf]
        %v3306 = vld [vmem:[#allocation2 + $0x20] sm:$0xf]
        %v3307 = vld [vmem:[#allocation2 + $0x24] sm:$0xf]
        %v3308 = vld [vmem:[#allocation2 + $0x28] sm:$0xf]
        %v3309 = vld [vmem:[#allocation2 + $0x2c] sm:$0xf]
        %v3310 = vld [vmem:[#allocation2 + $0x30] sm:$0xf]
        %v3311 = vld [vmem:[#allocation2 + $0x34] sm:$0xf]
        %v3312 = vld [vmem:[#allocation2 + $0x38] sm:$0xf]
        %v3313 = vld [vmem:[#allocation2 + $0x3c] sm:$0xf]
        %v3314 = vld [vmem:[#allocation2 + $0x40] sm:$0xf]
        %v3315 = vld [vmem:[#allocation2 + $0x44] sm:$0xf]
        %v3316 = vld [vmem:[#allocation2 + $0x48] sm:$0xf]
        %v3317 = vld [vmem:[#allocation2 + $0x4c] sm:$0xf]
        %v3318 = vld [vmem:[#allocation2 + $0x50] sm:$0xf]
        %v3319 = vld [vmem:[#allocation2 + $0x54] sm:$0xf]
        %v3320 = vld [vmem:[#allocation2 + $0x58] sm:$0xf]
        %v3321 = vld [vmem:[#allocation2 + $0x5c] sm:$0xf]
        %v3322 = vld [vmem:[#allocation2 + $0x60] sm:$0xf]
        %v3323 = vld [vmem:[#allocation2 + $0x64] sm:$0xf]
        %v3324 = vld [vmem:[#allocation2 + $0x68] sm:$0xf]
        %v3325 = vld [vmem:[#allocation2 + $0x6c] sm:$0xf]
        %v3326 = vld [vmem:[#allocation2 + $0x70] sm:$0xf]
        %v3327 = vld [vmem:[#allocation2 + $0x74] sm:$0xf]
        %v3328 = vld [vmem:[#allocation2 + $0x78] sm:$0xf]
        %v3329 = vld [vmem:[#allocation2 + $0x7c] sm:$0xf]
        %v3330 = vld [vmem:[#allocation2 + $0x80] sm:$0xf]
        %v3331 = vld [vmem:[#allocation2 + $0x84] sm:$0xf]
        %v3332 = vld [vmem:[#allocation2 + $0x88] sm:$0xf]
        %v3333 = vld [vmem:[#allocation2 + $0x8c] sm:$0xf]
        %3334 = vst [vmem:[#allocation4 + $0x10] sm:$0xf] %v3302
        %3335 = vst [vmem:[#allocation4 + $0x34] sm:$0xf] %v3303
        %3336 = vst [vmem:[#allocation4 + $0x58] sm:$0xf] %v3304
        %3337 = vst [vmem:[#allocation4 + $0x7c] sm:$0xf] %v3305
        %3338 = vst [vmem:[#allocation4 + $0xa0] sm:$0xf] %v3306
        %3339 = vst [vmem:[#allocation4 + $0xc4] sm:$0xf] %v3307
        %3340 = vst [vmem:[#allocation4 + $0xe8] sm:$0xf] %v3308
        %3341 = vst [vmem:[#allocation4 + $0x10c] sm:$0xf] %v3309
        %3342 = vst [vmem:[#allocation4 + $0x130] sm:$0xf] %v3310
        %3343 = vst [vmem:[#allocation4 + $0x154] sm:$0xf] %v3311
        %3344 = vst [vmem:[#allocation4 + $0x178] sm:$0xf] %v3312
        %3345 = vst [vmem:[#allocation4 + $0x19c] sm:$0xf] %v3313
        %3346 = vst [vmem:[#allocation4 + $0x1c0] sm:$0xf] %v3314
        %3347 = vst [vmem:[#allocation4 + $0x1e4] sm:$0xf] %v3315
        %3348 = vst [vmem:[#allocation4 + $0x208] sm:$0xf] %v3316
        %3349 = vst [vmem:[#allocation4 + $0x22c] sm:$0xf] %v3317
        %3350 = vst [vmem:[#allocation4 + $0x250] sm:$0xf] %v3318
        %3351 = vst [vmem:[#allocation4 + $0x274] sm:$0xf] %v3319
        %3352 = vst [vmem:[#allocation4 + $0x298] sm:$0xf] %v3320
        %3353 = vst [vmem:[#allocation4 + $0x2bc] sm:$0xf] %v3321
        %3354 = vst [vmem:[#allocation4 + $0x2e0] sm:$0xf] %v3322
        %3355 = vst [vmem:[#allocation4 + $0x304] sm:$0xf] %v3323
        %3356 = vst [vmem:[#allocation4 + $0x328] sm:$0xf] %v3324
        %3357 = vst [vmem:[#allocation4 + $0x34c] sm:$0xf] %v3325
        %3358 = vst [vmem:[#allocation4 + $0x370] sm:$0xf] %v3326
        %3359 = vst [vmem:[#allocation4 + $0x394] sm:$0xf] %v3327
        %3360 = vst [vmem:[#allocation4 + $0x3b8] sm:$0xf] %v3328
        %3361 = vst [vmem:[#allocation4 + $0x3dc] sm:$0xf] %v3329
        %3362 = vst [vmem:[#allocation4 + $0x400] sm:$0xf] %v3330
        %3363 = vst [vmem:[#allocation4 + $0x424] sm:$0xf] %v3331
        %3364 = vst [vmem:[#allocation4 + $0x448] sm:$0xf] %v3332
        %3365 = vst [vmem:[#allocation4 + $0x46c] sm:$0xf] %v3333
        %v3366 = vld [vmem:[#allocation2 + $0x10] sm:$0xf]
        %v3367 = vld [vmem:[#allocation2 + $0x14] sm:$0xf]
        %v3368 = vld [vmem:[#allocation2 + $0x18] sm:$0xf]
        %v3369 = vld [vmem:[#allocation2 + $0x1c] sm:$0xf]
        %v3370 = vld [vmem:[#allocation2 + $0x20] sm:$0xf]
        %v3371 = vld [vmem:[#allocation2 + $0x24] sm:$0xf]
        %v3372 = vld [vmem:[#allocation2 + $0x28] sm:$0xf]
        %v3373 = vld [vmem:[#allocation2 + $0x2c] sm:$0xf]
        %v3374 = vld [vmem:[#allocation2 + $0x30] sm:$0xf]
        %v3375 = vld [vmem:[#allocation2 + $0x34] sm:$0xf]
        %v3376 = vld [vmem:[#allocation2 + $0x38] sm:$0xf]
        %v3377 = vld [vmem:[#allocation2 + $0x3c] sm:$0xf]
        %v3378 = vld [vmem:[#allocation2 + $0x40] sm:$0xf]
        %v3379 = vld [vmem:[#allocation2 + $0x44] sm:$0xf]
        %v3380 = vld [vmem:[#allocation2 + $0x48] sm:$0xf]
        %v3381 = vld [vmem:[#allocation2 + $0x4c] sm:$0xf]
        %v3382 = vld [vmem:[#allocation2 + $0x50] sm:$0xf]
        %v3383 = vld [vmem:[#allocation2 + $0x54] sm:$0xf]
        %v3384 = vld [vmem:[#allocation2 + $0x58] sm:$0xf]
        %v3385 = vld [vmem:[#allocation2 + $0x5c] sm:$0xf]
        %v3386 = vld [vmem:[#allocation2 + $0x60] sm:$0xf]
        %v3387 = vld [vmem:[#allocation2 + $0x64] sm:$0xf]
        %v3388 = vld [vmem:[#allocation2 + $0x68] sm:$0xf]
        %v3389 = vld [vmem:[#allocation2 + $0x6c] sm:$0xf]
        %v3390 = vld [vmem:[#allocation2 + $0x70] sm:$0xf]
        %v3391 = vld [vmem:[#allocation2 + $0x74] sm:$0xf]
        %v3392 = vld [vmem:[#allocation2 + $0x78] sm:$0xf]
        %v3393 = vld [vmem:[#allocation2 + $0x7c] sm:$0xf]
        %v3394 = vld [vmem:[#allocation2 + $0x80] sm:$0xf]
        %v3395 = vld [vmem:[#allocation2 + $0x84] sm:$0xf]
        %v3396 = vld [vmem:[#allocation2 + $0x88] sm:$0xf]
        %v3397 = vld [vmem:[#allocation2 + $0x8c] sm:$0xf]
        %v3398 = vld [vmem:[#allocation2 + $0x90] sm:$0x1]
        %v3399 = vsel %vm2426, 0, %v3366
        %v3400 = vsel %vm2427, 0, %v3367
        %v3401 = vsel %vm2428, 0, %v3368
        %v3402 = vsel %vm2429, 0, %v3369
        %v3403 = vsel %vm2430, 0, %v3370
        %v3404 = vsel %vm2431, 0, %v3371
        %v3405 = vsel %vm2432, 0, %v3372
        %v3406 = vsel %vm2433, 0, %v3373
        %v3407 = vsel %vm2434, 0, %v3374
        %v3408 = vsel %vm2435, 0, %v3375
        %v3409 = vsel %vm2436, 0, %v3376
        %v3410 = vsel %vm2437, 0, %v3377
        %v3411 = vsel %vm2438, 0, %v3378
        %v3412 = vsel %vm2439, 0, %v3379
        %v3413 = vsel %vm2440, 0, %v3380
        %v3414 = vsel %vm2441, 0, %v3381
        %v3415 = vsel %vm2442, 0, %v3382
        %v3416 = vsel %vm2443, 0, %v3383
        %v3417 = vsel %vm2444, 0, %v3384
        %v3418 = vsel %vm2445, 0, %v3385
        %v3419 = vsel %vm2446, 0, %v3386
        %v3420 = vsel %vm2447, 0, %v3387
        %v3421 = vsel %vm2448, 0, %v3388
        %v3422 = vsel %vm2449, 0, %v3389
        %v3423 = vsel %vm2450, 0, %v3390
        %v3424 = vsel %vm2451, 0, %v3391
        %v3425 = vsel %vm2452, 0, %v3392
        %v3426 = vsel %vm2453, 0, %v3393
        %v3427 = vsel %vm2454, 0, %v3394
        %v3428 = vsel %vm2455, 0, %v3395
        %v3429 = vsel %vm2456, 0, %v3396
        %v3430 = vsel %vm2457, 0, %v3397
        %v3431 = vsel %vm2458, 0, %v3398
        %v3433 = vshrl.u32 %v3399, 16
        %v3435 = vrot.slane %v3433, 4
        %v3436 = vshll.u32 %v3399, 16
        %v3438 = vrot.slane %v3436, 5
        %v3439 = vor.u32 %v3435, %v3438
        %v3440 = vrot.slane %v3439, 4
        %v3442 = vshll.u32 %v3400, 16
        %v3444 = vrot.slane %v3442, 5
        %v3445 = vsel %vm1169, %v3440, %v3444
        %v3446 = vshrl.u32 %v3400, 16
        %v3448 = vrot.slane %v3446, 4
        %v3449 = vor.u32 %v3448, %v3444
        %v3450 = vrot.slane %v3449, 4
        %v3452 = vshll.u32 %v3401, 16
        %v3454 = vrot.slane %v3452, 5
        %v3455 = vsel %vm1169, %v3450, %v3454
        %v3456 = vshrl.u32 %v3401, 16
        %v3458 = vrot.slane %v3456, 4
        %v3459 = vor.u32 %v3458, %v3454
        %v3460 = vrot.slane %v3459, 4
        %v3462 = vshll.u32 %v3402, 16
        %v3464 = vrot.slane %v3462, 5
        %v3465 = vsel %vm1169, %v3460, %v3464
        %v3466 = vshrl.u32 %v3402, 16
        %v3468 = vrot.slane %v3466, 4
        %v3469 = vor.u32 %v3468, %v3464
        %v3470 = vrot.slane %v3469, 4
        %v3472 = vshll.u32 %v3403, 16
        %v3474 = vrot.slane %v3472, 5
        %v3475 = vsel %vm1169, %v3470, %v3474
        %v3476 = vshrl.u32 %v3403, 16
        %v3478 = vrot.slane %v3476, 4
        %v3479 = vor.u32 %v3478, %v3474
        %v3480 = vrot.slane %v3479, 4
        %v3482 = vshll.u32 %v3404, 16
        %v3484 = vrot.slane %v3482, 5
        %v3485 = vsel %vm1169, %v3480, %v3484
        %v3486 = vshrl.u32 %v3404, 16
        %v3488 = vrot.slane %v3486, 4
        %v3489 = vor.u32 %v3488, %v3484
        %v3490 = vrot.slane %v3489, 4
        %v3492 = vshll.u32 %v3405, 16
        %v3494 = vrot.slane %v3492, 5
        %v3495 = vsel %vm1169, %v3490, %v3494
        %v3496 = vshrl.u32 %v3405, 16
        %v3498 = vrot.slane %v3496, 4
        %v3499 = vor.u32 %v3498, %v3494
        %v3500 = vrot.slane %v3499, 4
        %v3502 = vshll.u32 %v3406, 16
        %v3504 = vrot.slane %v3502, 5
        %v3505 = vsel %vm1169, %v3500, %v3504
        %v3506 = vshrl.u32 %v3406, 16
        %v3508 = vrot.slane %v3506, 4
        %v3509 = vor.u32 %v3508, %v3504
        %v3510 = vrot.slane %v3509, 4
        %v3512 = vshll.u32 %v3407, 16
        %v3514 = vrot.slane %v3512, 5
        %v3515 = vsel %vm1169, %v3510, %v3514
        %v3516 = vshrl.u32 %v3407, 16
        %v3518 = vrot.slane %v3516, 4
        %v3519 = vor.u32 %v3518, %v3514
        %v3520 = vrot.slane %v3519, 4
        %v3522 = vshll.u32 %v3408, 16
        %v3524 = vrot.slane %v3522, 5
        %v3525 = vsel %vm1169, %v3520, %v3524
        %v3526 = vshrl.u32 %v3408, 16
        %v3528 = vrot.slane %v3526, 4
        %v3529 = vor.u32 %v3528, %v3524
        %v3530 = vrot.slane %v3529, 4
        %v3532 = vshll.u32 %v3409, 16
        %v3534 = vrot.slane %v3532, 5
        %v3535 = vsel %vm1169, %v3530, %v3534
        %v3536 = vshrl.u32 %v3409, 16
        %v3538 = vrot.slane %v3536, 4
        %v3539 = vor.u32 %v3538, %v3534
        %v3540 = vrot.slane %v3539, 4
        %v3542 = vshll.u32 %v3410, 16
        %v3544 = vrot.slane %v3542, 5
        %v3545 = vsel %vm1169, %v3540, %v3544
        %v3546 = vshrl.u32 %v3410, 16
        %v3548 = vrot.slane %v3546, 4
        %v3549 = vor.u32 %v3548, %v3544
        %v3550 = vrot.slane %v3549, 4
        %v3552 = vshll.u32 %v3411, 16
        %v3554 = vrot.slane %v3552, 5
        %v3555 = vsel %vm1169, %v3550, %v3554
        %v3556 = vshrl.u32 %v3411, 16
        %v3558 = vrot.slane %v3556, 4
        %v3559 = vor.u32 %v3558, %v3554
        %v3560 = vrot.slane %v3559, 4
        %v3562 = vshll.u32 %v3412, 16
        %v3564 = vrot.slane %v3562, 5
        %v3565 = vsel %vm1169, %v3560, %v3564
        %v3566 = vshrl.u32 %v3412, 16
        %v3568 = vrot.slane %v3566, 4
        %v3569 = vor.u32 %v3568, %v3564
        %v3570 = vrot.slane %v3569, 4
        %v3572 = vshll.u32 %v3413, 16
        %v3574 = vrot.slane %v3572, 5
        %v3575 = vsel %vm1169, %v3570, %v3574
        %v3576 = vshrl.u32 %v3413, 16
        %v3578 = vrot.slane %v3576, 4
        %v3579 = vor.u32 %v3578, %v3574
        %v3580 = vrot.slane %v3579, 4
        %v3582 = vshll.u32 %v3414, 16
        %v3584 = vrot.slane %v3582, 5
        %v3585 = vsel %vm1169, %v3580, %v3584
        %v3586 = vshrl.u32 %v3414, 16
        %v3588 = vrot.slane %v3586, 4
        %v3589 = vor.u32 %v3588, %v3584
        %v3590 = vrot.slane %v3589, 4
        %v3592 = vshll.u32 %v3415, 16
        %v3594 = vrot.slane %v3592, 5
        %v3595 = vsel %vm1169, %v3590, %v3594
        %v3596 = vshrl.u32 %v3415, 16
        %v3598 = vrot.slane %v3596, 4
        %v3599 = vor.u32 %v3598, %v3594
        %v3600 = vrot.slane %v3599, 4
        %v3602 = vshll.u32 %v3416, 16
        %v3604 = vrot.slane %v3602, 5
        %v3605 = vsel %vm1169, %v3600, %v3604
        %v3606 = vshrl.u32 %v3416, 16
        %v3608 = vrot.slane %v3606, 4
        %v3609 = vor.u32 %v3608, %v3604
        %v3610 = vrot.slane %v3609, 4
        %v3612 = vshll.u32 %v3417, 16
        %v3614 = vrot.slane %v3612, 5
        %v3615 = vsel %vm1169, %v3610, %v3614
        %v3616 = vshrl.u32 %v3417, 16
        %v3618 = vrot.slane %v3616, 4
        %v3619 = vor.u32 %v3618, %v3614
        %v3620 = vrot.slane %v3619, 4
        %v3622 = vshll.u32 %v3418, 16
        %v3624 = vrot.slane %v3622, 5
        %v3625 = vsel %vm1169, %v3620, %v3624
        %v3626 = vshrl.u32 %v3418, 16
        %v3628 = vrot.slane %v3626, 4
        %v3629 = vor.u32 %v3628, %v3624
        %v3630 = vrot.slane %v3629, 4
        %v3632 = vshll.u32 %v3419, 16
        %v3634 = vrot.slane %v3632, 5
        %v3635 = vsel %vm1169, %v3630, %v3634
        %v3636 = vshrl.u32 %v3419, 16
        %v3638 = vrot.slane %v3636, 4
        %v3639 = vor.u32 %v3638, %v3634
        %v3640 = vrot.slane %v3639, 4
        %v3642 = vshll.u32 %v3420, 16
        %v3644 = vrot.slane %v3642, 5
        %v3645 = vsel %vm1169, %v3640, %v3644
        %v3646 = vshrl.u32 %v3420, 16
        %v3648 = vrot.slane %v3646, 4
        %v3649 = vor.u32 %v3648, %v3644
        %v3650 = vrot.slane %v3649, 4
        %v3652 = vshll.u32 %v3421, 16
        %v3654 = vrot.slane %v3652, 5
        %v3655 = vsel %vm1169, %v3650, %v3654
        %v3656 = vshrl.u32 %v3421, 16
        %v3658 = vrot.slane %v3656, 4
        %v3659 = vor.u32 %v3658, %v3654
        %v3660 = vrot.slane %v3659, 4
        %v3662 = vshll.u32 %v3422, 16
        %v3664 = vrot.slane %v3662, 5
        %v3665 = vsel %vm1169, %v3660, %v3664
        %v3666 = vshrl.u32 %v3422, 16
        %v3668 = vrot.slane %v3666, 4
        %v3669 = vor.u32 %v3668, %v3664
        %v3670 = vrot.slane %v3669, 4
        %v3672 = vshll.u32 %v3423, 16
        %v3674 = vrot.slane %v3672, 5
        %v3675 = vsel %vm1169, %v3670, %v3674
        %v3676 = vshrl.u32 %v3423, 16
        %v3678 = vrot.slane %v3676, 4
        %v3679 = vor.u32 %v3678, %v3674
        %v3680 = vrot.slane %v3679, 4
        %v3682 = vshll.u32 %v3424, 16
        %v3684 = vrot.slane %v3682, 5
        %v3685 = vsel %vm1169, %v3680, %v3684
        %v3686 = vshrl.u32 %v3424, 16
        %v3688 = vrot.slane %v3686, 4
        %v3689 = vor.u32 %v3688, %v3684
        %v3690 = vrot.slane %v3689, 4
        %v3692 = vshll.u32 %v3425, 16
        %v3694 = vrot.slane %v3692, 5
        %v3695 = vsel %vm1169, %v3690, %v3694
        %v3696 = vshrl.u32 %v3425, 16
        %v3698 = vrot.slane %v3696, 4
        %v3699 = vor.u32 %v3698, %v3694
        %v3700 = vrot.slane %v3699, 4
        %v3702 = vshll.u32 %v3426, 16
        %v3704 = vrot.slane %v3702, 5
        %v3705 = vsel %vm1169, %v3700, %v3704
        %v3706 = vshrl.u32 %v3426, 16
        %v3708 = vrot.slane %v3706, 4
        %v3709 = vor.u32 %v3708, %v3704
        %v3710 = vrot.slane %v3709, 4
        %v3712 = vshll.u32 %v3427, 16
        %v3714 = vrot.slane %v3712, 5
        %v3715 = vsel %vm1169, %v3710, %v3714
        %v3716 = vshrl.u32 %v3427, 16
        %v3718 = vrot.slane %v3716, 4
        %v3719 = vor.u32 %v3718, %v3714
        %v3720 = vrot.slane %v3719, 4
        %v3722 = vshll.u32 %v3428, 16
        %v3724 = vrot.slane %v3722, 5
        %v3725 = vsel %vm1169, %v3720, %v3724
        %v3726 = vshrl.u32 %v3428, 16
        %v3728 = vrot.slane %v3726, 4
        %v3729 = vor.u32 %v3728, %v3724
        %v3730 = vrot.slane %v3729, 4
        %v3732 = vshll.u32 %v3429, 16
        %v3734 = vrot.slane %v3732, 5
        %v3735 = vsel %vm1169, %v3730, %v3734
        %v3736 = vshrl.u32 %v3429, 16
        %v3738 = vrot.slane %v3736, 4
        %v3739 = vor.u32 %v3738, %v3734
        %v3740 = vrot.slane %v3739, 4
        %v3742 = vshll.u32 %v3430, 16
        %v3744 = vrot.slane %v3742, 5
        %v3745 = vsel %vm1169, %v3740, %v3744
        %v3746 = vshrl.u32 %v3430, 16
        %v3748 = vrot.slane %v3746, 4
        %v3749 = vor.u32 %v3748, %v3744
        %v3750 = vrot.slane %v3749, 4
        %v3752 = vshll.u32 %v3431, 16
        %v3754 = vrot.slane %v3752, 5
        %v3755 = vsel %vm1169, %v3750, %v3754
        %3788 = vst [vmem:[#allocation4 + $0x14] sm:$0xf] %v3445
        %3789 = vst [vmem:[#allocation4 + $0x38] sm:$0xf] %v3455
        %3790 = vst [vmem:[#allocation4 + $0x5c] sm:$0xf] %v3465
        %3791 = vst [vmem:[#allocation4 + $0x80] sm:$0xf] %v3475
        %3792 = vst [vmem:[#allocation4 + $0xa4] sm:$0xf] %v3485
        %3793 = vst [vmem:[#allocation4 + $0xc8] sm:$0xf] %v3495
        %3794 = vst [vmem:[#allocation4 + $0xec] sm:$0xf] %v3505
        %3795 = vst [vmem:[#allocation4 + $0x110] sm:$0xf] %v3515
        %3796 = vst [vmem:[#allocation4 + $0x134] sm:$0xf] %v3525
        %3797 = vst [vmem:[#allocation4 + $0x158] sm:$0xf] %v3535
        %3798 = vst [vmem:[#allocation4 + $0x17c] sm:$0xf] %v3545
        %3799 = vst [vmem:[#allocation4 + $0x1a0] sm:$0xf] %v3555
        %3800 = vst [vmem:[#allocation4 + $0x1c4] sm:$0xf] %v3565
        %3801 = vst [vmem:[#allocation4 + $0x1e8] sm:$0xf] %v3575
        %3802 = vst [vmem:[#allocation4 + $0x20c] sm:$0xf] %v3585
        %3803 = vst [vmem:[#allocation4 + $0x230] sm:$0xf] %v3595
        %3804 = vst [vmem:[#allocation4 + $0x254] sm:$0xf] %v3605
        %3805 = vst [vmem:[#allocation4 + $0x278] sm:$0xf] %v3615
        %3806 = vst [vmem:[#allocation4 + $0x29c] sm:$0xf] %v3625
        %3807 = vst [vmem:[#allocation4 + $0x2c0] sm:$0xf] %v3635
        %3808 = vst [vmem:[#allocation4 + $0x2e4] sm:$0xf] %v3645
        %3809 = vst [vmem:[#allocation4 + $0x308] sm:$0xf] %v3655
        %3810 = vst [vmem:[#allocation4 + $0x32c] sm:$0xf] %v3665
        %3811 = vst [vmem:[#allocation4 + $0x350] sm:$0xf] %v3675
        %3812 = vst [vmem:[#allocation4 + $0x374] sm:$0xf] %v3685
        %3813 = vst [vmem:[#allocation4 + $0x398] sm:$0xf] %v3695
        %3814 = vst [vmem:[#allocation4 + $0x3bc] sm:$0xf] %v3705
        %3815 = vst [vmem:[#allocation4 + $0x3e0] sm:$0xf] %v3715
        %3816 = vst [vmem:[#allocation4 + $0x404] sm:$0xf] %v3725
        %3817 = vst [vmem:[#allocation4 + $0x428] sm:$0xf] %v3735
        %3818 = vst [vmem:[#allocation4 + $0x44c] sm:$0xf] %v3745
        %3819 = vst [vmem:[#allocation4 + $0x470] sm:$0xf] %v3755
        %v3820 = vld [vmem:[#allocation2 + $0x14] sm:$0x8]
        %v3821 = vld [vmem:[#allocation2 + $0x18] sm:$0xf]
        %v3822 = vld [vmem:[#allocation2 + $0x1c] sm:$0xf]
        %v3823 = vld [vmem:[#allocation2 + $0x20] sm:$0xf]
        %v3824 = vld [vmem:[#allocation2 + $0x24] sm:$0xf]
        %v3825 = vld [vmem:[#allocation2 + $0x28] sm:$0xf]
        %v3826 = vld [vmem:[#allocation2 + $0x2c] sm:$0xf]
        %v3827 = vld [vmem:[#allocation2 + $0x30] sm:$0xf]
        %v3828 = vld [vmem:[#allocation2 + $0x34] sm:$0xf]
        %v3829 = vld [vmem:[#allocation2 + $0x38] sm:$0xf]
        %v3830 = vld [vmem:[#allocation2 + $0x3c] sm:$0xf]
        %v3831 = vld [vmem:[#allocation2 + $0x40] sm:$0xf]
        %v3832 = vld [vmem:[#allocation2 + $0x44] sm:$0xf]
        %v3833 = vld [vmem:[#allocation2 + $0x48] sm:$0xf]
        %v3834 = vld [vmem:[#allocation2 + $0x4c] sm:$0xf]
        %v3835 = vld [vmem:[#allocation2 + $0x50] sm:$0xf]
        %v3836 = vld [vmem:[#allocation2 + $0x54] sm:$0xf]
        %v3837 = vld [vmem:[#allocation2 + $0x58] sm:$0xf]
        %v3838 = vld [vmem:[#allocation2 + $0x5c] sm:$0xf]
        %v3839 = vld [vmem:[#allocation2 + $0x60] sm:$0xf]
        %v3840 = vld [vmem:[#allocation2 + $0x64] sm:$0xf]
        %v3841 = vld [vmem:[#allocation2 + $0x68] sm:$0xf]
        %v3842 = vld [vmem:[#allocation2 + $0x6c] sm:$0xf]
        %v3843 = vld [vmem:[#allocation2 + $0x70] sm:$0xf]
        %v3844 = vld [vmem:[#allocation2 + $0x74] sm:$0xf]
        %v3845 = vld [vmem:[#allocation2 + $0x78] sm:$0xf]
        %v3846 = vld [vmem:[#allocation2 + $0x7c] sm:$0xf]
        %v3847 = vld [vmem:[#allocation2 + $0x80] sm:$0xf]
        %v3848 = vld [vmem:[#allocation2 + $0x84] sm:$0xf]
        %v3849 = vld [vmem:[#allocation2 + $0x88] sm:$0xf]
        %v3850 = vld [vmem:[#allocation2 + $0x8c] sm:$0xf]
        %v3851 = vld [vmem:[#allocation2 + $0x90] sm:$0xf]
        %v3852 = vld [vmem:[#allocation2 + $0x94] sm:$0xf]
        %v3853 = vsel %vm1489, 0, %v3820
        %v3854 = vsel %vm1490, 0, %v3821
        %v3855 = vsel %vm1491, 0, %v3822
        %v3856 = vsel %vm1492, 0, %v3823
        %v3857 = vsel %vm1493, 0, %v3824
        %v3858 = vsel %vm1494, 0, %v3825
        %v3859 = vsel %vm1495, 0, %v3826
        %v3860 = vsel %vm1496, 0, %v3827
        %v3861 = vsel %vm1497, 0, %v3828
        %v3862 = vsel %vm1498, 0, %v3829
        %v3863 = vsel %vm1499, 0, %v3830
        %v3864 = vsel %vm1500, 0, %v3831
        %v3865 = vsel %vm1501, 0, %v3832
        %v3866 = vsel %vm1502, 0, %v3833
        %v3867 = vsel %vm1503, 0, %v3834
        %v3868 = vsel %vm1504, 0, %v3835
        %v3869 = vsel %vm1505, 0, %v3836
        %v3870 = vsel %vm1506, 0, %v3837
        %v3871 = vsel %vm1507, 0, %v3838
        %v3872 = vsel %vm1508, 0, %v3839
        %v3873 = vsel %vm1509, 0, %v3840
        %v3874 = vsel %vm1510, 0, %v3841
        %v3875 = vsel %vm1511, 0, %v3842
        %v3876 = vsel %vm1512, 0, %v3843
        %v3877 = vsel %vm1513, 0, %v3844
        %v3878 = vsel %vm1514, 0, %v3845
        %v3879 = vsel %vm1515, 0, %v3846
        %v3880 = vsel %vm1516, 0, %v3847
        %v3881 = vsel %vm1517, 0, %v3848
        %v3882 = vsel %vm1518, 0, %v3849
        %v3883 = vsel %vm1519, 0, %v3850
        %v3884 = vsel %vm1520, 0, %v3851
        %v3885 = vsel %vm1521, 0, %v3852
        %v3887 = vshrl.u32 %v3853, 16
        %v3889 = vrot.slane %v3887, 7
        %v3890 = vrot.slane %v3889, 4
        %v3892 = vshrl.u32 %v3854, 16
        %v3894 = vrot.slane %v3892, 7
        %v3895 = vshll.u32 %v3854, 16
        %v3897 = vor.u32 %v3894, %v3895
        %v3898 = vsel %vm1557, %v3890, %v3897
        %v3899 = vrot.slane %v3894, 4
        %v3901 = vshrl.u32 %v3855, 16
        %v3903 = vrot.slane %v3901, 7
        %v3904 = vshll.u32 %v3855, 16
        %v3906 = vor.u32 %v3903, %v3904
        %v3907 = vsel %vm1557, %v3899, %v3906
        %v3908 = vrot.slane %v3903, 4
        %v3910 = vshrl.u32 %v3856, 16
        %v3912 = vrot.slane %v3910, 7
        %v3913 = vshll.u32 %v3856, 16
        %v3915 = vor.u32 %v3912, %v3913
        %v3916 = vsel %vm1557, %v3908, %v3915
        %v3917 = vrot.slane %v3912, 4
        %v3919 = vshrl.u32 %v3857, 16
        %v3921 = vrot.slane %v3919, 7
        %v3922 = vshll.u32 %v3857, 16
        %v3924 = vor.u32 %v3921, %v3922
        %v3925 = vsel %vm1557, %v3917, %v3924
        %v3926 = vrot.slane %v3921, 4
        %v3928 = vshrl.u32 %v3858, 16
        %v3930 = vrot.slane %v3928, 7
        %v3931 = vshll.u32 %v3858, 16
        %v3933 = vor.u32 %v3930, %v3931
        %v3934 = vsel %vm1557, %v3926, %v3933
        %v3935 = vrot.slane %v3930, 4
        %v3937 = vshrl.u32 %v3859, 16
        %v3939 = vrot.slane %v3937, 7
        %v3940 = vshll.u32 %v3859, 16
        %v3942 = vor.u32 %v3939, %v3940
        %v3943 = vsel %vm1557, %v3935, %v3942
        %v3944 = vrot.slane %v3939, 4
        %v3946 = vshrl.u32 %v3860, 16
        %v3948 = vrot.slane %v3946, 7
        %v3949 = vshll.u32 %v3860, 16
        %v3951 = vor.u32 %v3948, %v3949
        %v3952 = vsel %vm1557, %v3944, %v3951
        %v3953 = vrot.slane %v3948, 4
        %v3955 = vshrl.u32 %v3861, 16
        %v3957 = vrot.slane %v3955, 7
        %v3958 = vshll.u32 %v3861, 16
        %v3960 = vor.u32 %v3957, %v3958
        %v3961 = vsel %vm1557, %v3953, %v3960
        %v3962 = vrot.slane %v3957, 4
        %v3964 = vshrl.u32 %v3862, 16
        %v3966 = vrot.slane %v3964, 7
        %v3967 = vshll.u32 %v3862, 16
        %v3969 = vor.u32 %v3966, %v3967
        %v3970 = vsel %vm1557, %v3962, %v3969
        %v3971 = vrot.slane %v3966, 4
        %v3973 = vshrl.u32 %v3863, 16
        %v3975 = vrot.slane %v3973, 7
        %v3976 = vshll.u32 %v3863, 16
        %v3978 = vor.u32 %v3975, %v3976
        %v3979 = vsel %vm1557, %v3971, %v3978
        %v3980 = vrot.slane %v3975, 4
        %v3982 = vshrl.u32 %v3864, 16
        %v3984 = vrot.slane %v3982, 7
        %v3985 = vshll.u32 %v3864, 16
        %v3987 = vor.u32 %v3984, %v3985
        %v3988 = vsel %vm1557, %v3980, %v3987
        %v3989 = vrot.slane %v3984, 4
        %v3991 = vshrl.u32 %v3865, 16
        %v3993 = vrot.slane %v3991, 7
        %v3994 = vshll.u32 %v3865, 16
        %v3996 = vor.u32 %v3993, %v3994
        %v3997 = vsel %vm1557, %v3989, %v3996
        %v3998 = vrot.slane %v3993, 4
        %v4000 = vshrl.u32 %v3866, 16
        %v4002 = vrot.slane %v4000, 7
        %v4003 = vshll.u32 %v3866, 16
        %v4005 = vor.u32 %v4002, %v4003
        %v4006 = vsel %vm1557, %v3998, %v4005
        %v4007 = vrot.slane %v4002, 4
        %v4009 = vshrl.u32 %v3867, 16
        %v4011 = vrot.slane %v4009, 7
        %v4012 = vshll.u32 %v3867, 16
        %v4014 = vor.u32 %v4011, %v4012
        %v4015 = vsel %vm1557, %v4007, %v4014
        %v4016 = vrot.slane %v4011, 4
        %v4018 = vshrl.u32 %v3868, 16
        %v4020 = vrot.slane %v4018, 7
        %v4021 = vshll.u32 %v3868, 16
        %v4023 = vor.u32 %v4020, %v4021
        %v4024 = vsel %vm1557, %v4016, %v4023
        %v4025 = vrot.slane %v4020, 4
        %v4027 = vshrl.u32 %v3869, 16
        %v4029 = vrot.slane %v4027, 7
        %v4030 = vshll.u32 %v3869, 16
        %v4032 = vor.u32 %v4029, %v4030
        %v4033 = vsel %vm1557, %v4025, %v4032
        %v4034 = vrot.slane %v4029, 4
        %v4036 = vshrl.u32 %v3870, 16
        %v4038 = vrot.slane %v4036, 7
        %v4039 = vshll.u32 %v3870, 16
        %v4041 = vor.u32 %v4038, %v4039
        %v4042 = vsel %vm1557, %v4034, %v4041
        %v4043 = vrot.slane %v4038, 4
        %v4045 = vshrl.u32 %v3871, 16
        %v4047 = vrot.slane %v4045, 7
        %v4048 = vshll.u32 %v3871, 16
        %v4050 = vor.u32 %v4047, %v4048
        %v4051 = vsel %vm1557, %v4043, %v4050
        %v4052 = vrot.slane %v4047, 4
        %v4054 = vshrl.u32 %v3872, 16
        %v4056 = vrot.slane %v4054, 7
        %v4057 = vshll.u32 %v3872, 16
        %v4059 = vor.u32 %v4056, %v4057
        %v4060 = vsel %vm1557, %v4052, %v4059
        %v4061 = vrot.slane %v4056, 4
        %v4063 = vshrl.u32 %v3873, 16
        %v4065 = vrot.slane %v4063, 7
        %v4066 = vshll.u32 %v3873, 16
        %v4068 = vor.u32 %v4065, %v4066
        %v4069 = vsel %vm1557, %v4061, %v4068
        %v4070 = vrot.slane %v4065, 4
        %v4072 = vshrl.u32 %v3874, 16
        %v4074 = vrot.slane %v4072, 7
        %v4075 = vshll.u32 %v3874, 16
        %v4077 = vor.u32 %v4074, %v4075
        %v4078 = vsel %vm1557, %v4070, %v4077
        %v4079 = vrot.slane %v4074, 4
        %v4081 = vshrl.u32 %v3875, 16
        %v4083 = vrot.slane %v4081, 7
        %v4084 = vshll.u32 %v3875, 16
        %v4086 = vor.u32 %v4083, %v4084
        %v4087 = vsel %vm1557, %v4079, %v4086
        %v4088 = vrot.slane %v4083, 4
        %v4090 = vshrl.u32 %v3876, 16
        %v4092 = vrot.slane %v4090, 7
        %v4093 = vshll.u32 %v3876, 16
        %v4095 = vor.u32 %v4092, %v4093
        %v4096 = vsel %vm1557, %v4088, %v4095
        %v4097 = vrot.slane %v4092, 4
        %v4099 = vshrl.u32 %v3877, 16
        %v4101 = vrot.slane %v4099, 7
        %v4102 = vshll.u32 %v3877, 16
        %v4104 = vor.u32 %v4101, %v4102
        %v4105 = vsel %vm1557, %v4097, %v4104
        %v4106 = vrot.slane %v4101, 4
        %v4108 = vshrl.u32 %v3878, 16
        %v4110 = vrot.slane %v4108, 7
        %v4111 = vshll.u32 %v3878, 16
        %v4113 = vor.u32 %v4110, %v4111
        %v4114 = vsel %vm1557, %v4106, %v4113
        %v4115 = vrot.slane %v4110, 4
        %v4117 = vshrl.u32 %v3879, 16
        %v4119 = vrot.slane %v4117, 7
        %v4120 = vshll.u32 %v3879, 16
        %v4122 = vor.u32 %v4119, %v4120
        %v4123 = vsel %vm1557, %v4115, %v4122
        %v4124 = vrot.slane %v4119, 4
        %v4126 = vshrl.u32 %v3880, 16
        %v4128 = vrot.slane %v4126, 7
        %v4129 = vshll.u32 %v3880, 16
        %v4131 = vor.u32 %v4128, %v4129
        %v4132 = vsel %vm1557, %v4124, %v4131
        %v4133 = vrot.slane %v4128, 4
        %v4135 = vshrl.u32 %v3881, 16
        %v4137 = vrot.slane %v4135, 7
        %v4138 = vshll.u32 %v3881, 16
        %v4140 = vor.u32 %v4137, %v4138
        %v4141 = vsel %vm1557, %v4133, %v4140
        %v4142 = vrot.slane %v4137, 4
        %v4144 = vshrl.u32 %v3882, 16
        %v4146 = vrot.slane %v4144, 7
        %v4147 = vshll.u32 %v3882, 16
        %v4149 = vor.u32 %v4146, %v4147
        %v4150 = vsel %vm1557, %v4142, %v4149
        %v4151 = vrot.slane %v4146, 4
        %v4153 = vshrl.u32 %v3883, 16
        %v4155 = vrot.slane %v4153, 7
        %v4156 = vshll.u32 %v3883, 16
        %v4158 = vor.u32 %v4155, %v4156
        %v4159 = vsel %vm1557, %v4151, %v4158
        %v4160 = vrot.slane %v4155, 4
        %v4162 = vshrl.u32 %v3884, 16
        %v4164 = vrot.slane %v4162, 7
        %v4165 = vshll.u32 %v3884, 16
        %v4167 = vor.u32 %v4164, %v4165
        %v4168 = vsel %vm1557, %v4160, %v4167
        %v4169 = vrot.slane %v4164, 4
        %v4171 = vshrl.u32 %v3885, 16
        %v4173 = vrot.slane %v4171, 7
        %v4174 = vshll.u32 %v3885, 16
        %v4176 = vor.u32 %v4173, %v4174
        %v4177 = vsel %vm1557, %v4169, %v4176
        %4210 = vst [vmem:[#allocation4 + $0x18] sm:$0xf] %v3898
        %4211 = vst [vmem:[#allocation4 + $0x3c] sm:$0xf] %v3907
        %4212 = vst [vmem:[#allocation4 + $0x60] sm:$0xf] %v3916
        %4213 = vst [vmem:[#allocation4 + $0x84] sm:$0xf] %v3925
        %4214 = vst [vmem:[#allocation4 + $0xa8] sm:$0xf] %v3934
        %4215 = vst [vmem:[#allocation4 + $0xcc] sm:$0xf] %v3943
        %4216 = vst [vmem:[#allocation4 + $0xf0] sm:$0xf] %v3952
        %4217 = vst [vmem:[#allocation4 + $0x114] sm:$0xf] %v3961
        %4218 = vst [vmem:[#allocation4 + $0x138] sm:$0xf] %v3970
        %4219 = vst [vmem:[#allocation4 + $0x15c] sm:$0xf] %v3979
        %4220 = vst [vmem:[#allocation4 + $0x180] sm:$0xf] %v3988
        %4221 = vst [vmem:[#allocation4 + $0x1a4] sm:$0xf] %v3997
        %4222 = vst [vmem:[#allocation4 + $0x1c8] sm:$0xf] %v4006
        %4223 = vst [vmem:[#allocation4 + $0x1ec] sm:$0xf] %v4015
        %4224 = vst [vmem:[#allocation4 + $0x210] sm:$0xf] %v4024
        %4225 = vst [vmem:[#allocation4 + $0x234] sm:$0xf] %v4033
        %4226 = vst [vmem:[#allocation4 + $0x258] sm:$0xf] %v4042
        %4227 = vst [vmem:[#allocation4 + $0x27c] sm:$0xf] %v4051
        %4228 = vst [vmem:[#allocation4 + $0x2a0] sm:$0xf] %v4060
        %4229 = vst [vmem:[#allocation4 + $0x2c4] sm:$0xf] %v4069
        %4230 = vst [vmem:[#allocation4 + $0x2e8] sm:$0xf] %v4078
        %4231 = vst [vmem:[#allocation4 + $0x30c] sm:$0xf] %v4087
        %4232 = vst [vmem:[#allocation4 + $0x330] sm:$0xf] %v4096
        %4233 = vst [vmem:[#allocation4 + $0x354] sm:$0xf] %v4105
        %4234 = vst [vmem:[#allocation4 + $0x378] sm:$0xf] %v4114
        %4235 = vst [vmem:[#allocation4 + $0x39c] sm:$0xf] %v4123
        %4236 = vst [vmem:[#allocation4 + $0x3c0] sm:$0xf] %v4132
        %4237 = vst [vmem:[#allocation4 + $0x3e4] sm:$0xf] %v4141
        %4238 = vst [vmem:[#allocation4 + $0x408] sm:$0xf] %v4150
        %4239 = vst [vmem:[#allocation4 + $0x42c] sm:$0xf] %v4159
        %4240 = vst [vmem:[#allocation4 + $0x450] sm:$0xf] %v4168
        %4241 = vst [vmem:[#allocation4 + $0x474] sm:$0xf] %v4177
        %v4242 = vld [vmem:[#allocation2 + $0x18] sm:$0xf]
        %v4243 = vld [vmem:[#allocation2 + $0x1c] sm:$0xf]
        %v4244 = vld [vmem:[#allocation2 + $0x20] sm:$0xf]
        %v4245 = vld [vmem:[#allocation2 + $0x24] sm:$0xf]
        %v4246 = vld [vmem:[#allocation2 + $0x28] sm:$0xf]
        %v4247 = vld [vmem:[#allocation2 + $0x2c] sm:$0xf]
        %v4248 = vld [vmem:[#allocation2 + $0x30] sm:$0xf]
        %v4249 = vld [vmem:[#allocation2 + $0x34] sm:$0xf]
        %v4250 = vld [vmem:[#allocation2 + $0x38] sm:$0xf]
        %v4251 = vld [vmem:[#allocation2 + $0x3c] sm:$0xf]
        %v4252 = vld [vmem:[#allocation2 + $0x40] sm:$0xf]
        %v4253 = vld [vmem:[#allocation2 + $0x44] sm:$0xf]
        %v4254 = vld [vmem:[#allocation2 + $0x48] sm:$0xf]
        %v4255 = vld [vmem:[#allocation2 + $0x4c] sm:$0xf]
        %v4256 = vld [vmem:[#allocation2 + $0x50] sm:$0xf]
        %v4257 = vld [vmem:[#allocation2 + $0x54] sm:$0xf]
        %v4258 = vld [vmem:[#allocation2 + $0x58] sm:$0xf]
        %v4259 = vld [vmem:[#allocation2 + $0x5c] sm:$0xf]
        %v4260 = vld [vmem:[#allocation2 + $0x60] sm:$0xf]
        %v4261 = vld [vmem:[#allocation2 + $0x64] sm:$0xf]
        %v4262 = vld [vmem:[#allocation2 + $0x68] sm:$0xf]
        %v4263 = vld [vmem:[#allocation2 + $0x6c] sm:$0xf]
        %v4264 = vld [vmem:[#allocation2 + $0x70] sm:$0xf]
        %v4265 = vld [vmem:[#allocation2 + $0x74] sm:$0xf]
        %v4266 = vld [vmem:[#allocation2 + $0x78] sm:$0xf]
        %v4267 = vld [vmem:[#allocation2 + $0x7c] sm:$0xf]
        %v4268 = vld [vmem:[#allocation2 + $0x80] sm:$0xf]
        %v4269 = vld [vmem:[#allocation2 + $0x84] sm:$0xf]
        %v4270 = vld [vmem:[#allocation2 + $0x88] sm:$0xf]
        %v4271 = vld [vmem:[#allocation2 + $0x8c] sm:$0xf]
        %v4272 = vld [vmem:[#allocation2 + $0x90] sm:$0xf]
        %v4273 = vld [vmem:[#allocation2 + $0x94] sm:$0xf]
        %4274 = vst [vmem:[#allocation4 + $0x1c] sm:$0xf] %v4242
        %4275 = vst [vmem:[#allocation4 + $0x40] sm:$0xf] %v4243
        %4276 = vst [vmem:[#allocation4 + $0x64] sm:$0xf] %v4244
        %4277 = vst [vmem:[#allocation4 + $0x88] sm:$0xf] %v4245
        %4278 = vst [vmem:[#allocation4 + $0xac] sm:$0xf] %v4246
        %4279 = vst [vmem:[#allocation4 + $0xd0] sm:$0xf] %v4247
        %4280 = vst [vmem:[#allocation4 + $0xf4] sm:$0xf] %v4248
        %4281 = vst [vmem:[#allocation4 + $0x118] sm:$0xf] %v4249
        %4282 = vst [vmem:[#allocation4 + $0x13c] sm:$0xf] %v4250
        %4283 = vst [vmem:[#allocation4 + $0x160] sm:$0xf] %v4251
        %4284 = vst [vmem:[#allocation4 + $0x184] sm:$0xf] %v4252
        %4285 = vst [vmem:[#allocation4 + $0x1a8] sm:$0xf] %v4253
        %4286 = vst [vmem:[#allocation4 + $0x1cc] sm:$0xf] %v4254
        %4287 = vst [vmem:[#allocation4 + $0x1f0] sm:$0xf] %v4255
        %4288 = vst [vmem:[#allocation4 + $0x214] sm:$0xf] %v4256
        %4289 = vst [vmem:[#allocation4 + $0x238] sm:$0xf] %v4257
        %4290 = vst [vmem:[#allocation4 + $0x25c] sm:$0xf] %v4258
        %4291 = vst [vmem:[#allocation4 + $0x280] sm:$0xf] %v4259
        %4292 = vst [vmem:[#allocation4 + $0x2a4] sm:$0xf] %v4260
        %4293 = vst [vmem:[#allocation4 + $0x2c8] sm:$0xf] %v4261
        %4294 = vst [vmem:[#allocation4 + $0x2ec] sm:$0xf] %v4262
        %4295 = vst [vmem:[#allocation4 + $0x310] sm:$0xf] %v4263
        %4296 = vst [vmem:[#allocation4 + $0x334] sm:$0xf] %v4264
        %4297 = vst [vmem:[#allocation4 + $0x358] sm:$0xf] %v4265
        %4298 = vst [vmem:[#allocation4 + $0x37c] sm:$0xf] %v4266
        %4299 = vst [vmem:[#allocation4 + $0x3a0] sm:$0xf] %v4267
        %4300 = vst [vmem:[#allocation4 + $0x3c4] sm:$0xf] %v4268
        %4301 = vst [vmem:[#allocation4 + $0x3e8] sm:$0xf] %v4269
        %4302 = vst [vmem:[#allocation4 + $0x40c] sm:$0xf] %v4270
        %4303 = vst [vmem:[#allocation4 + $0x430] sm:$0xf] %v4271
        %4304 = vst [vmem:[#allocation4 + $0x454] sm:$0xf] %v4272
        %4305 = vst [vmem:[#allocation4 + $0x478] sm:$0xf] %v4273
        %v4306 = vld [vmem:[#allocation2 + $0x18] sm:$0xf]
        %v4307 = vld [vmem:[#allocation2 + $0x1c] sm:$0xf]
        %v4308 = vld [vmem:[#allocation2 + $0x20] sm:$0xf]
        %v4309 = vld [vmem:[#allocation2 + $0x24] sm:$0xf]
        %v4310 = vld [vmem:[#allocation2 + $0x28] sm:$0xf]
        %v4311 = vld [vmem:[#allocation2 + $0x2c] sm:$0xf]
        %v4312 = vld [vmem:[#allocation2 + $0x30] sm:$0xf]
        %v4313 = vld [vmem:[#allocation2 + $0x34] sm:$0xf]
        %v4314 = vld [vmem:[#allocation2 + $0x38] sm:$0xf]
        %v4315 = vld [vmem:[#allocation2 + $0x3c] sm:$0xf]
        %v4316 = vld [vmem:[#allocation2 + $0x40] sm:$0xf]
        %v4317 = vld [vmem:[#allocation2 + $0x44] sm:$0xf]
        %v4318 = vld [vmem:[#allocation2 + $0x48] sm:$0xf]
        %v4319 = vld [vmem:[#allocation2 + $0x4c] sm:$0xf]
        %v4320 = vld [vmem:[#allocation2 + $0x50] sm:$0xf]
        %v4321 = vld [vmem:[#allocation2 + $0x54] sm:$0xf]
        %v4322 = vld [vmem:[#allocation2 + $0x58] sm:$0xf]
        %v4323 = vld [vmem:[#allocation2 + $0x5c] sm:$0xf]
        %v4324 = vld [vmem:[#allocation2 + $0x60] sm:$0xf]
        %v4325 = vld [vmem:[#allocation2 + $0x64] sm:$0xf]
        %v4326 = vld [vmem:[#allocation2 + $0x68] sm:$0xf]
        %v4327 = vld [vmem:[#allocation2 + $0x6c] sm:$0xf]
        %v4328 = vld [vmem:[#allocation2 + $0x70] sm:$0xf]
        %v4329 = vld [vmem:[#allocation2 + $0x74] sm:$0xf]
        %v4330 = vld [vmem:[#allocation2 + $0x78] sm:$0xf]
        %v4331 = vld [vmem:[#allocation2 + $0x7c] sm:$0xf]
        %v4332 = vld [vmem:[#allocation2 + $0x80] sm:$0xf]
        %v4333 = vld [vmem:[#allocation2 + $0x84] sm:$0xf]
        %v4334 = vld [vmem:[#allocation2 + $0x88] sm:$0xf]
        %v4335 = vld [vmem:[#allocation2 + $0x8c] sm:$0xf]
        %v4336 = vld [vmem:[#allocation2 + $0x90] sm:$0xf]
        %v4337 = vld [vmem:[#allocation2 + $0x94] sm:$0xf]
        %v4338 = vld [vmem:[#allocation2 + $0x98] sm:$0x1]
        %v4339 = vsel %vm2426, 0, %v4306
        %v4340 = vsel %vm2427, 0, %v4307
        %v4341 = vsel %vm2428, 0, %v4308
        %v4342 = vsel %vm2429, 0, %v4309
        %v4343 = vsel %vm2430, 0, %v4310
        %v4344 = vsel %vm2431, 0, %v4311
        %v4345 = vsel %vm2432, 0, %v4312
        %v4346 = vsel %vm2433, 0, %v4313
        %v4347 = vsel %vm2434, 0, %v4314
        %v4348 = vsel %vm2435, 0, %v4315
        %v4349 = vsel %vm2436, 0, %v4316
        %v4350 = vsel %vm2437, 0, %v4317
        %v4351 = vsel %vm2438, 0, %v4318
        %v4352 = vsel %vm2439, 0, %v4319
        %v4353 = vsel %vm2440, 0, %v4320
        %v4354 = vsel %vm2441, 0, %v4321
        %v4355 = vsel %vm2442, 0, %v4322
        %v4356 = vsel %vm2443, 0, %v4323
        %v4357 = vsel %vm2444, 0, %v4324
        %v4358 = vsel %vm2445, 0, %v4325
        %v4359 = vsel %vm2446, 0, %v4326
        %v4360 = vsel %vm2447, 0, %v4327
        %v4361 = vsel %vm2448, 0, %v4328
        %v4362 = vsel %vm2449, 0, %v4329
        %v4363 = vsel %vm2450, 0, %v4330
        %v4364 = vsel %vm2451, 0, %v4331
        %v4365 = vsel %vm2452, 0, %v4332
        %v4366 = vsel %vm2453, 0, %v4333
        %v4367 = vsel %vm2454, 0, %v4334
        %v4368 = vsel %vm2455, 0, %v4335
        %v4369 = vsel %vm2456, 0, %v4336
        %v4370 = vsel %vm2457, 0, %v4337
        %v4371 = vsel %vm2458, 0, %v4338
        %v4373 = vshrl.u32 %v4339, 16
        %v4375 = vrot.slane %v4373, 4
        %v4376 = vshll.u32 %v4339, 16
        %v4378 = vrot.slane %v4376, 5
        %v4379 = vor.u32 %v4375, %v4378
        %v4380 = vrot.slane %v4379, 4
        %v4382 = vshll.u32 %v4340, 16
        %v4384 = vrot.slane %v4382, 5
        %v4385 = vsel %vm1169, %v4380, %v4384
        %v4386 = vshrl.u32 %v4340, 16
        %v4388 = vrot.slane %v4386, 4
        %v4389 = vor.u32 %v4388, %v4384
        %v4390 = vrot.slane %v4389, 4
        %v4392 = vshll.u32 %v4341, 16
        %v4394 = vrot.slane %v4392, 5
        %v4395 = vsel %vm1169, %v4390, %v4394
        %v4396 = vshrl.u32 %v4341, 16
        %v4398 = vrot.slane %v4396, 4
        %v4399 = vor.u32 %v4398, %v4394
        %v4400 = vrot.slane %v4399, 4
        %v4402 = vshll.u32 %v4342, 16
        %v4404 = vrot.slane %v4402, 5
        %v4405 = vsel %vm1169, %v4400, %v4404
        %v4406 = vshrl.u32 %v4342, 16
        %v4408 = vrot.slane %v4406, 4
        %v4409 = vor.u32 %v4408, %v4404
        %v4410 = vrot.slane %v4409, 4
        %v4412 = vshll.u32 %v4343, 16
        %v4414 = vrot.slane %v4412, 5
        %v4415 = vsel %vm1169, %v4410, %v4414
        %v4416 = vshrl.u32 %v4343, 16
        %v4418 = vrot.slane %v4416, 4
        %v4419 = vor.u32 %v4418, %v4414
        %v4420 = vrot.slane %v4419, 4
        %v4422 = vshll.u32 %v4344, 16
        %v4424 = vrot.slane %v4422, 5
        %v4425 = vsel %vm1169, %v4420, %v4424
        %v4426 = vshrl.u32 %v4344, 16
        %v4428 = vrot.slane %v4426, 4
        %v4429 = vor.u32 %v4428, %v4424
        %v4430 = vrot.slane %v4429, 4
        %v4432 = vshll.u32 %v4345, 16
        %v4434 = vrot.slane %v4432, 5
        %v4435 = vsel %vm1169, %v4430, %v4434
        %v4436 = vshrl.u32 %v4345, 16
        %v4438 = vrot.slane %v4436, 4
        %v4439 = vor.u32 %v4438, %v4434
        %v4440 = vrot.slane %v4439, 4
        %v4442 = vshll.u32 %v4346, 16
        %v4444 = vrot.slane %v4442, 5
        %v4445 = vsel %vm1169, %v4440, %v4444
        %v4446 = vshrl.u32 %v4346, 16
        %v4448 = vrot.slane %v4446, 4
        %v4449 = vor.u32 %v4448, %v4444
        %v4450 = vrot.slane %v4449, 4
        %v4452 = vshll.u32 %v4347, 16
        %v4454 = vrot.slane %v4452, 5
        %v4455 = vsel %vm1169, %v4450, %v4454
        %v4456 = vshrl.u32 %v4347, 16
        %v4458 = vrot.slane %v4456, 4
        %v4459 = vor.u32 %v4458, %v4454
        %v4460 = vrot.slane %v4459, 4
        %v4462 = vshll.u32 %v4348, 16
        %v4464 = vrot.slane %v4462, 5
        %v4465 = vsel %vm1169, %v4460, %v4464
        %v4466 = vshrl.u32 %v4348, 16
        %v4468 = vrot.slane %v4466, 4
        %v4469 = vor.u32 %v4468, %v4464
        %v4470 = vrot.slane %v4469, 4
        %v4472 = vshll.u32 %v4349, 16
        %v4474 = vrot.slane %v4472, 5
        %v4475 = vsel %vm1169, %v4470, %v4474
        %v4476 = vshrl.u32 %v4349, 16
        %v4478 = vrot.slane %v4476, 4
        %v4479 = vor.u32 %v4478, %v4474
        %v4480 = vrot.slane %v4479, 4
        %v4482 = vshll.u32 %v4350, 16
        %v4484 = vrot.slane %v4482, 5
        %v4485 = vsel %vm1169, %v4480, %v4484
        %v4486 = vshrl.u32 %v4350, 16
        %v4488 = vrot.slane %v4486, 4
        %v4489 = vor.u32 %v4488, %v4484
        %v4490 = vrot.slane %v4489, 4
        %v4492 = vshll.u32 %v4351, 16
        %v4494 = vrot.slane %v4492, 5
        %v4495 = vsel %vm1169, %v4490, %v4494
        %v4496 = vshrl.u32 %v4351, 16
        %v4498 = vrot.slane %v4496, 4
        %v4499 = vor.u32 %v4498, %v4494
        %v4500 = vrot.slane %v4499, 4
        %v4502 = vshll.u32 %v4352, 16
        %v4504 = vrot.slane %v4502, 5
        %v4505 = vsel %vm1169, %v4500, %v4504
        %v4506 = vshrl.u32 %v4352, 16
        %v4508 = vrot.slane %v4506, 4
        %v4509 = vor.u32 %v4508, %v4504
        %v4510 = vrot.slane %v4509, 4
        %v4512 = vshll.u32 %v4353, 16
        %v4514 = vrot.slane %v4512, 5
        %v4515 = vsel %vm1169, %v4510, %v4514
        %v4516 = vshrl.u32 %v4353, 16
        %v4518 = vrot.slane %v4516, 4
        %v4519 = vor.u32 %v4518, %v4514
        %v4520 = vrot.slane %v4519, 4
        %v4522 = vshll.u32 %v4354, 16
        %v4524 = vrot.slane %v4522, 5
        %v4525 = vsel %vm1169, %v4520, %v4524
        %v4526 = vshrl.u32 %v4354, 16
        %v4528 = vrot.slane %v4526, 4
        %v4529 = vor.u32 %v4528, %v4524
        %v4530 = vrot.slane %v4529, 4
        %v4532 = vshll.u32 %v4355, 16
        %v4534 = vrot.slane %v4532, 5
        %v4535 = vsel %vm1169, %v4530, %v4534
        %v4536 = vshrl.u32 %v4355, 16
        %v4538 = vrot.slane %v4536, 4
        %v4539 = vor.u32 %v4538, %v4534
        %v4540 = vrot.slane %v4539, 4
        %v4542 = vshll.u32 %v4356, 16
        %v4544 = vrot.slane %v4542, 5
        %v4545 = vsel %vm1169, %v4540, %v4544
        %v4546 = vshrl.u32 %v4356, 16
        %v4548 = vrot.slane %v4546, 4
        %v4549 = vor.u32 %v4548, %v4544
        %v4550 = vrot.slane %v4549, 4
        %v4552 = vshll.u32 %v4357, 16
        %v4554 = vrot.slane %v4552, 5
        %v4555 = vsel %vm1169, %v4550, %v4554
        %v4556 = vshrl.u32 %v4357, 16
        %v4558 = vrot.slane %v4556, 4
        %v4559 = vor.u32 %v4558, %v4554
        %v4560 = vrot.slane %v4559, 4
        %v4562 = vshll.u32 %v4358, 16
        %v4564 = vrot.slane %v4562, 5
        %v4565 = vsel %vm1169, %v4560, %v4564
        %v4566 = vshrl.u32 %v4358, 16
        %v4568 = vrot.slane %v4566, 4
        %v4569 = vor.u32 %v4568, %v4564
        %v4570 = vrot.slane %v4569, 4
        %v4572 = vshll.u32 %v4359, 16
        %v4574 = vrot.slane %v4572, 5
        %v4575 = vsel %vm1169, %v4570, %v4574
        %v4576 = vshrl.u32 %v4359, 16
        %v4578 = vrot.slane %v4576, 4
        %v4579 = vor.u32 %v4578, %v4574
        %v4580 = vrot.slane %v4579, 4
        %v4582 = vshll.u32 %v4360, 16
        %v4584 = vrot.slane %v4582, 5
        %v4585 = vsel %vm1169, %v4580, %v4584
        %v4586 = vshrl.u32 %v4360, 16
        %v4588 = vrot.slane %v4586, 4
        %v4589 = vor.u32 %v4588, %v4584
        %v4590 = vrot.slane %v4589, 4
        %v4592 = vshll.u32 %v4361, 16
        %v4594 = vrot.slane %v4592, 5
        %v4595 = vsel %vm1169, %v4590, %v4594
        %v4596 = vshrl.u32 %v4361, 16
        %v4598 = vrot.slane %v4596, 4
        %v4599 = vor.u32 %v4598, %v4594
        %v4600 = vrot.slane %v4599, 4
        %v4602 = vshll.u32 %v4362, 16
        %v4604 = vrot.slane %v4602, 5
        %v4605 = vsel %vm1169, %v4600, %v4604
        %v4606 = vshrl.u32 %v4362, 16
        %v4608 = vrot.slane %v4606, 4
        %v4609 = vor.u32 %v4608, %v4604
        %v4610 = vrot.slane %v4609, 4
        %v4612 = vshll.u32 %v4363, 16
        %v4614 = vrot.slane %v4612, 5
        %v4615 = vsel %vm1169, %v4610, %v4614
        %v4616 = vshrl.u32 %v4363, 16
        %v4618 = vrot.slane %v4616, 4
        %v4619 = vor.u32 %v4618, %v4614
        %v4620 = vrot.slane %v4619, 4
        %v4622 = vshll.u32 %v4364, 16
        %v4624 = vrot.slane %v4622, 5
        %v4625 = vsel %vm1169, %v4620, %v4624
        %v4626 = vshrl.u32 %v4364, 16
        %v4628 = vrot.slane %v4626, 4
        %v4629 = vor.u32 %v4628, %v4624
        %v4630 = vrot.slane %v4629, 4
        %v4632 = vshll.u32 %v4365, 16
        %v4634 = vrot.slane %v4632, 5
        %v4635 = vsel %vm1169, %v4630, %v4634
        %v4636 = vshrl.u32 %v4365, 16
        %v4638 = vrot.slane %v4636, 4
        %v4639 = vor.u32 %v4638, %v4634
        %v4640 = vrot.slane %v4639, 4
        %v4642 = vshll.u32 %v4366, 16
        %v4644 = vrot.slane %v4642, 5
        %v4645 = vsel %vm1169, %v4640, %v4644
        %v4646 = vshrl.u32 %v4366, 16
        %v4648 = vrot.slane %v4646, 4
        %v4649 = vor.u32 %v4648, %v4644
        %v4650 = vrot.slane %v4649, 4
        %v4652 = vshll.u32 %v4367, 16
        %v4654 = vrot.slane %v4652, 5
        %v4655 = vsel %vm1169, %v4650, %v4654
        %v4656 = vshrl.u32 %v4367, 16
        %v4658 = vrot.slane %v4656, 4
        %v4659 = vor.u32 %v4658, %v4654
        %v4660 = vrot.slane %v4659, 4
        %v4662 = vshll.u32 %v4368, 16
        %v4664 = vrot.slane %v4662, 5
        %v4665 = vsel %vm1169, %v4660, %v4664
        %v4666 = vshrl.u32 %v4368, 16
        %v4668 = vrot.slane %v4666, 4
        %v4669 = vor.u32 %v4668, %v4664
        %v4670 = vrot.slane %v4669, 4
        %v4672 = vshll.u32 %v4369, 16
        %v4674 = vrot.slane %v4672, 5
        %v4675 = vsel %vm1169, %v4670, %v4674
        %v4676 = vshrl.u32 %v4369, 16
        %v4678 = vrot.slane %v4676, 4
        %v4679 = vor.u32 %v4678, %v4674
        %v4680 = vrot.slane %v4679, 4
        %v4682 = vshll.u32 %v4370, 16
        %v4684 = vrot.slane %v4682, 5
        %v4685 = vsel %vm1169, %v4680, %v4684
        %v4686 = vshrl.u32 %v4370, 16
        %v4688 = vrot.slane %v4686, 4
        %v4689 = vor.u32 %v4688, %v4684
        %v4690 = vrot.slane %v4689, 4
        %v4692 = vshll.u32 %v4371, 16
        %v4694 = vrot.slane %v4692, 5
        %v4695 = vsel %vm1169, %v4690, %v4694
        %4728 = vst [vmem:[#allocation4 + $0x20] sm:$0xf] %v4385
        %4729 = vst [vmem:[#allocation4 + $0x44] sm:$0xf] %v4395
        %4730 = vst [vmem:[#allocation4 + $0x68] sm:$0xf] %v4405
        %4731 = vst [vmem:[#allocation4 + $0x8c] sm:$0xf] %v4415
        %4732 = vst [vmem:[#allocation4 + $0xb0] sm:$0xf] %v4425
        %4733 = vst [vmem:[#allocation4 + $0xd4] sm:$0xf] %v4435
        %4734 = vst [vmem:[#allocation4 + $0xf8] sm:$0xf] %v4445
        %4735 = vst [vmem:[#allocation4 + $0x11c] sm:$0xf] %v4455
        %4736 = vst [vmem:[#allocation4 + $0x140] sm:$0xf] %v4465
        %4737 = vst [vmem:[#allocation4 + $0x164] sm:$0xf] %v4475
        %4738 = vst [vmem:[#allocation4 + $0x188] sm:$0xf] %v4485
        %4739 = vst [vmem:[#allocation4 + $0x1ac] sm:$0xf] %v4495
        %4740 = vst [vmem:[#allocation4 + $0x1d0] sm:$0xf] %v4505
        %4741 = vst [vmem:[#allocation4 + $0x1f4] sm:$0xf] %v4515
        %4742 = vst [vmem:[#allocation4 + $0x218] sm:$0xf] %v4525
        %4743 = vst [vmem:[#allocation4 + $0x23c] sm:$0xf] %v4535
        %4744 = vst [vmem:[#allocation4 + $0x260] sm:$0xf] %v4545
        %4745 = vst [vmem:[#allocation4 + $0x284] sm:$0xf] %v4555
        %4746 = vst [vmem:[#allocation4 + $0x2a8] sm:$0xf] %v4565
        %4747 = vst [vmem:[#allocation4 + $0x2cc] sm:$0xf] %v4575
        %4748 = vst [vmem:[#allocation4 + $0x2f0] sm:$0xf] %v4585
        %4749 = vst [vmem:[#allocation4 + $0x314] sm:$0xf] %v4595
        %4750 = vst [vmem:[#allocation4 + $0x338] sm:$0xf] %v4605
        %4751 = vst [vmem:[#allocation4 + $0x35c] sm:$0xf] %v4615
        %4752 = vst [vmem:[#allocation4 + $0x380] sm:$0xf] %v4625
        %4753 = vst [vmem:[#allocation4 + $0x3a4] sm:$0xf] %v4635
        %4754 = vst [vmem:[#allocation4 + $0x3c8] sm:$0xf] %v4645
        %4755 = vst [vmem:[#allocation4 + $0x3ec] sm:$0xf] %v4655
        %4756 = vst [vmem:[#allocation4 + $0x410] sm:$0xf] %v4665
        %4757 = vst [vmem:[#allocation4 + $0x434] sm:$0xf] %v4675
        %4758 = vst [vmem:[#allocation4 + $0x458] sm:$0xf] %v4685
        %4759 = vst [vmem:[#allocation4 + $0x47c] sm:$0xf] %v4695
        %v4760 = vld [vmem:[#allocation4] sm:$0xff]
        %v4761 = vld [vmem:[#allocation4 + $0x8] sm:$0xff]
        %v4762 = vld [vmem:[#allocation4 + $0x10] sm:$0xff]
        %v4763 = vld [vmem:[#allocation4 + $0x18] sm:$0xff]
        %v4764 = vld [vmem:[#allocation4 + $0x20] sm:$0xf]
        %v4765 = vld [vmem:[#allocation4 + $0x24] sm:$0xff]
        %v4766 = vld [vmem:[#allocation4 + $0x2c] sm:$0xff]
        %v4767 = vld [vmem:[#allocation4 + $0x34] sm:$0xff]
        %v4768 = vld [vmem:[#allocation4 + $0x3c] sm:$0xff]
        %v4769 = vld [vmem:[#allocation4 + $0x44] sm:$0xf]
        %v4770 = vld [vmem:[#allocation4 + $0x48] sm:$0xff]
        %v4771 = vld [vmem:[#allocation4 + $0x50] sm:$0xff]
        %v4772 = vld [vmem:[#allocation4 + $0x58] sm:$0xff]
        %v4773 = vld [vmem:[#allocation4 + $0x60] sm:$0xff]
        %v4774 = vld [vmem:[#allocation4 + $0x68] sm:$0xf]
        %v4775 = vld [vmem:[#allocation4 + $0x6c] sm:$0xff]
        %v4776 = vld [vmem:[#allocation4 + $0x74] sm:$0xff]
        %v4777 = vld [vmem:[#allocation4 + $0x7c] sm:$0xff]
        %v4778 = vld [vmem:[#allocation4 + $0x84] sm:$0xff]
        %v4779 = vld [vmem:[#allocation4 + $0x8c] sm:$0xf]
        %v4780 = vld [vmem:[#allocation4 + $0x90] sm:$0xff]
        %v4781 = vld [vmem:[#allocation4 + $0x98] sm:$0xff]
        %v4782 = vld [vmem:[#allocation4 + $0xa0] sm:$0xff]
        %v4783 = vld [vmem:[#allocation4 + $0xa8] sm:$0xff]
        %v4784 = vld [vmem:[#allocation4 + $0xb0] sm:$0xf]
        %v4785 = vld [vmem:[#allocation4 + $0xb4] sm:$0xff]
        %v4786 = vld [vmem:[#allocation4 + $0xbc] sm:$0xff]
        %v4787 = vld [vmem:[#allocation4 + $0xc4] sm:$0xff]
        %v4788 = vld [vmem:[#allocation4 + $0xcc] sm:$0xff]
        %v4789 = vld [vmem:[#allocation4 + $0xd4] sm:$0xf]
        %v4790 = vld [vmem:[#allocation4 + $0xd8] sm:$0xff]
        %v4791 = vld [vmem:[#allocation4 + $0xe0] sm:$0xff]
        %v4792 = vld [vmem:[#allocation4 + $0xe8] sm:$0xff]
        %v4793 = vld [vmem:[#allocation4 + $0xf0] sm:$0xff]
        %v4794 = vld [vmem:[#allocation4 + $0xf8] sm:$0xf]
        %v4795 = vld [vmem:[#allocation4 + $0xfc] sm:$0xff]
        %v4796 = vld [vmem:[#allocation4 + $0x104] sm:$0xff]
        %v4797 = vld [vmem:[#allocation4 + $0x10c] sm:$0xff]
        %v4798 = vld [vmem:[#allocation4 + $0x114] sm:$0xff]
        %v4799 = vld [vmem:[#allocation4 + $0x11c] sm:$0xf]
        %v4800 = vld [vmem:[#allocation4 + $0x120] sm:$0xff]
        %v4801 = vld [vmem:[#allocation4 + $0x128] sm:$0xff]
        %v4802 = vld [vmem:[#allocation4 + $0x130] sm:$0xff]
        %v4803 = vld [vmem:[#allocation4 + $0x138] sm:$0xff]
        %v4804 = vld [vmem:[#allocation4 + $0x140] sm:$0xf]
        %v4805 = vld [vmem:[#allocation4 + $0x144] sm:$0xff]
        %v4806 = vld [vmem:[#allocation4 + $0x14c] sm:$0xff]
        %v4807 = vld [vmem:[#allocation4 + $0x154] sm:$0xff]
        %v4808 = vld [vmem:[#allocation4 + $0x15c] sm:$0xff]
        %v4809 = vld [vmem:[#allocation4 + $0x164] sm:$0xf]
        %v4810 = vld [vmem:[#allocation4 + $0x168] sm:$0xff]
        %v4811 = vld [vmem:[#allocation4 + $0x170] sm:$0xff]
        %v4812 = vld [vmem:[#allocation4 + $0x178] sm:$0xff]
        %v4813 = vld [vmem:[#allocation4 + $0x180] sm:$0xff]
        %v4814 = vld [vmem:[#allocation4 + $0x188] sm:$0xf]
        %v4815 = vld [vmem:[#allocation4 + $0x18c] sm:$0xff]
        %v4816 = vld [vmem:[#allocation4 + $0x194] sm:$0xff]
        %v4817 = vld [vmem:[#allocation4 + $0x19c] sm:$0xff]
        %v4818 = vld [vmem:[#allocation4 + $0x1a4] sm:$0xff]
        %v4819 = vld [vmem:[#allocation4 + $0x1ac] sm:$0xf]
        %v4820 = vld [vmem:[#allocation4 + $0x1b0] sm:$0xff]
        %v4821 = vld [vmem:[#allocation4 + $0x1b8] sm:$0xff]
        %v4822 = vld [vmem:[#allocation4 + $0x1c0] sm:$0xff]
        %v4823 = vld [vmem:[#allocation4 + $0x1c8] sm:$0xff]
        %v4824 = vld [vmem:[#allocation4 + $0x1d0] sm:$0xf]
        %v4825 = vld [vmem:[#allocation4 + $0x1d4] sm:$0xff]
        %v4826 = vld [vmem:[#allocation4 + $0x1dc] sm:$0xff]
        %v4827 = vld [vmem:[#allocation4 + $0x1e4] sm:$0xff]
        %v4828 = vld [vmem:[#allocation4 + $0x1ec] sm:$0xff]
        %v4829 = vld [vmem:[#allocation4 + $0x1f4] sm:$0xf]
        %v4830 = vld [vmem:[#allocation4 + $0x1f8] sm:$0xff]
        %v4831 = vld [vmem:[#allocation4 + $0x200] sm:$0xff]
        %v4832 = vld [vmem:[#allocation4 + $0x208] sm:$0xff]
        %v4833 = vld [vmem:[#allocation4 + $0x210] sm:$0xff]
        %v4834 = vld [vmem:[#allocation4 + $0x218] sm:$0xf]
        %v4835 = vld [vmem:[#allocation4 + $0x21c] sm:$0xff]
        %v4836 = vld [vmem:[#allocation4 + $0x224] sm:$0xff]
        %v4837 = vld [vmem:[#allocation4 + $0x22c] sm:$0xff]
        %v4838 = vld [vmem:[#allocation4 + $0x234] sm:$0xff]
        %v4839 = vld [vmem:[#allocation4 + $0x23c] sm:$0xf]
        %v4840 = vld [vmem:[#allocation4 + $0x240] sm:$0xff]
        %v4841 = vld [vmem:[#allocation4 + $0x248] sm:$0xff]
        %v4842 = vld [vmem:[#allocation4 + $0x250] sm:$0xff]
        %v4843 = vld [vmem:[#allocation4 + $0x258] sm:$0xff]
        %v4844 = vld [vmem:[#allocation4 + $0x260] sm:$0xf]
        %v4845 = vld [vmem:[#allocation4 + $0x264] sm:$0xff]
        %v4846 = vld [vmem:[#allocation4 + $0x26c] sm:$0xff]
        %v4847 = vld [vmem:[#allocation4 + $0x274] sm:$0xff]
        %v4848 = vld [vmem:[#allocation4 + $0x27c] sm:$0xff]
        %v4849 = vld [vmem:[#allocation4 + $0x284] sm:$0xf]
        %v4850 = vld [vmem:[#allocation4 + $0x288] sm:$0xff]
        %v4851 = vld [vmem:[#allocation4 + $0x290] sm:$0xff]
        %v4852 = vld [vmem:[#allocation4 + $0x298] sm:$0xff]
        %v4853 = vld [vmem:[#allocation4 + $0x2a0] sm:$0xff]
        %v4854 = vld [vmem:[#allocation4 + $0x2a8] sm:$0xf]
        %v4855 = vld [vmem:[#allocation4 + $0x2ac] sm:$0xff]
        %v4856 = vld [vmem:[#allocation4 + $0x2b4] sm:$0xff]
        %v4857 = vld [vmem:[#allocation4 + $0x2bc] sm:$0xff]
        %v4858 = vld [vmem:[#allocation4 + $0x2c4] sm:$0xff]
        %v4859 = vld [vmem:[#allocation4 + $0x2cc] sm:$0xf]
        %v4860 = vld [vmem:[#allocation4 + $0x2d0] sm:$0xff]
        %v4861 = vld [vmem:[#allocation4 + $0x2d8] sm:$0xff]
        %v4862 = vld [vmem:[#allocation4 + $0x2e0] sm:$0xff]
        %v4863 = vld [vmem:[#allocation4 + $0x2e8] sm:$0xff]
        %v4864 = vld [vmem:[#allocation4 + $0x2f0] sm:$0xf]
        %v4865 = vld [vmem:[#allocation4 + $0x2f4] sm:$0xff]
        %v4866 = vld [vmem:[#allocation4 + $0x2fc] sm:$0xff]
        %v4867 = vld [vmem:[#allocation4 + $0x304] sm:$0xff]
        %v4868 = vld [vmem:[#allocation4 + $0x30c] sm:$0xff]
        %v4869 = vld [vmem:[#allocation4 + $0x314] sm:$0xf]
        %v4870 = vld [vmem:[#allocation4 + $0x318] sm:$0xff]
        %v4871 = vld [vmem:[#allocation4 + $0x320] sm:$0xff]
        %v4872 = vld [vmem:[#allocation4 + $0x328] sm:$0xff]
        %v4873 = vld [vmem:[#allocation4 + $0x330] sm:$0xff]
        %v4874 = vld [vmem:[#allocation4 + $0x338] sm:$0xf]
        %v4875 = vld [vmem:[#allocation4 + $0x33c] sm:$0xff]
        %v4876 = vld [vmem:[#allocation4 + $0x344] sm:$0xff]
        %v4877 = vld [vmem:[#allocation4 + $0x34c] sm:$0xff]
        %v4878 = vld [vmem:[#allocation4 + $0x354] sm:$0xff]
        %v4879 = vld [vmem:[#allocation4 + $0x35c] sm:$0xf]
        %v4880 = vld [vmem:[#allocation4 + $0x360] sm:$0xff]
        %v4881 = vld [vmem:[#allocation4 + $0x368] sm:$0xff]
        %v4882 = vld [vmem:[#allocation4 + $0x370] sm:$0xff]
        %v4883 = vld [vmem:[#allocation4 + $0x378] sm:$0xff]
        %v4884 = vld [vmem:[#allocation4 + $0x380] sm:$0xf]
        %v4885 = vld [vmem:[#allocation4 + $0x384] sm:$0xff]
        %v4886 = vld [vmem:[#allocation4 + $0x38c] sm:$0xff]
        %v4887 = vld [vmem:[#allocation4 + $0x394] sm:$0xff]
        %v4888 = vld [vmem:[#allocation4 + $0x39c] sm:$0xff]
        %v4889 = vld [vmem:[#allocation4 + $0x3a4] sm:$0xf]
        %v4890 = vld [vmem:[#allocation4 + $0x3a8] sm:$0xff]
        %v4891 = vld [vmem:[#allocation4 + $0x3b0] sm:$0xff]
        %v4892 = vld [vmem:[#allocation4 + $0x3b8] sm:$0xff]
        %v4893 = vld [vmem:[#allocation4 + $0x3c0] sm:$0xff]
        %v4894 = vld [vmem:[#allocation4 + $0x3c8] sm:$0xf]
        %v4895 = vld [vmem:[#allocation4 + $0x3cc] sm:$0xff]
        %v4896 = vld [vmem:[#allocation4 + $0x3d4] sm:$0xff]
        %v4897 = vld [vmem:[#allocation4 + $0x3dc] sm:$0xff]
        %v4898 = vld [vmem:[#allocation4 + $0x3e4] sm:$0xff]
        %v4899 = vld [vmem:[#allocation4 + $0x3ec] sm:$0xf]
        %v4900 = vld [vmem:[#allocation4 + $0x3f0] sm:$0xff]
        %v4901 = vld [vmem:[#allocation4 + $0x3f8] sm:$0xff]
        %v4902 = vld [vmem:[#allocation4 + $0x400] sm:$0xff]
        %v4903 = vld [vmem:[#allocation4 + $0x408] sm:$0xff]
        %v4904 = vld [vmem:[#allocation4 + $0x410] sm:$0xf]
        %v4905 = vld [vmem:[#allocation4 + $0x414] sm:$0xff]
        %v4906 = vld [vmem:[#allocation4 + $0x41c] sm:$0xff]
        %v4907 = vld [vmem:[#allocation4 + $0x424] sm:$0xff]
        %v4908 = vld [vmem:[#allocation4 + $0x42c] sm:$0xff]
        %v4909 = vld [vmem:[#allocation4 + $0x434] sm:$0xf]
        %v4910 = vld [vmem:[#allocation4 + $0x438] sm:$0xff]
        %v4911 = vld [vmem:[#allocation4 + $0x440] sm:$0xff]
        %v4912 = vld [vmem:[#allocation4 + $0x448] sm:$0xff]
        %v4913 = vld [vmem:[#allocation4 + $0x450] sm:$0xff]
        %v4914 = vld [vmem:[#allocation4 + $0x458] sm:$0xf]
        %v4915 = vld [vmem:[#allocation4 + $0x45c] sm:$0xff]
        %v4916 = vld [vmem:[#allocation4 + $0x464] sm:$0xff]
        %v4917 = vld [vmem:[#allocation4 + $0x46c] sm:$0xff]
        %v4918 = vld [vmem:[#allocation4 + $0x474] sm:$0xff]
        %v4919 = vld [vmem:[#allocation4 + $0x47c] sm:$0xf]
        %v4920 = vld [vmem:[#allocation8] sm:$0xf]
        %v4921 = vld [vmem:[#allocation8 + $0x4] sm:$0xf]
        %v4922 = vld [vmem:[#allocation8 + $0x8] sm:$0xf]
        %v4923 = vld [vmem:[#allocation8 + $0xc] sm:$0xf]
        %v4924 = vld [vmem:[#allocation8 + $0x10] sm:$0xf]
        %v4925 = vld [vmem:[#allocation8 + $0x14] sm:$0xf]
        %v4926 = vld [vmem:[#allocation8 + $0x18] sm:$0xf]
        %v4927 = vld [vmem:[#allocation8 + $0x1c] sm:$0xf]
        %v4928 = vld [vmem:[#allocation8 + $0x20] sm:$0xf]
        %v4929 = vld [vmem:[#allocation8 + $0x24] sm:$0xf]
        %v4930 = vld [vmem:[#allocation8 + $0x28] sm:$0xf]
        %v4931 = vld [vmem:[#allocation8 + $0x2c] sm:$0xf]
        %v4932 = vld [vmem:[#allocation8 + $0x30] sm:$0xf]
        %v4933 = vld [vmem:[#allocation8 + $0x34] sm:$0xf]
        %v4934 = vld [vmem:[#allocation8 + $0x38] sm:$0xf]
        %v4935 = vld [vmem:[#allocation8 + $0x3c] sm:$0xf]
        %v4936 = vld [vmem:[#allocation8 + $0x40] sm:$0xf]
        %v4937 = vld [vmem:[#allocation8 + $0x44] sm:$0xf]
        %v4938 = vld [vmem:[#allocation8 + $0x48] sm:$0xf]
        %v4939 = vld [vmem:[#allocation8 + $0x4c] sm:$0xf]
        %v4940 = vld [vmem:[#allocation8 + $0x50] sm:$0xf]
        %v4941 = vld [vmem:[#allocation8 + $0x54] sm:$0xf]
        %v4942 = vld [vmem:[#allocation8 + $0x58] sm:$0xf]
        %v4943 = vld [vmem:[#allocation8 + $0x5c] sm:$0xf]
        %v4944 = vld [vmem:[#allocation8 + $0x60] sm:$0xf]
        %v4945 = vld [vmem:[#allocation8 + $0x64] sm:$0xf]
        %v4946 = vld [vmem:[#allocation8 + $0x68] sm:$0xf]
        %v4947 = vld [vmem:[#allocation8 + $0x6c] sm:$0xf]
        %v4948 = vld [vmem:[#allocation8 + $0x70] sm:$0xf]
        %v4949 = vld [vmem:[#allocation8 + $0x74] sm:$0xf]
        %v4950 = vld [vmem:[#allocation8 + $0x78] sm:$0xf]
        %v4951 = vld [vmem:[#allocation8 + $0x7c] sm:$0xf]
        %v4952 = vld [vmem:[#allocation8 + $0x80] sm:$0xf]
        %v4953 = vld [vmem:[#allocation8 + $0x84] sm:$0xf]
        %v4954 = vld [vmem:[#allocation8 + $0x88] sm:$0xf]
        %v4955 = vld [vmem:[#allocation8 + $0x8c] sm:$0xf]
        %v4956 = vld [vmem:[#allocation8 + $0x90] sm:$0xf]
        %v4957 = vld [vmem:[#allocation8 + $0x94] sm:$0xf]
        %v4958 = vld [vmem:[#allocation8 + $0x98] sm:$0xf]
        %v4959 = vld [vmem:[#allocation8 + $0x9c] sm:$0xf]
        %v4960 = vld [vmem:[#allocation8 + $0xa0] sm:$0xf]
        %v4961 = vld [vmem:[#allocation8 + $0xa4] sm:$0xf]
        %v4962 = vld [vmem:[#allocation8 + $0xa8] sm:$0xf]
        %v4963 = vld [vmem:[#allocation8 + $0xac] sm:$0xf]
        %v4964 = vld [vmem:[#allocation8 + $0xb0] sm:$0xf]
        %v4965 = vld [vmem:[#allocation8 + $0xb4] sm:$0xf]
        %v4966 = vld [vmem:[#allocation8 + $0xb8] sm:$0xf]
        %v4967 = vld [vmem:[#allocation8 + $0xbc] sm:$0xf]
        %v4968 = vld [vmem:[#allocation8 + $0xc0] sm:$0xf]
        %v4969 = vld [vmem:[#allocation8 + $0xc4] sm:$0xf]
        %v4970 = vld [vmem:[#allocation8 + $0xc8] sm:$0xf]
        %v4971 = vld [vmem:[#allocation8 + $0xcc] sm:$0xf]
        %v4972 = vld [vmem:[#allocation8 + $0xd0] sm:$0xf]
        %v4973 = vld [vmem:[#allocation8 + $0xd4] sm:$0xf]
        %v4974 = vld [vmem:[#allocation8 + $0xd8] sm:$0xf]
        %v4975 = vld [vmem:[#allocation8 + $0xdc] sm:$0xf]
        %v4976 = vld [vmem:[#allocation8 + $0xe0] sm:$0xf]
        %v4977 = vld [vmem:[#allocation8 + $0xe4] sm:$0xf]
        %v4978 = vld [vmem:[#allocation8 + $0xe8] sm:$0xf]
        %v4979 = vld [vmem:[#allocation8 + $0xec] sm:$0xf]
        %v4980 = vld [vmem:[#allocation8 + $0xf0] sm:$0xf]
        %v4981 = vld [vmem:[#allocation8 + $0xf4] sm:$0xf]
        %v4982 = vld [vmem:[#allocation8 + $0xf8] sm:$0xf]
        %v4983 = vld [vmem:[#allocation8 + $0xfc] sm:$0xf]
        %v4984 = vld [vmem:[#allocation8 + $0x100] sm:$0xf]
        %v4985 = vld [vmem:[#allocation8 + $0x104] sm:$0xf]
        %v4986 = vld [vmem:[#allocation8 + $0x108] sm:$0xf]
        %v4987 = vld [vmem:[#allocation8 + $0x10c] sm:$0xf]
        %v4988 = vld [vmem:[#allocation8 + $0x110] sm:$0xf]
        %v4989 = vld [vmem:[#allocation8 + $0x114] sm:$0xf]
        %v4990 = vld [vmem:[#allocation8 + $0x118] sm:$0xf]
        %v4991 = vld [vmem:[#allocation8 + $0x11c] sm:$0xf]
        %v4992 = vld [vmem:[#allocation8 + $0x120] sm:$0xf]
        %v4993 = vld [vmem:[#allocation8 + $0x124] sm:$0xf]
        %v4994 = vld [vmem:[#allocation8 + $0x128] sm:$0xf]
        %v4995 = vld [vmem:[#allocation8 + $0x12c] sm:$0xf]
        %v4996 = vld [vmem:[#allocation8 + $0x130] sm:$0xf]
        %v4997 = vld [vmem:[#allocation8 + $0x134] sm:$0xf]
        %v4998 = vld [vmem:[#allocation8 + $0x138] sm:$0xf]
        %v4999 = vld [vmem:[#allocation8 + $0x13c] sm:$0xf]
        %v5000 = vld [vmem:[#allocation8 + $0x140] sm:$0xf]
        %v5001 = vld [vmem:[#allocation8 + $0x144] sm:$0xf]
        %v5002 = vld [vmem:[#allocation8 + $0x148] sm:$0xf]
        %v5003 = vld [vmem:[#allocation8 + $0x14c] sm:$0xf]
        %v5004 = vld [vmem:[#allocation8 + $0x150] sm:$0xf]
        %v5005 = vld [vmem:[#allocation8 + $0x154] sm:$0xf]
        %v5006 = vld [vmem:[#allocation8 + $0x158] sm:$0xf]
        %v5007 = vld [vmem:[#allocation8 + $0x15c] sm:$0xf]
        %v5008 = vld [vmem:[#allocation8 + $0x160] sm:$0xf]
        %v5009 = vld [vmem:[#allocation8 + $0x164] sm:$0xf]
        %v5010 = vld [vmem:[#allocation8 + $0x168] sm:$0xf]
        %v5011 = vld [vmem:[#allocation8 + $0x16c] sm:$0xf]
        %v5012 = vld [vmem:[#allocation8 + $0x170] sm:$0xf]
        %v5013 = vld [vmem:[#allocation8 + $0x174] sm:$0xf]
        %v5014 = vld [vmem:[#allocation8 + $0x178] sm:$0xf]
        %v5015 = vld [vmem:[#allocation8 + $0x17c] sm:$0xf]
        %v5016 = vld [vmem:[#allocation8 + $0x180] sm:$0xf]
        %v5017 = vld [vmem:[#allocation8 + $0x184] sm:$0xf]
        %v5018 = vld [vmem:[#allocation8 + $0x188] sm:$0xf]
        %v5019 = vld [vmem:[#allocation8 + $0x18c] sm:$0xf]
        %v5020 = vld [vmem:[#allocation8 + $0x190] sm:$0xf]
        %v5021 = vld [vmem:[#allocation8 + $0x194] sm:$0xf]
        %v5022 = vld [vmem:[#allocation8 + $0x198] sm:$0xf]
        %v5023 = vld [vmem:[#allocation8 + $0x19c] sm:$0xf]
        %v5024 = vld [vmem:[#allocation8 + $0x1a0] sm:$0xf]
        %v5025 = vld [vmem:[#allocation8 + $0x1a4] sm:$0xf]
        %v5026 = vld [vmem:[#allocation8 + $0x1a8] sm:$0xf]
        %v5027 = vld [vmem:[#allocation8 + $0x1ac] sm:$0xf]
        %v5028 = vld [vmem:[#allocation8 + $0x1b0] sm:$0xf]
        %v5029 = vld [vmem:[#allocation8 + $0x1b4] sm:$0xf]
        %v5030 = vld [vmem:[#allocation8 + $0x1b8] sm:$0xf]
        %v5031 = vld [vmem:[#allocation8 + $0x1bc] sm:$0xf]
        %v5032 = vld [vmem:[#allocation8 + $0x1c0] sm:$0xf]
        %v5033 = vld [vmem:[#allocation8 + $0x1c4] sm:$0xf]
        %v5034 = vld [vmem:[#allocation8 + $0x1c8] sm:$0xf]
        %v5035 = vld [vmem:[#allocation8 + $0x1cc] sm:$0xf]
        %v5036 = vld [vmem:[#allocation8 + $0x1d0] sm:$0xf]
        %v5037 = vld [vmem:[#allocation8 + $0x1d4] sm:$0xf]
        %v5038 = vld [vmem:[#allocation8 + $0x1d8] sm:$0xf]
        %v5039 = vld [vmem:[#allocation8 + $0x1dc] sm:$0xf]
        %v5040 = vld [vmem:[#allocation8 + $0x1e0] sm:$0xf]
        %v5041 = vld [vmem:[#allocation8 + $0x1e4] sm:$0xf]
        %v5042 = vld [vmem:[#allocation8 + $0x1e8] sm:$0xf]
        %v5043 = vld [vmem:[#allocation8 + $0x1ec] sm:$0xf]
        %v5044 = vld [vmem:[#allocation8 + $0x1f0] sm:$0xf]
        %v5045 = vld [vmem:[#allocation8 + $0x1f4] sm:$0xf]
        %v5046 = vld [vmem:[#allocation8 + $0x1f8] sm:$0xf]
        %v5047 = vld [vmem:[#allocation8 + $0x1fc] sm:$0xf]
        %v5048 = vld [vmem:[#allocation8 + $0x200] sm:$0xf]
        %v5049 = vld [vmem:[#allocation8 + $0x204] sm:$0xf]
        %v5050 = vld [vmem:[#allocation8 + $0x208] sm:$0xf]
        %v5051 = vld [vmem:[#allocation8 + $0x20c] sm:$0xf]
        %v5052 = vld [vmem:[#allocation8 + $0x210] sm:$0xf]
        %v5053 = vld [vmem:[#allocation8 + $0x214] sm:$0xf]
        %v5054 = vld [vmem:[#allocation8 + $0x218] sm:$0xf]
        %v5055 = vld [vmem:[#allocation8 + $0x21c] sm:$0xf]
        %v5056 = vld [vmem:[#allocation8 + $0x220] sm:$0xf]
        %v5057 = vld [vmem:[#allocation8 + $0x224] sm:$0xf]
        %v5058 = vld [vmem:[#allocation8 + $0x228] sm:$0xf]
        %v5059 = vld [vmem:[#allocation8 + $0x22c] sm:$0xf]
        %v5060 = vld [vmem:[#allocation8 + $0x230] sm:$0xf]
        %v5061 = vld [vmem:[#allocation8 + $0x234] sm:$0xf]
        %v5062 = vld [vmem:[#allocation8 + $0x238] sm:$0xf]
        %v5063 = vld [vmem:[#allocation8 + $0x23c] sm:$0xf]
        %v5224 = vunpack.c.l.b16 %v4760
        %v5225 = vunpack.c.h.b16 %v4760
        %v5226 = vunpack.c.l.b16 %v4761
        %v5227 = vunpack.c.h.b16 %v4761
        %v5228 = vunpack.c.l.b16 %v4762
        %v5229 = vunpack.c.h.b16 %v4762
        %v5230 = vunpack.c.l.b16 %v4763
        %v5231 = vunpack.c.h.b16 %v4763
        %v5232 = vunpack.c.l.b16 %v4764
        %v5233 = vunpack.c.l.b16 %v4765
        %v5234 = vunpack.c.h.b16 %v4765
        %v5235 = vunpack.c.l.b16 %v4766
        %v5236 = vunpack.c.h.b16 %v4766
        %v5237 = vunpack.c.l.b16 %v4767
        %v5238 = vunpack.c.h.b16 %v4767
        %v5239 = vunpack.c.l.b16 %v4768
        %v5240 = vunpack.c.h.b16 %v4768
        %v5241 = vunpack.c.l.b16 %v4769
        %v5242 = vunpack.c.l.b16 %v4770
        %v5243 = vunpack.c.h.b16 %v4770
        %v5244 = vunpack.c.l.b16 %v4771
        %v5245 = vunpack.c.h.b16 %v4771
        %v5246 = vunpack.c.l.b16 %v4772
        %v5247 = vunpack.c.h.b16 %v4772
        %v5248 = vunpack.c.l.b16 %v4773
        %v5249 = vunpack.c.h.b16 %v4773
        %v5250 = vunpack.c.l.b16 %v4774
        %v5251 = vunpack.c.l.b16 %v4775
        %v5252 = vunpack.c.h.b16 %v4775
        %v5253 = vunpack.c.l.b16 %v4776
        %v5254 = vunpack.c.h.b16 %v4776
        %v5255 = vunpack.c.l.b16 %v4777
        %v5256 = vunpack.c.h.b16 %v4777
        %v5257 = vunpack.c.l.b16 %v4778
        %v5258 = vunpack.c.h.b16 %v4778
        %v5259 = vunpack.c.l.b16 %v4779
        %v5260 = vunpack.c.l.b16 %v4780
        %v5261 = vunpack.c.h.b16 %v4780
        %v5262 = vunpack.c.l.b16 %v4781
        %v5263 = vunpack.c.h.b16 %v4781
        %v5264 = vunpack.c.l.b16 %v4782
        %v5265 = vunpack.c.h.b16 %v4782
        %v5266 = vunpack.c.l.b16 %v4783
        %v5267 = vunpack.c.h.b16 %v4783
        %v5268 = vunpack.c.l.b16 %v4784
        %v5269 = vunpack.c.l.b16 %v4785
        %v5270 = vunpack.c.h.b16 %v4785
        %v5271 = vunpack.c.l.b16 %v4786
        %v5272 = vunpack.c.h.b16 %v4786
        %v5273 = vunpack.c.l.b16 %v4787
        %v5274 = vunpack.c.h.b16 %v4787
        %v5275 = vunpack.c.l.b16 %v4788
        %v5276 = vunpack.c.h.b16 %v4788
        %v5277 = vunpack.c.l.b16 %v4789
        %v5278 = vunpack.c.l.b16 %v4790
        %v5279 = vunpack.c.h.b16 %v4790
        %v5280 = vunpack.c.l.b16 %v4791
        %v5281 = vunpack.c.h.b16 %v4791
        %v5282 = vunpack.c.l.b16 %v4792
        %v5283 = vunpack.c.h.b16 %v4792
        %v5284 = vunpack.c.l.b16 %v4793
        %v5285 = vunpack.c.h.b16 %v4793
        %v5286 = vunpack.c.l.b16 %v4794
        %v5287 = vunpack.c.l.b16 %v4795
        %v5288 = vunpack.c.h.b16 %v4795
        %v5289 = vunpack.c.l.b16 %v4796
        %v5290 = vunpack.c.h.b16 %v4796
        %v5291 = vunpack.c.l.b16 %v4797
        %v5292 = vunpack.c.h.b16 %v4797
        %v5293 = vunpack.c.l.b16 %v4798
        %v5294 = vunpack.c.h.b16 %v4798
        %v5295 = vunpack.c.l.b16 %v4799
        %v5296 = vunpack.c.l.b16 %v4800
        %v5297 = vunpack.c.h.b16 %v4800
        %v5298 = vunpack.c.l.b16 %v4801
        %v5299 = vunpack.c.h.b16 %v4801
        %v5300 = vunpack.c.l.b16 %v4802
        %v5301 = vunpack.c.h.b16 %v4802
        %v5302 = vunpack.c.l.b16 %v4803
        %v5303 = vunpack.c.h.b16 %v4803
        %v5304 = vunpack.c.l.b16 %v4804
        %v5305 = vunpack.c.l.b16 %v4805
        %v5306 = vunpack.c.h.b16 %v4805
        %v5307 = vunpack.c.l.b16 %v4806
        %v5308 = vunpack.c.h.b16 %v4806
        %v5309 = vunpack.c.l.b16 %v4807
        %v5310 = vunpack.c.h.b16 %v4807
        %v5311 = vunpack.c.l.b16 %v4808
        %v5312 = vunpack.c.h.b16 %v4808
        %v5313 = vunpack.c.l.b16 %v4809
        %v5314 = vunpack.c.l.b16 %v4810
        %v5315 = vunpack.c.h.b16 %v4810
        %v5316 = vunpack.c.l.b16 %v4811
        %v5317 = vunpack.c.h.b16 %v4811
        %v5318 = vunpack.c.l.b16 %v4812
        %v5319 = vunpack.c.h.b16 %v4812
        %v5320 = vunpack.c.l.b16 %v4813
        %v5321 = vunpack.c.h.b16 %v4813
        %v5322 = vunpack.c.l.b16 %v4814
        %v5323 = vunpack.c.l.b16 %v4815
        %v5324 = vunpack.c.h.b16 %v4815
        %v5325 = vunpack.c.l.b16 %v4816
        %v5326 = vunpack.c.h.b16 %v4816
        %v5327 = vunpack.c.l.b16 %v4817
        %v5328 = vunpack.c.h.b16 %v4817
        %v5329 = vunpack.c.l.b16 %v4818
        %v5330 = vunpack.c.h.b16 %v4818
        %v5331 = vunpack.c.l.b16 %v4819
        %v5332 = vunpack.c.l.b16 %v4820
        %v5333 = vunpack.c.h.b16 %v4820
        %v5334 = vunpack.c.l.b16 %v4821
        %v5335 = vunpack.c.h.b16 %v4821
        %v5336 = vunpack.c.l.b16 %v4822
        %v5337 = vunpack.c.h.b16 %v4822
        %v5338 = vunpack.c.l.b16 %v4823
        %v5339 = vunpack.c.h.b16 %v4823
        %v5340 = vunpack.c.l.b16 %v4824
        %v5341 = vunpack.c.l.b16 %v4825
        %v5342 = vunpack.c.h.b16 %v4825
        %v5343 = vunpack.c.l.b16 %v4826
        %v5344 = vunpack.c.h.b16 %v4826
        %v5345 = vunpack.c.l.b16 %v4827
        %v5346 = vunpack.c.h.b16 %v4827
        %v5347 = vunpack.c.l.b16 %v4828
        %v5348 = vunpack.c.h.b16 %v4828
        %v5349 = vunpack.c.l.b16 %v4829
        %v5350 = vunpack.c.l.b16 %v4830
        %v5351 = vunpack.c.h.b16 %v4830
        %v5352 = vunpack.c.l.b16 %v4831
        %v5353 = vunpack.c.h.b16 %v4831
        %v5354 = vunpack.c.l.b16 %v4832
        %v5355 = vunpack.c.h.b16 %v4832
        %v5356 = vunpack.c.l.b16 %v4833
        %v5357 = vunpack.c.h.b16 %v4833
        %v5358 = vunpack.c.l.b16 %v4834
        %v5359 = vunpack.c.l.b16 %v4835
        %v5360 = vunpack.c.h.b16 %v4835
        %v5361 = vunpack.c.l.b16 %v4836
        %v5362 = vunpack.c.h.b16 %v4836
        %v5363 = vunpack.c.l.b16 %v4837
        %v5364 = vunpack.c.h.b16 %v4837
        %v5365 = vunpack.c.l.b16 %v4838
        %v5366 = vunpack.c.h.b16 %v4838
        %v5367 = vunpack.c.l.b16 %v4839
        %v5368 = vunpack.c.l.b16 %v4840
        %v5369 = vunpack.c.h.b16 %v4840
        %v5370 = vunpack.c.l.b16 %v4841
        %v5371 = vunpack.c.h.b16 %v4841
        %v5372 = vunpack.c.l.b16 %v4842
        %v5373 = vunpack.c.h.b16 %v4842
        %v5374 = vunpack.c.l.b16 %v4843
        %v5375 = vunpack.c.h.b16 %v4843
        %v5376 = vunpack.c.l.b16 %v4844
        %v5377 = vunpack.c.l.b16 %v4845
        %v5378 = vunpack.c.h.b16 %v4845
        %v5379 = vunpack.c.l.b16 %v4846
        %v5380 = vunpack.c.h.b16 %v4846
        %v5381 = vunpack.c.l.b16 %v4847
        %v5382 = vunpack.c.h.b16 %v4847
        %v5383 = vunpack.c.l.b16 %v4848
        %v5384 = vunpack.c.h.b16 %v4848
        %v5385 = vunpack.c.l.b16 %v4849
        %v5386 = vunpack.c.l.b16 %v4850
        %v5387 = vunpack.c.h.b16 %v4850
        %v5388 = vunpack.c.l.b16 %v4851
        %v5389 = vunpack.c.h.b16 %v4851
        %v5390 = vunpack.c.l.b16 %v4852
        %v5391 = vunpack.c.h.b16 %v4852
        %v5392 = vunpack.c.l.b16 %v4853
        %v5393 = vunpack.c.h.b16 %v4853
        %v5394 = vunpack.c.l.b16 %v4854
        %v5395 = vunpack.c.l.b16 %v4855
        %v5396 = vunpack.c.h.b16 %v4855
        %v5397 = vunpack.c.l.b16 %v4856
        %v5398 = vunpack.c.h.b16 %v4856
        %v5399 = vunpack.c.l.b16 %v4857
        %v5400 = vunpack.c.h.b16 %v4857
        %v5401 = vunpack.c.l.b16 %v4858
        %v5402 = vunpack.c.h.b16 %v4858
        %v5403 = vunpack.c.l.b16 %v4859
        %v5404 = vunpack.c.l.b16 %v4860
        %v5405 = vunpack.c.h.b16 %v4860
        %v5406 = vunpack.c.l.b16 %v4861
        %v5407 = vunpack.c.h.b16 %v4861
        %v5408 = vunpack.c.l.b16 %v4862
        %v5409 = vunpack.c.h.b16 %v4862
        %v5410 = vunpack.c.l.b16 %v4863
        %v5411 = vunpack.c.h.b16 %v4863
        %v5412 = vunpack.c.l.b16 %v4864
        %v5413 = vunpack.c.l.b16 %v4865
        %v5414 = vunpack.c.h.b16 %v4865
        %v5415 = vunpack.c.l.b16 %v4866
        %v5416 = vunpack.c.h.b16 %v4866
        %v5417 = vunpack.c.l.b16 %v4867
        %v5418 = vunpack.c.h.b16 %v4867
        %v5419 = vunpack.c.l.b16 %v4868
        %v5420 = vunpack.c.h.b16 %v4868
        %v5421 = vunpack.c.l.b16 %v4869
        %v5422 = vunpack.c.l.b16 %v4870
        %v5423 = vunpack.c.h.b16 %v4870
        %v5424 = vunpack.c.l.b16 %v4871
        %v5425 = vunpack.c.h.b16 %v4871
        %v5426 = vunpack.c.l.b16 %v4872
        %v5427 = vunpack.c.h.b16 %v4872
        %v5428 = vunpack.c.l.b16 %v4873
        %v5429 = vunpack.c.h.b16 %v4873
        %v5430 = vunpack.c.l.b16 %v4874
        %v5431 = vunpack.c.l.b16 %v4875
        %v5432 = vunpack.c.h.b16 %v4875
        %v5433 = vunpack.c.l.b16 %v4876
        %v5434 = vunpack.c.h.b16 %v4876
        %v5435 = vunpack.c.l.b16 %v4877
        %v5436 = vunpack.c.h.b16 %v4877
        %v5437 = vunpack.c.l.b16 %v4878
        %v5438 = vunpack.c.h.b16 %v4878
        %v5439 = vunpack.c.l.b16 %v4879
        %v5440 = vunpack.c.l.b16 %v4880
        %v5441 = vunpack.c.h.b16 %v4880
        %v5442 = vunpack.c.l.b16 %v4881
        %v5443 = vunpack.c.h.b16 %v4881
        %v5444 = vunpack.c.l.b16 %v4882
        %v5445 = vunpack.c.h.b16 %v4882
        %v5446 = vunpack.c.l.b16 %v4883
        %v5447 = vunpack.c.h.b16 %v4883
        %v5448 = vunpack.c.l.b16 %v4884
        %v5449 = vunpack.c.l.b16 %v4885
        %v5450 = vunpack.c.h.b16 %v4885
        %v5451 = vunpack.c.l.b16 %v4886
        %v5452 = vunpack.c.h.b16 %v4886
        %v5453 = vunpack.c.l.b16 %v4887
        %v5454 = vunpack.c.h.b16 %v4887
        %v5455 = vunpack.c.l.b16 %v4888
        %v5456 = vunpack.c.h.b16 %v4888
        %v5457 = vunpack.c.l.b16 %v4889
        %v5458 = vunpack.c.l.b16 %v4890
        %v5459 = vunpack.c.h.b16 %v4890
        %v5460 = vunpack.c.l.b16 %v4891
        %v5461 = vunpack.c.h.b16 %v4891
        %v5462 = vunpack.c.l.b16 %v4892
        %v5463 = vunpack.c.h.b16 %v4892
        %v5464 = vunpack.c.l.b16 %v4893
        %v5465 = vunpack.c.h.b16 %v4893
        %v5466 = vunpack.c.l.b16 %v4894
        %v5467 = vunpack.c.l.b16 %v4895
        %v5468 = vunpack.c.h.b16 %v4895
        %v5469 = vunpack.c.l.b16 %v4896
        %v5470 = vunpack.c.h.b16 %v4896
        %v5471 = vunpack.c.l.b16 %v4897
        %v5472 = vunpack.c.h.b16 %v4897
        %v5473 = vunpack.c.l.b16 %v4898
        %v5474 = vunpack.c.h.b16 %v4898
        %v5475 = vunpack.c.l.b16 %v4899
        %v5476 = vunpack.c.l.b16 %v4900
        %v5477 = vunpack.c.h.b16 %v4900
        %v5478 = vunpack.c.l.b16 %v4901
        %v5479 = vunpack.c.h.b16 %v4901
        %v5480 = vunpack.c.l.b16 %v4902
        %v5481 = vunpack.c.h.b16 %v4902
        %v5482 = vunpack.c.l.b16 %v4903
        %v5483 = vunpack.c.h.b16 %v4903
        %v5484 = vunpack.c.l.b16 %v4904
        %v5485 = vunpack.c.l.b16 %v4905
        %v5486 = vunpack.c.h.b16 %v4905
        %v5487 = vunpack.c.l.b16 %v4906
        %v5488 = vunpack.c.h.b16 %v4906
        %v5489 = vunpack.c.l.b16 %v4907
        %v5490 = vunpack.c.h.b16 %v4907
        %v5491 = vunpack.c.l.b16 %v4908
        %v5492 = vunpack.c.h.b16 %v4908
        %v5493 = vunpack.c.l.b16 %v4909
        %v5494 = vunpack.c.l.b16 %v4910
        %v5495 = vunpack.c.h.b16 %v4910
        %v5496 = vunpack.c.l.b16 %v4911
        %v5497 = vunpack.c.h.b16 %v4911
        %v5498 = vunpack.c.l.b16 %v4912
        %v5499 = vunpack.c.h.b16 %v4912
        %v5500 = vunpack.c.l.b16 %v4913
        %v5501 = vunpack.c.h.b16 %v4913
        %v5502 = vunpack.c.l.b16 %v4914
        %v5503 = vunpack.c.l.b16 %v4915
        %v5504 = vunpack.c.h.b16 %v4915
        %v5505 = vunpack.c.l.b16 %v4916
        %v5506 = vunpack.c.h.b16 %v4916
        %v5507 = vunpack.c.l.b16 %v4917
        %v5508 = vunpack.c.h.b16 %v4917
        %v5509 = vunpack.c.l.b16 %v4918
        %v5510 = vunpack.c.h.b16 %v4918
        %v5511 = vunpack.c.l.b16 %v4919
        %v5512 = vpack.c.b16 %v5233, %v5224
        %v5513 = vpack.c.b16 %v5234, %v5225
        %v5514 = vpack.c.b16 %v5235, %v5226
        %v5515 = vpack.c.b16 %v5236, %v5227
        %v5516 = vpack.c.b16 %v5237, %v5228
        %v5517 = vpack.c.b16 %v5238, %v5229
        %v5518 = vpack.c.b16 %v5239, %v5230
        %v5519 = vpack.c.b16 %v5240, %v5231
        %v5520 = vpack.c.b16 %v5241, %v5232
        %v5521 = vpack.c.b16 %v5251, %v5242
        %v5522 = vpack.c.b16 %v5252, %v5243
        %v5523 = vpack.c.b16 %v5253, %v5244
        %v5524 = vpack.c.b16 %v5254, %v5245
        %v5525 = vpack.c.b16 %v5255, %v5246
        %v5526 = vpack.c.b16 %v5256, %v5247
        %v5527 = vpack.c.b16 %v5257, %v5248
        %v5528 = vpack.c.b16 %v5258, %v5249
        %v5529 = vpack.c.b16 %v5259, %v5250
        %v5530 = vpack.c.b16 %v5269, %v5260
        %v5531 = vpack.c.b16 %v5270, %v5261
        %v5532 = vpack.c.b16 %v5271, %v5262
        %v5533 = vpack.c.b16 %v5272, %v5263
        %v5534 = vpack.c.b16 %v5273, %v5264
        %v5535 = vpack.c.b16 %v5274, %v5265
        %v5536 = vpack.c.b16 %v5275, %v5266
        %v5537 = vpack.c.b16 %v5276, %v5267
        %v5538 = vpack.c.b16 %v5277, %v5268
        %v5539 = vpack.c.b16 %v5287, %v5278
        %v5540 = vpack.c.b16 %v5288, %v5279
        %v5541 = vpack.c.b16 %v5289, %v5280
        %v5542 = vpack.c.b16 %v5290, %v5281
        %v5543 = vpack.c.b16 %v5291, %v5282
        %v5544 = vpack.c.b16 %v5292, %v5283
        %v5545 = vpack.c.b16 %v5293, %v5284
        %v5546 = vpack.c.b16 %v5294, %v5285
        %v5547 = vpack.c.b16 %v5295, %v5286
        %v5548 = vpack.c.b16 %v5305, %v5296
        %v5549 = vpack.c.b16 %v5306, %v5297
        %v5550 = vpack.c.b16 %v5307, %v5298
        %v5551 = vpack.c.b16 %v5308, %v5299
        %v5552 = vpack.c.b16 %v5309, %v5300
        %v5553 = vpack.c.b16 %v5310, %v5301
        %v5554 = vpack.c.b16 %v5311, %v5302
        %v5555 = vpack.c.b16 %v5312, %v5303
        %v5556 = vpack.c.b16 %v5313, %v5304
        %v5557 = vpack.c.b16 %v5323, %v5314
        %v5558 = vpack.c.b16 %v5324, %v5315
        %v5559 = vpack.c.b16 %v5325, %v5316
        %v5560 = vpack.c.b16 %v5326, %v5317
        %v5561 = vpack.c.b16 %v5327, %v5318
        %v5562 = vpack.c.b16 %v5328, %v5319
        %v5563 = vpack.c.b16 %v5329, %v5320
        %v5564 = vpack.c.b16 %v5330, %v5321
        %v5565 = vpack.c.b16 %v5331, %v5322
        %v5566 = vpack.c.b16 %v5341, %v5332
        %v5567 = vpack.c.b16 %v5342, %v5333
        %v5568 = vpack.c.b16 %v5343, %v5334
        %v5569 = vpack.c.b16 %v5344, %v5335
        %v5570 = vpack.c.b16 %v5345, %v5336
        %v5571 = vpack.c.b16 %v5346, %v5337
        %v5572 = vpack.c.b16 %v5347, %v5338
        %v5573 = vpack.c.b16 %v5348, %v5339
        %v5574 = vpack.c.b16 %v5349, %v5340
        %v5575 = vpack.c.b16 %v5359, %v5350
        %v5576 = vpack.c.b16 %v5360, %v5351
        %v5577 = vpack.c.b16 %v5361, %v5352
        %v5578 = vpack.c.b16 %v5362, %v5353
        %v5579 = vpack.c.b16 %v5363, %v5354
        %v5580 = vpack.c.b16 %v5364, %v5355
        %v5581 = vpack.c.b16 %v5365, %v5356
        %v5582 = vpack.c.b16 %v5366, %v5357
        %v5583 = vpack.c.b16 %v5367, %v5358
        %v5584 = vpack.c.b16 %v5377, %v5368
        %v5585 = vpack.c.b16 %v5378, %v5369
        %v5586 = vpack.c.b16 %v5379, %v5370
        %v5587 = vpack.c.b16 %v5380, %v5371
        %v5588 = vpack.c.b16 %v5381, %v5372
        %v5589 = vpack.c.b16 %v5382, %v5373
        %v5590 = vpack.c.b16 %v5383, %v5374
        %v5591 = vpack.c.b16 %v5384, %v5375
        %v5592 = vpack.c.b16 %v5385, %v5376
        %v5593 = vpack.c.b16 %v5395, %v5386
        %v5594 = vpack.c.b16 %v5396, %v5387
        %v5595 = vpack.c.b16 %v5397, %v5388
        %v5596 = vpack.c.b16 %v5398, %v5389
        %v5597 = vpack.c.b16 %v5399, %v5390
        %v5598 = vpack.c.b16 %v5400, %v5391
        %v5599 = vpack.c.b16 %v5401, %v5392
        %v5600 = vpack.c.b16 %v5402, %v5393
        %v5601 = vpack.c.b16 %v5403, %v5394
        %v5602 = vpack.c.b16 %v5413, %v5404
        %v5603 = vpack.c.b16 %v5414, %v5405
        %v5604 = vpack.c.b16 %v5415, %v5406
        %v5605 = vpack.c.b16 %v5416, %v5407
        %v5606 = vpack.c.b16 %v5417, %v5408
        %v5607 = vpack.c.b16 %v5418, %v5409
        %v5608 = vpack.c.b16 %v5419, %v5410
        %v5609 = vpack.c.b16 %v5420, %v5411
        %v5610 = vpack.c.b16 %v5421, %v5412
        %v5611 = vpack.c.b16 %v5431, %v5422
        %v5612 = vpack.c.b16 %v5432, %v5423
        %v5613 = vpack.c.b16 %v5433, %v5424
        %v5614 = vpack.c.b16 %v5434, %v5425
        %v5615 = vpack.c.b16 %v5435, %v5426
        %v5616 = vpack.c.b16 %v5436, %v5427
        %v5617 = vpack.c.b16 %v5437, %v5428
        %v5618 = vpack.c.b16 %v5438, %v5429
        %v5619 = vpack.c.b16 %v5439, %v5430
        %v5620 = vpack.c.b16 %v5449, %v5440
        %v5621 = vpack.c.b16 %v5450, %v5441
        %v5622 = vpack.c.b16 %v5451, %v5442
        %v5623 = vpack.c.b16 %v5452, %v5443
        %v5624 = vpack.c.b16 %v5453, %v5444
        %v5625 = vpack.c.b16 %v5454, %v5445
        %v5626 = vpack.c.b16 %v5455, %v5446
        %v5627 = vpack.c.b16 %v5456, %v5447
        %v5628 = vpack.c.b16 %v5457, %v5448
        %v5629 = vpack.c.b16 %v5467, %v5458
        %v5630 = vpack.c.b16 %v5468, %v5459
        %v5631 = vpack.c.b16 %v5469, %v5460
        %v5632 = vpack.c.b16 %v5470, %v5461
        %v5633 = vpack.c.b16 %v5471, %v5462
        %v5634 = vpack.c.b16 %v5472, %v5463
        %v5635 = vpack.c.b16 %v5473, %v5464
        %v5636 = vpack.c.b16 %v5474, %v5465
        %v5637 = vpack.c.b16 %v5475, %v5466
        %v5638 = vpack.c.b16 %v5485, %v5476
        %v5639 = vpack.c.b16 %v5486, %v5477
        %v5640 = vpack.c.b16 %v5487, %v5478
        %v5641 = vpack.c.b16 %v5488, %v5479
        %v5642 = vpack.c.b16 %v5489, %v5480
        %v5643 = vpack.c.b16 %v5490, %v5481
        %v5644 = vpack.c.b16 %v5491, %v5482
        %v5645 = vpack.c.b16 %v5492, %v5483
        %v5646 = vpack.c.b16 %v5493, %v5484
        %v5647 = vpack.c.b16 %v5503, %v5494
        %v5648 = vpack.c.b16 %v5504, %v5495
        %v5649 = vpack.c.b16 %v5505, %v5496
        %v5650 = vpack.c.b16 %v5506, %v5497
        %v5651 = vpack.c.b16 %v5507, %v5498
        %v5652 = vpack.c.b16 %v5508, %v5499
        %v5653 = vpack.c.b16 %v5509, %v5500
        %v5654 = vpack.c.b16 %v5510, %v5501
        %v5655 = vpack.c.b16 %v5511, %v5502
        %v5944 = vunpack.c.l.b16 %v4920
        %v5945 = vunpack.c.l.b16 %v4921
        %v5946 = vunpack.c.l.b16 %v4922
        %v5947 = vunpack.c.l.b16 %v4923
        %v5948 = vunpack.c.l.b16 %v4924
        %v5949 = vunpack.c.l.b16 %v4925
        %v5950 = vunpack.c.l.b16 %v4926
        %v5951 = vunpack.c.l.b16 %v4927
        %v5952 = vunpack.c.l.b16 %v4928
        %v5953 = vunpack.c.l.b16 %v4929
        %v5954 = vunpack.c.l.b16 %v4930
        %v5955 = vunpack.c.l.b16 %v4931
        %v5956 = vunpack.c.l.b16 %v4932
        %v5957 = vunpack.c.l.b16 %v4933
        %v5958 = vunpack.c.l.b16 %v4934
        %v5959 = vunpack.c.l.b16 %v4935
        %v5960 = vunpack.c.l.b16 %v4936
        %v5961 = vunpack.c.l.b16 %v4937
        %v5962 = vunpack.c.l.b16 %v4938
        %v5963 = vunpack.c.l.b16 %v4939
        %v5964 = vunpack.c.l.b16 %v4940
        %v5965 = vunpack.c.l.b16 %v4941
        %v5966 = vunpack.c.l.b16 %v4942
        %v5967 = vunpack.c.l.b16 %v4943
        %v5968 = vunpack.c.l.b16 %v4944
        %v5969 = vunpack.c.l.b16 %v4945
        %v5970 = vunpack.c.l.b16 %v4946
        %v5971 = vunpack.c.l.b16 %v4947
        %v5972 = vunpack.c.l.b16 %v4948
        %v5973 = vunpack.c.l.b16 %v4949
        %v5974 = vunpack.c.l.b16 %v4950
        %v5975 = vunpack.c.l.b16 %v4951
        %v5976 = vunpack.c.l.b16 %v4952
        %v5977 = vunpack.c.l.b16 %v4953
        %v5978 = vunpack.c.l.b16 %v4954
        %v5979 = vunpack.c.l.b16 %v4955
        %v5980 = vunpack.c.l.b16 %v4956
        %v5981 = vunpack.c.l.b16 %v4957
        %v5982 = vunpack.c.l.b16 %v4958
        %v5983 = vunpack.c.l.b16 %v4959
        %v5984 = vunpack.c.l.b16 %v4960
        %v5985 = vunpack.c.l.b16 %v4961
        %v5986 = vunpack.c.l.b16 %v4962
        %v5987 = vunpack.c.l.b16 %v4963
        %v5988 = vunpack.c.l.b16 %v4964
        %v5989 = vunpack.c.l.b16 %v4965
        %v5990 = vunpack.c.l.b16 %v4966
        %v5991 = vunpack.c.l.b16 %v4967
        %v5992 = vunpack.c.l.b16 %v4968
        %v5993 = vunpack.c.l.b16 %v4969
        %v5994 = vunpack.c.l.b16 %v4970
        %v5995 = vunpack.c.l.b16 %v4971
        %v5996 = vunpack.c.l.b16 %v4972
        %v5997 = vunpack.c.l.b16 %v4973
        %v5998 = vunpack.c.l.b16 %v4974
        %v5999 = vunpack.c.l.b16 %v4975
        %v6000 = vunpack.c.l.b16 %v4976
        %v6001 = vunpack.c.l.b16 %v4977
        %v6002 = vunpack.c.l.b16 %v4978
        %v6003 = vunpack.c.l.b16 %v4979
        %v6004 = vunpack.c.l.b16 %v4980
        %v6005 = vunpack.c.l.b16 %v4981
        %v6006 = vunpack.c.l.b16 %v4982
        %v6007 = vunpack.c.l.b16 %v4983
        %v6008 = vunpack.c.l.b16 %v4984
        %v6009 = vunpack.c.l.b16 %v4985
        %v6010 = vunpack.c.l.b16 %v4986
        %v6011 = vunpack.c.l.b16 %v4987
        %v6012 = vunpack.c.l.b16 %v4988
        %v6013 = vunpack.c.l.b16 %v4989
        %v6014 = vunpack.c.l.b16 %v4990
        %v6015 = vunpack.c.l.b16 %v4991
        %v6016 = vunpack.c.l.b16 %v4992
        %v6017 = vunpack.c.l.b16 %v4993
        %v6018 = vunpack.c.l.b16 %v4994
        %v6019 = vunpack.c.l.b16 %v4995
        %v6020 = vunpack.c.l.b16 %v4996
        %v6021 = vunpack.c.l.b16 %v4997
        %v6022 = vunpack.c.l.b16 %v4998
        %v6023 = vunpack.c.l.b16 %v4999
        %v6024 = vunpack.c.l.b16 %v5000
        %v6025 = vunpack.c.l.b16 %v5001
        %v6026 = vunpack.c.l.b16 %v5002
        %v6027 = vunpack.c.l.b16 %v5003
        %v6028 = vunpack.c.l.b16 %v5004
        %v6029 = vunpack.c.l.b16 %v5005
        %v6030 = vunpack.c.l.b16 %v5006
        %v6031 = vunpack.c.l.b16 %v5007
        %v6032 = vunpack.c.l.b16 %v5008
        %v6033 = vunpack.c.l.b16 %v5009
        %v6034 = vunpack.c.l.b16 %v5010
        %v6035 = vunpack.c.l.b16 %v5011
        %v6036 = vunpack.c.l.b16 %v5012
        %v6037 = vunpack.c.l.b16 %v5013
        %v6038 = vunpack.c.l.b16 %v5014
        %v6039 = vunpack.c.l.b16 %v5015
        %v6040 = vunpack.c.l.b16 %v5016
        %v6041 = vunpack.c.l.b16 %v5017
        %v6042 = vunpack.c.l.b16 %v5018
        %v6043 = vunpack.c.l.b16 %v5019
        %v6044 = vunpack.c.l.b16 %v5020
        %v6045 = vunpack.c.l.b16 %v5021
        %v6046 = vunpack.c.l.b16 %v5022
        %v6047 = vunpack.c.l.b16 %v5023
        %v6048 = vunpack.c.l.b16 %v5024
        %v6049 = vunpack.c.l.b16 %v5025
        %v6050 = vunpack.c.l.b16 %v5026
        %v6051 = vunpack.c.l.b16 %v5027
        %v6052 = vunpack.c.l.b16 %v5028
        %v6053 = vunpack.c.l.b16 %v5029
        %v6054 = vunpack.c.l.b16 %v5030
        %v6055 = vunpack.c.l.b16 %v5031
        %v6056 = vunpack.c.l.b16 %v5032
        %v6057 = vunpack.c.l.b16 %v5033
        %v6058 = vunpack.c.l.b16 %v5034
        %v6059 = vunpack.c.l.b16 %v5035
        %v6060 = vunpack.c.l.b16 %v5036
        %v6061 = vunpack.c.l.b16 %v5037
        %v6062 = vunpack.c.l.b16 %v5038
        %v6063 = vunpack.c.l.b16 %v5039
        %v6064 = vunpack.c.l.b16 %v5040
        %v6065 = vunpack.c.l.b16 %v5041
        %v6066 = vunpack.c.l.b16 %v5042
        %v6067 = vunpack.c.l.b16 %v5043
        %v6068 = vunpack.c.l.b16 %v5044
        %v6069 = vunpack.c.l.b16 %v5045
        %v6070 = vunpack.c.l.b16 %v5046
        %v6071 = vunpack.c.l.b16 %v5047
        %v6072 = vunpack.c.l.b16 %v5048
        %v6073 = vunpack.c.l.b16 %v5049
        %v6074 = vunpack.c.l.b16 %v5050
        %v6075 = vunpack.c.l.b16 %v5051
        %v6076 = vunpack.c.l.b16 %v5052
        %v6077 = vunpack.c.l.b16 %v5053
        %v6078 = vunpack.c.l.b16 %v5054
        %v6079 = vunpack.c.l.b16 %v5055
        %v6080 = vunpack.c.l.b16 %v5056
        %v6081 = vunpack.c.l.b16 %v5057
        %v6082 = vunpack.c.l.b16 %v5058
        %v6083 = vunpack.c.l.b16 %v5059
        %v6084 = vunpack.c.l.b16 %v5060
        %v6085 = vunpack.c.l.b16 %v5061
        %v6086 = vunpack.c.l.b16 %v5062
        %v6087 = vunpack.c.l.b16 %v5063
        %v6088 = vpack.c.b16 %v5945, %v5944
        %v6089 = vpack.c.b16 %v5947, %v5946
        %v6090 = vpack.c.b16 %v5949, %v5948
        %v6091 = vpack.c.b16 %v5951, %v5950
        %v6092 = vpack.c.b16 %v5953, %v5952
        %v6093 = vpack.c.b16 %v5955, %v5954
        %v6094 = vpack.c.b16 %v5957, %v5956
        %v6095 = vpack.c.b16 %v5959, %v5958
        %v6096 = vpack.c.b16 %v5961, %v5960
        %v6097 = vpack.c.b16 %v5963, %v5962
        %v6098 = vpack.c.b16 %v5965, %v5964
        %v6099 = vpack.c.b16 %v5967, %v5966
        %v6100 = vpack.c.b16 %v5969, %v5968
        %v6101 = vpack.c.b16 %v5971, %v5970
        %v6102 = vpack.c.b16 %v5973, %v5972
        %v6103 = vpack.c.b16 %v5975, %v5974
        %v6104 = vpack.c.b16 %v5977, %v5976
        %v6105 = vpack.c.b16 %v5979, %v5978
        %v6106 = vpack.c.b16 %v5981, %v5980
        %v6107 = vpack.c.b16 %v5983, %v5982
        %v6108 = vpack.c.b16 %v5985, %v5984
        %v6109 = vpack.c.b16 %v5987, %v5986
        %v6110 = vpack.c.b16 %v5989, %v5988
        %v6111 = vpack.c.b16 %v5991, %v5990
        %v6112 = vpack.c.b16 %v5993, %v5992
        %v6113 = vpack.c.b16 %v5995, %v5994
        %v6114 = vpack.c.b16 %v5997, %v5996
        %v6115 = vpack.c.b16 %v5999, %v5998
        %v6116 = vpack.c.b16 %v6001, %v6000
        %v6117 = vpack.c.b16 %v6003, %v6002
        %v6118 = vpack.c.b16 %v6005, %v6004
        %v6119 = vpack.c.b16 %v6007, %v6006
        %v6120 = vpack.c.b16 %v6009, %v6008
        %v6121 = vpack.c.b16 %v6011, %v6010
        %v6122 = vpack.c.b16 %v6013, %v6012
        %v6123 = vpack.c.b16 %v6015, %v6014
        %v6124 = vpack.c.b16 %v6017, %v6016
        %v6125 = vpack.c.b16 %v6019, %v6018
        %v6126 = vpack.c.b16 %v6021, %v6020
        %v6127 = vpack.c.b16 %v6023, %v6022
        %v6128 = vpack.c.b16 %v6025, %v6024
        %v6129 = vpack.c.b16 %v6027, %v6026
        %v6130 = vpack.c.b16 %v6029, %v6028
        %v6131 = vpack.c.b16 %v6031, %v6030
        %v6132 = vpack.c.b16 %v6033, %v6032
        %v6133 = vpack.c.b16 %v6035, %v6034
        %v6134 = vpack.c.b16 %v6037, %v6036
        %v6135 = vpack.c.b16 %v6039, %v6038
        %v6136 = vpack.c.b16 %v6041, %v6040
        %v6137 = vpack.c.b16 %v6043, %v6042
        %v6138 = vpack.c.b16 %v6045, %v6044
        %v6139 = vpack.c.b16 %v6047, %v6046
        %v6140 = vpack.c.b16 %v6049, %v6048
        %v6141 = vpack.c.b16 %v6051, %v6050
        %v6142 = vpack.c.b16 %v6053, %v6052
        %v6143 = vpack.c.b16 %v6055, %v6054
        %v6144 = vpack.c.b16 %v6057, %v6056
        %v6145 = vpack.c.b16 %v6059, %v6058
        %v6146 = vpack.c.b16 %v6061, %v6060
        %v6147 = vpack.c.b16 %v6063, %v6062
        %v6148 = vpack.c.b16 %v6065, %v6064
        %v6149 = vpack.c.b16 %v6067, %v6066
        %v6150 = vpack.c.b16 %v6069, %v6068
        %v6151 = vpack.c.b16 %v6071, %v6070
        %v6152 = vpack.c.b16 %v6073, %v6072
        %v6153 = vpack.c.b16 %v6075, %v6074
        %v6154 = vpack.c.b16 %v6077, %v6076
        %v6155 = vpack.c.b16 %v6079, %v6078
        %v6156 = vpack.c.b16 %v6081, %v6080
        %v6157 = vpack.c.b16 %v6083, %v6082
        %v6158 = vpack.c.b16 %v6085, %v6084
        %v6159 = vpack.c.b16 %v6087, %v6086
        %6232 = vmatprep.subr.bf16.mxu0 0
        %6233 = vmatpush1.bf16.msra.mxu0 %v6095
        %6234 = vmatprep.subr.bf16.mxu0 0
        %6235 = vmatpush1.bf16.msra.mxu0 %v6094
        %6236 = vmatprep.subr.bf16.mxu0 0
        %6237 = vmatpush1.bf16.msra.mxu0 %v6093
        %6238 = vmatprep.subr.bf16.mxu0 0
        %6239 = vmatpush1.bf16.msra.mxu0 %v6092
        %6240 = vmatprep.subr.bf16.mxu0 0
        %6241 = vmatpush1.bf16.msra.mxu0 %v6091
        %6242 = vmatprep.subr.bf16.mxu0 0
        %6243 = vmatpush1.bf16.msra.mxu0 %v6090
        %6244 = vmatprep.subr.bf16.mxu0 0
        %6245 = vmatpush1.bf16.msra.mxu0 %v6089
        %6246 = vmatprep.subr.bf16.mxu0 0
        %6247 = vmatpush1.bf16.msra.mxu0 %v6088
        %6248 = vmatprep.subr.bf16.mxu0 0
        %6249 = vmatpush2.bf16.msra.mxu0 %v6103
        %6250 = vmatprep.subr.bf16.mxu0 0
        %6251 = vmatpush2.bf16.msra.mxu0 %v6102
        %6252 = vmatprep.subr.bf16.mxu0 0
        %6253 = vmatpush2.bf16.msra.mxu0 %v6101
        %6254 = vmatprep.subr.bf16.mxu0 0
        %6255 = vmatpush2.bf16.msra.mxu0 %v6100
        %6256 = vmatprep.subr.bf16.mxu0 0
        %6257 = vmatpush2.bf16.msra.mxu0 %v6099
        %6258 = vmatprep.subr.bf16.mxu0 0
        %6259 = vmatpush2.bf16.msra.mxu0 %v6098
        %6260 = vmatprep.subr.bf16.mxu0 0
        %6261 = vmatpush2.bf16.msra.mxu0 %v6097
        %6262 = vmatprep.subr.bf16.mxu0 0
        %6263 = vmatpush2.bf16.msra.mxu0 %v6096
        %6264 = vmatprep.mubr.bf16.mxu0 %v5513
        %6265 = vmatmul.mubr.bf16.gmra.mxu0 %v5512
        %v6266 = vpop.f32.mrf.mxu0
        %v6267 = vadd.f32 0.0, %v6266
        %v6268 = vpop.f32.mrf.mxu0
        %v6269 = vpop.f32.mrf.mxu0
        %v6270 = vadd.f32 0.0, %v6269
        %v6271 = vpop.f32.mrf.mxu0
        %6272 = vmatprep.mubr.bf16.mxu0 %v5522
        %6273 = vmatmul.mubr.bf16.gmra.mxu0 %v5521
        %v6274 = vpop.f32.mrf.mxu0
        %v6275 = vadd.f32 0.0, %v6274
        %v6276 = vpop.f32.mrf.mxu0
        %v6277 = vpop.f32.mrf.mxu0
        %v6278 = vadd.f32 0.0, %v6277
        %v6279 = vpop.f32.mrf.mxu0
        %6280 = vmatprep.mubr.bf16.mxu0 %v5531
        %6281 = vmatmul.mubr.bf16.gmra.mxu0 %v5530
        %v6282 = vpop.f32.mrf.mxu0
        %v6283 = vadd.f32 0.0, %v6282
        %v6284 = vpop.f32.mrf.mxu0
        %v6285 = vpop.f32.mrf.mxu0
        %v6286 = vadd.f32 0.0, %v6285
        %v6287 = vpop.f32.mrf.mxu0
        %6288 = vmatprep.mubr.bf16.mxu0 %v5540
        %6289 = vmatmul.mubr.bf16.gmra.mxu0 %v5539
        %v6290 = vpop.f32.mrf.mxu0
        %v6291 = vadd.f32 0.0, %v6290
        %v6292 = vpop.f32.mrf.mxu0
        %v6293 = vpop.f32.mrf.mxu0
        %v6294 = vadd.f32 0.0, %v6293
        %v6295 = vpop.f32.mrf.mxu0
        %6296 = vmatprep.mubr.bf16.mxu0 %v5549
        %6297 = vmatmul.mubr.bf16.gmra.mxu0 %v5548
        %v6298 = vpop.f32.mrf.mxu0
        %v6299 = vadd.f32 0.0, %v6298
        %v6300 = vpop.f32.mrf.mxu0
        %v6301 = vpop.f32.mrf.mxu0
        %v6302 = vadd.f32 0.0, %v6301
        %v6303 = vpop.f32.mrf.mxu0
        %6304 = vmatprep.mubr.bf16.mxu0 %v5558
        %6305 = vmatmul.mubr.bf16.gmra.mxu0 %v5557
        %v6306 = vpop.f32.mrf.mxu0
        %v6307 = vadd.f32 0.0, %v6306
        %v6308 = vpop.f32.mrf.mxu0
        %v6309 = vpop.f32.mrf.mxu0
        %v6310 = vadd.f32 0.0, %v6309
        %v6311 = vpop.f32.mrf.mxu0
        %6312 = vmatprep.mubr.bf16.mxu0 %v5567
        %6313 = vmatmul.mubr.bf16.gmra.mxu0 %v5566
        %v6314 = vpop.f32.mrf.mxu0
        %v6315 = vadd.f32 0.0, %v6314
        %v6316 = vpop.f32.mrf.mxu0
        %v6317 = vpop.f32.mrf.mxu0
        %v6318 = vadd.f32 0.0, %v6317
        %v6319 = vpop.f32.mrf.mxu0
        %6320 = vmatprep.mubr.bf16.mxu0 %v5576
        %6321 = vmatmul.mubr.bf16.gmra.mxu0 %v5575
        %v6322 = vpop.f32.mrf.mxu0
        %v6323 = vadd.f32 0.0, %v6322
        %v6324 = vpop.f32.mrf.mxu0
        %v6325 = vpop.f32.mrf.mxu0
        %v6326 = vadd.f32 0.0, %v6325
        %v6327 = vpop.f32.mrf.mxu0
        %6328 = vmatprep.mubr.bf16.mxu0 %v5585
        %6329 = vmatmul.mubr.bf16.gmra.mxu0 %v5584
        %v6330 = vpop.f32.mrf.mxu0
        %v6331 = vadd.f32 0.0, %v6330
        %v6332 = vpop.f32.mrf.mxu0
        %v6333 = vpop.f32.mrf.mxu0
        %v6334 = vadd.f32 0.0, %v6333
        %v6335 = vpop.f32.mrf.mxu0
        %6336 = vmatprep.mubr.bf16.mxu0 %v5594
        %6337 = vmatmul.mubr.bf16.gmra.mxu0 %v5593
        %v6338 = vpop.f32.mrf.mxu0
        %v6339 = vadd.f32 0.0, %v6338
        %v6340 = vpop.f32.mrf.mxu0
        %v6341 = vpop.f32.mrf.mxu0
        %v6342 = vadd.f32 0.0, %v6341
        %v6343 = vpop.f32.mrf.mxu0
        %6344 = vmatprep.mubr.bf16.mxu0 %v5603
        %6345 = vmatmul.mubr.bf16.gmra.mxu0 %v5602
        %v6346 = vpop.f32.mrf.mxu0
        %v6347 = vadd.f32 0.0, %v6346
        %v6348 = vpop.f32.mrf.mxu0
        %v6349 = vpop.f32.mrf.mxu0
        %v6350 = vadd.f32 0.0, %v6349
        %v6351 = vpop.f32.mrf.mxu0
        %6352 = vmatprep.mubr.bf16.mxu0 %v5612
        %6353 = vmatmul.mubr.bf16.gmra.mxu0 %v5611
        %v6354 = vpop.f32.mrf.mxu0
        %v6355 = vadd.f32 0.0, %v6354
        %v6356 = vpop.f32.mrf.mxu0
        %v6357 = vpop.f32.mrf.mxu0
        %v6358 = vadd.f32 0.0, %v6357
        %v6359 = vpop.f32.mrf.mxu0
        %6360 = vmatprep.mubr.bf16.mxu0 %v5621
        %6361 = vmatmul.mubr.bf16.gmra.mxu0 %v5620
        %v6362 = vpop.f32.mrf.mxu0
        %v6363 = vadd.f32 0.0, %v6362
        %v6364 = vpop.f32.mrf.mxu0
        %v6365 = vpop.f32.mrf.mxu0
        %v6366 = vadd.f32 0.0, %v6365
        %v6367 = vpop.f32.mrf.mxu0
        %6368 = vmatprep.mubr.bf16.mxu0 %v5630
        %6369 = vmatmul.mubr.bf16.gmra.mxu0 %v5629
        %v6370 = vpop.f32.mrf.mxu0
        %v6371 = vadd.f32 0.0, %v6370
        %v6372 = vpop.f32.mrf.mxu0
        %v6373 = vpop.f32.mrf.mxu0
        %v6374 = vadd.f32 0.0, %v6373
        %v6375 = vpop.f32.mrf.mxu0
        %6376 = vmatprep.mubr.bf16.mxu0 %v5639
        %6377 = vmatmul.mubr.bf16.gmra.mxu0 %v5638
        %v6378 = vpop.f32.mrf.mxu0
        %v6379 = vadd.f32 0.0, %v6378
        %v6380 = vpop.f32.mrf.mxu0
        %v6381 = vpop.f32.mrf.mxu0
        %v6382 = vadd.f32 0.0, %v6381
        %v6383 = vpop.f32.mrf.mxu0
        %6384 = vmatprep.mubr.bf16.mxu0 %v5648
        %6385 = vmatmul.mubr.bf16.gmra.mxu0 %v5647
        %v6386 = vpop.f32.mrf.mxu0
        %v6387 = vadd.f32 0.0, %v6386
        %v6388 = vpop.f32.mrf.mxu0
        %v6389 = vpop.f32.mrf.mxu0
        %v6390 = vadd.f32 0.0, %v6389
        %v6391 = vpop.f32.mrf.mxu0
        %6392 = vdwg.mxu0
        %6393 = vmatprep.subr.bf16.mxu0 0
        %6394 = vmatpush1.bf16.msra.mxu0 %v6111
        %6395 = vmatprep.subr.bf16.mxu0 0
        %6396 = vmatpush1.bf16.msra.mxu0 %v6110
        %6397 = vmatprep.subr.bf16.mxu0 0
        %6398 = vmatpush1.bf16.msra.mxu0 %v6109
        %6399 = vmatprep.subr.bf16.mxu0 0
        %6400 = vmatpush1.bf16.msra.mxu0 %v6108
        %6401 = vmatprep.subr.bf16.mxu0 0
        %6402 = vmatpush1.bf16.msra.mxu0 %v6107
        %6403 = vmatprep.subr.bf16.mxu0 0
        %6404 = vmatpush1.bf16.msra.mxu0 %v6106
        %6405 = vmatprep.subr.bf16.mxu0 0
        %6406 = vmatpush1.bf16.msra.mxu0 %v6105
        %6407 = vmatprep.subr.bf16.mxu0 0
        %6408 = vmatpush1.bf16.msra.mxu0 %v6104
        %6409 = vmatprep.subr.bf16.mxu0 0
        %6410 = vmatpush2.bf16.msra.mxu0 %v6119
        %6411 = vmatprep.subr.bf16.mxu0 0
        %6412 = vmatpush2.bf16.msra.mxu0 %v6118
        %6413 = vmatprep.subr.bf16.mxu0 0
        %6414 = vmatpush2.bf16.msra.mxu0 %v6117
        %6415 = vmatprep.subr.bf16.mxu0 0
        %6416 = vmatpush2.bf16.msra.mxu0 %v6116
        %6417 = vmatprep.subr.bf16.mxu0 0
        %6418 = vmatpush2.bf16.msra.mxu0 %v6115
        %6419 = vmatprep.subr.bf16.mxu0 0
        %6420 = vmatpush2.bf16.msra.mxu0 %v6114
        %6421 = vmatprep.subr.bf16.mxu0 0
        %6422 = vmatpush2.bf16.msra.mxu0 %v6113
        %6423 = vmatprep.subr.bf16.mxu0 0
        %6424 = vmatpush2.bf16.msra.mxu0 %v6112
        %6425 = vmatprep.mubr.bf16.mxu0 %v5515
        %6426 = vmatmul.mubr.bf16.gmra.mxu0 %v5514
        %v6427 = vpop.f32.mrf.mxu0
        %v6428 = vadd.f32 %v6267, %v6427
        %v6429 = vpop.f32.mrf.mxu0
        %v6430 = vpop.f32.mrf.mxu0
        %v6431 = vadd.f32 %v6270, %v6430
        %v6432 = vpop.f32.mrf.mxu0
        %6433 = vmatprep.mubr.bf16.mxu0 %v5524
        %6434 = vmatmul.mubr.bf16.gmra.mxu0 %v5523
        %v6435 = vpop.f32.mrf.mxu0
        %v6436 = vadd.f32 %v6275, %v6435
        %v6437 = vpop.f32.mrf.mxu0
        %v6438 = vpop.f32.mrf.mxu0
        %v6439 = vadd.f32 %v6278, %v6438
        %v6440 = vpop.f32.mrf.mxu0
        %6441 = vmatprep.mubr.bf16.mxu0 %v5533
        %6442 = vmatmul.mubr.bf16.gmra.mxu0 %v5532
        %v6443 = vpop.f32.mrf.mxu0
        %v6444 = vadd.f32 %v6283, %v6443
        %v6445 = vpop.f32.mrf.mxu0
        %v6446 = vpop.f32.mrf.mxu0
        %v6447 = vadd.f32 %v6286, %v6446
        %v6448 = vpop.f32.mrf.mxu0
        %6449 = vmatprep.mubr.bf16.mxu0 %v5542
        %6450 = vmatmul.mubr.bf16.gmra.mxu0 %v5541
        %v6451 = vpop.f32.mrf.mxu0
        %v6452 = vadd.f32 %v6291, %v6451
        %v6453 = vpop.f32.mrf.mxu0
        %v6454 = vpop.f32.mrf.mxu0
        %v6455 = vadd.f32 %v6294, %v6454
        %v6456 = vpop.f32.mrf.mxu0
        %6457 = vmatprep.mubr.bf16.mxu0 %v5551
        %6458 = vmatmul.mubr.bf16.gmra.mxu0 %v5550
        %v6459 = vpop.f32.mrf.mxu0
        %v6460 = vadd.f32 %v6299, %v6459
        %v6461 = vpop.f32.mrf.mxu0
        %v6462 = vpop.f32.mrf.mxu0
        %v6463 = vadd.f32 %v6302, %v6462
        %v6464 = vpop.f32.mrf.mxu0
        %6465 = vmatprep.mubr.bf16.mxu0 %v5560
        %6466 = vmatmul.mubr.bf16.gmra.mxu0 %v5559
        %v6467 = vpop.f32.mrf.mxu0
        %v6468 = vadd.f32 %v6307, %v6467
        %v6469 = vpop.f32.mrf.mxu0
        %v6470 = vpop.f32.mrf.mxu0
        %v6471 = vadd.f32 %v6310, %v6470
        %v6472 = vpop.f32.mrf.mxu0
        %6473 = vmatprep.mubr.bf16.mxu0 %v5569
        %6474 = vmatmul.mubr.bf16.gmra.mxu0 %v5568
        %v6475 = vpop.f32.mrf.mxu0
        %v6476 = vadd.f32 %v6315, %v6475
        %v6477 = vpop.f32.mrf.mxu0
        %v6478 = vpop.f32.mrf.mxu0
        %v6479 = vadd.f32 %v6318, %v6478
        %v6480 = vpop.f32.mrf.mxu0
        %6481 = vmatprep.mubr.bf16.mxu0 %v5578
        %6482 = vmatmul.mubr.bf16.gmra.mxu0 %v5577
        %v6483 = vpop.f32.mrf.mxu0
        %v6484 = vadd.f32 %v6323, %v6483
        %v6485 = vpop.f32.mrf.mxu0
        %v6486 = vpop.f32.mrf.mxu0
        %v6487 = vadd.f32 %v6326, %v6486
        %v6488 = vpop.f32.mrf.mxu0
        %6489 = vmatprep.mubr.bf16.mxu0 %v5587
        %6490 = vmatmul.mubr.bf16.gmra.mxu0 %v5586
        %v6491 = vpop.f32.mrf.mxu0
        %v6492 = vadd.f32 %v6331, %v6491
        %v6493 = vpop.f32.mrf.mxu0
        %v6494 = vpop.f32.mrf.mxu0
        %v6495 = vadd.f32 %v6334, %v6494
        %v6496 = vpop.f32.mrf.mxu0
        %6497 = vmatprep.mubr.bf16.mxu0 %v5596
        %6498 = vmatmul.mubr.bf16.gmra.mxu0 %v5595
        %v6499 = vpop.f32.mrf.mxu0
        %v6500 = vadd.f32 %v6339, %v6499
        %v6501 = vpop.f32.mrf.mxu0
        %v6502 = vpop.f32.mrf.mxu0
        %v6503 = vadd.f32 %v6342, %v6502
        %v6504 = vpop.f32.mrf.mxu0
        %6505 = vmatprep.mubr.bf16.mxu0 %v5605
        %6506 = vmatmul.mubr.bf16.gmra.mxu0 %v5604
        %v6507 = vpop.f32.mrf.mxu0
        %v6508 = vadd.f32 %v6347, %v6507
        %v6509 = vpop.f32.mrf.mxu0
        %v6510 = vpop.f32.mrf.mxu0
        %v6511 = vadd.f32 %v6350, %v6510
        %v6512 = vpop.f32.mrf.mxu0
        %6513 = vmatprep.mubr.bf16.mxu0 %v5614
        %6514 = vmatmul.mubr.bf16.gmra.mxu0 %v5613
        %v6515 = vpop.f32.mrf.mxu0
        %v6516 = vadd.f32 %v6355, %v6515
        %v6517 = vpop.f32.mrf.mxu0
        %v6518 = vpop.f32.mrf.mxu0
        %v6519 = vadd.f32 %v6358, %v6518
        %v6520 = vpop.f32.mrf.mxu0
        %6521 = vmatprep.mubr.bf16.mxu0 %v5623
        %6522 = vmatmul.mubr.bf16.gmra.mxu0 %v5622
        %v6523 = vpop.f32.mrf.mxu0
        %v6524 = vadd.f32 %v6363, %v6523
        %v6525 = vpop.f32.mrf.mxu0
        %v6526 = vpop.f32.mrf.mxu0
        %v6527 = vadd.f32 %v6366, %v6526
        %v6528 = vpop.f32.mrf.mxu0
        %6529 = vmatprep.mubr.bf16.mxu0 %v5632
        %6530 = vmatmul.mubr.bf16.gmra.mxu0 %v5631
        %v6531 = vpop.f32.mrf.mxu0
        %v6532 = vadd.f32 %v6371, %v6531
        %v6533 = vpop.f32.mrf.mxu0
        %v6534 = vpop.f32.mrf.mxu0
        %v6535 = vadd.f32 %v6374, %v6534
        %v6536 = vpop.f32.mrf.mxu0
        %6537 = vmatprep.mubr.bf16.mxu0 %v5641
        %6538 = vmatmul.mubr.bf16.gmra.mxu0 %v5640
        %v6539 = vpop.f32.mrf.mxu0
        %v6540 = vadd.f32 %v6379, %v6539
        %v6541 = vpop.f32.mrf.mxu0
        %v6542 = vpop.f32.mrf.mxu0
        %v6543 = vadd.f32 %v6382, %v6542
        %v6544 = vpop.f32.mrf.mxu0
        %6545 = vmatprep.mubr.bf16.mxu0 %v5650
        %6546 = vmatmul.mubr.bf16.gmra.mxu0 %v5649
        %v6547 = vpop.f32.mrf.mxu0
        %v6548 = vadd.f32 %v6387, %v6547
        %v6549 = vpop.f32.mrf.mxu0
        %v6550 = vpop.f32.mrf.mxu0
        %v6551 = vadd.f32 %v6390, %v6550
        %v6552 = vpop.f32.mrf.mxu0
        %6553 = vdwg.mxu0
        %6554 = vmatprep.subr.bf16.mxu0 0
        %6555 = vmatpush1.bf16.msra.mxu0 %v6127
        %6556 = vmatprep.subr.bf16.mxu0 0
        %6557 = vmatpush1.bf16.msra.mxu0 %v6126
        %6558 = vmatprep.subr.bf16.mxu0 0
        %6559 = vmatpush1.bf16.msra.mxu0 %v6125
        %6560 = vmatprep.subr.bf16.mxu0 0
        %6561 = vmatpush1.bf16.msra.mxu0 %v6124
        %6562 = vmatprep.subr.bf16.mxu0 0
        %6563 = vmatpush1.bf16.msra.mxu0 %v6123
        %6564 = vmatprep.subr.bf16.mxu0 0
        %6565 = vmatpush1.bf16.msra.mxu0 %v6122
        %6566 = vmatprep.subr.bf16.mxu0 0
        %6567 = vmatpush1.bf16.msra.mxu0 %v6121
        %6568 = vmatprep.subr.bf16.mxu0 0
        %6569 = vmatpush1.bf16.msra.mxu0 %v6120
        %6570 = vmatprep.subr.bf16.mxu0 0
        %6571 = vmatpush2.bf16.msra.mxu0 %v6135
        %6572 = vmatprep.subr.bf16.mxu0 0
        %6573 = vmatpush2.bf16.msra.mxu0 %v6134
        %6574 = vmatprep.subr.bf16.mxu0 0
        %6575 = vmatpush2.bf16.msra.mxu0 %v6133
        %6576 = vmatprep.subr.bf16.mxu0 0
        %6577 = vmatpush2.bf16.msra.mxu0 %v6132
        %6578 = vmatprep.subr.bf16.mxu0 0
        %6579 = vmatpush2.bf16.msra.mxu0 %v6131
        %6580 = vmatprep.subr.bf16.mxu0 0
        %6581 = vmatpush2.bf16.msra.mxu0 %v6130
        %6582 = vmatprep.subr.bf16.mxu0 0
        %6583 = vmatpush2.bf16.msra.mxu0 %v6129
        %6584 = vmatprep.subr.bf16.mxu0 0
        %6585 = vmatpush2.bf16.msra.mxu0 %v6128
        %6586 = vmatprep.mubr.bf16.mxu0 %v5517
        %6587 = vmatmul.mubr.bf16.gmra.mxu0 %v5516
        %v6588 = vpop.f32.mrf.mxu0
        %v6589 = vadd.f32 %v6428, %v6588
        %v6590 = vpop.f32.mrf.mxu0
        %v6591 = vpop.f32.mrf.mxu0
        %v6592 = vadd.f32 %v6431, %v6591
        %v6593 = vpop.f32.mrf.mxu0
        %6594 = vmatprep.mubr.bf16.mxu0 %v5526
        %6595 = vmatmul.mubr.bf16.gmra.mxu0 %v5525
        %v6596 = vpop.f32.mrf.mxu0
        %v6597 = vadd.f32 %v6436, %v6596
        %v6598 = vpop.f32.mrf.mxu0
        %v6599 = vpop.f32.mrf.mxu0
        %v6600 = vadd.f32 %v6439, %v6599
        %v6601 = vpop.f32.mrf.mxu0
        %6602 = vmatprep.mubr.bf16.mxu0 %v5535
        %6603 = vmatmul.mubr.bf16.gmra.mxu0 %v5534
        %v6604 = vpop.f32.mrf.mxu0
        %v6605 = vadd.f32 %v6444, %v6604
        %v6606 = vpop.f32.mrf.mxu0
        %v6607 = vpop.f32.mrf.mxu0
        %v6608 = vadd.f32 %v6447, %v6607
        %v6609 = vpop.f32.mrf.mxu0
        %6610 = vmatprep.mubr.bf16.mxu0 %v5544
        %6611 = vmatmul.mubr.bf16.gmra.mxu0 %v5543
        %v6612 = vpop.f32.mrf.mxu0
        %v6613 = vadd.f32 %v6452, %v6612
        %v6614 = vpop.f32.mrf.mxu0
        %v6615 = vpop.f32.mrf.mxu0
        %v6616 = vadd.f32 %v6455, %v6615
        %v6617 = vpop.f32.mrf.mxu0
        %6618 = vmatprep.mubr.bf16.mxu0 %v5553
        %6619 = vmatmul.mubr.bf16.gmra.mxu0 %v5552
        %v6620 = vpop.f32.mrf.mxu0
        %v6621 = vadd.f32 %v6460, %v6620
        %v6622 = vpop.f32.mrf.mxu0
        %v6623 = vpop.f32.mrf.mxu0
        %v6624 = vadd.f32 %v6463, %v6623
        %v6625 = vpop.f32.mrf.mxu0
        %6626 = vmatprep.mubr.bf16.mxu0 %v5562
        %6627 = vmatmul.mubr.bf16.gmra.mxu0 %v5561
        %v6628 = vpop.f32.mrf.mxu0
        %v6629 = vadd.f32 %v6468, %v6628
        %v6630 = vpop.f32.mrf.mxu0
        %v6631 = vpop.f32.mrf.mxu0
        %v6632 = vadd.f32 %v6471, %v6631
        %v6633 = vpop.f32.mrf.mxu0
        %6634 = vmatprep.mubr.bf16.mxu0 %v5571
        %6635 = vmatmul.mubr.bf16.gmra.mxu0 %v5570
        %v6636 = vpop.f32.mrf.mxu0
        %v6637 = vadd.f32 %v6476, %v6636
        %v6638 = vpop.f32.mrf.mxu0
        %v6639 = vpop.f32.mrf.mxu0
        %v6640 = vadd.f32 %v6479, %v6639
        %v6641 = vpop.f32.mrf.mxu0
        %6642 = vmatprep.mubr.bf16.mxu0 %v5580
        %6643 = vmatmul.mubr.bf16.gmra.mxu0 %v5579
        %v6644 = vpop.f32.mrf.mxu0
        %v6645 = vadd.f32 %v6484, %v6644
        %v6646 = vpop.f32.mrf.mxu0
        %v6647 = vpop.f32.mrf.mxu0
        %v6648 = vadd.f32 %v6487, %v6647
        %v6649 = vpop.f32.mrf.mxu0
        %6650 = vmatprep.mubr.bf16.mxu0 %v5589
        %6651 = vmatmul.mubr.bf16.gmra.mxu0 %v5588
        %v6652 = vpop.f32.mrf.mxu0
        %v6653 = vadd.f32 %v6492, %v6652
        %v6654 = vpop.f32.mrf.mxu0
        %v6655 = vpop.f32.mrf.mxu0
        %v6656 = vadd.f32 %v6495, %v6655
        %v6657 = vpop.f32.mrf.mxu0
        %6658 = vmatprep.mubr.bf16.mxu0 %v5598
        %6659 = vmatmul.mubr.bf16.gmra.mxu0 %v5597
        %v6660 = vpop.f32.mrf.mxu0
        %v6661 = vadd.f32 %v6500, %v6660
        %v6662 = vpop.f32.mrf.mxu0
        %v6663 = vpop.f32.mrf.mxu0
        %v6664 = vadd.f32 %v6503, %v6663
        %v6665 = vpop.f32.mrf.mxu0
        %6666 = vmatprep.mubr.bf16.mxu0 %v5607
        %6667 = vmatmul.mubr.bf16.gmra.mxu0 %v5606
        %v6668 = vpop.f32.mrf.mxu0
        %v6669 = vadd.f32 %v6508, %v6668
        %v6670 = vpop.f32.mrf.mxu0
        %v6671 = vpop.f32.mrf.mxu0
        %v6672 = vadd.f32 %v6511, %v6671
        %v6673 = vpop.f32.mrf.mxu0
        %6674 = vmatprep.mubr.bf16.mxu0 %v5616
        %6675 = vmatmul.mubr.bf16.gmra.mxu0 %v5615
        %v6676 = vpop.f32.mrf.mxu0
        %v6677 = vadd.f32 %v6516, %v6676
        %v6678 = vpop.f32.mrf.mxu0
        %v6679 = vpop.f32.mrf.mxu0
        %v6680 = vadd.f32 %v6519, %v6679
        %v6681 = vpop.f32.mrf.mxu0
        %6682 = vmatprep.mubr.bf16.mxu0 %v5625
        %6683 = vmatmul.mubr.bf16.gmra.mxu0 %v5624
        %v6684 = vpop.f32.mrf.mxu0
        %v6685 = vadd.f32 %v6524, %v6684
        %v6686 = vpop.f32.mrf.mxu0
        %v6687 = vpop.f32.mrf.mxu0
        %v6688 = vadd.f32 %v6527, %v6687
        %v6689 = vpop.f32.mrf.mxu0
        %6690 = vmatprep.mubr.bf16.mxu0 %v5634
        %6691 = vmatmul.mubr.bf16.gmra.mxu0 %v5633
        %v6692 = vpop.f32.mrf.mxu0
        %v6693 = vadd.f32 %v6532, %v6692
        %v6694 = vpop.f32.mrf.mxu0
        %v6695 = vpop.f32.mrf.mxu0
        %v6696 = vadd.f32 %v6535, %v6695
        %v6697 = vpop.f32.mrf.mxu0
        %6698 = vmatprep.mubr.bf16.mxu0 %v5643
        %6699 = vmatmul.mubr.bf16.gmra.mxu0 %v5642
        %v6700 = vpop.f32.mrf.mxu0
        %v6701 = vadd.f32 %v6540, %v6700
        %v6702 = vpop.f32.mrf.mxu0
        %v6703 = vpop.f32.mrf.mxu0
        %v6704 = vadd.f32 %v6543, %v6703
        %v6705 = vpop.f32.mrf.mxu0
        %6706 = vmatprep.mubr.bf16.mxu0 %v5652
        %6707 = vmatmul.mubr.bf16.gmra.mxu0 %v5651
        %v6708 = vpop.f32.mrf.mxu0
        %v6709 = vadd.f32 %v6548, %v6708
        %v6710 = vpop.f32.mrf.mxu0
        %v6711 = vpop.f32.mrf.mxu0
        %v6712 = vadd.f32 %v6551, %v6711
        %v6713 = vpop.f32.mrf.mxu0
        %6714 = vdwg.mxu0
        %6715 = vmatprep.subr.bf16.mxu0 0
        %6716 = vmatpush1.bf16.msra.mxu0 %v6143
        %6717 = vmatprep.subr.bf16.mxu0 0
        %6718 = vmatpush1.bf16.msra.mxu0 %v6142
        %6719 = vmatprep.subr.bf16.mxu0 0
        %6720 = vmatpush1.bf16.msra.mxu0 %v6141
        %6721 = vmatprep.subr.bf16.mxu0 0
        %6722 = vmatpush1.bf16.msra.mxu0 %v6140
        %6723 = vmatprep.subr.bf16.mxu0 0
        %6724 = vmatpush1.bf16.msra.mxu0 %v6139
        %6725 = vmatprep.subr.bf16.mxu0 0
        %6726 = vmatpush1.bf16.msra.mxu0 %v6138
        %6727 = vmatprep.subr.bf16.mxu0 0
        %6728 = vmatpush1.bf16.msra.mxu0 %v6137
        %6729 = vmatprep.subr.bf16.mxu0 0
        %6730 = vmatpush1.bf16.msra.mxu0 %v6136
        %6731 = vmatprep.subr.bf16.mxu0 0
        %6732 = vmatpush2.bf16.msra.mxu0 %v6151
        %6733 = vmatprep.subr.bf16.mxu0 0
        %6734 = vmatpush2.bf16.msra.mxu0 %v6150
        %6735 = vmatprep.subr.bf16.mxu0 0
        %6736 = vmatpush2.bf16.msra.mxu0 %v6149
        %6737 = vmatprep.subr.bf16.mxu0 0
        %6738 = vmatpush2.bf16.msra.mxu0 %v6148
        %6739 = vmatprep.subr.bf16.mxu0 0
        %6740 = vmatpush2.bf16.msra.mxu0 %v6147
        %6741 = vmatprep.subr.bf16.mxu0 0
        %6742 = vmatpush2.bf16.msra.mxu0 %v6146
        %6743 = vmatprep.subr.bf16.mxu0 0
        %6744 = vmatpush2.bf16.msra.mxu0 %v6145
        %6745 = vmatprep.subr.bf16.mxu0 0
        %6746 = vmatpush2.bf16.msra.mxu0 %v6144
        %6747 = vmatprep.mubr.bf16.mxu0 %v5519
        %6748 = vmatmul.mubr.bf16.gmra.mxu0 %v5518
        %v6749 = vpop.f32.mrf.mxu0
        %v6750 = vadd.f32 %v6589, %v6749
        %v6751 = vpop.f32.mrf.mxu0
        %v6752 = vpop.f32.mrf.mxu0
        %v6753 = vadd.f32 %v6592, %v6752
        %v6754 = vpop.f32.mrf.mxu0
        %6755 = vmatprep.mubr.bf16.mxu0 %v5528
        %6756 = vmatmul.mubr.bf16.gmra.mxu0 %v5527
        %v6757 = vpop.f32.mrf.mxu0
        %v6758 = vadd.f32 %v6597, %v6757
        %v6759 = vpop.f32.mrf.mxu0
        %v6760 = vpop.f32.mrf.mxu0
        %v6761 = vadd.f32 %v6600, %v6760
        %v6762 = vpop.f32.mrf.mxu0
        %6763 = vmatprep.mubr.bf16.mxu0 %v5537
        %6764 = vmatmul.mubr.bf16.gmra.mxu0 %v5536
        %v6765 = vpop.f32.mrf.mxu0
        %v6766 = vadd.f32 %v6605, %v6765
        %v6767 = vpop.f32.mrf.mxu0
        %v6768 = vpop.f32.mrf.mxu0
        %v6769 = vadd.f32 %v6608, %v6768
        %v6770 = vpop.f32.mrf.mxu0
        %6771 = vmatprep.mubr.bf16.mxu0 %v5546
        %6772 = vmatmul.mubr.bf16.gmra.mxu0 %v5545
        %v6773 = vpop.f32.mrf.mxu0
        %v6774 = vadd.f32 %v6613, %v6773
        %v6775 = vpop.f32.mrf.mxu0
        %v6776 = vpop.f32.mrf.mxu0
        %v6777 = vadd.f32 %v6616, %v6776
        %v6778 = vpop.f32.mrf.mxu0
        %6779 = vmatprep.mubr.bf16.mxu0 %v5555
        %6780 = vmatmul.mubr.bf16.gmra.mxu0 %v5554
        %v6781 = vpop.f32.mrf.mxu0
        %v6782 = vadd.f32 %v6621, %v6781
        %v6783 = vpop.f32.mrf.mxu0
        %v6784 = vpop.f32.mrf.mxu0
        %v6785 = vadd.f32 %v6624, %v6784
        %v6786 = vpop.f32.mrf.mxu0
        %6787 = vmatprep.mubr.bf16.mxu0 %v5564
        %6788 = vmatmul.mubr.bf16.gmra.mxu0 %v5563
        %v6789 = vpop.f32.mrf.mxu0
        %v6790 = vadd.f32 %v6629, %v6789
        %v6791 = vpop.f32.mrf.mxu0
        %v6792 = vpop.f32.mrf.mxu0
        %v6793 = vadd.f32 %v6632, %v6792
        %v6794 = vpop.f32.mrf.mxu0
        %6795 = vmatprep.mubr.bf16.mxu0 %v5573
        %6796 = vmatmul.mubr.bf16.gmra.mxu0 %v5572
        %v6797 = vpop.f32.mrf.mxu0
        %v6798 = vadd.f32 %v6637, %v6797
        %v6799 = vpop.f32.mrf.mxu0
        %v6800 = vpop.f32.mrf.mxu0
        %v6801 = vadd.f32 %v6640, %v6800
        %v6802 = vpop.f32.mrf.mxu0
        %6803 = vmatprep.mubr.bf16.mxu0 %v5582
        %6804 = vmatmul.mubr.bf16.gmra.mxu0 %v5581
        %v6805 = vpop.f32.mrf.mxu0
        %v6806 = vadd.f32 %v6645, %v6805
        %v6807 = vpop.f32.mrf.mxu0
        %v6808 = vpop.f32.mrf.mxu0
        %v6809 = vadd.f32 %v6648, %v6808
        %v6810 = vpop.f32.mrf.mxu0
        %6811 = vmatprep.mubr.bf16.mxu0 %v5591
        %6812 = vmatmul.mubr.bf16.gmra.mxu0 %v5590
        %v6813 = vpop.f32.mrf.mxu0
        %v6814 = vadd.f32 %v6653, %v6813
        %v6815 = vpop.f32.mrf.mxu0
        %v6816 = vpop.f32.mrf.mxu0
        %v6817 = vadd.f32 %v6656, %v6816
        %v6818 = vpop.f32.mrf.mxu0
        %6819 = vmatprep.mubr.bf16.mxu0 %v5600
        %6820 = vmatmul.mubr.bf16.gmra.mxu0 %v5599
        %v6821 = vpop.f32.mrf.mxu0
        %v6822 = vadd.f32 %v6661, %v6821
        %v6823 = vpop.f32.mrf.mxu0
        %v6824 = vpop.f32.mrf.mxu0
        %v6825 = vadd.f32 %v6664, %v6824
        %v6826 = vpop.f32.mrf.mxu0
        %6827 = vmatprep.mubr.bf16.mxu0 %v5609
        %6828 = vmatmul.mubr.bf16.gmra.mxu0 %v5608
        %v6829 = vpop.f32.mrf.mxu0
        %v6830 = vadd.f32 %v6669, %v6829
        %v6831 = vpop.f32.mrf.mxu0
        %v6832 = vpop.f32.mrf.mxu0
        %v6833 = vadd.f32 %v6672, %v6832
        %v6834 = vpop.f32.mrf.mxu0
        %6835 = vmatprep.mubr.bf16.mxu0 %v5618
        %6836 = vmatmul.mubr.bf16.gmra.mxu0 %v5617
        %v6837 = vpop.f32.mrf.mxu0
        %v6838 = vadd.f32 %v6677, %v6837
        %v6839 = vpop.f32.mrf.mxu0
        %v6840 = vpop.f32.mrf.mxu0
        %v6841 = vadd.f32 %v6680, %v6840
        %v6842 = vpop.f32.mrf.mxu0
        %6843 = vmatprep.mubr.bf16.mxu0 %v5627
        %6844 = vmatmul.mubr.bf16.gmra.mxu0 %v5626
        %v6845 = vpop.f32.mrf.mxu0
        %v6846 = vadd.f32 %v6685, %v6845
        %v6847 = vpop.f32.mrf.mxu0
        %v6848 = vpop.f32.mrf.mxu0
        %v6849 = vadd.f32 %v6688, %v6848
        %v6850 = vpop.f32.mrf.mxu0
        %6851 = vmatprep.mubr.bf16.mxu0 %v5636
        %6852 = vmatmul.mubr.bf16.gmra.mxu0 %v5635
        %v6853 = vpop.f32.mrf.mxu0
        %v6854 = vadd.f32 %v6693, %v6853
        %v6855 = vpop.f32.mrf.mxu0
        %v6856 = vpop.f32.mrf.mxu0
        %v6857 = vadd.f32 %v6696, %v6856
        %v6858 = vpop.f32.mrf.mxu0
        %6859 = vmatprep.mubr.bf16.mxu0 %v5645
        %6860 = vmatmul.mubr.bf16.gmra.mxu0 %v5644
        %v6861 = vpop.f32.mrf.mxu0
        %v6862 = vadd.f32 %v6701, %v6861
        %v6863 = vpop.f32.mrf.mxu0
        %v6864 = vpop.f32.mrf.mxu0
        %v6865 = vadd.f32 %v6704, %v6864
        %v6866 = vpop.f32.mrf.mxu0
        %6867 = vmatprep.mubr.bf16.mxu0 %v5654
        %6868 = vmatmul.mubr.bf16.gmra.mxu0 %v5653
        %v6869 = vpop.f32.mrf.mxu0
        %v6870 = vadd.f32 %v6709, %v6869
        %v6871 = vpop.f32.mrf.mxu0
        %v6872 = vpop.f32.mrf.mxu0
        %v6873 = vadd.f32 %v6712, %v6872
        %v6874 = vpop.f32.mrf.mxu0
        %6875 = vdwg.mxu0
        %6876 = vmatprep.subr.bf16.mxu0 0
        %6877 = vmatpush1.bf16.msra.mxu0 %v6159
        %6878 = vmatprep.subr.bf16.mxu0 0
        %6879 = vmatpush1.bf16.msra.mxu0 %v6158
        %6880 = vmatprep.subr.bf16.mxu0 0
        %6881 = vmatpush1.bf16.msra.mxu0 %v6157
        %6882 = vmatprep.subr.bf16.mxu0 0
        %6883 = vmatpush1.bf16.msra.mxu0 %v6156
        %6884 = vmatprep.subr.bf16.mxu0 0
        %6885 = vmatpush1.bf16.msra.mxu0 %v6155
        %6886 = vmatprep.subr.bf16.mxu0 0
        %6887 = vmatpush1.bf16.msra.mxu0 %v6154
        %6888 = vmatprep.subr.bf16.mxu0 0
        %6889 = vmatpush1.bf16.msra.mxu0 %v6153
        %6890 = vmatprep.subr.bf16.mxu0 0
        %6891 = vmatpush1.bf16.msra.mxu0 %v6152
        %6892 = vmatprep.subr.bf16.mxu0 0
        %6893 = vmatpush2.bf16.msra.mxu0 0
        %6894 = vmatprep.subr.bf16.mxu0 0
        %6895 = vmatpush2.bf16.msra.mxu0 0
        %6896 = vmatprep.subr.bf16.mxu0 0
        %6897 = vmatpush2.bf16.msra.mxu0 0
        %6898 = vmatprep.subr.bf16.mxu0 0
        %6899 = vmatpush2.bf16.msra.mxu0 0
        %6900 = vmatprep.subr.bf16.mxu0 0
        %6901 = vmatpush2.bf16.msra.mxu0 0
        %6902 = vmatprep.subr.bf16.mxu0 0
        %6903 = vmatpush2.bf16.msra.mxu0 0
        %6904 = vmatprep.subr.bf16.mxu0 0
        %6905 = vmatpush2.bf16.msra.mxu0 0
        %6906 = vmatprep.subr.bf16.mxu0 0
        %6907 = vmatpush2.bf16.msra.mxu0 0
        %6908 = vmatprep.mubr.bf16.mxu0 0
        %6909 = vmatmul.mubr.bf16.gmra.mxu0 %v5520
        %v6910 = vpop.f32.mrf.mxu0
        %v6911 = vadd.f32 %v6750, %v6910
        %v6912 = vpop.f32.mrf.mxu0
        %v6913 = vpop.f32.mrf.mxu0
        %v6914 = vadd.f32 %v6753, %v6913
        %v6915 = vpop.f32.mrf.mxu0
        %6916 = vmatprep.mubr.bf16.mxu0 0
        %6917 = vmatmul.mubr.bf16.gmra.mxu0 %v5529
        %v6918 = vpop.f32.mrf.mxu0
        %v6919 = vadd.f32 %v6758, %v6918
        %v6920 = vpop.f32.mrf.mxu0
        %v6921 = vpop.f32.mrf.mxu0
        %v6922 = vadd.f32 %v6761, %v6921
        %v6923 = vpop.f32.mrf.mxu0
        %6924 = vmatprep.mubr.bf16.mxu0 0
        %6925 = vmatmul.mubr.bf16.gmra.mxu0 %v5538
        %v6926 = vpop.f32.mrf.mxu0
        %v6927 = vadd.f32 %v6766, %v6926
        %v6928 = vpop.f32.mrf.mxu0
        %v6929 = vpop.f32.mrf.mxu0
        %v6930 = vadd.f32 %v6769, %v6929
        %v6931 = vpop.f32.mrf.mxu0
        %6932 = vmatprep.mubr.bf16.mxu0 0
        %6933 = vmatmul.mubr.bf16.gmra.mxu0 %v5547
        %v6934 = vpop.f32.mrf.mxu0
        %v6935 = vadd.f32 %v6774, %v6934
        %v6936 = vpop.f32.mrf.mxu0
        %v6937 = vpop.f32.mrf.mxu0
        %v6938 = vadd.f32 %v6777, %v6937
        %v6939 = vpop.f32.mrf.mxu0
        %6940 = vmatprep.mubr.bf16.mxu0 0
        %6941 = vmatmul.mubr.bf16.gmra.mxu0 %v5556
        %v6942 = vpop.f32.mrf.mxu0
        %v6943 = vadd.f32 %v6782, %v6942
        %v6944 = vpop.f32.mrf.mxu0
        %v6945 = vpop.f32.mrf.mxu0
        %v6946 = vadd.f32 %v6785, %v6945
        %v6947 = vpop.f32.mrf.mxu0
        %6948 = vmatprep.mubr.bf16.mxu0 0
        %6949 = vmatmul.mubr.bf16.gmra.mxu0 %v5565
        %v6950 = vpop.f32.mrf.mxu0
        %v6951 = vadd.f32 %v6790, %v6950
        %v6952 = vpop.f32.mrf.mxu0
        %v6953 = vpop.f32.mrf.mxu0
        %v6954 = vadd.f32 %v6793, %v6953
        %v6955 = vpop.f32.mrf.mxu0
        %6956 = vmatprep.mubr.bf16.mxu0 0
        %6957 = vmatmul.mubr.bf16.gmra.mxu0 %v5574
        %v6958 = vpop.f32.mrf.mxu0
        %v6959 = vadd.f32 %v6798, %v6958
        %v6960 = vpop.f32.mrf.mxu0
        %v6961 = vpop.f32.mrf.mxu0
        %v6962 = vadd.f32 %v6801, %v6961
        %v6963 = vpop.f32.mrf.mxu0
        %6964 = vmatprep.mubr.bf16.mxu0 0
        %6965 = vmatmul.mubr.bf16.gmra.mxu0 %v5583
        %v6966 = vpop.f32.mrf.mxu0
        %v6967 = vadd.f32 %v6806, %v6966
        %v6968 = vpop.f32.mrf.mxu0
        %v6969 = vpop.f32.mrf.mxu0
        %v6970 = vadd.f32 %v6809, %v6969
        %v6971 = vpop.f32.mrf.mxu0
        %6972 = vmatprep.mubr.bf16.mxu0 0
        %6973 = vmatmul.mubr.bf16.gmra.mxu0 %v5592
        %v6974 = vpop.f32.mrf.mxu0
        %v6975 = vadd.f32 %v6814, %v6974
        %v6976 = vpop.f32.mrf.mxu0
        %v6977 = vpop.f32.mrf.mxu0
        %v6978 = vadd.f32 %v6817, %v6977
        %v6979 = vpop.f32.mrf.mxu0
        %6980 = vmatprep.mubr.bf16.mxu0 0
        %6981 = vmatmul.mubr.bf16.gmra.mxu0 %v5601
        %v6982 = vpop.f32.mrf.mxu0
        %v6983 = vadd.f32 %v6822, %v6982
        %v6984 = vpop.f32.mrf.mxu0
        %v6985 = vpop.f32.mrf.mxu0
        %v6986 = vadd.f32 %v6825, %v6985
        %v6987 = vpop.f32.mrf.mxu0
        %6988 = vmatprep.mubr.bf16.mxu0 0
        %6989 = vmatmul.mubr.bf16.gmra.mxu0 %v5610
        %v6990 = vpop.f32.mrf.mxu0
        %v6991 = vadd.f32 %v6830, %v6990
        %v6992 = vpop.f32.mrf.mxu0
        %v6993 = vpop.f32.mrf.mxu0
        %v6994 = vadd.f32 %v6833, %v6993
        %v6995 = vpop.f32.mrf.mxu0
        %6996 = vmatprep.mubr.bf16.mxu0 0
        %6997 = vmatmul.mubr.bf16.gmra.mxu0 %v5619
        %v6998 = vpop.f32.mrf.mxu0
        %v6999 = vadd.f32 %v6838, %v6998
        %v7000 = vpop.f32.mrf.mxu0
        %v7001 = vpop.f32.mrf.mxu0
        %v7002 = vadd.f32 %v6841, %v7001
        %v7003 = vpop.f32.mrf.mxu0
        %7004 = vmatprep.mubr.bf16.mxu0 0
        %7005 = vmatmul.mubr.bf16.gmra.mxu0 %v5628
        %v7006 = vpop.f32.mrf.mxu0
        %v7007 = vadd.f32 %v6846, %v7006
        %v7008 = vpop.f32.mrf.mxu0
        %v7009 = vpop.f32.mrf.mxu0
        %v7010 = vadd.f32 %v6849, %v7009
        %v7011 = vpop.f32.mrf.mxu0
        %7012 = vmatprep.mubr.bf16.mxu0 0
        %7013 = vmatmul.mubr.bf16.gmra.mxu0 %v5637
        %v7014 = vpop.f32.mrf.mxu0
        %v7015 = vadd.f32 %v6854, %v7014
        %v7016 = vpop.f32.mrf.mxu0
        %v7017 = vpop.f32.mrf.mxu0
        %v7018 = vadd.f32 %v6857, %v7017
        %v7019 = vpop.f32.mrf.mxu0
        %7020 = vmatprep.mubr.bf16.mxu0 0
        %7021 = vmatmul.mubr.bf16.gmra.mxu0 %v5646
        %v7022 = vpop.f32.mrf.mxu0
        %v7023 = vadd.f32 %v6862, %v7022
        %v7024 = vpop.f32.mrf.mxu0
        %v7025 = vpop.f32.mrf.mxu0
        %v7026 = vadd.f32 %v6865, %v7025
        %v7027 = vpop.f32.mrf.mxu0
        %7028 = vmatprep.mubr.bf16.mxu0 0
        %7029 = vmatmul.mubr.bf16.gmra.mxu0 %v5655
        %v7030 = vpop.f32.mrf.mxu0
        %v7031 = vadd.f32 %v6870, %v7030
        %v7032 = vpop.f32.mrf.mxu0
        %v7033 = vpop.f32.mrf.mxu0
        %v7034 = vadd.f32 %v6873, %v7033
        %v7035 = vpop.f32.mrf.mxu0
        %7036 = vdwg.mxu0
        %v7037 = vld [vmem:[%s2] sm:$0x1]
        %v7039 = vlaneseq
        %v7040 = vshrl.u32 %v7039, 7
        %v7041 = vsub.s32 0, %v7040
        %v7042 = vrot.slane %v7037, %v7041
        %v7044 = vmul.f32 %v6911, %v7042
        %v7045 = vmul.f32 %v6914, %v7042
        %v7046 = vmul.f32 %v6919, %v7042
        %v7047 = vmul.f32 %v6922, %v7042
        %v7048 = vmul.f32 %v6927, %v7042
        %v7049 = vmul.f32 %v6930, %v7042
        %v7050 = vmul.f32 %v6935, %v7042
        %v7051 = vmul.f32 %v6938, %v7042
        %v7052 = vmul.f32 %v6943, %v7042
        %v7053 = vmul.f32 %v6946, %v7042
        %v7054 = vmul.f32 %v6951, %v7042
        %v7055 = vmul.f32 %v6954, %v7042
        %v7056 = vmul.f32 %v6959, %v7042
        %v7057 = vmul.f32 %v6962, %v7042
        %v7058 = vmul.f32 %v6967, %v7042
        %v7059 = vmul.f32 %v6970, %v7042
        %v7060 = vmul.f32 %v6975, %v7042
        %v7061 = vmul.f32 %v6978, %v7042
        %v7062 = vmul.f32 %v6983, %v7042
        %v7063 = vmul.f32 %v6986, %v7042
        %v7064 = vmul.f32 %v6991, %v7042
        %v7065 = vmul.f32 %v6994, %v7042
        %v7066 = vmul.f32 %v6999, %v7042
        %v7067 = vmul.f32 %v7002, %v7042
        %v7068 = vmul.f32 %v7007, %v7042
        %v7069 = vmul.f32 %v7010, %v7042
        %v7070 = vmul.f32 %v7015, %v7042
        %v7071 = vmul.f32 %v7018, %v7042
        %v7072 = vmul.f32 %v7023, %v7042
        %v7073 = vmul.f32 %v7026, %v7042
        %v7074 = vmul.f32 %v7031, %v7042
        %v7075 = vmul.f32 %v7034, %v7042
        %v7076 = vld [vmem:[%s3] sm:$0x1]
        %v7078 = vlaneseq
        %v7079 = vshrl.u32 %v7078, 7
        %v7080 = vsub.s32 0, %v7079
        %v7081 = vrot.slane %v7076, %v7080
        %v7083 = vadd.f32 %v7044, %v7081
        %v7084 = vadd.f32 %v7045, %v7081
        %v7085 = vadd.f32 %v7046, %v7081
        %v7086 = vadd.f32 %v7047, %v7081
        %v7087 = vadd.f32 %v7048, %v7081
        %v7088 = vadd.f32 %v7049, %v7081
        %v7089 = vadd.f32 %v7050, %v7081
        %v7090 = vadd.f32 %v7051, %v7081
        %v7091 = vadd.f32 %v7052, %v7081
        %v7092 = vadd.f32 %v7053, %v7081
        %v7093 = vadd.f32 %v7054, %v7081
        %v7094 = vadd.f32 %v7055, %v7081
        %v7095 = vadd.f32 %v7056, %v7081
        %v7096 = vadd.f32 %v7057, %v7081
        %v7097 = vadd.f32 %v7058, %v7081
        %v7098 = vadd.f32 %v7059, %v7081
        %v7099 = vadd.f32 %v7060, %v7081
        %v7100 = vadd.f32 %v7061, %v7081
        %v7101 = vadd.f32 %v7062, %v7081
        %v7102 = vadd.f32 %v7063, %v7081
        %v7103 = vadd.f32 %v7064, %v7081
        %v7104 = vadd.f32 %v7065, %v7081
        %v7105 = vadd.f32 %v7066, %v7081
        %v7106 = vadd.f32 %v7067, %v7081
        %v7107 = vadd.f32 %v7068, %v7081
        %v7108 = vadd.f32 %v7069, %v7081
        %v7109 = vadd.f32 %v7070, %v7081
        %v7110 = vadd.f32 %v7071, %v7081
        %v7111 = vadd.f32 %v7072, %v7081
        %v7112 = vadd.f32 %v7073, %v7081
        %v7113 = vadd.f32 %v7074, %v7081
        %v7114 = vadd.f32 %v7075, %v7081
        %v7115 = vmax.f32 %v7083, 0.0
        %v7116 = vmax.f32 %v7084, 0.0
        %v7117 = vmax.f32 %v7085, 0.0
        %v7118 = vmax.f32 %v7086, 0.0
        %v7119 = vmax.f32 %v7087, 0.0
        %v7120 = vmax.f32 %v7088, 0.0
        %v7121 = vmax.f32 %v7089, 0.0
        %v7122 = vmax.f32 %v7090, 0.0
        %v7123 = vmax.f32 %v7091, 0.0
        %v7124 = vmax.f32 %v7092, 0.0
        %v7125 = vmax.f32 %v7093, 0.0
        %v7126 = vmax.f32 %v7094, 0.0
        %v7127 = vmax.f32 %v7095, 0.0
        %v7128 = vmax.f32 %v7096, 0.0
        %v7129 = vmax.f32 %v7097, 0.0
        %v7130 = vmax.f32 %v7098, 0.0
        %v7131 = vmax.f32 %v7099, 0.0
        %v7132 = vmax.f32 %v7100, 0.0
        %v7133 = vmax.f32 %v7101, 0.0
        %v7134 = vmax.f32 %v7102, 0.0
        %v7135 = vmax.f32 %v7103, 0.0
        %v7136 = vmax.f32 %v7104, 0.0
        %v7137 = vmax.f32 %v7105, 0.0
        %v7138 = vmax.f32 %v7106, 0.0
        %v7139 = vmax.f32 %v7107, 0.0
        %v7140 = vmax.f32 %v7108, 0.0
        %v7141 = vmax.f32 %v7109, 0.0
        %v7142 = vmax.f32 %v7110, 0.0
        %v7143 = vmax.f32 %v7111, 0.0
        %v7144 = vmax.f32 %v7112, 0.0
        %v7145 = vmax.f32 %v7113, 0.0
        %v7146 = vmax.f32 %v7114, 0.0
        %v7147 = vpack.c.bf16 %v7116, %v7115
        %v7148 = vpack.c.bf16 %v7118, %v7117
        %v7149 = vpack.c.bf16 %v7120, %v7119
        %v7150 = vpack.c.bf16 %v7122, %v7121
        %v7151 = vpack.c.bf16 %v7124, %v7123
        %v7152 = vpack.c.bf16 %v7126, %v7125
        %v7153 = vpack.c.bf16 %v7128, %v7127
        %v7154 = vpack.c.bf16 %v7130, %v7129
        %v7155 = vpack.c.bf16 %v7132, %v7131
        %v7156 = vpack.c.bf16 %v7134, %v7133
        %v7157 = vpack.c.bf16 %v7136, %v7135
        %v7158 = vpack.c.bf16 %v7138, %v7137
        %v7159 = vpack.c.bf16 %v7140, %v7139
        %v7160 = vpack.c.bf16 %v7142, %v7141
        %v7161 = vpack.c.bf16 %v7144, %v7143
        %v7162 = vpack.c.bf16 %v7146, %v7145
        %7163 = vst [vmem:[#allocation3 + $0x8] sm:$0xf] 0
        %7164 = vst [vmem:[#allocation3 + $0xc] sm:$0xf] 0
        %7165 = vst [vmem:[#allocation3 + $0x90] sm:$0xf] 0
        %7166 = vst [vmem:[#allocation3 + $0x94] sm:$0xf] 0
        %v7183 = vunpack.c.l.b16 %v7147
        %v7184 = vunpack.c.h.b16 %v7147
        %v7185 = vunpack.c.l.b16 %v7148
        %v7186 = vunpack.c.h.b16 %v7148
        %v7187 = vunpack.c.l.b16 %v7149
        %v7188 = vunpack.c.h.b16 %v7149
        %v7189 = vunpack.c.l.b16 %v7150
        %v7190 = vunpack.c.h.b16 %v7150
        %v7191 = vunpack.c.l.b16 %v7151
        %v7192 = vunpack.c.h.b16 %v7151
        %v7193 = vunpack.c.l.b16 %v7152
        %v7194 = vunpack.c.h.b16 %v7152
        %v7195 = vunpack.c.l.b16 %v7153
        %v7196 = vunpack.c.h.b16 %v7153
        %v7197 = vunpack.c.l.b16 %v7154
        %v7198 = vunpack.c.h.b16 %v7154
        %v7199 = vunpack.c.l.b16 %v7155
        %v7200 = vunpack.c.h.b16 %v7155
        %v7201 = vunpack.c.l.b16 %v7156
        %v7202 = vunpack.c.h.b16 %v7156
        %v7203 = vunpack.c.l.b16 %v7157
        %v7204 = vunpack.c.h.b16 %v7157
        %v7205 = vunpack.c.l.b16 %v7158
        %v7206 = vunpack.c.h.b16 %v7158
        %v7207 = vunpack.c.l.b16 %v7159
        %v7208 = vunpack.c.h.b16 %v7159
        %v7209 = vunpack.c.l.b16 %v7160
        %v7210 = vunpack.c.h.b16 %v7160
        %v7211 = vunpack.c.l.b16 %v7161
        %v7212 = vunpack.c.h.b16 %v7161
        %v7213 = vunpack.c.l.b16 %v7162
        %v7214 = vunpack.c.h.b16 %v7162
        %v7215 = vpack.c.b16 %v7183, %v7183
        %v7216 = vpack.c.b16 %v7184, %v7184
        %v7217 = vpack.c.b16 %v7185, %v7185
        %v7218 = vpack.c.b16 %v7186, %v7186
        %v7219 = vpack.c.b16 %v7187, %v7187
        %v7220 = vpack.c.b16 %v7188, %v7188
        %v7221 = vpack.c.b16 %v7189, %v7189
        %v7222 = vpack.c.b16 %v7190, %v7190
        %v7223 = vpack.c.b16 %v7191, %v7191
        %v7224 = vpack.c.b16 %v7192, %v7192
        %v7225 = vpack.c.b16 %v7193, %v7193
        %v7226 = vpack.c.b16 %v7194, %v7194
        %v7227 = vpack.c.b16 %v7195, %v7195
        %v7228 = vpack.c.b16 %v7196, %v7196
        %v7229 = vpack.c.b16 %v7197, %v7197
        %v7230 = vpack.c.b16 %v7198, %v7198
        %v7231 = vpack.c.b16 %v7199, %v7199
        %v7232 = vpack.c.b16 %v7200, %v7200
        %v7233 = vpack.c.b16 %v7201, %v7201
        %v7234 = vpack.c.b16 %v7202, %v7202
        %v7235 = vpack.c.b16 %v7203, %v7203
        %v7236 = vpack.c.b16 %v7204, %v7204
        %v7237 = vpack.c.b16 %v7205, %v7205
        %v7238 = vpack.c.b16 %v7206, %v7206
        %v7239 = vpack.c.b16 %v7207, %v7207
        %v7240 = vpack.c.b16 %v7208, %v7208
        %v7241 = vpack.c.b16 %v7209, %v7209
        %v7242 = vpack.c.b16 %v7210, %v7210
        %v7243 = vpack.c.b16 %v7211, %v7211
        %v7244 = vpack.c.b16 %v7212, %v7212
        %v7245 = vpack.c.b16 %v7213, %v7213
        %v7246 = vpack.c.b16 %v7214, %v7214
        %7279 = vst [vmem:[#allocation3 + $0x10] sm:$0xf] %v7215
        %7280 = vst [vmem:[#allocation3 + $0x14] sm:$0xf] %v7216
        %7281 = vst [vmem:[#allocation3 + $0x18] sm:$0xf] %v7217
        %7282 = vst [vmem:[#allocation3 + $0x1c] sm:$0xf] %v7218
        %7283 = vst [vmem:[#allocation3 + $0x20] sm:$0xf] %v7219
        %7284 = vst [vmem:[#allocation3 + $0x24] sm:$0xf] %v7220
        %7285 = vst [vmem:[#allocation3 + $0x28] sm:$0xf] %v7221
        %7286 = vst [vmem:[#allocation3 + $0x2c] sm:$0xf] %v7222
        %7287 = vst [vmem:[#allocation3 + $0x30] sm:$0xf] %v7223
        %7288 = vst [vmem:[#allocation3 + $0x34] sm:$0xf] %v7224
        %7289 = vst [vmem:[#allocation3 + $0x38] sm:$0xf] %v7225
        %7290 = vst [vmem:[#allocation3 + $0x3c] sm:$0xf] %v7226
        %7291 = vst [vmem:[#allocation3 + $0x40] sm:$0xf] %v7227
        %7292 = vst [vmem:[#allocation3 + $0x44] sm:$0xf] %v7228
        %7293 = vst [vmem:[#allocation3 + $0x48] sm:$0xf] %v7229
        %7294 = vst [vmem:[#allocation3 + $0x4c] sm:$0xf] %v7230
        %7295 = vst [vmem:[#allocation3 + $0x50] sm:$0xf] %v7231
        %7296 = vst [vmem:[#allocation3 + $0x54] sm:$0xf] %v7232
        %7297 = vst [vmem:[#allocation3 + $0x58] sm:$0xf] %v7233
        %7298 = vst [vmem:[#allocation3 + $0x5c] sm:$0xf] %v7234
        %7299 = vst [vmem:[#allocation3 + $0x60] sm:$0xf] %v7235
        %7300 = vst [vmem:[#allocation3 + $0x64] sm:$0xf] %v7236
        %7301 = vst [vmem:[#allocation3 + $0x68] sm:$0xf] %v7237
        %7302 = vst [vmem:[#allocation3 + $0x6c] sm:$0xf] %v7238
        %7303 = vst [vmem:[#allocation3 + $0x70] sm:$0xf] %v7239
        %7304 = vst [vmem:[#allocation3 + $0x74] sm:$0xf] %v7240
        %7305 = vst [vmem:[#allocation3 + $0x78] sm:$0xf] %v7241
        %7306 = vst [vmem:[#allocation3 + $0x7c] sm:$0xf] %v7242
        %7307 = vst [vmem:[#allocation3 + $0x80] sm:$0xf] %v7243
        %7308 = vst [vmem:[#allocation3 + $0x84] sm:$0xf] %v7244
        %7309 = vst [vmem:[#allocation3 + $0x88] sm:$0xf] %v7245
        %7310 = vst [vmem:[#allocation3 + $0x8c] sm:$0xf] %v7246
        %v7311 = vld [vmem:[#allocation3 + $0x4] sm:$0x8]
        %v7312 = vld [vmem:[#allocation3 + $0x8] sm:$0xf]
        %v7313 = vld [vmem:[#allocation3 + $0xc] sm:$0xf]
        %v7314 = vld [vmem:[#allocation3 + $0x10] sm:$0xf]
        %v7315 = vld [vmem:[#allocation3 + $0x14] sm:$0xf]
        %v7316 = vld [vmem:[#allocation3 + $0x18] sm:$0xf]
        %v7317 = vld [vmem:[#allocation3 + $0x1c] sm:$0xf]
        %v7318 = vld [vmem:[#allocation3 + $0x20] sm:$0xf]
        %v7319 = vld [vmem:[#allocation3 + $0x24] sm:$0xf]
        %v7320 = vld [vmem:[#allocation3 + $0x28] sm:$0xf]
        %v7321 = vld [vmem:[#allocation3 + $0x2c] sm:$0xf]
        %v7322 = vld [vmem:[#allocation3 + $0x30] sm:$0xf]
        %v7323 = vld [vmem:[#allocation3 + $0x34] sm:$0xf]
        %v7324 = vld [vmem:[#allocation3 + $0x38] sm:$0xf]
        %v7325 = vld [vmem:[#allocation3 + $0x3c] sm:$0xf]
        %v7326 = vld [vmem:[#allocation3 + $0x40] sm:$0xf]
        %v7327 = vld [vmem:[#allocation3 + $0x44] sm:$0xf]
        %v7328 = vld [vmem:[#allocation3 + $0x48] sm:$0xf]
        %v7329 = vld [vmem:[#allocation3 + $0x4c] sm:$0xf]
        %v7330 = vld [vmem:[#allocation3 + $0x50] sm:$0xf]
        %v7331 = vld [vmem:[#allocation3 + $0x54] sm:$0xf]
        %v7332 = vld [vmem:[#allocation3 + $0x58] sm:$0xf]
        %v7333 = vld [vmem:[#allocation3 + $0x5c] sm:$0xf]
        %v7334 = vld [vmem:[#allocation3 + $0x60] sm:$0xf]
        %v7335 = vld [vmem:[#allocation3 + $0x64] sm:$0xf]
        %v7336 = vld [vmem:[#allocation3 + $0x68] sm:$0xf]
        %v7337 = vld [vmem:[#allocation3 + $0x6c] sm:$0xf]
        %v7338 = vld [vmem:[#allocation3 + $0x70] sm:$0xf]
        %v7339 = vld [vmem:[#allocation3 + $0x74] sm:$0xf]
        %v7340 = vld [vmem:[#allocation3 + $0x78] sm:$0xf]
        %v7341 = vld [vmem:[#allocation3 + $0x7c] sm:$0xf]
        %v7342 = vld [vmem:[#allocation3 + $0x80] sm:$0xf]
        %v7343 = vld [vmem:[#allocation3 + $0x84] sm:$0xf]
        %v7344 = vsel %vm1489, 0, %v7311
        %v7345 = vsel %vm1490, 0, %v7312
        %v7346 = vsel %vm1491, 0, %v7313
        %v7347 = vsel %vm1492, 0, %v7314
        %v7348 = vsel %vm1493, 0, %v7315
        %v7349 = vsel %vm1494, 0, %v7316
        %v7350 = vsel %vm1495, 0, %v7317
        %v7351 = vsel %vm1496, 0, %v7318
        %v7352 = vsel %vm1497, 0, %v7319
        %v7353 = vsel %vm1498, 0, %v7320
        %v7354 = vsel %vm1499, 0, %v7321
        %v7355 = vsel %vm1500, 0, %v7322
        %v7356 = vsel %vm1501, 0, %v7323
        %v7357 = vsel %vm1502, 0, %v7324
        %v7358 = vsel %vm1503, 0, %v7325
        %v7359 = vsel %vm1504, 0, %v7326
        %v7360 = vsel %vm1505, 0, %v7327
        %v7361 = vsel %vm1506, 0, %v7328
        %v7362 = vsel %vm1507, 0, %v7329
        %v7363 = vsel %vm1508, 0, %v7330
        %v7364 = vsel %vm1509, 0, %v7331
        %v7365 = vsel %vm1510, 0, %v7332
        %v7366 = vsel %vm1511, 0, %v7333
        %v7367 = vsel %vm1512, 0, %v7334
        %v7368 = vsel %vm1513, 0, %v7335
        %v7369 = vsel %vm1514, 0, %v7336
        %v7370 = vsel %vm1515, 0, %v7337
        %v7371 = vsel %vm1516, 0, %v7338
        %v7372 = vsel %vm1517, 0, %v7339
        %v7373 = vsel %vm1518, 0, %v7340
        %v7374 = vsel %vm1519, 0, %v7341
        %v7375 = vsel %vm1520, 0, %v7342
        %v7376 = vsel %vm1521, 0, %v7343
        %v7378 = vshrl.u32 %v7344, 16
        %v7380 = vrot.slane %v7378, 7
        %v7381 = vrot.slane %v7380, 4
        %v7383 = vshrl.u32 %v7345, 16
        %v7385 = vrot.slane %v7383, 7
        %v7386 = vshll.u32 %v7345, 16
        %v7388 = vor.u32 %v7385, %v7386
        %v7389 = vsel %vm1557, %v7381, %v7388
        %v7390 = vrot.slane %v7385, 4
        %v7392 = vshrl.u32 %v7346, 16
        %v7394 = vrot.slane %v7392, 7
        %v7395 = vshll.u32 %v7346, 16
        %v7397 = vor.u32 %v7394, %v7395
        %v7398 = vsel %vm1557, %v7390, %v7397
        %v7399 = vrot.slane %v7394, 4
        %v7401 = vshrl.u32 %v7347, 16
        %v7403 = vrot.slane %v7401, 7
        %v7404 = vshll.u32 %v7347, 16
        %v7406 = vor.u32 %v7403, %v7404
        %v7407 = vsel %vm1557, %v7399, %v7406
        %v7408 = vrot.slane %v7403, 4
        %v7410 = vshrl.u32 %v7348, 16
        %v7412 = vrot.slane %v7410, 7
        %v7413 = vshll.u32 %v7348, 16
        %v7415 = vor.u32 %v7412, %v7413
        %v7416 = vsel %vm1557, %v7408, %v7415
        %v7417 = vrot.slane %v7412, 4
        %v7419 = vshrl.u32 %v7349, 16
        %v7421 = vrot.slane %v7419, 7
        %v7422 = vshll.u32 %v7349, 16
        %v7424 = vor.u32 %v7421, %v7422
        %v7425 = vsel %vm1557, %v7417, %v7424
        %v7426 = vrot.slane %v7421, 4
        %v7428 = vshrl.u32 %v7350, 16
        %v7430 = vrot.slane %v7428, 7
        %v7431 = vshll.u32 %v7350, 16
        %v7433 = vor.u32 %v7430, %v7431
        %v7434 = vsel %vm1557, %v7426, %v7433
        %v7435 = vrot.slane %v7430, 4
        %v7437 = vshrl.u32 %v7351, 16
        %v7439 = vrot.slane %v7437, 7
        %v7440 = vshll.u32 %v7351, 16
        %v7442 = vor.u32 %v7439, %v7440
        %v7443 = vsel %vm1557, %v7435, %v7442
        %v7444 = vrot.slane %v7439, 4
        %v7446 = vshrl.u32 %v7352, 16
        %v7448 = vrot.slane %v7446, 7
        %v7449 = vshll.u32 %v7352, 16
        %v7451 = vor.u32 %v7448, %v7449
        %v7452 = vsel %vm1557, %v7444, %v7451
        %v7453 = vrot.slane %v7448, 4
        %v7455 = vshrl.u32 %v7353, 16
        %v7457 = vrot.slane %v7455, 7
        %v7458 = vshll.u32 %v7353, 16
        %v7460 = vor.u32 %v7457, %v7458
        %v7461 = vsel %vm1557, %v7453, %v7460
        %v7462 = vrot.slane %v7457, 4
        %v7464 = vshrl.u32 %v7354, 16
        %v7466 = vrot.slane %v7464, 7
        %v7467 = vshll.u32 %v7354, 16
        %v7469 = vor.u32 %v7466, %v7467
        %v7470 = vsel %vm1557, %v7462, %v7469
        %v7471 = vrot.slane %v7466, 4
        %v7473 = vshrl.u32 %v7355, 16
        %v7475 = vrot.slane %v7473, 7
        %v7476 = vshll.u32 %v7355, 16
        %v7478 = vor.u32 %v7475, %v7476
        %v7479 = vsel %vm1557, %v7471, %v7478
        %v7480 = vrot.slane %v7475, 4
        %v7482 = vshrl.u32 %v7356, 16
        %v7484 = vrot.slane %v7482, 7
        %v7485 = vshll.u32 %v7356, 16
        %v7487 = vor.u32 %v7484, %v7485
        %v7488 = vsel %vm1557, %v7480, %v7487
        %v7489 = vrot.slane %v7484, 4
        %v7491 = vshrl.u32 %v7357, 16
        %v7493 = vrot.slane %v7491, 7
        %v7494 = vshll.u32 %v7357, 16
        %v7496 = vor.u32 %v7493, %v7494
        %v7497 = vsel %vm1557, %v7489, %v7496
        %v7498 = vrot.slane %v7493, 4
        %v7500 = vshrl.u32 %v7358, 16
        %v7502 = vrot.slane %v7500, 7
        %v7503 = vshll.u32 %v7358, 16
        %v7505 = vor.u32 %v7502, %v7503
        %v7506 = vsel %vm1557, %v7498, %v7505
        %v7507 = vrot.slane %v7502, 4
        %v7509 = vshrl.u32 %v7359, 16
        %v7511 = vrot.slane %v7509, 7
        %v7512 = vshll.u32 %v7359, 16
        %v7514 = vor.u32 %v7511, %v7512
        %v7515 = vsel %vm1557, %v7507, %v7514
        %v7516 = vrot.slane %v7511, 4
        %v7518 = vshrl.u32 %v7360, 16
        %v7520 = vrot.slane %v7518, 7
        %v7521 = vshll.u32 %v7360, 16
        %v7523 = vor.u32 %v7520, %v7521
        %v7524 = vsel %vm1557, %v7516, %v7523
        %v7525 = vrot.slane %v7520, 4
        %v7527 = vshrl.u32 %v7361, 16
        %v7529 = vrot.slane %v7527, 7
        %v7530 = vshll.u32 %v7361, 16
        %v7532 = vor.u32 %v7529, %v7530
        %v7533 = vsel %vm1557, %v7525, %v7532
        %v7534 = vrot.slane %v7529, 4
        %v7536 = vshrl.u32 %v7362, 16
        %v7538 = vrot.slane %v7536, 7
        %v7539 = vshll.u32 %v7362, 16
        %v7541 = vor.u32 %v7538, %v7539
        %v7542 = vsel %vm1557, %v7534, %v7541
        %v7543 = vrot.slane %v7538, 4
        %v7545 = vshrl.u32 %v7363, 16
        %v7547 = vrot.slane %v7545, 7
        %v7548 = vshll.u32 %v7363, 16
        %v7550 = vor.u32 %v7547, %v7548
        %v7551 = vsel %vm1557, %v7543, %v7550
        %v7552 = vrot.slane %v7547, 4
        %v7554 = vshrl.u32 %v7364, 16
        %v7556 = vrot.slane %v7554, 7
        %v7557 = vshll.u32 %v7364, 16
        %v7559 = vor.u32 %v7556, %v7557
        %v7560 = vsel %vm1557, %v7552, %v7559
        %v7561 = vrot.slane %v7556, 4
        %v7563 = vshrl.u32 %v7365, 16
        %v7565 = vrot.slane %v7563, 7
        %v7566 = vshll.u32 %v7365, 16
        %v7568 = vor.u32 %v7565, %v7566
        %v7569 = vsel %vm1557, %v7561, %v7568
        %v7570 = vrot.slane %v7565, 4
        %v7572 = vshrl.u32 %v7366, 16
        %v7574 = vrot.slane %v7572, 7
        %v7575 = vshll.u32 %v7366, 16
        %v7577 = vor.u32 %v7574, %v7575
        %v7578 = vsel %vm1557, %v7570, %v7577
        %v7579 = vrot.slane %v7574, 4
        %v7581 = vshrl.u32 %v7367, 16
        %v7583 = vrot.slane %v7581, 7
        %v7584 = vshll.u32 %v7367, 16
        %v7586 = vor.u32 %v7583, %v7584
        %v7587 = vsel %vm1557, %v7579, %v7586
        %v7588 = vrot.slane %v7583, 4
        %v7590 = vshrl.u32 %v7368, 16
        %v7592 = vrot.slane %v7590, 7
        %v7593 = vshll.u32 %v7368, 16
        %v7595 = vor.u32 %v7592, %v7593
        %v7596 = vsel %vm1557, %v7588, %v7595
        %v7597 = vrot.slane %v7592, 4
        %v7599 = vshrl.u32 %v7369, 16
        %v7601 = vrot.slane %v7599, 7
        %v7602 = vshll.u32 %v7369, 16
        %v7604 = vor.u32 %v7601, %v7602
        %v7605 = vsel %vm1557, %v7597, %v7604
        %v7606 = vrot.slane %v7601, 4
        %v7608 = vshrl.u32 %v7370, 16
        %v7610 = vrot.slane %v7608, 7
        %v7611 = vshll.u32 %v7370, 16
        %v7613 = vor.u32 %v7610, %v7611
        %v7614 = vsel %vm1557, %v7606, %v7613
        %v7615 = vrot.slane %v7610, 4
        %v7617 = vshrl.u32 %v7371, 16
        %v7619 = vrot.slane %v7617, 7
        %v7620 = vshll.u32 %v7371, 16
        %v7622 = vor.u32 %v7619, %v7620
        %v7623 = vsel %vm1557, %v7615, %v7622
        %v7624 = vrot.slane %v7619, 4
        %v7626 = vshrl.u32 %v7372, 16
        %v7628 = vrot.slane %v7626, 7
        %v7629 = vshll.u32 %v7372, 16
        %v7631 = vor.u32 %v7628, %v7629
        %v7632 = vsel %vm1557, %v7624, %v7631
        %v7633 = vrot.slane %v7628, 4
        %v7635 = vshrl.u32 %v7373, 16
        %v7637 = vrot.slane %v7635, 7
        %v7638 = vshll.u32 %v7373, 16
        %v7640 = vor.u32 %v7637, %v7638
        %v7641 = vsel %vm1557, %v7633, %v7640
        %v7642 = vrot.slane %v7637, 4
        %v7644 = vshrl.u32 %v7374, 16
        %v7646 = vrot.slane %v7644, 7
        %v7647 = vshll.u32 %v7374, 16
        %v7649 = vor.u32 %v7646, %v7647
        %v7650 = vsel %vm1557, %v7642, %v7649
        %v7651 = vrot.slane %v7646, 4
        %v7653 = vshrl.u32 %v7375, 16
        %v7655 = vrot.slane %v7653, 7
        %v7656 = vshll.u32 %v7375, 16
        %v7658 = vor.u32 %v7655, %v7656
        %v7659 = vsel %vm1557, %v7651, %v7658
        %v7660 = vrot.slane %v7655, 4
        %v7662 = vshrl.u32 %v7376, 16
        %v7664 = vrot.slane %v7662, 7
        %v7665 = vshll.u32 %v7376, 16
        %v7667 = vor.u32 %v7664, %v7665
        %v7668 = vsel %vm1557, %v7660, %v7667
        %7701 = vst [vmem:[#allocation4] sm:$0xf] %v7389
        %7702 = vst [vmem:[#allocation4 + $0x24] sm:$0xf] %v7398
        %7703 = vst [vmem:[#allocation4 + $0x48] sm:$0xf] %v7407
        %7704 = vst [vmem:[#allocation4 + $0x6c] sm:$0xf] %v7416
        %7705 = vst [vmem:[#allocation4 + $0x90] sm:$0xf] %v7425
        %7706 = vst [vmem:[#allocation4 + $0xb4] sm:$0xf] %v7434
        %7707 = vst [vmem:[#allocation4 + $0xd8] sm:$0xf] %v7443
        %7708 = vst [vmem:[#allocation4 + $0xfc] sm:$0xf] %v7452
        %7709 = vst [vmem:[#allocation4 + $0x120] sm:$0xf] %v7461
        %7710 = vst [vmem:[#allocation4 + $0x144] sm:$0xf] %v7470
        %7711 = vst [vmem:[#allocation4 + $0x168] sm:$0xf] %v7479
        %7712 = vst [vmem:[#allocation4 + $0x18c] sm:$0xf] %v7488
        %7713 = vst [vmem:[#allocation4 + $0x1b0] sm:$0xf] %v7497
        %7714 = vst [vmem:[#allocation4 + $0x1d4] sm:$0xf] %v7506
        %7715 = vst [vmem:[#allocation4 + $0x1f8] sm:$0xf] %v7515
        %7716 = vst [vmem:[#allocation4 + $0x21c] sm:$0xf] %v7524
        %7717 = vst [vmem:[#allocation4 + $0x240] sm:$0xf] %v7533
        %7718 = vst [vmem:[#allocation4 + $0x264] sm:$0xf] %v7542
        %7719 = vst [vmem:[#allocation4 + $0x288] sm:$0xf] %v7551
        %7720 = vst [vmem:[#allocation4 + $0x2ac] sm:$0xf] %v7560
        %7721 = vst [vmem:[#allocation4 + $0x2d0] sm:$0xf] %v7569
        %7722 = vst [vmem:[#allocation4 + $0x2f4] sm:$0xf] %v7578
        %7723 = vst [vmem:[#allocation4 + $0x318] sm:$0xf] %v7587
        %7724 = vst [vmem:[#allocation4 + $0x33c] sm:$0xf] %v7596
        %7725 = vst [vmem:[#allocation4 + $0x360] sm:$0xf] %v7605
        %7726 = vst [vmem:[#allocation4 + $0x384] sm:$0xf] %v7614
        %7727 = vst [vmem:[#allocation4 + $0x3a8] sm:$0xf] %v7623
        %7728 = vst [vmem:[#allocation4 + $0x3cc] sm:$0xf] %v7632
        %7729 = vst [vmem:[#allocation4 + $0x3f0] sm:$0xf] %v7641
        %7730 = vst [vmem:[#allocation4 + $0x414] sm:$0xf] %v7650
        %7731 = vst [vmem:[#allocation4 + $0x438] sm:$0xf] %v7659
        %7732 = vst [vmem:[#allocation4 + $0x45c] sm:$0xf] %v7668
        %v7733 = vld [vmem:[#allocation3 + $0x8] sm:$0xf]
        %v7734 = vld [vmem:[#allocation3 + $0xc] sm:$0xf]
        %v7735 = vld [vmem:[#allocation3 + $0x10] sm:$0xf]
        %v7736 = vld [vmem:[#allocation3 + $0x14] sm:$0xf]
        %v7737 = vld [vmem:[#allocation3 + $0x18] sm:$0xf]
        %v7738 = vld [vmem:[#allocation3 + $0x1c] sm:$0xf]
        %v7739 = vld [vmem:[#allocation3 + $0x20] sm:$0xf]
        %v7740 = vld [vmem:[#allocation3 + $0x24] sm:$0xf]
        %v7741 = vld [vmem:[#allocation3 + $0x28] sm:$0xf]
        %v7742 = vld [vmem:[#allocation3 + $0x2c] sm:$0xf]
        %v7743 = vld [vmem:[#allocation3 + $0x30] sm:$0xf]
        %v7744 = vld [vmem:[#allocation3 + $0x34] sm:$0xf]
        %v7745 = vld [vmem:[#allocation3 + $0x38] sm:$0xf]
        %v7746 = vld [vmem:[#allocation3 + $0x3c] sm:$0xf]
        %v7747 = vld [vmem:[#allocation3 + $0x40] sm:$0xf]
        %v7748 = vld [vmem:[#allocation3 + $0x44] sm:$0xf]
        %v7749 = vld [vmem:[#allocation3 + $0x48] sm:$0xf]
        %v7750 = vld [vmem:[#allocation3 + $0x4c] sm:$0xf]
        %v7751 = vld [vmem:[#allocation3 + $0x50] sm:$0xf]
        %v7752 = vld [vmem:[#allocation3 + $0x54] sm:$0xf]
        %v7753 = vld [vmem:[#allocation3 + $0x58] sm:$0xf]
        %v7754 = vld [vmem:[#allocation3 + $0x5c] sm:$0xf]
        %v7755 = vld [vmem:[#allocation3 + $0x60] sm:$0xf]
        %v7756 = vld [vmem:[#allocation3 + $0x64] sm:$0xf]
        %v7757 = vld [vmem:[#allocation3 + $0x68] sm:$0xf]
        %v7758 = vld [vmem:[#allocation3 + $0x6c] sm:$0xf]
        %v7759 = vld [vmem:[#allocation3 + $0x70] sm:$0xf]
        %v7760 = vld [vmem:[#allocation3 + $0x74] sm:$0xf]
        %v7761 = vld [vmem:[#allocation3 + $0x78] sm:$0xf]
        %v7762 = vld [vmem:[#allocation3 + $0x7c] sm:$0xf]
        %v7763 = vld [vmem:[#allocation3 + $0x80] sm:$0xf]
        %v7764 = vld [vmem:[#allocation3 + $0x84] sm:$0xf]
        %7765 = vst [vmem:[#allocation4 + $0x4] sm:$0xf] %v7733
        %7766 = vst [vmem:[#allocation4 + $0x28] sm:$0xf] %v7734
        %7767 = vst [vmem:[#allocation4 + $0x4c] sm:$0xf] %v7735
        %7768 = vst [vmem:[#allocation4 + $0x70] sm:$0xf] %v7736
        %7769 = vst [vmem:[#allocation4 + $0x94] sm:$0xf] %v7737
        %7770 = vst [vmem:[#allocation4 + $0xb8] sm:$0xf] %v7738
        %7771 = vst [vmem:[#allocation4 + $0xdc] sm:$0xf] %v7739
        %7772 = vst [vmem:[#allocation4 + $0x100] sm:$0xf] %v7740
        %7773 = vst [vmem:[#allocation4 + $0x124] sm:$0xf] %v7741
        %7774 = vst [vmem:[#allocation4 + $0x148] sm:$0xf] %v7742
        %7775 = vst [vmem:[#allocation4 + $0x16c] sm:$0xf] %v7743
        %7776 = vst [vmem:[#allocation4 + $0x190] sm:$0xf] %v7744
        %7777 = vst [vmem:[#allocation4 + $0x1b4] sm:$0xf] %v7745
        %7778 = vst [vmem:[#allocation4 + $0x1d8] sm:$0xf] %v7746
        %7779 = vst [vmem:[#allocation4 + $0x1fc] sm:$0xf] %v7747
        %7780 = vst [vmem:[#allocation4 + $0x220] sm:$0xf] %v7748
        %7781 = vst [vmem:[#allocation4 + $0x244] sm:$0xf] %v7749
        %7782 = vst [vmem:[#allocation4 + $0x268] sm:$0xf] %v7750
        %7783 = vst [vmem:[#allocation4 + $0x28c] sm:$0xf] %v7751
        %7784 = vst [vmem:[#allocation4 + $0x2b0] sm:$0xf] %v7752
        %7785 = vst [vmem:[#allocation4 + $0x2d4] sm:$0xf] %v7753
        %7786 = vst [vmem:[#allocation4 + $0x2f8] sm:$0xf] %v7754
        %7787 = vst [vmem:[#allocation4 + $0x31c] sm:$0xf] %v7755
        %7788 = vst [vmem:[#allocation4 + $0x340] sm:$0xf] %v7756
        %7789 = vst [vmem:[#allocation4 + $0x364] sm:$0xf] %v7757
        %7790 = vst [vmem:[#allocation4 + $0x388] sm:$0xf] %v7758
        %7791 = vst [vmem:[#allocation4 + $0x3ac] sm:$0xf] %v7759
        %7792 = vst [vmem:[#allocation4 + $0x3d0] sm:$0xf] %v7760
        %7793 = vst [vmem:[#allocation4 + $0x3f4] sm:$0xf] %v7761
        %7794 = vst [vmem:[#allocation4 + $0x418] sm:$0xf] %v7762
        %7795 = vst [vmem:[#allocation4 + $0x43c] sm:$0xf] %v7763
        %7796 = vst [vmem:[#allocation4 + $0x460] sm:$0xf] %v7764
        %v7797 = vld [vmem:[#allocation3 + $0x8] sm:$0xf]
        %v7798 = vld [vmem:[#allocation3 + $0xc] sm:$0xf]
        %v7799 = vld [vmem:[#allocation3 + $0x10] sm:$0xf]
        %v7800 = vld [vmem:[#allocation3 + $0x14] sm:$0xf]
        %v7801 = vld [vmem:[#allocation3 + $0x18] sm:$0xf]
        %v7802 = vld [vmem:[#allocation3 + $0x1c] sm:$0xf]
        %v7803 = vld [vmem:[#allocation3 + $0x20] sm:$0xf]
        %v7804 = vld [vmem:[#allocation3 + $0x24] sm:$0xf]
        %v7805 = vld [vmem:[#allocation3 + $0x28] sm:$0xf]
        %v7806 = vld [vmem:[#allocation3 + $0x2c] sm:$0xf]
        %v7807 = vld [vmem:[#allocation3 + $0x30] sm:$0xf]
        %v7808 = vld [vmem:[#allocation3 + $0x34] sm:$0xf]
        %v7809 = vld [vmem:[#allocation3 + $0x38] sm:$0xf]
        %v7810 = vld [vmem:[#allocation3 + $0x3c] sm:$0xf]
        %v7811 = vld [vmem:[#allocation3 + $0x40] sm:$0xf]
        %v7812 = vld [vmem:[#allocation3 + $0x44] sm:$0xf]
        %v7813 = vld [vmem:[#allocation3 + $0x48] sm:$0xf]
        %v7814 = vld [vmem:[#allocation3 + $0x4c] sm:$0xf]
        %v7815 = vld [vmem:[#allocation3 + $0x50] sm:$0xf]
        %v7816 = vld [vmem:[#allocation3 + $0x54] sm:$0xf]
        %v7817 = vld [vmem:[#allocation3 + $0x58] sm:$0xf]
        %v7818 = vld [vmem:[#allocation3 + $0x5c] sm:$0xf]
        %v7819 = vld [vmem:[#allocation3 + $0x60] sm:$0xf]
        %v7820 = vld [vmem:[#allocation3 + $0x64] sm:$0xf]
        %v7821 = vld [vmem:[#allocation3 + $0x68] sm:$0xf]
        %v7822 = vld [vmem:[#allocation3 + $0x6c] sm:$0xf]
        %v7823 = vld [vmem:[#allocation3 + $0x70] sm:$0xf]
        %v7824 = vld [vmem:[#allocation3 + $0x74] sm:$0xf]
        %v7825 = vld [vmem:[#allocation3 + $0x78] sm:$0xf]
        %v7826 = vld [vmem:[#allocation3 + $0x7c] sm:$0xf]
        %v7827 = vld [vmem:[#allocation3 + $0x80] sm:$0xf]
        %v7828 = vld [vmem:[#allocation3 + $0x84] sm:$0xf]
        %v7829 = vld [vmem:[#allocation3 + $0x88] sm:$0x1]
        %v7830 = vsel %vm2426, 0, %v7797
        %v7831 = vsel %vm2427, 0, %v7798
        %v7832 = vsel %vm2428, 0, %v7799
        %v7833 = vsel %vm2429, 0, %v7800
        %v7834 = vsel %vm2430, 0, %v7801
        %v7835 = vsel %vm2431, 0, %v7802
        %v7836 = vsel %vm2432, 0, %v7803
        %v7837 = vsel %vm2433, 0, %v7804
        %v7838 = vsel %vm2434, 0, %v7805
        %v7839 = vsel %vm2435, 0, %v7806
        %v7840 = vsel %vm2436, 0, %v7807
        %v7841 = vsel %vm2437, 0, %v7808
        %v7842 = vsel %vm2438, 0, %v7809
        %v7843 = vsel %vm2439, 0, %v7810
        %v7844 = vsel %vm2440, 0, %v7811
        %v7845 = vsel %vm2441, 0, %v7812
        %v7846 = vsel %vm2442, 0, %v7813
        %v7847 = vsel %vm2443, 0, %v7814
        %v7848 = vsel %vm2444, 0, %v7815
        %v7849 = vsel %vm2445, 0, %v7816
        %v7850 = vsel %vm2446, 0, %v7817
        %v7851 = vsel %vm2447, 0, %v7818
        %v7852 = vsel %vm2448, 0, %v7819
        %v7853 = vsel %vm2449, 0, %v7820
        %v7854 = vsel %vm2450, 0, %v7821
        %v7855 = vsel %vm2451, 0, %v7822
        %v7856 = vsel %vm2452, 0, %v7823
        %v7857 = vsel %vm2453, 0, %v7824
        %v7858 = vsel %vm2454, 0, %v7825
        %v7859 = vsel %vm2455, 0, %v7826
        %v7860 = vsel %vm2456, 0, %v7827
        %v7861 = vsel %vm2457, 0, %v7828
        %v7862 = vsel %vm2458, 0, %v7829
        %v7864 = vshrl.u32 %v7830, 16
        %v7866 = vrot.slane %v7864, 4
        %v7867 = vshll.u32 %v7830, 16
        %v7869 = vrot.slane %v7867, 5
        %v7870 = vor.u32 %v7866, %v7869
        %v7871 = vrot.slane %v7870, 4
        %v7873 = vshll.u32 %v7831, 16
        %v7875 = vrot.slane %v7873, 5
        %v7876 = vsel %vm1169, %v7871, %v7875
        %v7877 = vshrl.u32 %v7831, 16
        %v7879 = vrot.slane %v7877, 4
        %v7880 = vor.u32 %v7879, %v7875
        %v7881 = vrot.slane %v7880, 4
        %v7883 = vshll.u32 %v7832, 16
        %v7885 = vrot.slane %v7883, 5
        %v7886 = vsel %vm1169, %v7881, %v7885
        %v7887 = vshrl.u32 %v7832, 16
        %v7889 = vrot.slane %v7887, 4
        %v7890 = vor.u32 %v7889, %v7885
        %v7891 = vrot.slane %v7890, 4
        %v7893 = vshll.u32 %v7833, 16
        %v7895 = vrot.slane %v7893, 5
        %v7896 = vsel %vm1169, %v7891, %v7895
        %v7897 = vshrl.u32 %v7833, 16
        %v7899 = vrot.slane %v7897, 4
        %v7900 = vor.u32 %v7899, %v7895
        %v7901 = vrot.slane %v7900, 4
        %v7903 = vshll.u32 %v7834, 16
        %v7905 = vrot.slane %v7903, 5
        %v7906 = vsel %vm1169, %v7901, %v7905
        %v7907 = vshrl.u32 %v7834, 16
        %v7909 = vrot.slane %v7907, 4
        %v7910 = vor.u32 %v7909, %v7905
        %v7911 = vrot.slane %v7910, 4
        %v7913 = vshll.u32 %v7835, 16
        %v7915 = vrot.slane %v7913, 5
        %v7916 = vsel %vm1169, %v7911, %v7915
        %v7917 = vshrl.u32 %v7835, 16
        %v7919 = vrot.slane %v7917, 4
        %v7920 = vor.u32 %v7919, %v7915
        %v7921 = vrot.slane %v7920, 4
        %v7923 = vshll.u32 %v7836, 16
        %v7925 = vrot.slane %v7923, 5
        %v7926 = vsel %vm1169, %v7921, %v7925
        %v7927 = vshrl.u32 %v7836, 16
        %v7929 = vrot.slane %v7927, 4
        %v7930 = vor.u32 %v7929, %v7925
        %v7931 = vrot.slane %v7930, 4
        %v7933 = vshll.u32 %v7837, 16
        %v7935 = vrot.slane %v7933, 5
        %v7936 = vsel %vm1169, %v7931, %v7935
        %v7937 = vshrl.u32 %v7837, 16
        %v7939 = vrot.slane %v7937, 4
        %v7940 = vor.u32 %v7939, %v7935
        %v7941 = vrot.slane %v7940, 4
        %v7943 = vshll.u32 %v7838, 16
        %v7945 = vrot.slane %v7943, 5
        %v7946 = vsel %vm1169, %v7941, %v7945
        %v7947 = vshrl.u32 %v7838, 16
        %v7949 = vrot.slane %v7947, 4
        %v7950 = vor.u32 %v7949, %v7945
        %v7951 = vrot.slane %v7950, 4
        %v7953 = vshll.u32 %v7839, 16
        %v7955 = vrot.slane %v7953, 5
        %v7956 = vsel %vm1169, %v7951, %v7955
        %v7957 = vshrl.u32 %v7839, 16
        %v7959 = vrot.slane %v7957, 4
        %v7960 = vor.u32 %v7959, %v7955
        %v7961 = vrot.slane %v7960, 4
        %v7963 = vshll.u32 %v7840, 16
        %v7965 = vrot.slane %v7963, 5
        %v7966 = vsel %vm1169, %v7961, %v7965
        %v7967 = vshrl.u32 %v7840, 16
        %v7969 = vrot.slane %v7967, 4
        %v7970 = vor.u32 %v7969, %v7965
        %v7971 = vrot.slane %v7970, 4
        %v7973 = vshll.u32 %v7841, 16
        %v7975 = vrot.slane %v7973, 5
        %v7976 = vsel %vm1169, %v7971, %v7975
        %v7977 = vshrl.u32 %v7841, 16
        %v7979 = vrot.slane %v7977, 4
        %v7980 = vor.u32 %v7979, %v7975
        %v7981 = vrot.slane %v7980, 4
        %v7983 = vshll.u32 %v7842, 16
        %v7985 = vrot.slane %v7983, 5
        %v7986 = vsel %vm1169, %v7981, %v7985
        %v7987 = vshrl.u32 %v7842, 16
        %v7989 = vrot.slane %v7987, 4
        %v7990 = vor.u32 %v7989, %v7985
        %v7991 = vrot.slane %v7990, 4
        %v7993 = vshll.u32 %v7843, 16
        %v7995 = vrot.slane %v7993, 5
        %v7996 = vsel %vm1169, %v7991, %v7995
        %v7997 = vshrl.u32 %v7843, 16
        %v7999 = vrot.slane %v7997, 4
        %v8000 = vor.u32 %v7999, %v7995
        %v8001 = vrot.slane %v8000, 4
        %v8003 = vshll.u32 %v7844, 16
        %v8005 = vrot.slane %v8003, 5
        %v8006 = vsel %vm1169, %v8001, %v8005
        %v8007 = vshrl.u32 %v7844, 16
        %v8009 = vrot.slane %v8007, 4
        %v8010 = vor.u32 %v8009, %v8005
        %v8011 = vrot.slane %v8010, 4
        %v8013 = vshll.u32 %v7845, 16
        %v8015 = vrot.slane %v8013, 5
        %v8016 = vsel %vm1169, %v8011, %v8015
        %v8017 = vshrl.u32 %v7845, 16
        %v8019 = vrot.slane %v8017, 4
        %v8020 = vor.u32 %v8019, %v8015
        %v8021 = vrot.slane %v8020, 4
        %v8023 = vshll.u32 %v7846, 16
        %v8025 = vrot.slane %v8023, 5
        %v8026 = vsel %vm1169, %v8021, %v8025
        %v8027 = vshrl.u32 %v7846, 16
        %v8029 = vrot.slane %v8027, 4
        %v8030 = vor.u32 %v8029, %v8025
        %v8031 = vrot.slane %v8030, 4
        %v8033 = vshll.u32 %v7847, 16
        %v8035 = vrot.slane %v8033, 5
        %v8036 = vsel %vm1169, %v8031, %v8035
        %v8037 = vshrl.u32 %v7847, 16
        %v8039 = vrot.slane %v8037, 4
        %v8040 = vor.u32 %v8039, %v8035
        %v8041 = vrot.slane %v8040, 4
        %v8043 = vshll.u32 %v7848, 16
        %v8045 = vrot.slane %v8043, 5
        %v8046 = vsel %vm1169, %v8041, %v8045
        %v8047 = vshrl.u32 %v7848, 16
        %v8049 = vrot.slane %v8047, 4
        %v8050 = vor.u32 %v8049, %v8045
        %v8051 = vrot.slane %v8050, 4
        %v8053 = vshll.u32 %v7849, 16
        %v8055 = vrot.slane %v8053, 5
        %v8056 = vsel %vm1169, %v8051, %v8055
        %v8057 = vshrl.u32 %v7849, 16
        %v8059 = vrot.slane %v8057, 4
        %v8060 = vor.u32 %v8059, %v8055
        %v8061 = vrot.slane %v8060, 4
        %v8063 = vshll.u32 %v7850, 16
        %v8065 = vrot.slane %v8063, 5
        %v8066 = vsel %vm1169, %v8061, %v8065
        %v8067 = vshrl.u32 %v7850, 16
        %v8069 = vrot.slane %v8067, 4
        %v8070 = vor.u32 %v8069, %v8065
        %v8071 = vrot.slane %v8070, 4
        %v8073 = vshll.u32 %v7851, 16
        %v8075 = vrot.slane %v8073, 5
        %v8076 = vsel %vm1169, %v8071, %v8075
        %v8077 = vshrl.u32 %v7851, 16
        %v8079 = vrot.slane %v8077, 4
        %v8080 = vor.u32 %v8079, %v8075
        %v8081 = vrot.slane %v8080, 4
        %v8083 = vshll.u32 %v7852, 16
        %v8085 = vrot.slane %v8083, 5
        %v8086 = vsel %vm1169, %v8081, %v8085
        %v8087 = vshrl.u32 %v7852, 16
        %v8089 = vrot.slane %v8087, 4
        %v8090 = vor.u32 %v8089, %v8085
        %v8091 = vrot.slane %v8090, 4
        %v8093 = vshll.u32 %v7853, 16
        %v8095 = vrot.slane %v8093, 5
        %v8096 = vsel %vm1169, %v8091, %v8095
        %v8097 = vshrl.u32 %v7853, 16
        %v8099 = vrot.slane %v8097, 4
        %v8100 = vor.u32 %v8099, %v8095
        %v8101 = vrot.slane %v8100, 4
        %v8103 = vshll.u32 %v7854, 16
        %v8105 = vrot.slane %v8103, 5
        %v8106 = vsel %vm1169, %v8101, %v8105
        %v8107 = vshrl.u32 %v7854, 16
        %v8109 = vrot.slane %v8107, 4
        %v8110 = vor.u32 %v8109, %v8105
        %v8111 = vrot.slane %v8110, 4
        %v8113 = vshll.u32 %v7855, 16
        %v8115 = vrot.slane %v8113, 5
        %v8116 = vsel %vm1169, %v8111, %v8115
        %v8117 = vshrl.u32 %v7855, 16
        %v8119 = vrot.slane %v8117, 4
        %v8120 = vor.u32 %v8119, %v8115
        %v8121 = vrot.slane %v8120, 4
        %v8123 = vshll.u32 %v7856, 16
        %v8125 = vrot.slane %v8123, 5
        %v8126 = vsel %vm1169, %v8121, %v8125
        %v8127 = vshrl.u32 %v7856, 16
        %v8129 = vrot.slane %v8127, 4
        %v8130 = vor.u32 %v8129, %v8125
        %v8131 = vrot.slane %v8130, 4
        %v8133 = vshll.u32 %v7857, 16
        %v8135 = vrot.slane %v8133, 5
        %v8136 = vsel %vm1169, %v8131, %v8135
        %v8137 = vshrl.u32 %v7857, 16
        %v8139 = vrot.slane %v8137, 4
        %v8140 = vor.u32 %v8139, %v8135
        %v8141 = vrot.slane %v8140, 4
        %v8143 = vshll.u32 %v7858, 16
        %v8145 = vrot.slane %v8143, 5
        %v8146 = vsel %vm1169, %v8141, %v8145
        %v8147 = vshrl.u32 %v7858, 16
        %v8149 = vrot.slane %v8147, 4
        %v8150 = vor.u32 %v8149, %v8145
        %v8151 = vrot.slane %v8150, 4
        %v8153 = vshll.u32 %v7859, 16
        %v8155 = vrot.slane %v8153, 5
        %v8156 = vsel %vm1169, %v8151, %v8155
        %v8157 = vshrl.u32 %v7859, 16
        %v8159 = vrot.slane %v8157, 4
        %v8160 = vor.u32 %v8159, %v8155
        %v8161 = vrot.slane %v8160, 4
        %v8163 = vshll.u32 %v7860, 16
        %v8165 = vrot.slane %v8163, 5
        %v8166 = vsel %vm1169, %v8161, %v8165
        %v8167 = vshrl.u32 %v7860, 16
        %v8169 = vrot.slane %v8167, 4
        %v8170 = vor.u32 %v8169, %v8165
        %v8171 = vrot.slane %v8170, 4
        %v8173 = vshll.u32 %v7861, 16
        %v8175 = vrot.slane %v8173, 5
        %v8176 = vsel %vm1169, %v8171, %v8175
        %v8177 = vshrl.u32 %v7861, 16
        %v8179 = vrot.slane %v8177, 4
        %v8180 = vor.u32 %v8179, %v8175
        %v8181 = vrot.slane %v8180, 4
        %v8183 = vshll.u32 %v7862, 16
        %v8185 = vrot.slane %v8183, 5
        %v8186 = vsel %vm1169, %v8181, %v8185
        %8219 = vst [vmem:[#allocation4 + $0x8] sm:$0xf] %v7876
        %8220 = vst [vmem:[#allocation4 + $0x2c] sm:$0xf] %v7886
        %8221 = vst [vmem:[#allocation4 + $0x50] sm:$0xf] %v7896
        %8222 = vst [vmem:[#allocation4 + $0x74] sm:$0xf] %v7906
        %8223 = vst [vmem:[#allocation4 + $0x98] sm:$0xf] %v7916
        %8224 = vst [vmem:[#allocation4 + $0xbc] sm:$0xf] %v7926
        %8225 = vst [vmem:[#allocation4 + $0xe0] sm:$0xf] %v7936
        %8226 = vst [vmem:[#allocation4 + $0x104] sm:$0xf] %v7946
        %8227 = vst [vmem:[#allocation4 + $0x128] sm:$0xf] %v7956
        %8228 = vst [vmem:[#allocation4 + $0x14c] sm:$0xf] %v7966
        %8229 = vst [vmem:[#allocation4 + $0x170] sm:$0xf] %v7976
        %8230 = vst [vmem:[#allocation4 + $0x194] sm:$0xf] %v7986
        %8231 = vst [vmem:[#allocation4 + $0x1b8] sm:$0xf] %v7996
        %8232 = vst [vmem:[#allocation4 + $0x1dc] sm:$0xf] %v8006
        %8233 = vst [vmem:[#allocation4 + $0x200] sm:$0xf] %v8016
        %8234 = vst [vmem:[#allocation4 + $0x224] sm:$0xf] %v8026
        %8235 = vst [vmem:[#allocation4 + $0x248] sm:$0xf] %v8036
        %8236 = vst [vmem:[#allocation4 + $0x26c] sm:$0xf] %v8046
        %8237 = vst [vmem:[#allocation4 + $0x290] sm:$0xf] %v8056
        %8238 = vst [vmem:[#allocation4 + $0x2b4] sm:$0xf] %v8066
        %8239 = vst [vmem:[#allocation4 + $0x2d8] sm:$0xf] %v8076
        %8240 = vst [vmem:[#allocation4 + $0x2fc] sm:$0xf] %v8086
        %8241 = vst [vmem:[#allocation4 + $0x320] sm:$0xf] %v8096
        %8242 = vst [vmem:[#allocation4 + $0x344] sm:$0xf] %v8106
        %8243 = vst [vmem:[#allocation4 + $0x368] sm:$0xf] %v8116
        %8244 = vst [vmem:[#allocation4 + $0x38c] sm:$0xf] %v8126
        %8245 = vst [vmem:[#allocation4 + $0x3b0] sm:$0xf] %v8136
        %8246 = vst [vmem:[#allocation4 + $0x3d4] sm:$0xf] %v8146
        %8247 = vst [vmem:[#allocation4 + $0x3f8] sm:$0xf] %v8156
        %8248 = vst [vmem:[#allocation4 + $0x41c] sm:$0xf] %v8166
        %8249 = vst [vmem:[#allocation4 + $0x440] sm:$0xf] %v8176
        %8250 = vst [vmem:[#allocation4 + $0x464] sm:$0xf] %v8186
        %v8251 = vld [vmem:[#allocation3 + $0xc] sm:$0x8]
        %v8252 = vld [vmem:[#allocation3 + $0x10] sm:$0xf]
        %v8253 = vld [vmem:[#allocation3 + $0x14] sm:$0xf]
        %v8254 = vld [vmem:[#allocation3 + $0x18] sm:$0xf]
        %v8255 = vld [vmem:[#allocation3 + $0x1c] sm:$0xf]
        %v8256 = vld [vmem:[#allocation3 + $0x20] sm:$0xf]
        %v8257 = vld [vmem:[#allocation3 + $0x24] sm:$0xf]
        %v8258 = vld [vmem:[#allocation3 + $0x28] sm:$0xf]
        %v8259 = vld [vmem:[#allocation3 + $0x2c] sm:$0xf]
        %v8260 = vld [vmem:[#allocation3 + $0x30] sm:$0xf]
        %v8261 = vld [vmem:[#allocation3 + $0x34] sm:$0xf]
        %v8262 = vld [vmem:[#allocation3 + $0x38] sm:$0xf]
        %v8263 = vld [vmem:[#allocation3 + $0x3c] sm:$0xf]
        %v8264 = vld [vmem:[#allocation3 + $0x40] sm:$0xf]
        %v8265 = vld [vmem:[#allocation3 + $0x44] sm:$0xf]
        %v8266 = vld [vmem:[#allocation3 + $0x48] sm:$0xf]
        %v8267 = vld [vmem:[#allocation3 + $0x4c] sm:$0xf]
        %v8268 = vld [vmem:[#allocation3 + $0x50] sm:$0xf]
        %v8269 = vld [vmem:[#allocation3 + $0x54] sm:$0xf]
        %v8270 = vld [vmem:[#allocation3 + $0x58] sm:$0xf]
        %v8271 = vld [vmem:[#allocation3 + $0x5c] sm:$0xf]
        %v8272 = vld [vmem:[#allocation3 + $0x60] sm:$0xf]
        %v8273 = vld [vmem:[#allocation3 + $0x64] sm:$0xf]
        %v8274 = vld [vmem:[#allocation3 + $0x68] sm:$0xf]
        %v8275 = vld [vmem:[#allocation3 + $0x6c] sm:$0xf]
        %v8276 = vld [vmem:[#allocation3 + $0x70] sm:$0xf]
        %v8277 = vld [vmem:[#allocation3 + $0x74] sm:$0xf]
        %v8278 = vld [vmem:[#allocation3 + $0x78] sm:$0xf]
        %v8279 = vld [vmem:[#allocation3 + $0x7c] sm:$0xf]
        %v8280 = vld [vmem:[#allocation3 + $0x80] sm:$0xf]
        %v8281 = vld [vmem:[#allocation3 + $0x84] sm:$0xf]
        %v8282 = vld [vmem:[#allocation3 + $0x88] sm:$0xf]
        %v8283 = vld [vmem:[#allocation3 + $0x8c] sm:$0xf]
        %v8284 = vsel %vm1489, 0, %v8251
        %v8285 = vsel %vm1490, 0, %v8252
        %v8286 = vsel %vm1491, 0, %v8253
        %v8287 = vsel %vm1492, 0, %v8254
        %v8288 = vsel %vm1493, 0, %v8255
        %v8289 = vsel %vm1494, 0, %v8256
        %v8290 = vsel %vm1495, 0, %v8257
        %v8291 = vsel %vm1496, 0, %v8258
        %v8292 = vsel %vm1497, 0, %v8259
        %v8293 = vsel %vm1498, 0, %v8260
        %v8294 = vsel %vm1499, 0, %v8261
        %v8295 = vsel %vm1500, 0, %v8262
        %v8296 = vsel %vm1501, 0, %v8263
        %v8297 = vsel %vm1502, 0, %v8264
        %v8298 = vsel %vm1503, 0, %v8265
        %v8299 = vsel %vm1504, 0, %v8266
        %v8300 = vsel %vm1505, 0, %v8267
        %v8301 = vsel %vm1506, 0, %v8268
        %v8302 = vsel %vm1507, 0, %v8269
        %v8303 = vsel %vm1508, 0, %v8270
        %v8304 = vsel %vm1509, 0, %v8271
        %v8305 = vsel %vm1510, 0, %v8272
        %v8306 = vsel %vm1511, 0, %v8273
        %v8307 = vsel %vm1512, 0, %v8274
        %v8308 = vsel %vm1513, 0, %v8275
        %v8309 = vsel %vm1514, 0, %v8276
        %v8310 = vsel %vm1515, 0, %v8277
        %v8311 = vsel %vm1516, 0, %v8278
        %v8312 = vsel %vm1517, 0, %v8279
        %v8313 = vsel %vm1518, 0, %v8280
        %v8314 = vsel %vm1519, 0, %v8281
        %v8315 = vsel %vm1520, 0, %v8282
        %v8316 = vsel %vm1521, 0, %v8283
        %v8318 = vshrl.u32 %v8284, 16
        %v8320 = vrot.slane %v8318, 7
        %v8321 = vrot.slane %v8320, 4
        %v8323 = vshrl.u32 %v8285, 16
        %v8325 = vrot.slane %v8323, 7
        %v8326 = vshll.u32 %v8285, 16
        %v8328 = vor.u32 %v8325, %v8326
        %v8329 = vsel %vm1557, %v8321, %v8328
        %v8330 = vrot.slane %v8325, 4
        %v8332 = vshrl.u32 %v8286, 16
        %v8334 = vrot.slane %v8332, 7
        %v8335 = vshll.u32 %v8286, 16
        %v8337 = vor.u32 %v8334, %v8335
        %v8338 = vsel %vm1557, %v8330, %v8337
        %v8339 = vrot.slane %v8334, 4
        %v8341 = vshrl.u32 %v8287, 16
        %v8343 = vrot.slane %v8341, 7
        %v8344 = vshll.u32 %v8287, 16
        %v8346 = vor.u32 %v8343, %v8344
        %v8347 = vsel %vm1557, %v8339, %v8346
        %v8348 = vrot.slane %v8343, 4
        %v8350 = vshrl.u32 %v8288, 16
        %v8352 = vrot.slane %v8350, 7
        %v8353 = vshll.u32 %v8288, 16
        %v8355 = vor.u32 %v8352, %v8353
        %v8356 = vsel %vm1557, %v8348, %v8355
        %v8357 = vrot.slane %v8352, 4
        %v8359 = vshrl.u32 %v8289, 16
        %v8361 = vrot.slane %v8359, 7
        %v8362 = vshll.u32 %v8289, 16
        %v8364 = vor.u32 %v8361, %v8362
        %v8365 = vsel %vm1557, %v8357, %v8364
        %v8366 = vrot.slane %v8361, 4
        %v8368 = vshrl.u32 %v8290, 16
        %v8370 = vrot.slane %v8368, 7
        %v8371 = vshll.u32 %v8290, 16
        %v8373 = vor.u32 %v8370, %v8371
        %v8374 = vsel %vm1557, %v8366, %v8373
        %v8375 = vrot.slane %v8370, 4
        %v8377 = vshrl.u32 %v8291, 16
        %v8379 = vrot.slane %v8377, 7
        %v8380 = vshll.u32 %v8291, 16
        %v8382 = vor.u32 %v8379, %v8380
        %v8383 = vsel %vm1557, %v8375, %v8382
        %v8384 = vrot.slane %v8379, 4
        %v8386 = vshrl.u32 %v8292, 16
        %v8388 = vrot.slane %v8386, 7
        %v8389 = vshll.u32 %v8292, 16
        %v8391 = vor.u32 %v8388, %v8389
        %v8392 = vsel %vm1557, %v8384, %v8391
        %v8393 = vrot.slane %v8388, 4
        %v8395 = vshrl.u32 %v8293, 16
        %v8397 = vrot.slane %v8395, 7
        %v8398 = vshll.u32 %v8293, 16
        %v8400 = vor.u32 %v8397, %v8398
        %v8401 = vsel %vm1557, %v8393, %v8400
        %v8402 = vrot.slane %v8397, 4
        %v8404 = vshrl.u32 %v8294, 16
        %v8406 = vrot.slane %v8404, 7
        %v8407 = vshll.u32 %v8294, 16
        %v8409 = vor.u32 %v8406, %v8407
        %v8410 = vsel %vm1557, %v8402, %v8409
        %v8411 = vrot.slane %v8406, 4
        %v8413 = vshrl.u32 %v8295, 16
        %v8415 = vrot.slane %v8413, 7
        %v8416 = vshll.u32 %v8295, 16
        %v8418 = vor.u32 %v8415, %v8416
        %v8419 = vsel %vm1557, %v8411, %v8418
        %v8420 = vrot.slane %v8415, 4
        %v8422 = vshrl.u32 %v8296, 16
        %v8424 = vrot.slane %v8422, 7
        %v8425 = vshll.u32 %v8296, 16
        %v8427 = vor.u32 %v8424, %v8425
        %v8428 = vsel %vm1557, %v8420, %v8427
        %v8429 = vrot.slane %v8424, 4
        %v8431 = vshrl.u32 %v8297, 16
        %v8433 = vrot.slane %v8431, 7
        %v8434 = vshll.u32 %v8297, 16
        %v8436 = vor.u32 %v8433, %v8434
        %v8437 = vsel %vm1557, %v8429, %v8436
        %v8438 = vrot.slane %v8433, 4
        %v8440 = vshrl.u32 %v8298, 16
        %v8442 = vrot.slane %v8440, 7
        %v8443 = vshll.u32 %v8298, 16
        %v8445 = vor.u32 %v8442, %v8443
        %v8446 = vsel %vm1557, %v8438, %v8445
        %v8447 = vrot.slane %v8442, 4
        %v8449 = vshrl.u32 %v8299, 16
        %v8451 = vrot.slane %v8449, 7
        %v8452 = vshll.u32 %v8299, 16
        %v8454 = vor.u32 %v8451, %v8452
        %v8455 = vsel %vm1557, %v8447, %v8454
        %v8456 = vrot.slane %v8451, 4
        %v8458 = vshrl.u32 %v8300, 16
        %v8460 = vrot.slane %v8458, 7
        %v8461 = vshll.u32 %v8300, 16
        %v8463 = vor.u32 %v8460, %v8461
        %v8464 = vsel %vm1557, %v8456, %v8463
        %v8465 = vrot.slane %v8460, 4
        %v8467 = vshrl.u32 %v8301, 16
        %v8469 = vrot.slane %v8467, 7
        %v8470 = vshll.u32 %v8301, 16
        %v8472 = vor.u32 %v8469, %v8470
        %v8473 = vsel %vm1557, %v8465, %v8472
        %v8474 = vrot.slane %v8469, 4
        %v8476 = vshrl.u32 %v8302, 16
        %v8478 = vrot.slane %v8476, 7
        %v8479 = vshll.u32 %v8302, 16
        %v8481 = vor.u32 %v8478, %v8479
        %v8482 = vsel %vm1557, %v8474, %v8481
        %v8483 = vrot.slane %v8478, 4
        %v8485 = vshrl.u32 %v8303, 16
        %v8487 = vrot.slane %v8485, 7
        %v8488 = vshll.u32 %v8303, 16
        %v8490 = vor.u32 %v8487, %v8488
        %v8491 = vsel %vm1557, %v8483, %v8490
        %v8492 = vrot.slane %v8487, 4
        %v8494 = vshrl.u32 %v8304, 16
        %v8496 = vrot.slane %v8494, 7
        %v8497 = vshll.u32 %v8304, 16
        %v8499 = vor.u32 %v8496, %v8497
        %v8500 = vsel %vm1557, %v8492, %v8499
        %v8501 = vrot.slane %v8496, 4
        %v8503 = vshrl.u32 %v8305, 16
        %v8505 = vrot.slane %v8503, 7
        %v8506 = vshll.u32 %v8305, 16
        %v8508 = vor.u32 %v8505, %v8506
        %v8509 = vsel %vm1557, %v8501, %v8508
        %v8510 = vrot.slane %v8505, 4
        %v8512 = vshrl.u32 %v8306, 16
        %v8514 = vrot.slane %v8512, 7
        %v8515 = vshll.u32 %v8306, 16
        %v8517 = vor.u32 %v8514, %v8515
        %v8518 = vsel %vm1557, %v8510, %v8517
        %v8519 = vrot.slane %v8514, 4
        %v8521 = vshrl.u32 %v8307, 16
        %v8523 = vrot.slane %v8521, 7
        %v8524 = vshll.u32 %v8307, 16
        %v8526 = vor.u32 %v8523, %v8524
        %v8527 = vsel %vm1557, %v8519, %v8526
        %v8528 = vrot.slane %v8523, 4
        %v8530 = vshrl.u32 %v8308, 16
        %v8532 = vrot.slane %v8530, 7
        %v8533 = vshll.u32 %v8308, 16
        %v8535 = vor.u32 %v8532, %v8533
        %v8536 = vsel %vm1557, %v8528, %v8535
        %v8537 = vrot.slane %v8532, 4
        %v8539 = vshrl.u32 %v8309, 16
        %v8541 = vrot.slane %v8539, 7
        %v8542 = vshll.u32 %v8309, 16
        %v8544 = vor.u32 %v8541, %v8542
        %v8545 = vsel %vm1557, %v8537, %v8544
        %v8546 = vrot.slane %v8541, 4
        %v8548 = vshrl.u32 %v8310, 16
        %v8550 = vrot.slane %v8548, 7
        %v8551 = vshll.u32 %v8310, 16
        %v8553 = vor.u32 %v8550, %v8551
        %v8554 = vsel %vm1557, %v8546, %v8553
        %v8555 = vrot.slane %v8550, 4
        %v8557 = vshrl.u32 %v8311, 16
        %v8559 = vrot.slane %v8557, 7
        %v8560 = vshll.u32 %v8311, 16
        %v8562 = vor.u32 %v8559, %v8560
        %v8563 = vsel %vm1557, %v8555, %v8562
        %v8564 = vrot.slane %v8559, 4
        %v8566 = vshrl.u32 %v8312, 16
        %v8568 = vrot.slane %v8566, 7
        %v8569 = vshll.u32 %v8312, 16
        %v8571 = vor.u32 %v8568, %v8569
        %v8572 = vsel %vm1557, %v8564, %v8571
        %v8573 = vrot.slane %v8568, 4
        %v8575 = vshrl.u32 %v8313, 16
        %v8577 = vrot.slane %v8575, 7
        %v8578 = vshll.u32 %v8313, 16
        %v8580 = vor.u32 %v8577, %v8578
        %v8581 = vsel %vm1557, %v8573, %v8580
        %v8582 = vrot.slane %v8577, 4
        %v8584 = vshrl.u32 %v8314, 16
        %v8586 = vrot.slane %v8584, 7
        %v8587 = vshll.u32 %v8314, 16
        %v8589 = vor.u32 %v8586, %v8587
        %v8590 = vsel %vm1557, %v8582, %v8589
        %v8591 = vrot.slane %v8586, 4
        %v8593 = vshrl.u32 %v8315, 16
        %v8595 = vrot.slane %v8593, 7
        %v8596 = vshll.u32 %v8315, 16
        %v8598 = vor.u32 %v8595, %v8596
        %v8599 = vsel %vm1557, %v8591, %v8598
        %v8600 = vrot.slane %v8595, 4
        %v8602 = vshrl.u32 %v8316, 16
        %v8604 = vrot.slane %v8602, 7
        %v8605 = vshll.u32 %v8316, 16
        %v8607 = vor.u32 %v8604, %v8605
        %v8608 = vsel %vm1557, %v8600, %v8607
        %8641 = vst [vmem:[#allocation4 + $0xc] sm:$0xf] %v8329
        %8642 = vst [vmem:[#allocation4 + $0x30] sm:$0xf] %v8338
        %8643 = vst [vmem:[#allocation4 + $0x54] sm:$0xf] %v8347
        %8644 = vst [vmem:[#allocation4 + $0x78] sm:$0xf] %v8356
        %8645 = vst [vmem:[#allocation4 + $0x9c] sm:$0xf] %v8365
        %8646 = vst [vmem:[#allocation4 + $0xc0] sm:$0xf] %v8374
        %8647 = vst [vmem:[#allocation4 + $0xe4] sm:$0xf] %v8383
        %8648 = vst [vmem:[#allocation4 + $0x108] sm:$0xf] %v8392
        %8649 = vst [vmem:[#allocation4 + $0x12c] sm:$0xf] %v8401
        %8650 = vst [vmem:[#allocation4 + $0x150] sm:$0xf] %v8410
        %8651 = vst [vmem:[#allocation4 + $0x174] sm:$0xf] %v8419
        %8652 = vst [vmem:[#allocation4 + $0x198] sm:$0xf] %v8428
        %8653 = vst [vmem:[#allocation4 + $0x1bc] sm:$0xf] %v8437
        %8654 = vst [vmem:[#allocation4 + $0x1e0] sm:$0xf] %v8446
        %8655 = vst [vmem:[#allocation4 + $0x204] sm:$0xf] %v8455
        %8656 = vst [vmem:[#allocation4 + $0x228] sm:$0xf] %v8464
        %8657 = vst [vmem:[#allocation4 + $0x24c] sm:$0xf] %v8473
        %8658 = vst [vmem:[#allocation4 + $0x270] sm:$0xf] %v8482
        %8659 = vst [vmem:[#allocation4 + $0x294] sm:$0xf] %v8491
        %8660 = vst [vmem:[#allocation4 + $0x2b8] sm:$0xf] %v8500
        %8661 = vst [vmem:[#allocation4 + $0x2dc] sm:$0xf] %v8509
        %8662 = vst [vmem:[#allocation4 + $0x300] sm:$0xf] %v8518
        %8663 = vst [vmem:[#allocation4 + $0x324] sm:$0xf] %v8527
        %8664 = vst [vmem:[#allocation4 + $0x348] sm:$0xf] %v8536
        %8665 = vst [vmem:[#allocation4 + $0x36c] sm:$0xf] %v8545
        %8666 = vst [vmem:[#allocation4 + $0x390] sm:$0xf] %v8554
        %8667 = vst [vmem:[#allocation4 + $0x3b4] sm:$0xf] %v8563
        %8668 = vst [vmem:[#allocation4 + $0x3d8] sm:$0xf] %v8572
        %8669 = vst [vmem:[#allocation4 + $0x3fc] sm:$0xf] %v8581
        %8670 = vst [vmem:[#allocation4 + $0x420] sm:$0xf] %v8590
        %8671 = vst [vmem:[#allocation4 + $0x444] sm:$0xf] %v8599
        %8672 = vst [vmem:[#allocation4 + $0x468] sm:$0xf] %v8608
        %v8673 = vld [vmem:[#allocation3 + $0x10] sm:$0xf]
        %v8674 = vld [vmem:[#allocation3 + $0x14] sm:$0xf]
        %v8675 = vld [vmem:[#allocation3 + $0x18] sm:$0xf]
        %v8676 = vld [vmem:[#allocation3 + $0x1c] sm:$0xf]
        %v8677 = vld [vmem:[#allocation3 + $0x20] sm:$0xf]
        %v8678 = vld [vmem:[#allocation3 + $0x24] sm:$0xf]
        %v8679 = vld [vmem:[#allocation3 + $0x28] sm:$0xf]
        %v8680 = vld [vmem:[#allocation3 + $0x2c] sm:$0xf]
        %v8681 = vld [vmem:[#allocation3 + $0x30] sm:$0xf]
        %v8682 = vld [vmem:[#allocation3 + $0x34] sm:$0xf]
        %v8683 = vld [vmem:[#allocation3 + $0x38] sm:$0xf]
        %v8684 = vld [vmem:[#allocation3 + $0x3c] sm:$0xf]
        %v8685 = vld [vmem:[#allocation3 + $0x40] sm:$0xf]
        %v8686 = vld [vmem:[#allocation3 + $0x44] sm:$0xf]
        %v8687 = vld [vmem:[#allocation3 + $0x48] sm:$0xf]
        %v8688 = vld [vmem:[#allocation3 + $0x4c] sm:$0xf]
        %v8689 = vld [vmem:[#allocation3 + $0x50] sm:$0xf]
        %v8690 = vld [vmem:[#allocation3 + $0x54] sm:$0xf]
        %v8691 = vld [vmem:[#allocation3 + $0x58] sm:$0xf]
        %v8692 = vld [vmem:[#allocation3 + $0x5c] sm:$0xf]
        %v8693 = vld [vmem:[#allocation3 + $0x60] sm:$0xf]
        %v8694 = vld [vmem:[#allocation3 + $0x64] sm:$0xf]
        %v8695 = vld [vmem:[#allocation3 + $0x68] sm:$0xf]
        %v8696 = vld [vmem:[#allocation3 + $0x6c] sm:$0xf]
        %v8697 = vld [vmem:[#allocation3 + $0x70] sm:$0xf]
        %v8698 = vld [vmem:[#allocation3 + $0x74] sm:$0xf]
        %v8699 = vld [vmem:[#allocation3 + $0x78] sm:$0xf]
        %v8700 = vld [vmem:[#allocation3 + $0x7c] sm:$0xf]
        %v8701 = vld [vmem:[#allocation3 + $0x80] sm:$0xf]
        %v8702 = vld [vmem:[#allocation3 + $0x84] sm:$0xf]
        %v8703 = vld [vmem:[#allocation3 + $0x88] sm:$0xf]
        %v8704 = vld [vmem:[#allocation3 + $0x8c] sm:$0xf]
        %8705 = vst [vmem:[#allocation4 + $0x10] sm:$0xf] %v8673
        %8706 = vst [vmem:[#allocation4 + $0x34] sm:$0xf] %v8674
        %8707 = vst [vmem:[#allocation4 + $0x58] sm:$0xf] %v8675
        %8708 = vst [vmem:[#allocation4 + $0x7c] sm:$0xf] %v8676
        %8709 = vst [vmem:[#allocation4 + $0xa0] sm:$0xf] %v8677
        %8710 = vst [vmem:[#allocation4 + $0xc4] sm:$0xf] %v8678
        %8711 = vst [vmem:[#allocation4 + $0xe8] sm:$0xf] %v8679
        %8712 = vst [vmem:[#allocation4 + $0x10c] sm:$0xf] %v8680
        %8713 = vst [vmem:[#allocation4 + $0x130] sm:$0xf] %v8681
        %8714 = vst [vmem:[#allocation4 + $0x154] sm:$0xf] %v8682
        %8715 = vst [vmem:[#allocation4 + $0x178] sm:$0xf] %v8683
        %8716 = vst [vmem:[#allocation4 + $0x19c] sm:$0xf] %v8684
        %8717 = vst [vmem:[#allocation4 + $0x1c0] sm:$0xf] %v8685
        %8718 = vst [vmem:[#allocation4 + $0x1e4] sm:$0xf] %v8686
        %8719 = vst [vmem:[#allocation4 + $0x208] sm:$0xf] %v8687
        %8720 = vst [vmem:[#allocation4 + $0x22c] sm:$0xf] %v8688
        %8721 = vst [vmem:[#allocation4 + $0x250] sm:$0xf] %v8689
        %8722 = vst [vmem:[#allocation4 + $0x274] sm:$0xf] %v8690
        %8723 = vst [vmem:[#allocation4 + $0x298] sm:$0xf] %v8691
        %8724 = vst [vmem:[#allocation4 + $0x2bc] sm:$0xf] %v8692
        %8725 = vst [vmem:[#allocation4 + $0x2e0] sm:$0xf] %v8693
        %8726 = vst [vmem:[#allocation4 + $0x304] sm:$0xf] %v8694
        %8727 = vst [vmem:[#allocation4 + $0x328] sm:$0xf] %v8695
        %8728 = vst [vmem:[#allocation4 + $0x34c] sm:$0xf] %v8696
        %8729 = vst [vmem:[#allocation4 + $0x370] sm:$0xf] %v8697
        %8730 = vst [vmem:[#allocation4 + $0x394] sm:$0xf] %v8698
        %8731 = vst [vmem:[#allocation4 + $0x3b8] sm:$0xf] %v8699
        %8732 = vst [vmem:[#allocation4 + $0x3dc] sm:$0xf] %v8700
        %8733 = vst [vmem:[#allocation4 + $0x400] sm:$0xf] %v8701
        %8734 = vst [vmem:[#allocation4 + $0x424] sm:$0xf] %v8702
        %8735 = vst [vmem:[#allocation4 + $0x448] sm:$0xf] %v8703
        %8736 = vst [vmem:[#allocation4 + $0x46c] sm:$0xf] %v8704
        %v8737 = vld [vmem:[#allocation3 + $0x10] sm:$0xf]
        %v8738 = vld [vmem:[#allocation3 + $0x14] sm:$0xf]
        %v8739 = vld [vmem:[#allocation3 + $0x18] sm:$0xf]
        %v8740 = vld [vmem:[#allocation3 + $0x1c] sm:$0xf]
        %v8741 = vld [vmem:[#allocation3 + $0x20] sm:$0xf]
        %v8742 = vld [vmem:[#allocation3 + $0x24] sm:$0xf]
        %v8743 = vld [vmem:[#allocation3 + $0x28] sm:$0xf]
        %v8744 = vld [vmem:[#allocation3 + $0x2c] sm:$0xf]
        %v8745 = vld [vmem:[#allocation3 + $0x30] sm:$0xf]
        %v8746 = vld [vmem:[#allocation3 + $0x34] sm:$0xf]
        %v8747 = vld [vmem:[#allocation3 + $0x38] sm:$0xf]
        %v8748 = vld [vmem:[#allocation3 + $0x3c] sm:$0xf]
        %v8749 = vld [vmem:[#allocation3 + $0x40] sm:$0xf]
        %v8750 = vld [vmem:[#allocation3 + $0x44] sm:$0xf]
        %v8751 = vld [vmem:[#allocation3 + $0x48] sm:$0xf]
        %v8752 = vld [vmem:[#allocation3 + $0x4c] sm:$0xf]
        %v8753 = vld [vmem:[#allocation3 + $0x50] sm:$0xf]
        %v8754 = vld [vmem:[#allocation3 + $0x54] sm:$0xf]
        %v8755 = vld [vmem:[#allocation3 + $0x58] sm:$0xf]
        %v8756 = vld [vmem:[#allocation3 + $0x5c] sm:$0xf]
        %v8757 = vld [vmem:[#allocation3 + $0x60] sm:$0xf]
        %v8758 = vld [vmem:[#allocation3 + $0x64] sm:$0xf]
        %v8759 = vld [vmem:[#allocation3 + $0x68] sm:$0xf]
        %v8760 = vld [vmem:[#allocation3 + $0x6c] sm:$0xf]
        %v8761 = vld [vmem:[#allocation3 + $0x70] sm:$0xf]
        %v8762 = vld [vmem:[#allocation3 + $0x74] sm:$0xf]
        %v8763 = vld [vmem:[#allocation3 + $0x78] sm:$0xf]
        %v8764 = vld [vmem:[#allocation3 + $0x7c] sm:$0xf]
        %v8765 = vld [vmem:[#allocation3 + $0x80] sm:$0xf]
        %v8766 = vld [vmem:[#allocation3 + $0x84] sm:$0xf]
        %v8767 = vld [vmem:[#allocation3 + $0x88] sm:$0xf]
        %v8768 = vld [vmem:[#allocation3 + $0x8c] sm:$0xf]
        %v8769 = vld [vmem:[#allocation3 + $0x90] sm:$0x1]
        %v8770 = vsel %vm2426, 0, %v8737
        %v8771 = vsel %vm2427, 0, %v8738
        %v8772 = vsel %vm2428, 0, %v8739
        %v8773 = vsel %vm2429, 0, %v8740
        %v8774 = vsel %vm2430, 0, %v8741
        %v8775 = vsel %vm2431, 0, %v8742
        %v8776 = vsel %vm2432, 0, %v8743
        %v8777 = vsel %vm2433, 0, %v8744
        %v8778 = vsel %vm2434, 0, %v8745
        %v8779 = vsel %vm2435, 0, %v8746
        %v8780 = vsel %vm2436, 0, %v8747
        %v8781 = vsel %vm2437, 0, %v8748
        %v8782 = vsel %vm2438, 0, %v8749
        %v8783 = vsel %vm2439, 0, %v8750
        %v8784 = vsel %vm2440, 0, %v8751
        %v8785 = vsel %vm2441, 0, %v8752
        %v8786 = vsel %vm2442, 0, %v8753
        %v8787 = vsel %vm2443, 0, %v8754
        %v8788 = vsel %vm2444, 0, %v8755
        %v8789 = vsel %vm2445, 0, %v8756
        %v8790 = vsel %vm2446, 0, %v8757
        %v8791 = vsel %vm2447, 0, %v8758
        %v8792 = vsel %vm2448, 0, %v8759
        %v8793 = vsel %vm2449, 0, %v8760
        %v8794 = vsel %vm2450, 0, %v8761
        %v8795 = vsel %vm2451, 0, %v8762
        %v8796 = vsel %vm2452, 0, %v8763
        %v8797 = vsel %vm2453, 0, %v8764
        %v8798 = vsel %vm2454, 0, %v8765
        %v8799 = vsel %vm2455, 0, %v8766
        %v8800 = vsel %vm2456, 0, %v8767
        %v8801 = vsel %vm2457, 0, %v8768
        %v8802 = vsel %vm2458, 0, %v8769
        %v8804 = vshrl.u32 %v8770, 16
        %v8806 = vrot.slane %v8804, 4
        %v8807 = vshll.u32 %v8770, 16
        %v8809 = vrot.slane %v8807, 5
        %v8810 = vor.u32 %v8806, %v8809
        %v8811 = vrot.slane %v8810, 4
        %v8813 = vshll.u32 %v8771, 16
        %v8815 = vrot.slane %v8813, 5
        %v8816 = vsel %vm1169, %v8811, %v8815
        %v8817 = vshrl.u32 %v8771, 16
        %v8819 = vrot.slane %v8817, 4
        %v8820 = vor.u32 %v8819, %v8815
        %v8821 = vrot.slane %v8820, 4
        %v8823 = vshll.u32 %v8772, 16
        %v8825 = vrot.slane %v8823, 5
        %v8826 = vsel %vm1169, %v8821, %v8825
        %v8827 = vshrl.u32 %v8772, 16
        %v8829 = vrot.slane %v8827, 4
        %v8830 = vor.u32 %v8829, %v8825
        %v8831 = vrot.slane %v8830, 4
        %v8833 = vshll.u32 %v8773, 16
        %v8835 = vrot.slane %v8833, 5
        %v8836 = vsel %vm1169, %v8831, %v8835
        %v8837 = vshrl.u32 %v8773, 16
        %v8839 = vrot.slane %v8837, 4
        %v8840 = vor.u32 %v8839, %v8835
        %v8841 = vrot.slane %v8840, 4
        %v8843 = vshll.u32 %v8774, 16
        %v8845 = vrot.slane %v8843, 5
        %v8846 = vsel %vm1169, %v8841, %v8845
        %v8847 = vshrl.u32 %v8774, 16
        %v8849 = vrot.slane %v8847, 4
        %v8850 = vor.u32 %v8849, %v8845
        %v8851 = vrot.slane %v8850, 4
        %v8853 = vshll.u32 %v8775, 16
        %v8855 = vrot.slane %v8853, 5
        %v8856 = vsel %vm1169, %v8851, %v8855
        %v8857 = vshrl.u32 %v8775, 16
        %v8859 = vrot.slane %v8857, 4
        %v8860 = vor.u32 %v8859, %v8855
        %v8861 = vrot.slane %v8860, 4
        %v8863 = vshll.u32 %v8776, 16
        %v8865 = vrot.slane %v8863, 5
        %v8866 = vsel %vm1169, %v8861, %v8865
        %v8867 = vshrl.u32 %v8776, 16
        %v8869 = vrot.slane %v8867, 4
        %v8870 = vor.u32 %v8869, %v8865
        %v8871 = vrot.slane %v8870, 4
        %v8873 = vshll.u32 %v8777, 16
        %v8875 = vrot.slane %v8873, 5
        %v8876 = vsel %vm1169, %v8871, %v8875
        %v8877 = vshrl.u32 %v8777, 16
        %v8879 = vrot.slane %v8877, 4
        %v8880 = vor.u32 %v8879, %v8875
        %v8881 = vrot.slane %v8880, 4
        %v8883 = vshll.u32 %v8778, 16
        %v8885 = vrot.slane %v8883, 5
        %v8886 = vsel %vm1169, %v8881, %v8885
        %v8887 = vshrl.u32 %v8778, 16
        %v8889 = vrot.slane %v8887, 4
        %v8890 = vor.u32 %v8889, %v8885
        %v8891 = vrot.slane %v8890, 4
        %v8893 = vshll.u32 %v8779, 16
        %v8895 = vrot.slane %v8893, 5
        %v8896 = vsel %vm1169, %v8891, %v8895
        %v8897 = vshrl.u32 %v8779, 16
        %v8899 = vrot.slane %v8897, 4
        %v8900 = vor.u32 %v8899, %v8895
        %v8901 = vrot.slane %v8900, 4
        %v8903 = vshll.u32 %v8780, 16
        %v8905 = vrot.slane %v8903, 5
        %v8906 = vsel %vm1169, %v8901, %v8905
        %v8907 = vshrl.u32 %v8780, 16
        %v8909 = vrot.slane %v8907, 4
        %v8910 = vor.u32 %v8909, %v8905
        %v8911 = vrot.slane %v8910, 4
        %v8913 = vshll.u32 %v8781, 16
        %v8915 = vrot.slane %v8913, 5
        %v8916 = vsel %vm1169, %v8911, %v8915
        %v8917 = vshrl.u32 %v8781, 16
        %v8919 = vrot.slane %v8917, 4
        %v8920 = vor.u32 %v8919, %v8915
        %v8921 = vrot.slane %v8920, 4
        %v8923 = vshll.u32 %v8782, 16
        %v8925 = vrot.slane %v8923, 5
        %v8926 = vsel %vm1169, %v8921, %v8925
        %v8927 = vshrl.u32 %v8782, 16
        %v8929 = vrot.slane %v8927, 4
        %v8930 = vor.u32 %v8929, %v8925
        %v8931 = vrot.slane %v8930, 4
        %v8933 = vshll.u32 %v8783, 16
        %v8935 = vrot.slane %v8933, 5
        %v8936 = vsel %vm1169, %v8931, %v8935
        %v8937 = vshrl.u32 %v8783, 16
        %v8939 = vrot.slane %v8937, 4
        %v8940 = vor.u32 %v8939, %v8935
        %v8941 = vrot.slane %v8940, 4
        %v8943 = vshll.u32 %v8784, 16
        %v8945 = vrot.slane %v8943, 5
        %v8946 = vsel %vm1169, %v8941, %v8945
        %v8947 = vshrl.u32 %v8784, 16
        %v8949 = vrot.slane %v8947, 4
        %v8950 = vor.u32 %v8949, %v8945
        %v8951 = vrot.slane %v8950, 4
        %v8953 = vshll.u32 %v8785, 16
        %v8955 = vrot.slane %v8953, 5
        %v8956 = vsel %vm1169, %v8951, %v8955
        %v8957 = vshrl.u32 %v8785, 16
        %v8959 = vrot.slane %v8957, 4
        %v8960 = vor.u32 %v8959, %v8955
        %v8961 = vrot.slane %v8960, 4
        %v8963 = vshll.u32 %v8786, 16
        %v8965 = vrot.slane %v8963, 5
        %v8966 = vsel %vm1169, %v8961, %v8965
        %v8967 = vshrl.u32 %v8786, 16
        %v8969 = vrot.slane %v8967, 4
        %v8970 = vor.u32 %v8969, %v8965
        %v8971 = vrot.slane %v8970, 4
        %v8973 = vshll.u32 %v8787, 16
        %v8975 = vrot.slane %v8973, 5
        %v8976 = vsel %vm1169, %v8971, %v8975
        %v8977 = vshrl.u32 %v8787, 16
        %v8979 = vrot.slane %v8977, 4
        %v8980 = vor.u32 %v8979, %v8975
        %v8981 = vrot.slane %v8980, 4
        %v8983 = vshll.u32 %v8788, 16
        %v8985 = vrot.slane %v8983, 5
        %v8986 = vsel %vm1169, %v8981, %v8985
        %v8987 = vshrl.u32 %v8788, 16
        %v8989 = vrot.slane %v8987, 4
        %v8990 = vor.u32 %v8989, %v8985
        %v8991 = vrot.slane %v8990, 4
        %v8993 = vshll.u32 %v8789, 16
        %v8995 = vrot.slane %v8993, 5
        %v8996 = vsel %vm1169, %v8991, %v8995
        %v8997 = vshrl.u32 %v8789, 16
        %v8999 = vrot.slane %v8997, 4
        %v9000 = vor.u32 %v8999, %v8995
        %v9001 = vrot.slane %v9000, 4
        %v9003 = vshll.u32 %v8790, 16
        %v9005 = vrot.slane %v9003, 5
        %v9006 = vsel %vm1169, %v9001, %v9005
        %v9007 = vshrl.u32 %v8790, 16
        %v9009 = vrot.slane %v9007, 4
        %v9010 = vor.u32 %v9009, %v9005
        %v9011 = vrot.slane %v9010, 4
        %v9013 = vshll.u32 %v8791, 16
        %v9015 = vrot.slane %v9013, 5
        %v9016 = vsel %vm1169, %v9011, %v9015
        %v9017 = vshrl.u32 %v8791, 16
        %v9019 = vrot.slane %v9017, 4
        %v9020 = vor.u32 %v9019, %v9015
        %v9021 = vrot.slane %v9020, 4
        %v9023 = vshll.u32 %v8792, 16
        %v9025 = vrot.slane %v9023, 5
        %v9026 = vsel %vm1169, %v9021, %v9025
        %v9027 = vshrl.u32 %v8792, 16
        %v9029 = vrot.slane %v9027, 4
        %v9030 = vor.u32 %v9029, %v9025
        %v9031 = vrot.slane %v9030, 4
        %v9033 = vshll.u32 %v8793, 16
        %v9035 = vrot.slane %v9033, 5
        %v9036 = vsel %vm1169, %v9031, %v9035
        %v9037 = vshrl.u32 %v8793, 16
        %v9039 = vrot.slane %v9037, 4
        %v9040 = vor.u32 %v9039, %v9035
        %v9041 = vrot.slane %v9040, 4
        %v9043 = vshll.u32 %v8794, 16
        %v9045 = vrot.slane %v9043, 5
        %v9046 = vsel %vm1169, %v9041, %v9045
        %v9047 = vshrl.u32 %v8794, 16
        %v9049 = vrot.slane %v9047, 4
        %v9050 = vor.u32 %v9049, %v9045
        %v9051 = vrot.slane %v9050, 4
        %v9053 = vshll.u32 %v8795, 16
        %v9055 = vrot.slane %v9053, 5
        %v9056 = vsel %vm1169, %v9051, %v9055
        %v9057 = vshrl.u32 %v8795, 16
        %v9059 = vrot.slane %v9057, 4
        %v9060 = vor.u32 %v9059, %v9055
        %v9061 = vrot.slane %v9060, 4
        %v9063 = vshll.u32 %v8796, 16
        %v9065 = vrot.slane %v9063, 5
        %v9066 = vsel %vm1169, %v9061, %v9065
        %v9067 = vshrl.u32 %v8796, 16
        %v9069 = vrot.slane %v9067, 4
        %v9070 = vor.u32 %v9069, %v9065
        %v9071 = vrot.slane %v9070, 4
        %v9073 = vshll.u32 %v8797, 16
        %v9075 = vrot.slane %v9073, 5
        %v9076 = vsel %vm1169, %v9071, %v9075
        %v9077 = vshrl.u32 %v8797, 16
        %v9079 = vrot.slane %v9077, 4
        %v9080 = vor.u32 %v9079, %v9075
        %v9081 = vrot.slane %v9080, 4
        %v9083 = vshll.u32 %v8798, 16
        %v9085 = vrot.slane %v9083, 5
        %v9086 = vsel %vm1169, %v9081, %v9085
        %v9087 = vshrl.u32 %v8798, 16
        %v9089 = vrot.slane %v9087, 4
        %v9090 = vor.u32 %v9089, %v9085
        %v9091 = vrot.slane %v9090, 4
        %v9093 = vshll.u32 %v8799, 16
        %v9095 = vrot.slane %v9093, 5
        %v9096 = vsel %vm1169, %v9091, %v9095
        %v9097 = vshrl.u32 %v8799, 16
        %v9099 = vrot.slane %v9097, 4
        %v9100 = vor.u32 %v9099, %v9095
        %v9101 = vrot.slane %v9100, 4
        %v9103 = vshll.u32 %v8800, 16
        %v9105 = vrot.slane %v9103, 5
        %v9106 = vsel %vm1169, %v9101, %v9105
        %v9107 = vshrl.u32 %v8800, 16
        %v9109 = vrot.slane %v9107, 4
        %v9110 = vor.u32 %v9109, %v9105
        %v9111 = vrot.slane %v9110, 4
        %v9113 = vshll.u32 %v8801, 16
        %v9115 = vrot.slane %v9113, 5
        %v9116 = vsel %vm1169, %v9111, %v9115
        %v9117 = vshrl.u32 %v8801, 16
        %v9119 = vrot.slane %v9117, 4
        %v9120 = vor.u32 %v9119, %v9115
        %v9121 = vrot.slane %v9120, 4
        %v9123 = vshll.u32 %v8802, 16
        %v9125 = vrot.slane %v9123, 5
        %v9126 = vsel %vm1169, %v9121, %v9125
        %9159 = vst [vmem:[#allocation4 + $0x14] sm:$0xf] %v8816
        %9160 = vst [vmem:[#allocation4 + $0x38] sm:$0xf] %v8826
        %9161 = vst [vmem:[#allocation4 + $0x5c] sm:$0xf] %v8836
        %9162 = vst [vmem:[#allocation4 + $0x80] sm:$0xf] %v8846
        %9163 = vst [vmem:[#allocation4 + $0xa4] sm:$0xf] %v8856
        %9164 = vst [vmem:[#allocation4 + $0xc8] sm:$0xf] %v8866
        %9165 = vst [vmem:[#allocation4 + $0xec] sm:$0xf] %v8876
        %9166 = vst [vmem:[#allocation4 + $0x110] sm:$0xf] %v8886
        %9167 = vst [vmem:[#allocation4 + $0x134] sm:$0xf] %v8896
        %9168 = vst [vmem:[#allocation4 + $0x158] sm:$0xf] %v8906
        %9169 = vst [vmem:[#allocation4 + $0x17c] sm:$0xf] %v8916
        %9170 = vst [vmem:[#allocation4 + $0x1a0] sm:$0xf] %v8926
        %9171 = vst [vmem:[#allocation4 + $0x1c4] sm:$0xf] %v8936
        %9172 = vst [vmem:[#allocation4 + $0x1e8] sm:$0xf] %v8946
        %9173 = vst [vmem:[#allocation4 + $0x20c] sm:$0xf] %v8956
        %9174 = vst [vmem:[#allocation4 + $0x230] sm:$0xf] %v8966
        %9175 = vst [vmem:[#allocation4 + $0x254] sm:$0xf] %v8976
        %9176 = vst [vmem:[#allocation4 + $0x278] sm:$0xf] %v8986
        %9177 = vst [vmem:[#allocation4 + $0x29c] sm:$0xf] %v8996
        %9178 = vst [vmem:[#allocation4 + $0x2c0] sm:$0xf] %v9006
        %9179 = vst [vmem:[#allocation4 + $0x2e4] sm:$0xf] %v9016
        %9180 = vst [vmem:[#allocation4 + $0x308] sm:$0xf] %v9026
        %9181 = vst [vmem:[#allocation4 + $0x32c] sm:$0xf] %v9036
        %9182 = vst [vmem:[#allocation4 + $0x350] sm:$0xf] %v9046
        %9183 = vst [vmem:[#allocation4 + $0x374] sm:$0xf] %v9056
        %9184 = vst [vmem:[#allocation4 + $0x398] sm:$0xf] %v9066
        %9185 = vst [vmem:[#allocation4 + $0x3bc] sm:$0xf] %v9076
        %9186 = vst [vmem:[#allocation4 + $0x3e0] sm:$0xf] %v9086
        %9187 = vst [vmem:[#allocation4 + $0x404] sm:$0xf] %v9096
        %9188 = vst [vmem:[#allocation4 + $0x428] sm:$0xf] %v9106
        %9189 = vst [vmem:[#allocation4 + $0x44c] sm:$0xf] %v9116
        %9190 = vst [vmem:[#allocation4 + $0x470] sm:$0xf] %v9126
        %v9191 = vld [vmem:[#allocation3 + $0x14] sm:$0x8]
        %v9192 = vld [vmem:[#allocation3 + $0x18] sm:$0xf]
        %v9193 = vld [vmem:[#allocation3 + $0x1c] sm:$0xf]
        %v9194 = vld [vmem:[#allocation3 + $0x20] sm:$0xf]
        %v9195 = vld [vmem:[#allocation3 + $0x24] sm:$0xf]
        %v9196 = vld [vmem:[#allocation3 + $0x28] sm:$0xf]
        %v9197 = vld [vmem:[#allocation3 + $0x2c] sm:$0xf]
        %v9198 = vld [vmem:[#allocation3 + $0x30] sm:$0xf]
        %v9199 = vld [vmem:[#allocation3 + $0x34] sm:$0xf]
        %v9200 = vld [vmem:[#allocation3 + $0x38] sm:$0xf]
        %v9201 = vld [vmem:[#allocation3 + $0x3c] sm:$0xf]
        %v9202 = vld [vmem:[#allocation3 + $0x40] sm:$0xf]
        %v9203 = vld [vmem:[#allocation3 + $0x44] sm:$0xf]
        %v9204 = vld [vmem:[#allocation3 + $0x48] sm:$0xf]
        %v9205 = vld [vmem:[#allocation3 + $0x4c] sm:$0xf]
        %v9206 = vld [vmem:[#allocation3 + $0x50] sm:$0xf]
        %v9207 = vld [vmem:[#allocation3 + $0x54] sm:$0xf]
        %v9208 = vld [vmem:[#allocation3 + $0x58] sm:$0xf]
        %v9209 = vld [vmem:[#allocation3 + $0x5c] sm:$0xf]
        %v9210 = vld [vmem:[#allocation3 + $0x60] sm:$0xf]
        %v9211 = vld [vmem:[#allocation3 + $0x64] sm:$0xf]
        %v9212 = vld [vmem:[#allocation3 + $0x68] sm:$0xf]
        %v9213 = vld [vmem:[#allocation3 + $0x6c] sm:$0xf]
        %v9214 = vld [vmem:[#allocation3 + $0x70] sm:$0xf]
        %v9215 = vld [vmem:[#allocation3 + $0x74] sm:$0xf]
        %v9216 = vld [vmem:[#allocation3 + $0x78] sm:$0xf]
        %v9217 = vld [vmem:[#allocation3 + $0x7c] sm:$0xf]
        %v9218 = vld [vmem:[#allocation3 + $0x80] sm:$0xf]
        %v9219 = vld [vmem:[#allocation3 + $0x84] sm:$0xf]
        %v9220 = vld [vmem:[#allocation3 + $0x88] sm:$0xf]
        %v9221 = vld [vmem:[#allocation3 + $0x8c] sm:$0xf]
        %v9222 = vld [vmem:[#allocation3 + $0x90] sm:$0xf]
        %v9223 = vld [vmem:[#allocation3 + $0x94] sm:$0xf]
        %v9224 = vsel %vm1489, 0, %v9191
        %v9225 = vsel %vm1490, 0, %v9192
        %v9226 = vsel %vm1491, 0, %v9193
        %v9227 = vsel %vm1492, 0, %v9194
        %v9228 = vsel %vm1493, 0, %v9195
        %v9229 = vsel %vm1494, 0, %v9196
        %v9230 = vsel %vm1495, 0, %v9197
        %v9231 = vsel %vm1496, 0, %v9198
        %v9232 = vsel %vm1497, 0, %v9199
        %v9233 = vsel %vm1498, 0, %v9200
        %v9234 = vsel %vm1499, 0, %v9201
        %v9235 = vsel %vm1500, 0, %v9202
        %v9236 = vsel %vm1501, 0, %v9203
        %v9237 = vsel %vm1502, 0, %v9204
        %v9238 = vsel %vm1503, 0, %v9205
        %v9239 = vsel %vm1504, 0, %v9206
        %v9240 = vsel %vm1505, 0, %v9207
        %v9241 = vsel %vm1506, 0, %v9208
        %v9242 = vsel %vm1507, 0, %v9209
        %v9243 = vsel %vm1508, 0, %v9210
        %v9244 = vsel %vm1509, 0, %v9211
        %v9245 = vsel %vm1510, 0, %v9212
        %v9246 = vsel %vm1511, 0, %v9213
        %v9247 = vsel %vm1512, 0, %v9214
        %v9248 = vsel %vm1513, 0, %v9215
        %v9249 = vsel %vm1514, 0, %v9216
        %v9250 = vsel %vm1515, 0, %v9217
        %v9251 = vsel %vm1516, 0, %v9218
        %v9252 = vsel %vm1517, 0, %v9219
        %v9253 = vsel %vm1518, 0, %v9220
        %v9254 = vsel %vm1519, 0, %v9221
        %v9255 = vsel %vm1520, 0, %v9222
        %v9256 = vsel %vm1521, 0, %v9223
        %v9258 = vshrl.u32 %v9224, 16
        %v9260 = vrot.slane %v9258, 7
        %v9261 = vrot.slane %v9260, 4
        %v9263 = vshrl.u32 %v9225, 16
        %v9265 = vrot.slane %v9263, 7
        %v9266 = vshll.u32 %v9225, 16
        %v9268 = vor.u32 %v9265, %v9266
        %v9269 = vsel %vm1557, %v9261, %v9268
        %v9270 = vrot.slane %v9265, 4
        %v9272 = vshrl.u32 %v9226, 16
        %v9274 = vrot.slane %v9272, 7
        %v9275 = vshll.u32 %v9226, 16
        %v9277 = vor.u32 %v9274, %v9275
        %v9278 = vsel %vm1557, %v9270, %v9277
        %v9279 = vrot.slane %v9274, 4
        %v9281 = vshrl.u32 %v9227, 16
        %v9283 = vrot.slane %v9281, 7
        %v9284 = vshll.u32 %v9227, 16
        %v9286 = vor.u32 %v9283, %v9284
        %v9287 = vsel %vm1557, %v9279, %v9286
        %v9288 = vrot.slane %v9283, 4
        %v9290 = vshrl.u32 %v9228, 16
        %v9292 = vrot.slane %v9290, 7
        %v9293 = vshll.u32 %v9228, 16
        %v9295 = vor.u32 %v9292, %v9293
        %v9296 = vsel %vm1557, %v9288, %v9295
        %v9297 = vrot.slane %v9292, 4
        %v9299 = vshrl.u32 %v9229, 16
        %v9301 = vrot.slane %v9299, 7
        %v9302 = vshll.u32 %v9229, 16
        %v9304 = vor.u32 %v9301, %v9302
        %v9305 = vsel %vm1557, %v9297, %v9304
        %v9306 = vrot.slane %v9301, 4
        %v9308 = vshrl.u32 %v9230, 16
        %v9310 = vrot.slane %v9308, 7
        %v9311 = vshll.u32 %v9230, 16
        %v9313 = vor.u32 %v9310, %v9311
        %v9314 = vsel %vm1557, %v9306, %v9313
        %v9315 = vrot.slane %v9310, 4
        %v9317 = vshrl.u32 %v9231, 16
        %v9319 = vrot.slane %v9317, 7
        %v9320 = vshll.u32 %v9231, 16
        %v9322 = vor.u32 %v9319, %v9320
        %v9323 = vsel %vm1557, %v9315, %v9322
        %v9324 = vrot.slane %v9319, 4
        %v9326 = vshrl.u32 %v9232, 16
        %v9328 = vrot.slane %v9326, 7
        %v9329 = vshll.u32 %v9232, 16
        %v9331 = vor.u32 %v9328, %v9329
        %v9332 = vsel %vm1557, %v9324, %v9331
        %v9333 = vrot.slane %v9328, 4
        %v9335 = vshrl.u32 %v9233, 16
        %v9337 = vrot.slane %v9335, 7
        %v9338 = vshll.u32 %v9233, 16
        %v9340 = vor.u32 %v9337, %v9338
        %v9341 = vsel %vm1557, %v9333, %v9340
        %v9342 = vrot.slane %v9337, 4
        %v9344 = vshrl.u32 %v9234, 16
        %v9346 = vrot.slane %v9344, 7
        %v9347 = vshll.u32 %v9234, 16
        %v9349 = vor.u32 %v9346, %v9347
        %v9350 = vsel %vm1557, %v9342, %v9349
        %v9351 = vrot.slane %v9346, 4
        %v9353 = vshrl.u32 %v9235, 16
        %v9355 = vrot.slane %v9353, 7
        %v9356 = vshll.u32 %v9235, 16
        %v9358 = vor.u32 %v9355, %v9356
        %v9359 = vsel %vm1557, %v9351, %v9358
        %v9360 = vrot.slane %v9355, 4
        %v9362 = vshrl.u32 %v9236, 16
        %v9364 = vrot.slane %v9362, 7
        %v9365 = vshll.u32 %v9236, 16
        %v9367 = vor.u32 %v9364, %v9365
        %v9368 = vsel %vm1557, %v9360, %v9367
        %v9369 = vrot.slane %v9364, 4
        %v9371 = vshrl.u32 %v9237, 16
        %v9373 = vrot.slane %v9371, 7
        %v9374 = vshll.u32 %v9237, 16
        %v9376 = vor.u32 %v9373, %v9374
        %v9377 = vsel %vm1557, %v9369, %v9376
        %v9378 = vrot.slane %v9373, 4
        %v9380 = vshrl.u32 %v9238, 16
        %v9382 = vrot.slane %v9380, 7
        %v9383 = vshll.u32 %v9238, 16
        %v9385 = vor.u32 %v9382, %v9383
        %v9386 = vsel %vm1557, %v9378, %v9385
        %v9387 = vrot.slane %v9382, 4
        %v9389 = vshrl.u32 %v9239, 16
        %v9391 = vrot.slane %v9389, 7
        %v9392 = vshll.u32 %v9239, 16
        %v9394 = vor.u32 %v9391, %v9392
        %v9395 = vsel %vm1557, %v9387, %v9394
        %v9396 = vrot.slane %v9391, 4
        %v9398 = vshrl.u32 %v9240, 16
        %v9400 = vrot.slane %v9398, 7
        %v9401 = vshll.u32 %v9240, 16
        %v9403 = vor.u32 %v9400, %v9401
        %v9404 = vsel %vm1557, %v9396, %v9403
        %v9405 = vrot.slane %v9400, 4
        %v9407 = vshrl.u32 %v9241, 16
        %v9409 = vrot.slane %v9407, 7
        %v9410 = vshll.u32 %v9241, 16
        %v9412 = vor.u32 %v9409, %v9410
        %v9413 = vsel %vm1557, %v9405, %v9412
        %v9414 = vrot.slane %v9409, 4
        %v9416 = vshrl.u32 %v9242, 16
        %v9418 = vrot.slane %v9416, 7
        %v9419 = vshll.u32 %v9242, 16
        %v9421 = vor.u32 %v9418, %v9419
        %v9422 = vsel %vm1557, %v9414, %v9421
        %v9423 = vrot.slane %v9418, 4
        %v9425 = vshrl.u32 %v9243, 16
        %v9427 = vrot.slane %v9425, 7
        %v9428 = vshll.u32 %v9243, 16
        %v9430 = vor.u32 %v9427, %v9428
        %v9431 = vsel %vm1557, %v9423, %v9430
        %v9432 = vrot.slane %v9427, 4
        %v9434 = vshrl.u32 %v9244, 16
        %v9436 = vrot.slane %v9434, 7
        %v9437 = vshll.u32 %v9244, 16
        %v9439 = vor.u32 %v9436, %v9437
        %v9440 = vsel %vm1557, %v9432, %v9439
        %v9441 = vrot.slane %v9436, 4
        %v9443 = vshrl.u32 %v9245, 16
        %v9445 = vrot.slane %v9443, 7
        %v9446 = vshll.u32 %v9245, 16
        %v9448 = vor.u32 %v9445, %v9446
        %v9449 = vsel %vm1557, %v9441, %v9448
        %v9450 = vrot.slane %v9445, 4
        %v9452 = vshrl.u32 %v9246, 16
        %v9454 = vrot.slane %v9452, 7
        %v9455 = vshll.u32 %v9246, 16
        %v9457 = vor.u32 %v9454, %v9455
        %v9458 = vsel %vm1557, %v9450, %v9457
        %v9459 = vrot.slane %v9454, 4
        %v9461 = vshrl.u32 %v9247, 16
        %v9463 = vrot.slane %v9461, 7
        %v9464 = vshll.u32 %v9247, 16
        %v9466 = vor.u32 %v9463, %v9464
        %v9467 = vsel %vm1557, %v9459, %v9466
        %v9468 = vrot.slane %v9463, 4
        %v9470 = vshrl.u32 %v9248, 16
        %v9472 = vrot.slane %v9470, 7
        %v9473 = vshll.u32 %v9248, 16
        %v9475 = vor.u32 %v9472, %v9473
        %v9476 = vsel %vm1557, %v9468, %v9475
        %v9477 = vrot.slane %v9472, 4
        %v9479 = vshrl.u32 %v9249, 16
        %v9481 = vrot.slane %v9479, 7
        %v9482 = vshll.u32 %v9249, 16
        %v9484 = vor.u32 %v9481, %v9482
        %v9485 = vsel %vm1557, %v9477, %v9484
        %v9486 = vrot.slane %v9481, 4
        %v9488 = vshrl.u32 %v9250, 16
        %v9490 = vrot.slane %v9488, 7
        %v9491 = vshll.u32 %v9250, 16
        %v9493 = vor.u32 %v9490, %v9491
        %v9494 = vsel %vm1557, %v9486, %v9493
        %v9495 = vrot.slane %v9490, 4
        %v9497 = vshrl.u32 %v9251, 16
        %v9499 = vrot.slane %v9497, 7
        %v9500 = vshll.u32 %v9251, 16
        %v9502 = vor.u32 %v9499, %v9500
        %v9503 = vsel %vm1557, %v9495, %v9502
        %v9504 = vrot.slane %v9499, 4
        %v9506 = vshrl.u32 %v9252, 16
        %v9508 = vrot.slane %v9506, 7
        %v9509 = vshll.u32 %v9252, 16
        %v9511 = vor.u32 %v9508, %v9509
        %v9512 = vsel %vm1557, %v9504, %v9511
        %v9513 = vrot.slane %v9508, 4
        %v9515 = vshrl.u32 %v9253, 16
        %v9517 = vrot.slane %v9515, 7
        %v9518 = vshll.u32 %v9253, 16
        %v9520 = vor.u32 %v9517, %v9518
        %v9521 = vsel %vm1557, %v9513, %v9520
        %v9522 = vrot.slane %v9517, 4
        %v9524 = vshrl.u32 %v9254, 16
        %v9526 = vrot.slane %v9524, 7
        %v9527 = vshll.u32 %v9254, 16
        %v9529 = vor.u32 %v9526, %v9527
        %v9530 = vsel %vm1557, %v9522, %v9529
        %v9531 = vrot.slane %v9526, 4
        %v9533 = vshrl.u32 %v9255, 16
        %v9535 = vrot.slane %v9533, 7
        %v9536 = vshll.u32 %v9255, 16
        %v9538 = vor.u32 %v9535, %v9536
        %v9539 = vsel %vm1557, %v9531, %v9538
        %v9540 = vrot.slane %v9535, 4
        %v9542 = vshrl.u32 %v9256, 16
        %v9544 = vrot.slane %v9542, 7
        %v9545 = vshll.u32 %v9256, 16
        %v9547 = vor.u32 %v9544, %v9545
        %v9548 = vsel %vm1557, %v9540, %v9547
        %9581 = vst [vmem:[#allocation4 + $0x18] sm:$0xf] %v9269
        %9582 = vst [vmem:[#allocation4 + $0x3c] sm:$0xf] %v9278
        %9583 = vst [vmem:[#allocation4 + $0x60] sm:$0xf] %v9287
        %9584 = vst [vmem:[#allocation4 + $0x84] sm:$0xf] %v9296
        %9585 = vst [vmem:[#allocation4 + $0xa8] sm:$0xf] %v9305
        %9586 = vst [vmem:[#allocation4 + $0xcc] sm:$0xf] %v9314
        %9587 = vst [vmem:[#allocation4 + $0xf0] sm:$0xf] %v9323
        %9588 = vst [vmem:[#allocation4 + $0x114] sm:$0xf] %v9332
        %9589 = vst [vmem:[#allocation4 + $0x138] sm:$0xf] %v9341
        %9590 = vst [vmem:[#allocation4 + $0x15c] sm:$0xf] %v9350
        %9591 = vst [vmem:[#allocation4 + $0x180] sm:$0xf] %v9359
        %9592 = vst [vmem:[#allocation4 + $0x1a4] sm:$0xf] %v9368
        %9593 = vst [vmem:[#allocation4 + $0x1c8] sm:$0xf] %v9377
        %9594 = vst [vmem:[#allocation4 + $0x1ec] sm:$0xf] %v9386
        %9595 = vst [vmem:[#allocation4 + $0x210] sm:$0xf] %v9395
        %9596 = vst [vmem:[#allocation4 + $0x234] sm:$0xf] %v9404
        %9597 = vst [vmem:[#allocation4 + $0x258] sm:$0xf] %v9413
        %9598 = vst [vmem:[#allocation4 + $0x27c] sm:$0xf] %v9422
        %9599 = vst [vmem:[#allocation4 + $0x2a0] sm:$0xf] %v9431
        %9600 = vst [vmem:[#allocation4 + $0x2c4] sm:$0xf] %v9440
        %9601 = vst [vmem:[#allocation4 + $0x2e8] sm:$0xf] %v9449
        %9602 = vst [vmem:[#allocation4 + $0x30c] sm:$0xf] %v9458
        %9603 = vst [vmem:[#allocation4 + $0x330] sm:$0xf] %v9467
        %9604 = vst [vmem:[#allocation4 + $0x354] sm:$0xf] %v9476
        %9605 = vst [vmem:[#allocation4 + $0x378] sm:$0xf] %v9485
        %9606 = vst [vmem:[#allocation4 + $0x39c] sm:$0xf] %v9494
        %9607 = vst [vmem:[#allocation4 + $0x3c0] sm:$0xf] %v9503
        %9608 = vst [vmem:[#allocation4 + $0x3e4] sm:$0xf] %v9512
        %9609 = vst [vmem:[#allocation4 + $0x408] sm:$0xf] %v9521
        %9610 = vst [vmem:[#allocation4 + $0x42c] sm:$0xf] %v9530
        %9611 = vst [vmem:[#allocation4 + $0x450] sm:$0xf] %v9539
        %9612 = vst [vmem:[#allocation4 + $0x474] sm:$0xf] %v9548
        %v9613 = vld [vmem:[#allocation3 + $0x18] sm:$0xf]
        %v9614 = vld [vmem:[#allocation3 + $0x1c] sm:$0xf]
        %v9615 = vld [vmem:[#allocation3 + $0x20] sm:$0xf]
        %v9616 = vld [vmem:[#allocation3 + $0x24] sm:$0xf]
        %v9617 = vld [vmem:[#allocation3 + $0x28] sm:$0xf]
        %v9618 = vld [vmem:[#allocation3 + $0x2c] sm:$0xf]
        %v9619 = vld [vmem:[#allocation3 + $0x30] sm:$0xf]
        %v9620 = vld [vmem:[#allocation3 + $0x34] sm:$0xf]
        %v9621 = vld [vmem:[#allocation3 + $0x38] sm:$0xf]
        %v9622 = vld [vmem:[#allocation3 + $0x3c] sm:$0xf]
        %v9623 = vld [vmem:[#allocation3 + $0x40] sm:$0xf]
        %v9624 = vld [vmem:[#allocation3 + $0x44] sm:$0xf]
        %v9625 = vld [vmem:[#allocation3 + $0x48] sm:$0xf]
        %v9626 = vld [vmem:[#allocation3 + $0x4c] sm:$0xf]
        %v9627 = vld [vmem:[#allocation3 + $0x50] sm:$0xf]
        %v9628 = vld [vmem:[#allocation3 + $0x54] sm:$0xf]
        %v9629 = vld [vmem:[#allocation3 + $0x58] sm:$0xf]
        %v9630 = vld [vmem:[#allocation3 + $0x5c] sm:$0xf]
        %v9631 = vld [vmem:[#allocation3 + $0x60] sm:$0xf]
        %v9632 = vld [vmem:[#allocation3 + $0x64] sm:$0xf]
        %v9633 = vld [vmem:[#allocation3 + $0x68] sm:$0xf]
        %v9634 = vld [vmem:[#allocation3 + $0x6c] sm:$0xf]
        %v9635 = vld [vmem:[#allocation3 + $0x70] sm:$0xf]
        %v9636 = vld [vmem:[#allocation3 + $0x74] sm:$0xf]
        %v9637 = vld [vmem:[#allocation3 + $0x78] sm:$0xf]
        %v9638 = vld [vmem:[#allocation3 + $0x7c] sm:$0xf]
        %v9639 = vld [vmem:[#allocation3 + $0x80] sm:$0xf]
        %v9640 = vld [vmem:[#allocation3 + $0x84] sm:$0xf]
        %v9641 = vld [vmem:[#allocation3 + $0x88] sm:$0xf]
        %v9642 = vld [vmem:[#allocation3 + $0x8c] sm:$0xf]
        %v9643 = vld [vmem:[#allocation3 + $0x90] sm:$0xf]
        %v9644 = vld [vmem:[#allocation3 + $0x94] sm:$0xf]
        %9645 = vst [vmem:[#allocation4 + $0x1c] sm:$0xf] %v9613
        %9646 = vst [vmem:[#allocation4 + $0x40] sm:$0xf] %v9614
        %9647 = vst [vmem:[#allocation4 + $0x64] sm:$0xf] %v9615
        %9648 = vst [vmem:[#allocation4 + $0x88] sm:$0xf] %v9616
        %9649 = vst [vmem:[#allocation4 + $0xac] sm:$0xf] %v9617
        %9650 = vst [vmem:[#allocation4 + $0xd0] sm:$0xf] %v9618
        %9651 = vst [vmem:[#allocation4 + $0xf4] sm:$0xf] %v9619
        %9652 = vst [vmem:[#allocation4 + $0x118] sm:$0xf] %v9620
        %9653 = vst [vmem:[#allocation4 + $0x13c] sm:$0xf] %v9621
        %9654 = vst [vmem:[#allocation4 + $0x160] sm:$0xf] %v9622
        %9655 = vst [vmem:[#allocation4 + $0x184] sm:$0xf] %v9623
        %9656 = vst [vmem:[#allocation4 + $0x1a8] sm:$0xf] %v9624
        %9657 = vst [vmem:[#allocation4 + $0x1cc] sm:$0xf] %v9625
        %9658 = vst [vmem:[#allocation4 + $0x1f0] sm:$0xf] %v9626
        %9659 = vst [vmem:[#allocation4 + $0x214] sm:$0xf] %v9627
        %9660 = vst [vmem:[#allocation4 + $0x238] sm:$0xf] %v9628
        %9661 = vst [vmem:[#allocation4 + $0x25c] sm:$0xf] %v9629
        %9662 = vst [vmem:[#allocation4 + $0x280] sm:$0xf] %v9630
        %9663 = vst [vmem:[#allocation4 + $0x2a4] sm:$0xf] %v9631
        %9664 = vst [vmem:[#allocation4 + $0x2c8] sm:$0xf] %v9632
        %9665 = vst [vmem:[#allocation4 + $0x2ec] sm:$0xf] %v9633
        %9666 = vst [vmem:[#allocation4 + $0x310] sm:$0xf] %v9634
        %9667 = vst [vmem:[#allocation4 + $0x334] sm:$0xf] %v9635
        %9668 = vst [vmem:[#allocation4 + $0x358] sm:$0xf] %v9636
        %9669 = vst [vmem:[#allocation4 + $0x37c] sm:$0xf] %v9637
        %9670 = vst [vmem:[#allocation4 + $0x3a0] sm:$0xf] %v9638
        %9671 = vst [vmem:[#allocation4 + $0x3c4] sm:$0xf] %v9639
        %9672 = vst [vmem:[#allocation4 + $0x3e8] sm:$0xf] %v9640
        %9673 = vst [vmem:[#allocation4 + $0x40c] sm:$0xf] %v9641
        %9674 = vst [vmem:[#allocation4 + $0x430] sm:$0xf] %v9642
        %9675 = vst [vmem:[#allocation4 + $0x454] sm:$0xf] %v9643
        %9676 = vst [vmem:[#allocation4 + $0x478] sm:$0xf] %v9644
        %v9677 = vld [vmem:[#allocation3 + $0x18] sm:$0xf]
        %v9678 = vld [vmem:[#allocation3 + $0x1c] sm:$0xf]
        %v9679 = vld [vmem:[#allocation3 + $0x20] sm:$0xf]
        %v9680 = vld [vmem:[#allocation3 + $0x24] sm:$0xf]
        %v9681 = vld [vmem:[#allocation3 + $0x28] sm:$0xf]
        %v9682 = vld [vmem:[#allocation3 + $0x2c] sm:$0xf]
        %v9683 = vld [vmem:[#allocation3 + $0x30] sm:$0xf]
        %v9684 = vld [vmem:[#allocation3 + $0x34] sm:$0xf]
        %v9685 = vld [vmem:[#allocation3 + $0x38] sm:$0xf]
        %v9686 = vld [vmem:[#allocation3 + $0x3c] sm:$0xf]
        %v9687 = vld [vmem:[#allocation3 + $0x40] sm:$0xf]
        %v9688 = vld [vmem:[#allocation3 + $0x44] sm:$0xf]
        %v9689 = vld [vmem:[#allocation3 + $0x48] sm:$0xf]
        %v9690 = vld [vmem:[#allocation3 + $0x4c] sm:$0xf]
        %v9691 = vld [vmem:[#allocation3 + $0x50] sm:$0xf]
        %v9692 = vld [vmem:[#allocation3 + $0x54] sm:$0xf]
        %v9693 = vld [vmem:[#allocation3 + $0x58] sm:$0xf]
        %v9694 = vld [vmem:[#allocation3 + $0x5c] sm:$0xf]
        %v9695 = vld [vmem:[#allocation3 + $0x60] sm:$0xf]
        %v9696 = vld [vmem:[#allocation3 + $0x64] sm:$0xf]
        %v9697 = vld [vmem:[#allocation3 + $0x68] sm:$0xf]
        %v9698 = vld [vmem:[#allocation3 + $0x6c] sm:$0xf]
        %v9699 = vld [vmem:[#allocation3 + $0x70] sm:$0xf]
        %v9700 = vld [vmem:[#allocation3 + $0x74] sm:$0xf]
        %v9701 = vld [vmem:[#allocation3 + $0x78] sm:$0xf]
        %v9702 = vld [vmem:[#allocation3 + $0x7c] sm:$0xf]
        %v9703 = vld [vmem:[#allocation3 + $0x80] sm:$0xf]
        %v9704 = vld [vmem:[#allocation3 + $0x84] sm:$0xf]
        %v9705 = vld [vmem:[#allocation3 + $0x88] sm:$0xf]
        %v9706 = vld [vmem:[#allocation3 + $0x8c] sm:$0xf]
        %v9707 = vld [vmem:[#allocation3 + $0x90] sm:$0xf]
        %v9708 = vld [vmem:[#allocation3 + $0x94] sm:$0xf]
        %v9709 = vld [vmem:[#allocation3 + $0x98] sm:$0x1]
        %v9710 = vsel %vm2426, 0, %v9677
        %v9711 = vsel %vm2427, 0, %v9678
        %v9712 = vsel %vm2428, 0, %v9679
        %v9713 = vsel %vm2429, 0, %v9680
        %v9714 = vsel %vm2430, 0, %v9681
        %v9715 = vsel %vm2431, 0, %v9682
        %v9716 = vsel %vm2432, 0, %v9683
        %v9717 = vsel %vm2433, 0, %v9684
        %v9718 = vsel %vm2434, 0, %v9685
        %v9719 = vsel %vm2435, 0, %v9686
        %v9720 = vsel %vm2436, 0, %v9687
        %v9721 = vsel %vm2437, 0, %v9688
        %v9722 = vsel %vm2438, 0, %v9689
        %v9723 = vsel %vm2439, 0, %v9690
        %v9724 = vsel %vm2440, 0, %v9691
        %v9725 = vsel %vm2441, 0, %v9692
        %v9726 = vsel %vm2442, 0, %v9693
        %v9727 = vsel %vm2443, 0, %v9694
        %v9728 = vsel %vm2444, 0, %v9695
        %v9729 = vsel %vm2445, 0, %v9696
        %v9730 = vsel %vm2446, 0, %v9697
        %v9731 = vsel %vm2447, 0, %v9698
        %v9732 = vsel %vm2448, 0, %v9699
        %v9733 = vsel %vm2449, 0, %v9700
        %v9734 = vsel %vm2450, 0, %v9701
        %v9735 = vsel %vm2451, 0, %v9702
        %v9736 = vsel %vm2452, 0, %v9703
        %v9737 = vsel %vm2453, 0, %v9704
        %v9738 = vsel %vm2454, 0, %v9705
        %v9739 = vsel %vm2455, 0, %v9706
        %v9740 = vsel %vm2456, 0, %v9707
        %v9741 = vsel %vm2457, 0, %v9708
        %v9742 = vsel %vm2458, 0, %v9709
        %v9744 = vshrl.u32 %v9710, 16
        %v9746 = vrot.slane %v9744, 4
        %v9747 = vshll.u32 %v9710, 16
        %v9749 = vrot.slane %v9747, 5
        %v9750 = vor.u32 %v9746, %v9749
        %v9751 = vrot.slane %v9750, 4
        %v9753 = vshll.u32 %v9711, 16
        %v9755 = vrot.slane %v9753, 5
        %v9756 = vsel %vm1169, %v9751, %v9755
        %v9757 = vshrl.u32 %v9711, 16
        %v9759 = vrot.slane %v9757, 4
        %v9760 = vor.u32 %v9759, %v9755
        %v9761 = vrot.slane %v9760, 4
        %v9763 = vshll.u32 %v9712, 16
        %v9765 = vrot.slane %v9763, 5
        %v9766 = vsel %vm1169, %v9761, %v9765
        %v9767 = vshrl.u32 %v9712, 16
        %v9769 = vrot.slane %v9767, 4
        %v9770 = vor.u32 %v9769, %v9765
        %v9771 = vrot.slane %v9770, 4
        %v9773 = vshll.u32 %v9713, 16
        %v9775 = vrot.slane %v9773, 5
        %v9776 = vsel %vm1169, %v9771, %v9775
        %v9777 = vshrl.u32 %v9713, 16
        %v9779 = vrot.slane %v9777, 4
        %v9780 = vor.u32 %v9779, %v9775
        %v9781 = vrot.slane %v9780, 4
        %v9783 = vshll.u32 %v9714, 16
        %v9785 = vrot.slane %v9783, 5
        %v9786 = vsel %vm1169, %v9781, %v9785
        %v9787 = vshrl.u32 %v9714, 16
        %v9789 = vrot.slane %v9787, 4
        %v9790 = vor.u32 %v9789, %v9785
        %v9791 = vrot.slane %v9790, 4
        %v9793 = vshll.u32 %v9715, 16
        %v9795 = vrot.slane %v9793, 5
        %v9796 = vsel %vm1169, %v9791, %v9795
        %v9797 = vshrl.u32 %v9715, 16
        %v9799 = vrot.slane %v9797, 4
        %v9800 = vor.u32 %v9799, %v9795
        %v9801 = vrot.slane %v9800, 4
        %v9803 = vshll.u32 %v9716, 16
        %v9805 = vrot.slane %v9803, 5
        %v9806 = vsel %vm1169, %v9801, %v9805
        %v9807 = vshrl.u32 %v9716, 16
        %v9809 = vrot.slane %v9807, 4
        %v9810 = vor.u32 %v9809, %v9805
        %v9811 = vrot.slane %v9810, 4
        %v9813 = vshll.u32 %v9717, 16
        %v9815 = vrot.slane %v9813, 5
        %v9816 = vsel %vm1169, %v9811, %v9815
        %v9817 = vshrl.u32 %v9717, 16
        %v9819 = vrot.slane %v9817, 4
        %v9820 = vor.u32 %v9819, %v9815
        %v9821 = vrot.slane %v9820, 4
        %v9823 = vshll.u32 %v9718, 16
        %v9825 = vrot.slane %v9823, 5
        %v9826 = vsel %vm1169, %v9821, %v9825
        %v9827 = vshrl.u32 %v9718, 16
        %v9829 = vrot.slane %v9827, 4
        %v9830 = vor.u32 %v9829, %v9825
        %v9831 = vrot.slane %v9830, 4
        %v9833 = vshll.u32 %v9719, 16
        %v9835 = vrot.slane %v9833, 5
        %v9836 = vsel %vm1169, %v9831, %v9835
        %v9837 = vshrl.u32 %v9719, 16
        %v9839 = vrot.slane %v9837, 4
        %v9840 = vor.u32 %v9839, %v9835
        %v9841 = vrot.slane %v9840, 4
        %v9843 = vshll.u32 %v9720, 16
        %v9845 = vrot.slane %v9843, 5
        %v9846 = vsel %vm1169, %v9841, %v9845
        %v9847 = vshrl.u32 %v9720, 16
        %v9849 = vrot.slane %v9847, 4
        %v9850 = vor.u32 %v9849, %v9845
        %v9851 = vrot.slane %v9850, 4
        %v9853 = vshll.u32 %v9721, 16
        %v9855 = vrot.slane %v9853, 5
        %v9856 = vsel %vm1169, %v9851, %v9855
        %v9857 = vshrl.u32 %v9721, 16
        %v9859 = vrot.slane %v9857, 4
        %v9860 = vor.u32 %v9859, %v9855
        %v9861 = vrot.slane %v9860, 4
        %v9863 = vshll.u32 %v9722, 16
        %v9865 = vrot.slane %v9863, 5
        %v9866 = vsel %vm1169, %v9861, %v9865
        %v9867 = vshrl.u32 %v9722, 16
        %v9869 = vrot.slane %v9867, 4
        %v9870 = vor.u32 %v9869, %v9865
        %v9871 = vrot.slane %v9870, 4
        %v9873 = vshll.u32 %v9723, 16
        %v9875 = vrot.slane %v9873, 5
        %v9876 = vsel %vm1169, %v9871, %v9875
        %v9877 = vshrl.u32 %v9723, 16
        %v9879 = vrot.slane %v9877, 4
        %v9880 = vor.u32 %v9879, %v9875
        %v9881 = vrot.slane %v9880, 4
        %v9883 = vshll.u32 %v9724, 16
        %v9885 = vrot.slane %v9883, 5
        %v9886 = vsel %vm1169, %v9881, %v9885
        %v9887 = vshrl.u32 %v9724, 16
        %v9889 = vrot.slane %v9887, 4
        %v9890 = vor.u32 %v9889, %v9885
        %v9891 = vrot.slane %v9890, 4
        %v9893 = vshll.u32 %v9725, 16
        %v9895 = vrot.slane %v9893, 5
        %v9896 = vsel %vm1169, %v9891, %v9895
        %v9897 = vshrl.u32 %v9725, 16
        %v9899 = vrot.slane %v9897, 4
        %v9900 = vor.u32 %v9899, %v9895
        %v9901 = vrot.slane %v9900, 4
        %v9903 = vshll.u32 %v9726, 16
        %v9905 = vrot.slane %v9903, 5
        %v9906 = vsel %vm1169, %v9901, %v9905
        %v9907 = vshrl.u32 %v9726, 16
        %v9909 = vrot.slane %v9907, 4
        %v9910 = vor.u32 %v9909, %v9905
        %v9911 = vrot.slane %v9910, 4
        %v9913 = vshll.u32 %v9727, 16
        %v9915 = vrot.slane %v9913, 5
        %v9916 = vsel %vm1169, %v9911, %v9915
        %v9917 = vshrl.u32 %v9727, 16
        %v9919 = vrot.slane %v9917, 4
        %v9920 = vor.u32 %v9919, %v9915
        %v9921 = vrot.slane %v9920, 4
        %v9923 = vshll.u32 %v9728, 16
        %v9925 = vrot.slane %v9923, 5
        %v9926 = vsel %vm1169, %v9921, %v9925
        %v9927 = vshrl.u32 %v9728, 16
        %v9929 = vrot.slane %v9927, 4
        %v9930 = vor.u32 %v9929, %v9925
        %v9931 = vrot.slane %v9930, 4
        %v9933 = vshll.u32 %v9729, 16
        %v9935 = vrot.slane %v9933, 5
        %v9936 = vsel %vm1169, %v9931, %v9935
        %v9937 = vshrl.u32 %v9729, 16
        %v9939 = vrot.slane %v9937, 4
        %v9940 = vor.u32 %v9939, %v9935
        %v9941 = vrot.slane %v9940, 4
        %v9943 = vshll.u32 %v9730, 16
        %v9945 = vrot.slane %v9943, 5
        %v9946 = vsel %vm1169, %v9941, %v9945
        %v9947 = vshrl.u32 %v9730, 16
        %v9949 = vrot.slane %v9947, 4
        %v9950 = vor.u32 %v9949, %v9945
        %v9951 = vrot.slane %v9950, 4
        %v9953 = vshll.u32 %v9731, 16
        %v9955 = vrot.slane %v9953, 5
        %v9956 = vsel %vm1169, %v9951, %v9955
        %v9957 = vshrl.u32 %v9731, 16
        %v9959 = vrot.slane %v9957, 4
        %v9960 = vor.u32 %v9959, %v9955
        %v9961 = vrot.slane %v9960, 4
        %v9963 = vshll.u32 %v9732, 16
        %v9965 = vrot.slane %v9963, 5
        %v9966 = vsel %vm1169, %v9961, %v9965
        %v9967 = vshrl.u32 %v9732, 16
        %v9969 = vrot.slane %v9967, 4
        %v9970 = vor.u32 %v9969, %v9965
        %v9971 = vrot.slane %v9970, 4
        %v9973 = vshll.u32 %v9733, 16
        %v9975 = vrot.slane %v9973, 5
        %v9976 = vsel %vm1169, %v9971, %v9975
        %v9977 = vshrl.u32 %v9733, 16
        %v9979 = vrot.slane %v9977, 4
        %v9980 = vor.u32 %v9979, %v9975
        %v9981 = vrot.slane %v9980, 4
        %v9983 = vshll.u32 %v9734, 16
        %v9985 = vrot.slane %v9983, 5
        %v9986 = vsel %vm1169, %v9981, %v9985
        %v9987 = vshrl.u32 %v9734, 16
        %v9989 = vrot.slane %v9987, 4
        %v9990 = vor.u32 %v9989, %v9985
        %v9991 = vrot.slane %v9990, 4
        %v9993 = vshll.u32 %v9735, 16
        %v9995 = vrot.slane %v9993, 5
        %v9996 = vsel %vm1169, %v9991, %v9995
        %v9997 = vshrl.u32 %v9735, 16
        %v9999 = vrot.slane %v9997, 4
        %v10000 = vor.u32 %v9999, %v9995
        %v10001 = vrot.slane %v10000, 4
        %v10003 = vshll.u32 %v9736, 16
        %v10005 = vrot.slane %v10003, 5
        %v10006 = vsel %vm1169, %v10001, %v10005
        %v10007 = vshrl.u32 %v9736, 16
        %v10009 = vrot.slane %v10007, 4
        %v10010 = vor.u32 %v10009, %v10005
        %v10011 = vrot.slane %v10010, 4
        %v10013 = vshll.u32 %v9737, 16
        %v10015 = vrot.slane %v10013, 5
        %v10016 = vsel %vm1169, %v10011, %v10015
        %v10017 = vshrl.u32 %v9737, 16
        %v10019 = vrot.slane %v10017, 4
        %v10020 = vor.u32 %v10019, %v10015
        %v10021 = vrot.slane %v10020, 4
        %v10023 = vshll.u32 %v9738, 16
        %v10025 = vrot.slane %v10023, 5
        %v10026 = vsel %vm1169, %v10021, %v10025
        %v10027 = vshrl.u32 %v9738, 16
        %v10029 = vrot.slane %v10027, 4
        %v10030 = vor.u32 %v10029, %v10025
        %v10031 = vrot.slane %v10030, 4
        %v10033 = vshll.u32 %v9739, 16
        %v10035 = vrot.slane %v10033, 5
        %v10036 = vsel %vm1169, %v10031, %v10035
        %v10037 = vshrl.u32 %v9739, 16
        %v10039 = vrot.slane %v10037, 4
        %v10040 = vor.u32 %v10039, %v10035
        %v10041 = vrot.slane %v10040, 4
        %v10043 = vshll.u32 %v9740, 16
        %v10045 = vrot.slane %v10043, 5
        %v10046 = vsel %vm1169, %v10041, %v10045
        %v10047 = vshrl.u32 %v9740, 16
        %v10049 = vrot.slane %v10047, 4
        %v10050 = vor.u32 %v10049, %v10045
        %v10051 = vrot.slane %v10050, 4
        %v10053 = vshll.u32 %v9741, 16
        %v10055 = vrot.slane %v10053, 5
        %v10056 = vsel %vm1169, %v10051, %v10055
        %v10057 = vshrl.u32 %v9741, 16
        %v10059 = vrot.slane %v10057, 4
        %v10060 = vor.u32 %v10059, %v10055
        %v10061 = vrot.slane %v10060, 4
        %v10063 = vshll.u32 %v9742, 16
        %v10065 = vrot.slane %v10063, 5
        %v10066 = vsel %vm1169, %v10061, %v10065
        %10099 = vst [vmem:[#allocation4 + $0x20] sm:$0xf] %v9756
        %10100 = vst [vmem:[#allocation4 + $0x44] sm:$0xf] %v9766
        %10101 = vst [vmem:[#allocation4 + $0x68] sm:$0xf] %v9776
        %10102 = vst [vmem:[#allocation4 + $0x8c] sm:$0xf] %v9786
        %10103 = vst [vmem:[#allocation4 + $0xb0] sm:$0xf] %v9796
        %10104 = vst [vmem:[#allocation4 + $0xd4] sm:$0xf] %v9806
        %10105 = vst [vmem:[#allocation4 + $0xf8] sm:$0xf] %v9816
        %10106 = vst [vmem:[#allocation4 + $0x11c] sm:$0xf] %v9826
        %10107 = vst [vmem:[#allocation4 + $0x140] sm:$0xf] %v9836
        %10108 = vst [vmem:[#allocation4 + $0x164] sm:$0xf] %v9846
        %10109 = vst [vmem:[#allocation4 + $0x188] sm:$0xf] %v9856
        %10110 = vst [vmem:[#allocation4 + $0x1ac] sm:$0xf] %v9866
        %10111 = vst [vmem:[#allocation4 + $0x1d0] sm:$0xf] %v9876
        %10112 = vst [vmem:[#allocation4 + $0x1f4] sm:$0xf] %v9886
        %10113 = vst [vmem:[#allocation4 + $0x218] sm:$0xf] %v9896
        %10114 = vst [vmem:[#allocation4 + $0x23c] sm:$0xf] %v9906
        %10115 = vst [vmem:[#allocation4 + $0x260] sm:$0xf] %v9916
        %10116 = vst [vmem:[#allocation4 + $0x284] sm:$0xf] %v9926
        %10117 = vst [vmem:[#allocation4 + $0x2a8] sm:$0xf] %v9936
        %10118 = vst [vmem:[#allocation4 + $0x2cc] sm:$0xf] %v9946
        %10119 = vst [vmem:[#allocation4 + $0x2f0] sm:$0xf] %v9956
        %10120 = vst [vmem:[#allocation4 + $0x314] sm:$0xf] %v9966
        %10121 = vst [vmem:[#allocation4 + $0x338] sm:$0xf] %v9976
        %10122 = vst [vmem:[#allocation4 + $0x35c] sm:$0xf] %v9986
        %10123 = vst [vmem:[#allocation4 + $0x380] sm:$0xf] %v9996
        %10124 = vst [vmem:[#allocation4 + $0x3a4] sm:$0xf] %v10006
        %10125 = vst [vmem:[#allocation4 + $0x3c8] sm:$0xf] %v10016
        %10126 = vst [vmem:[#allocation4 + $0x3ec] sm:$0xf] %v10026
        %10127 = vst [vmem:[#allocation4 + $0x410] sm:$0xf] %v10036
        %10128 = vst [vmem:[#allocation4 + $0x434] sm:$0xf] %v10046
        %10129 = vst [vmem:[#allocation4 + $0x458] sm:$0xf] %v10056
        %10130 = vst [vmem:[#allocation4 + $0x47c] sm:$0xf] %v10066
        %v10131 = vld [vmem:[#allocation4] sm:$0xff]
        %v10132 = vld [vmem:[#allocation4 + $0x8] sm:$0xff]
        %v10133 = vld [vmem:[#allocation4 + $0x10] sm:$0xff]
        %v10134 = vld [vmem:[#allocation4 + $0x18] sm:$0xff]
        %v10135 = vld [vmem:[#allocation4 + $0x20] sm:$0xf]
        %v10136 = vld [vmem:[#allocation4 + $0x24] sm:$0xff]
        %v10137 = vld [vmem:[#allocation4 + $0x2c] sm:$0xff]
        %v10138 = vld [vmem:[#allocation4 + $0x34] sm:$0xff]
        %v10139 = vld [vmem:[#allocation4 + $0x3c] sm:$0xff]
        %v10140 = vld [vmem:[#allocation4 + $0x44] sm:$0xf]
        %v10141 = vld [vmem:[#allocation4 + $0x48] sm:$0xff]
        %v10142 = vld [vmem:[#allocation4 + $0x50] sm:$0xff]
        %v10143 = vld [vmem:[#allocation4 + $0x58] sm:$0xff]
        %v10144 = vld [vmem:[#allocation4 + $0x60] sm:$0xff]
        %v10145 = vld [vmem:[#allocation4 + $0x68] sm:$0xf]
        %v10146 = vld [vmem:[#allocation4 + $0x6c] sm:$0xff]
        %v10147 = vld [vmem:[#allocation4 + $0x74] sm:$0xff]
        %v10148 = vld [vmem:[#allocation4 + $0x7c] sm:$0xff]
        %v10149 = vld [vmem:[#allocation4 + $0x84] sm:$0xff]
        %v10150 = vld [vmem:[#allocation4 + $0x8c] sm:$0xf]
        %v10151 = vld [vmem:[#allocation4 + $0x90] sm:$0xff]
        %v10152 = vld [vmem:[#allocation4 + $0x98] sm:$0xff]
        %v10153 = vld [vmem:[#allocation4 + $0xa0] sm:$0xff]
        %v10154 = vld [vmem:[#allocation4 + $0xa8] sm:$0xff]
        %v10155 = vld [vmem:[#allocation4 + $0xb0] sm:$0xf]
        %v10156 = vld [vmem:[#allocation4 + $0xb4] sm:$0xff]
        %v10157 = vld [vmem:[#allocation4 + $0xbc] sm:$0xff]
        %v10158 = vld [vmem:[#allocation4 + $0xc4] sm:$0xff]
        %v10159 = vld [vmem:[#allocation4 + $0xcc] sm:$0xff]
        %v10160 = vld [vmem:[#allocation4 + $0xd4] sm:$0xf]
        %v10161 = vld [vmem:[#allocation4 + $0xd8] sm:$0xff]
        %v10162 = vld [vmem:[#allocation4 + $0xe0] sm:$0xff]
        %v10163 = vld [vmem:[#allocation4 + $0xe8] sm:$0xff]
        %v10164 = vld [vmem:[#allocation4 + $0xf0] sm:$0xff]
        %v10165 = vld [vmem:[#allocation4 + $0xf8] sm:$0xf]
        %v10166 = vld [vmem:[#allocation4 + $0xfc] sm:$0xff]
        %v10167 = vld [vmem:[#allocation4 + $0x104] sm:$0xff]
        %v10168 = vld [vmem:[#allocation4 + $0x10c] sm:$0xff]
        %v10169 = vld [vmem:[#allocation4 + $0x114] sm:$0xff]
        %v10170 = vld [vmem:[#allocation4 + $0x11c] sm:$0xf]
        %v10171 = vld [vmem:[#allocation4 + $0x120] sm:$0xff]
        %v10172 = vld [vmem:[#allocation4 + $0x128] sm:$0xff]
        %v10173 = vld [vmem:[#allocation4 + $0x130] sm:$0xff]
        %v10174 = vld [vmem:[#allocation4 + $0x138] sm:$0xff]
        %v10175 = vld [vmem:[#allocation4 + $0x140] sm:$0xf]
        %v10176 = vld [vmem:[#allocation4 + $0x144] sm:$0xff]
        %v10177 = vld [vmem:[#allocation4 + $0x14c] sm:$0xff]
        %v10178 = vld [vmem:[#allocation4 + $0x154] sm:$0xff]
        %v10179 = vld [vmem:[#allocation4 + $0x15c] sm:$0xff]
        %v10180 = vld [vmem:[#allocation4 + $0x164] sm:$0xf]
        %v10181 = vld [vmem:[#allocation4 + $0x168] sm:$0xff]
        %v10182 = vld [vmem:[#allocation4 + $0x170] sm:$0xff]
        %v10183 = vld [vmem:[#allocation4 + $0x178] sm:$0xff]
        %v10184 = vld [vmem:[#allocation4 + $0x180] sm:$0xff]
        %v10185 = vld [vmem:[#allocation4 + $0x188] sm:$0xf]
        %v10186 = vld [vmem:[#allocation4 + $0x18c] sm:$0xff]
        %v10187 = vld [vmem:[#allocation4 + $0x194] sm:$0xff]
        %v10188 = vld [vmem:[#allocation4 + $0x19c] sm:$0xff]
        %v10189 = vld [vmem:[#allocation4 + $0x1a4] sm:$0xff]
        %v10190 = vld [vmem:[#allocation4 + $0x1ac] sm:$0xf]
        %v10191 = vld [vmem:[#allocation4 + $0x1b0] sm:$0xff]
        %v10192 = vld [vmem:[#allocation4 + $0x1b8] sm:$0xff]
        %v10193 = vld [vmem:[#allocation4 + $0x1c0] sm:$0xff]
        %v10194 = vld [vmem:[#allocation4 + $0x1c8] sm:$0xff]
        %v10195 = vld [vmem:[#allocation4 + $0x1d0] sm:$0xf]
        %v10196 = vld [vmem:[#allocation4 + $0x1d4] sm:$0xff]
        %v10197 = vld [vmem:[#allocation4 + $0x1dc] sm:$0xff]
        %v10198 = vld [vmem:[#allocation4 + $0x1e4] sm:$0xff]
        %v10199 = vld [vmem:[#allocation4 + $0x1ec] sm:$0xff]
        %v10200 = vld [vmem:[#allocation4 + $0x1f4] sm:$0xf]
        %v10201 = vld [vmem:[#allocation4 + $0x1f8] sm:$0xff]
        %v10202 = vld [vmem:[#allocation4 + $0x200] sm:$0xff]
        %v10203 = vld [vmem:[#allocation4 + $0x208] sm:$0xff]
        %v10204 = vld [vmem:[#allocation4 + $0x210] sm:$0xff]
        %v10205 = vld [vmem:[#allocation4 + $0x218] sm:$0xf]
        %v10206 = vld [vmem:[#allocation4 + $0x21c] sm:$0xff]
        %v10207 = vld [vmem:[#allocation4 + $0x224] sm:$0xff]
        %v10208 = vld [vmem:[#allocation4 + $0x22c] sm:$0xff]
        %v10209 = vld [vmem:[#allocation4 + $0x234] sm:$0xff]
        %v10210 = vld [vmem:[#allocation4 + $0x23c] sm:$0xf]
        %v10211 = vld [vmem:[#allocation4 + $0x240] sm:$0xff]
        %v10212 = vld [vmem:[#allocation4 + $0x248] sm:$0xff]
        %v10213 = vld [vmem:[#allocation4 + $0x250] sm:$0xff]
        %v10214 = vld [vmem:[#allocation4 + $0x258] sm:$0xff]
        %v10215 = vld [vmem:[#allocation4 + $0x260] sm:$0xf]
        %v10216 = vld [vmem:[#allocation4 + $0x264] sm:$0xff]
        %v10217 = vld [vmem:[#allocation4 + $0x26c] sm:$0xff]
        %v10218 = vld [vmem:[#allocation4 + $0x274] sm:$0xff]
        %v10219 = vld [vmem:[#allocation4 + $0x27c] sm:$0xff]
        %v10220 = vld [vmem:[#allocation4 + $0x284] sm:$0xf]
        %v10221 = vld [vmem:[#allocation4 + $0x288] sm:$0xff]
        %v10222 = vld [vmem:[#allocation4 + $0x290] sm:$0xff]
        %v10223 = vld [vmem:[#allocation4 + $0x298] sm:$0xff]
        %v10224 = vld [vmem:[#allocation4 + $0x2a0] sm:$0xff]
        %v10225 = vld [vmem:[#allocation4 + $0x2a8] sm:$0xf]
        %v10226 = vld [vmem:[#allocation4 + $0x2ac] sm:$0xff]
        %v10227 = vld [vmem:[#allocation4 + $0x2b4] sm:$0xff]
        %v10228 = vld [vmem:[#allocation4 + $0x2bc] sm:$0xff]
        %v10229 = vld [vmem:[#allocation4 + $0x2c4] sm:$0xff]
        %v10230 = vld [vmem:[#allocation4 + $0x2cc] sm:$0xf]
        %v10231 = vld [vmem:[#allocation4 + $0x2d0] sm:$0xff]
        %v10232 = vld [vmem:[#allocation4 + $0x2d8] sm:$0xff]
        %v10233 = vld [vmem:[#allocation4 + $0x2e0] sm:$0xff]
        %v10234 = vld [vmem:[#allocation4 + $0x2e8] sm:$0xff]
        %v10235 = vld [vmem:[#allocation4 + $0x2f0] sm:$0xf]
        %v10236 = vld [vmem:[#allocation4 + $0x2f4] sm:$0xff]
        %v10237 = vld [vmem:[#allocation4 + $0x2fc] sm:$0xff]
        %v10238 = vld [vmem:[#allocation4 + $0x304] sm:$0xff]
        %v10239 = vld [vmem:[#allocation4 + $0x30c] sm:$0xff]
        %v10240 = vld [vmem:[#allocation4 + $0x314] sm:$0xf]
        %v10241 = vld [vmem:[#allocation4 + $0x318] sm:$0xff]
        %v10242 = vld [vmem:[#allocation4 + $0x320] sm:$0xff]
        %v10243 = vld [vmem:[#allocation4 + $0x328] sm:$0xff]
        %v10244 = vld [vmem:[#allocation4 + $0x330] sm:$0xff]
        %v10245 = vld [vmem:[#allocation4 + $0x338] sm:$0xf]
        %v10246 = vld [vmem:[#allocation4 + $0x33c] sm:$0xff]
        %v10247 = vld [vmem:[#allocation4 + $0x344] sm:$0xff]
        %v10248 = vld [vmem:[#allocation4 + $0x34c] sm:$0xff]
        %v10249 = vld [vmem:[#allocation4 + $0x354] sm:$0xff]
        %v10250 = vld [vmem:[#allocation4 + $0x35c] sm:$0xf]
        %v10251 = vld [vmem:[#allocation4 + $0x360] sm:$0xff]
        %v10252 = vld [vmem:[#allocation4 + $0x368] sm:$0xff]
        %v10253 = vld [vmem:[#allocation4 + $0x370] sm:$0xff]
        %v10254 = vld [vmem:[#allocation4 + $0x378] sm:$0xff]
        %v10255 = vld [vmem:[#allocation4 + $0x380] sm:$0xf]
        %v10256 = vld [vmem:[#allocation4 + $0x384] sm:$0xff]
        %v10257 = vld [vmem:[#allocation4 + $0x38c] sm:$0xff]
        %v10258 = vld [vmem:[#allocation4 + $0x394] sm:$0xff]
        %v10259 = vld [vmem:[#allocation4 + $0x39c] sm:$0xff]
        %v10260 = vld [vmem:[#allocation4 + $0x3a4] sm:$0xf]
        %v10261 = vld [vmem:[#allocation4 + $0x3a8] sm:$0xff]
        %v10262 = vld [vmem:[#allocation4 + $0x3b0] sm:$0xff]
        %v10263 = vld [vmem:[#allocation4 + $0x3b8] sm:$0xff]
        %v10264 = vld [vmem:[#allocation4 + $0x3c0] sm:$0xff]
        %v10265 = vld [vmem:[#allocation4 + $0x3c8] sm:$0xf]
        %v10266 = vld [vmem:[#allocation4 + $0x3cc] sm:$0xff]
        %v10267 = vld [vmem:[#allocation4 + $0x3d4] sm:$0xff]
        %v10268 = vld [vmem:[#allocation4 + $0x3dc] sm:$0xff]
        %v10269 = vld [vmem:[#allocation4 + $0x3e4] sm:$0xff]
        %v10270 = vld [vmem:[#allocation4 + $0x3ec] sm:$0xf]
        %v10271 = vld [vmem:[#allocation4 + $0x3f0] sm:$0xff]
        %v10272 = vld [vmem:[#allocation4 + $0x3f8] sm:$0xff]
        %v10273 = vld [vmem:[#allocation4 + $0x400] sm:$0xff]
        %v10274 = vld [vmem:[#allocation4 + $0x408] sm:$0xff]
        %v10275 = vld [vmem:[#allocation4 + $0x410] sm:$0xf]
        %v10276 = vld [vmem:[#allocation4 + $0x414] sm:$0xff]
        %v10277 = vld [vmem:[#allocation4 + $0x41c] sm:$0xff]
        %v10278 = vld [vmem:[#allocation4 + $0x424] sm:$0xff]
        %v10279 = vld [vmem:[#allocation4 + $0x42c] sm:$0xff]
        %v10280 = vld [vmem:[#allocation4 + $0x434] sm:$0xf]
        %v10281 = vld [vmem:[#allocation4 + $0x438] sm:$0xff]
        %v10282 = vld [vmem:[#allocation4 + $0x440] sm:$0xff]
        %v10283 = vld [vmem:[#allocation4 + $0x448] sm:$0xff]
        %v10284 = vld [vmem:[#allocation4 + $0x450] sm:$0xff]
        %v10285 = vld [vmem:[#allocation4 + $0x458] sm:$0xf]
        %v10286 = vld [vmem:[#allocation4 + $0x45c] sm:$0xff]
        %v10287 = vld [vmem:[#allocation4 + $0x464] sm:$0xff]
        %v10288 = vld [vmem:[#allocation4 + $0x46c] sm:$0xff]
        %v10289 = vld [vmem:[#allocation4 + $0x474] sm:$0xff]
        %v10290 = vld [vmem:[#allocation4 + $0x47c] sm:$0xf]
        %v10291 = vld [vmem:[#allocation10] sm:$0xf]
        %v10292 = vld [vmem:[#allocation10 + $0x4] sm:$0xf]
        %v10293 = vld [vmem:[#allocation10 + $0x8] sm:$0xf]
        %v10294 = vld [vmem:[#allocation10 + $0xc] sm:$0xf]
        %v10295 = vld [vmem:[#allocation10 + $0x10] sm:$0xf]
        %v10296 = vld [vmem:[#allocation10 + $0x14] sm:$0xf]
        %v10297 = vld [vmem:[#allocation10 + $0x18] sm:$0xf]
        %v10298 = vld [vmem:[#allocation10 + $0x1c] sm:$0xf]
        %v10299 = vld [vmem:[#allocation10 + $0x20] sm:$0xf]
        %v10300 = vld [vmem:[#allocation10 + $0x24] sm:$0xf]
        %v10301 = vld [vmem:[#allocation10 + $0x28] sm:$0xf]
        %v10302 = vld [vmem:[#allocation10 + $0x2c] sm:$0xf]
        %v10303 = vld [vmem:[#allocation10 + $0x30] sm:$0xf]
        %v10304 = vld [vmem:[#allocation10 + $0x34] sm:$0xf]
        %v10305 = vld [vmem:[#allocation10 + $0x38] sm:$0xf]
        %v10306 = vld [vmem:[#allocation10 + $0x3c] sm:$0xf]
        %v10307 = vld [vmem:[#allocation10 + $0x40] sm:$0xf]
        %v10308 = vld [vmem:[#allocation10 + $0x44] sm:$0xf]
        %v10309 = vld [vmem:[#allocation10 + $0x48] sm:$0xf]
        %v10310 = vld [vmem:[#allocation10 + $0x4c] sm:$0xf]
        %v10311 = vld [vmem:[#allocation10 + $0x50] sm:$0xf]
        %v10312 = vld [vmem:[#allocation10 + $0x54] sm:$0xf]
        %v10313 = vld [vmem:[#allocation10 + $0x58] sm:$0xf]
        %v10314 = vld [vmem:[#allocation10 + $0x5c] sm:$0xf]
        %v10315 = vld [vmem:[#allocation10 + $0x60] sm:$0xf]
        %v10316 = vld [vmem:[#allocation10 + $0x64] sm:$0xf]
        %v10317 = vld [vmem:[#allocation10 + $0x68] sm:$0xf]
        %v10318 = vld [vmem:[#allocation10 + $0x6c] sm:$0xf]
        %v10319 = vld [vmem:[#allocation10 + $0x70] sm:$0xf]
        %v10320 = vld [vmem:[#allocation10 + $0x74] sm:$0xf]
        %v10321 = vld [vmem:[#allocation10 + $0x78] sm:$0xf]
        %v10322 = vld [vmem:[#allocation10 + $0x7c] sm:$0xf]
        %v10323 = vld [vmem:[#allocation10 + $0x80] sm:$0xf]
        %v10324 = vld [vmem:[#allocation10 + $0x84] sm:$0xf]
        %v10325 = vld [vmem:[#allocation10 + $0x88] sm:$0xf]
        %v10326 = vld [vmem:[#allocation10 + $0x8c] sm:$0xf]
        %v10327 = vld [vmem:[#allocation10 + $0x90] sm:$0xf]
        %v10328 = vld [vmem:[#allocation10 + $0x94] sm:$0xf]
        %v10329 = vld [vmem:[#allocation10 + $0x98] sm:$0xf]
        %v10330 = vld [vmem:[#allocation10 + $0x9c] sm:$0xf]
        %v10331 = vld [vmem:[#allocation10 + $0xa0] sm:$0xf]
        %v10332 = vld [vmem:[#allocation10 + $0xa4] sm:$0xf]
        %v10333 = vld [vmem:[#allocation10 + $0xa8] sm:$0xf]
        %v10334 = vld [vmem:[#allocation10 + $0xac] sm:$0xf]
        %v10335 = vld [vmem:[#allocation10 + $0xb0] sm:$0xf]
        %v10336 = vld [vmem:[#allocation10 + $0xb4] sm:$0xf]
        %v10337 = vld [vmem:[#allocation10 + $0xb8] sm:$0xf]
        %v10338 = vld [vmem:[#allocation10 + $0xbc] sm:$0xf]
        %v10339 = vld [vmem:[#allocation10 + $0xc0] sm:$0xf]
        %v10340 = vld [vmem:[#allocation10 + $0xc4] sm:$0xf]
        %v10341 = vld [vmem:[#allocation10 + $0xc8] sm:$0xf]
        %v10342 = vld [vmem:[#allocation10 + $0xcc] sm:$0xf]
        %v10343 = vld [vmem:[#allocation10 + $0xd0] sm:$0xf]
        %v10344 = vld [vmem:[#allocation10 + $0xd4] sm:$0xf]
        %v10345 = vld [vmem:[#allocation10 + $0xd8] sm:$0xf]
        %v10346 = vld [vmem:[#allocation10 + $0xdc] sm:$0xf]
        %v10347 = vld [vmem:[#allocation10 + $0xe0] sm:$0xf]
        %v10348 = vld [vmem:[#allocation10 + $0xe4] sm:$0xf]
        %v10349 = vld [vmem:[#allocation10 + $0xe8] sm:$0xf]
        %v10350 = vld [vmem:[#allocation10 + $0xec] sm:$0xf]
        %v10351 = vld [vmem:[#allocation10 + $0xf0] sm:$0xf]
        %v10352 = vld [vmem:[#allocation10 + $0xf4] sm:$0xf]
        %v10353 = vld [vmem:[#allocation10 + $0xf8] sm:$0xf]
        %v10354 = vld [vmem:[#allocation10 + $0xfc] sm:$0xf]
        %v10355 = vld [vmem:[#allocation10 + $0x100] sm:$0xf]
        %v10356 = vld [vmem:[#allocation10 + $0x104] sm:$0xf]
        %v10357 = vld [vmem:[#allocation10 + $0x108] sm:$0xf]
        %v10358 = vld [vmem:[#allocation10 + $0x10c] sm:$0xf]
        %v10359 = vld [vmem:[#allocation10 + $0x110] sm:$0xf]
        %v10360 = vld [vmem:[#allocation10 + $0x114] sm:$0xf]
        %v10361 = vld [vmem:[#allocation10 + $0x118] sm:$0xf]
        %v10362 = vld [vmem:[#allocation10 + $0x11c] sm:$0xf]
        %v10363 = vld [vmem:[#allocation10 + $0x120] sm:$0xf]
        %v10364 = vld [vmem:[#allocation10 + $0x124] sm:$0xf]
        %v10365 = vld [vmem:[#allocation10 + $0x128] sm:$0xf]
        %v10366 = vld [vmem:[#allocation10 + $0x12c] sm:$0xf]
        %v10367 = vld [vmem:[#allocation10 + $0x130] sm:$0xf]
        %v10368 = vld [vmem:[#allocation10 + $0x134] sm:$0xf]
        %v10369 = vld [vmem:[#allocation10 + $0x138] sm:$0xf]
        %v10370 = vld [vmem:[#allocation10 + $0x13c] sm:$0xf]
        %v10371 = vld [vmem:[#allocation10 + $0x140] sm:$0xf]
        %v10372 = vld [vmem:[#allocation10 + $0x144] sm:$0xf]
        %v10373 = vld [vmem:[#allocation10 + $0x148] sm:$0xf]
        %v10374 = vld [vmem:[#allocation10 + $0x14c] sm:$0xf]
        %v10375 = vld [vmem:[#allocation10 + $0x150] sm:$0xf]
        %v10376 = vld [vmem:[#allocation10 + $0x154] sm:$0xf]
        %v10377 = vld [vmem:[#allocation10 + $0x158] sm:$0xf]
        %v10378 = vld [vmem:[#allocation10 + $0x15c] sm:$0xf]
        %v10379 = vld [vmem:[#allocation10 + $0x160] sm:$0xf]
        %v10380 = vld [vmem:[#allocation10 + $0x164] sm:$0xf]
        %v10381 = vld [vmem:[#allocation10 + $0x168] sm:$0xf]
        %v10382 = vld [vmem:[#allocation10 + $0x16c] sm:$0xf]
        %v10383 = vld [vmem:[#allocation10 + $0x170] sm:$0xf]
        %v10384 = vld [vmem:[#allocation10 + $0x174] sm:$0xf]
        %v10385 = vld [vmem:[#allocation10 + $0x178] sm:$0xf]
        %v10386 = vld [vmem:[#allocation10 + $0x17c] sm:$0xf]
        %v10387 = vld [vmem:[#allocation10 + $0x180] sm:$0xf]
        %v10388 = vld [vmem:[#allocation10 + $0x184] sm:$0xf]
        %v10389 = vld [vmem:[#allocation10 + $0x188] sm:$0xf]
        %v10390 = vld [vmem:[#allocation10 + $0x18c] sm:$0xf]
        %v10391 = vld [vmem:[#allocation10 + $0x190] sm:$0xf]
        %v10392 = vld [vmem:[#allocation10 + $0x194] sm:$0xf]
        %v10393 = vld [vmem:[#allocation10 + $0x198] sm:$0xf]
        %v10394 = vld [vmem:[#allocation10 + $0x19c] sm:$0xf]
        %v10395 = vld [vmem:[#allocation10 + $0x1a0] sm:$0xf]
        %v10396 = vld [vmem:[#allocation10 + $0x1a4] sm:$0xf]
        %v10397 = vld [vmem:[#allocation10 + $0x1a8] sm:$0xf]
        %v10398 = vld [vmem:[#allocation10 + $0x1ac] sm:$0xf]
        %v10399 = vld [vmem:[#allocation10 + $0x1b0] sm:$0xf]
        %v10400 = vld [vmem:[#allocation10 + $0x1b4] sm:$0xf]
        %v10401 = vld [vmem:[#allocation10 + $0x1b8] sm:$0xf]
        %v10402 = vld [vmem:[#allocation10 + $0x1bc] sm:$0xf]
        %v10403 = vld [vmem:[#allocation10 + $0x1c0] sm:$0xf]
        %v10404 = vld [vmem:[#allocation10 + $0x1c4] sm:$0xf]
        %v10405 = vld [vmem:[#allocation10 + $0x1c8] sm:$0xf]
        %v10406 = vld [vmem:[#allocation10 + $0x1cc] sm:$0xf]
        %v10407 = vld [vmem:[#allocation10 + $0x1d0] sm:$0xf]
        %v10408 = vld [vmem:[#allocation10 + $0x1d4] sm:$0xf]
        %v10409 = vld [vmem:[#allocation10 + $0x1d8] sm:$0xf]
        %v10410 = vld [vmem:[#allocation10 + $0x1dc] sm:$0xf]
        %v10411 = vld [vmem:[#allocation10 + $0x1e0] sm:$0xf]
        %v10412 = vld [vmem:[#allocation10 + $0x1e4] sm:$0xf]
        %v10413 = vld [vmem:[#allocation10 + $0x1e8] sm:$0xf]
        %v10414 = vld [vmem:[#allocation10 + $0x1ec] sm:$0xf]
        %v10415 = vld [vmem:[#allocation10 + $0x1f0] sm:$0xf]
        %v10416 = vld [vmem:[#allocation10 + $0x1f4] sm:$0xf]
        %v10417 = vld [vmem:[#allocation10 + $0x1f8] sm:$0xf]
        %v10418 = vld [vmem:[#allocation10 + $0x1fc] sm:$0xf]
        %v10419 = vld [vmem:[#allocation10 + $0x200] sm:$0xf]
        %v10420 = vld [vmem:[#allocation10 + $0x204] sm:$0xf]
        %v10421 = vld [vmem:[#allocation10 + $0x208] sm:$0xf]
        %v10422 = vld [vmem:[#allocation10 + $0x20c] sm:$0xf]
        %v10423 = vld [vmem:[#allocation10 + $0x210] sm:$0xf]
        %v10424 = vld [vmem:[#allocation10 + $0x214] sm:$0xf]
        %v10425 = vld [vmem:[#allocation10 + $0x218] sm:$0xf]
        %v10426 = vld [vmem:[#allocation10 + $0x21c] sm:$0xf]
        %v10427 = vld [vmem:[#allocation10 + $0x220] sm:$0xf]
        %v10428 = vld [vmem:[#allocation10 + $0x224] sm:$0xf]
        %v10429 = vld [vmem:[#allocation10 + $0x228] sm:$0xf]
        %v10430 = vld [vmem:[#allocation10 + $0x22c] sm:$0xf]
        %v10431 = vld [vmem:[#allocation10 + $0x230] sm:$0xf]
        %v10432 = vld [vmem:[#allocation10 + $0x234] sm:$0xf]
        %v10433 = vld [vmem:[#allocation10 + $0x238] sm:$0xf]
        %v10434 = vld [vmem:[#allocation10 + $0x23c] sm:$0xf]
        %v10595 = vunpack.c.l.b16 %v10131
        %v10596 = vunpack.c.h.b16 %v10131
        %v10597 = vunpack.c.l.b16 %v10132
        %v10598 = vunpack.c.h.b16 %v10132
        %v10599 = vunpack.c.l.b16 %v10133
        %v10600 = vunpack.c.h.b16 %v10133
        %v10601 = vunpack.c.l.b16 %v10134
        %v10602 = vunpack.c.h.b16 %v10134
        %v10603 = vunpack.c.l.b16 %v10135
        %v10604 = vunpack.c.l.b16 %v10136
        %v10605 = vunpack.c.h.b16 %v10136
        %v10606 = vunpack.c.l.b16 %v10137
        %v10607 = vunpack.c.h.b16 %v10137
        %v10608 = vunpack.c.l.b16 %v10138
        %v10609 = vunpack.c.h.b16 %v10138
        %v10610 = vunpack.c.l.b16 %v10139
        %v10611 = vunpack.c.h.b16 %v10139
        %v10612 = vunpack.c.l.b16 %v10140
        %v10613 = vunpack.c.l.b16 %v10141
        %v10614 = vunpack.c.h.b16 %v10141
        %v10615 = vunpack.c.l.b16 %v10142
        %v10616 = vunpack.c.h.b16 %v10142
        %v10617 = vunpack.c.l.b16 %v10143
        %v10618 = vunpack.c.h.b16 %v10143
        %v10619 = vunpack.c.l.b16 %v10144
        %v10620 = vunpack.c.h.b16 %v10144
        %v10621 = vunpack.c.l.b16 %v10145
        %v10622 = vunpack.c.l.b16 %v10146
        %v10623 = vunpack.c.h.b16 %v10146
        %v10624 = vunpack.c.l.b16 %v10147
        %v10625 = vunpack.c.h.b16 %v10147
        %v10626 = vunpack.c.l.b16 %v10148
        %v10627 = vunpack.c.h.b16 %v10148
        %v10628 = vunpack.c.l.b16 %v10149
        %v10629 = vunpack.c.h.b16 %v10149
        %v10630 = vunpack.c.l.b16 %v10150
        %v10631 = vunpack.c.l.b16 %v10151
        %v10632 = vunpack.c.h.b16 %v10151
        %v10633 = vunpack.c.l.b16 %v10152
        %v10634 = vunpack.c.h.b16 %v10152
        %v10635 = vunpack.c.l.b16 %v10153
        %v10636 = vunpack.c.h.b16 %v10153
        %v10637 = vunpack.c.l.b16 %v10154
        %v10638 = vunpack.c.h.b16 %v10154
        %v10639 = vunpack.c.l.b16 %v10155
        %v10640 = vunpack.c.l.b16 %v10156
        %v10641 = vunpack.c.h.b16 %v10156
        %v10642 = vunpack.c.l.b16 %v10157
        %v10643 = vunpack.c.h.b16 %v10157
        %v10644 = vunpack.c.l.b16 %v10158
        %v10645 = vunpack.c.h.b16 %v10158
        %v10646 = vunpack.c.l.b16 %v10159
        %v10647 = vunpack.c.h.b16 %v10159
        %v10648 = vunpack.c.l.b16 %v10160
        %v10649 = vunpack.c.l.b16 %v10161
        %v10650 = vunpack.c.h.b16 %v10161
        %v10651 = vunpack.c.l.b16 %v10162
        %v10652 = vunpack.c.h.b16 %v10162
        %v10653 = vunpack.c.l.b16 %v10163
        %v10654 = vunpack.c.h.b16 %v10163
        %v10655 = vunpack.c.l.b16 %v10164
        %v10656 = vunpack.c.h.b16 %v10164
        %v10657 = vunpack.c.l.b16 %v10165
        %v10658 = vunpack.c.l.b16 %v10166
        %v10659 = vunpack.c.h.b16 %v10166
        %v10660 = vunpack.c.l.b16 %v10167
        %v10661 = vunpack.c.h.b16 %v10167
        %v10662 = vunpack.c.l.b16 %v10168
        %v10663 = vunpack.c.h.b16 %v10168
        %v10664 = vunpack.c.l.b16 %v10169
        %v10665 = vunpack.c.h.b16 %v10169
        %v10666 = vunpack.c.l.b16 %v10170
        %v10667 = vunpack.c.l.b16 %v10171
        %v10668 = vunpack.c.h.b16 %v10171
        %v10669 = vunpack.c.l.b16 %v10172
        %v10670 = vunpack.c.h.b16 %v10172
        %v10671 = vunpack.c.l.b16 %v10173
        %v10672 = vunpack.c.h.b16 %v10173
        %v10673 = vunpack.c.l.b16 %v10174
        %v10674 = vunpack.c.h.b16 %v10174
        %v10675 = vunpack.c.l.b16 %v10175
        %v10676 = vunpack.c.l.b16 %v10176
        %v10677 = vunpack.c.h.b16 %v10176
        %v10678 = vunpack.c.l.b16 %v10177
        %v10679 = vunpack.c.h.b16 %v10177
        %v10680 = vunpack.c.l.b16 %v10178
        %v10681 = vunpack.c.h.b16 %v10178
        %v10682 = vunpack.c.l.b16 %v10179
        %v10683 = vunpack.c.h.b16 %v10179
        %v10684 = vunpack.c.l.b16 %v10180
        %v10685 = vunpack.c.l.b16 %v10181
        %v10686 = vunpack.c.h.b16 %v10181
        %v10687 = vunpack.c.l.b16 %v10182
        %v10688 = vunpack.c.h.b16 %v10182
        %v10689 = vunpack.c.l.b16 %v10183
        %v10690 = vunpack.c.h.b16 %v10183
        %v10691 = vunpack.c.l.b16 %v10184
        %v10692 = vunpack.c.h.b16 %v10184
        %v10693 = vunpack.c.l.b16 %v10185
        %v10694 = vunpack.c.l.b16 %v10186
        %v10695 = vunpack.c.h.b16 %v10186
        %v10696 = vunpack.c.l.b16 %v10187
        %v10697 = vunpack.c.h.b16 %v10187
        %v10698 = vunpack.c.l.b16 %v10188
        %v10699 = vunpack.c.h.b16 %v10188
        %v10700 = vunpack.c.l.b16 %v10189
        %v10701 = vunpack.c.h.b16 %v10189
        %v10702 = vunpack.c.l.b16 %v10190
        %v10703 = vunpack.c.l.b16 %v10191
        %v10704 = vunpack.c.h.b16 %v10191
        %v10705 = vunpack.c.l.b16 %v10192
        %v10706 = vunpack.c.h.b16 %v10192
        %v10707 = vunpack.c.l.b16 %v10193
        %v10708 = vunpack.c.h.b16 %v10193
        %v10709 = vunpack.c.l.b16 %v10194
        %v10710 = vunpack.c.h.b16 %v10194
        %v10711 = vunpack.c.l.b16 %v10195
        %v10712 = vunpack.c.l.b16 %v10196
        %v10713 = vunpack.c.h.b16 %v10196
        %v10714 = vunpack.c.l.b16 %v10197
        %v10715 = vunpack.c.h.b16 %v10197
        %v10716 = vunpack.c.l.b16 %v10198
        %v10717 = vunpack.c.h.b16 %v10198
        %v10718 = vunpack.c.l.b16 %v10199
        %v10719 = vunpack.c.h.b16 %v10199
        %v10720 = vunpack.c.l.b16 %v10200
        %v10721 = vunpack.c.l.b16 %v10201
        %v10722 = vunpack.c.h.b16 %v10201
        %v10723 = vunpack.c.l.b16 %v10202
        %v10724 = vunpack.c.h.b16 %v10202
        %v10725 = vunpack.c.l.b16 %v10203
        %v10726 = vunpack.c.h.b16 %v10203
        %v10727 = vunpack.c.l.b16 %v10204
        %v10728 = vunpack.c.h.b16 %v10204
        %v10729 = vunpack.c.l.b16 %v10205
        %v10730 = vunpack.c.l.b16 %v10206
        %v10731 = vunpack.c.h.b16 %v10206
        %v10732 = vunpack.c.l.b16 %v10207
        %v10733 = vunpack.c.h.b16 %v10207
        %v10734 = vunpack.c.l.b16 %v10208
        %v10735 = vunpack.c.h.b16 %v10208
        %v10736 = vunpack.c.l.b16 %v10209
        %v10737 = vunpack.c.h.b16 %v10209
        %v10738 = vunpack.c.l.b16 %v10210
        %v10739 = vunpack.c.l.b16 %v10211
        %v10740 = vunpack.c.h.b16 %v10211
        %v10741 = vunpack.c.l.b16 %v10212
        %v10742 = vunpack.c.h.b16 %v10212
        %v10743 = vunpack.c.l.b16 %v10213
        %v10744 = vunpack.c.h.b16 %v10213
        %v10745 = vunpack.c.l.b16 %v10214
        %v10746 = vunpack.c.h.b16 %v10214
        %v10747 = vunpack.c.l.b16 %v10215
        %v10748 = vunpack.c.l.b16 %v10216
        %v10749 = vunpack.c.h.b16 %v10216
        %v10750 = vunpack.c.l.b16 %v10217
        %v10751 = vunpack.c.h.b16 %v10217
        %v10752 = vunpack.c.l.b16 %v10218
        %v10753 = vunpack.c.h.b16 %v10218
        %v10754 = vunpack.c.l.b16 %v10219
        %v10755 = vunpack.c.h.b16 %v10219
        %v10756 = vunpack.c.l.b16 %v10220
        %v10757 = vunpack.c.l.b16 %v10221
        %v10758 = vunpack.c.h.b16 %v10221
        %v10759 = vunpack.c.l.b16 %v10222
        %v10760 = vunpack.c.h.b16 %v10222
        %v10761 = vunpack.c.l.b16 %v10223
        %v10762 = vunpack.c.h.b16 %v10223
        %v10763 = vunpack.c.l.b16 %v10224
        %v10764 = vunpack.c.h.b16 %v10224
        %v10765 = vunpack.c.l.b16 %v10225
        %v10766 = vunpack.c.l.b16 %v10226
        %v10767 = vunpack.c.h.b16 %v10226
        %v10768 = vunpack.c.l.b16 %v10227
        %v10769 = vunpack.c.h.b16 %v10227
        %v10770 = vunpack.c.l.b16 %v10228
        %v10771 = vunpack.c.h.b16 %v10228
        %v10772 = vunpack.c.l.b16 %v10229
        %v10773 = vunpack.c.h.b16 %v10229
        %v10774 = vunpack.c.l.b16 %v10230
        %v10775 = vunpack.c.l.b16 %v10231
        %v10776 = vunpack.c.h.b16 %v10231
        %v10777 = vunpack.c.l.b16 %v10232
        %v10778 = vunpack.c.h.b16 %v10232
        %v10779 = vunpack.c.l.b16 %v10233
        %v10780 = vunpack.c.h.b16 %v10233
        %v10781 = vunpack.c.l.b16 %v10234
        %v10782 = vunpack.c.h.b16 %v10234
        %v10783 = vunpack.c.l.b16 %v10235
        %v10784 = vunpack.c.l.b16 %v10236
        %v10785 = vunpack.c.h.b16 %v10236
        %v10786 = vunpack.c.l.b16 %v10237
        %v10787 = vunpack.c.h.b16 %v10237
        %v10788 = vunpack.c.l.b16 %v10238
        %v10789 = vunpack.c.h.b16 %v10238
        %v10790 = vunpack.c.l.b16 %v10239
        %v10791 = vunpack.c.h.b16 %v10239
        %v10792 = vunpack.c.l.b16 %v10240
        %v10793 = vunpack.c.l.b16 %v10241
        %v10794 = vunpack.c.h.b16 %v10241
        %v10795 = vunpack.c.l.b16 %v10242
        %v10796 = vunpack.c.h.b16 %v10242
        %v10797 = vunpack.c.l.b16 %v10243
        %v10798 = vunpack.c.h.b16 %v10243
        %v10799 = vunpack.c.l.b16 %v10244
        %v10800 = vunpack.c.h.b16 %v10244
        %v10801 = vunpack.c.l.b16 %v10245
        %v10802 = vunpack.c.l.b16 %v10246
        %v10803 = vunpack.c.h.b16 %v10246
        %v10804 = vunpack.c.l.b16 %v10247
        %v10805 = vunpack.c.h.b16 %v10247
        %v10806 = vunpack.c.l.b16 %v10248
        %v10807 = vunpack.c.h.b16 %v10248
        %v10808 = vunpack.c.l.b16 %v10249
        %v10809 = vunpack.c.h.b16 %v10249
        %v10810 = vunpack.c.l.b16 %v10250
        %v10811 = vunpack.c.l.b16 %v10251
        %v10812 = vunpack.c.h.b16 %v10251
        %v10813 = vunpack.c.l.b16 %v10252
        %v10814 = vunpack.c.h.b16 %v10252
        %v10815 = vunpack.c.l.b16 %v10253
        %v10816 = vunpack.c.h.b16 %v10253
        %v10817 = vunpack.c.l.b16 %v10254
        %v10818 = vunpack.c.h.b16 %v10254
        %v10819 = vunpack.c.l.b16 %v10255
        %v10820 = vunpack.c.l.b16 %v10256
        %v10821 = vunpack.c.h.b16 %v10256
        %v10822 = vunpack.c.l.b16 %v10257
        %v10823 = vunpack.c.h.b16 %v10257
        %v10824 = vunpack.c.l.b16 %v10258
        %v10825 = vunpack.c.h.b16 %v10258
        %v10826 = vunpack.c.l.b16 %v10259
        %v10827 = vunpack.c.h.b16 %v10259
        %v10828 = vunpack.c.l.b16 %v10260
        %v10829 = vunpack.c.l.b16 %v10261
        %v10830 = vunpack.c.h.b16 %v10261
        %v10831 = vunpack.c.l.b16 %v10262
        %v10832 = vunpack.c.h.b16 %v10262
        %v10833 = vunpack.c.l.b16 %v10263
        %v10834 = vunpack.c.h.b16 %v10263
        %v10835 = vunpack.c.l.b16 %v10264
        %v10836 = vunpack.c.h.b16 %v10264
        %v10837 = vunpack.c.l.b16 %v10265
        %v10838 = vunpack.c.l.b16 %v10266
        %v10839 = vunpack.c.h.b16 %v10266
        %v10840 = vunpack.c.l.b16 %v10267
        %v10841 = vunpack.c.h.b16 %v10267
        %v10842 = vunpack.c.l.b16 %v10268
        %v10843 = vunpack.c.h.b16 %v10268
        %v10844 = vunpack.c.l.b16 %v10269
        %v10845 = vunpack.c.h.b16 %v10269
        %v10846 = vunpack.c.l.b16 %v10270
        %v10847 = vunpack.c.l.b16 %v10271
        %v10848 = vunpack.c.h.b16 %v10271
        %v10849 = vunpack.c.l.b16 %v10272
        %v10850 = vunpack.c.h.b16 %v10272
        %v10851 = vunpack.c.l.b16 %v10273
        %v10852 = vunpack.c.h.b16 %v10273
        %v10853 = vunpack.c.l.b16 %v10274
        %v10854 = vunpack.c.h.b16 %v10274
        %v10855 = vunpack.c.l.b16 %v10275
        %v10856 = vunpack.c.l.b16 %v10276
        %v10857 = vunpack.c.h.b16 %v10276
        %v10858 = vunpack.c.l.b16 %v10277
        %v10859 = vunpack.c.h.b16 %v10277
        %v10860 = vunpack.c.l.b16 %v10278
        %v10861 = vunpack.c.h.b16 %v10278
        %v10862 = vunpack.c.l.b16 %v10279
        %v10863 = vunpack.c.h.b16 %v10279
        %v10864 = vunpack.c.l.b16 %v10280
        %v10865 = vunpack.c.l.b16 %v10281
        %v10866 = vunpack.c.h.b16 %v10281
        %v10867 = vunpack.c.l.b16 %v10282
        %v10868 = vunpack.c.h.b16 %v10282
        %v10869 = vunpack.c.l.b16 %v10283
        %v10870 = vunpack.c.h.b16 %v10283
        %v10871 = vunpack.c.l.b16 %v10284
        %v10872 = vunpack.c.h.b16 %v10284
        %v10873 = vunpack.c.l.b16 %v10285
        %v10874 = vunpack.c.l.b16 %v10286
        %v10875 = vunpack.c.h.b16 %v10286
        %v10876 = vunpack.c.l.b16 %v10287
        %v10877 = vunpack.c.h.b16 %v10287
        %v10878 = vunpack.c.l.b16 %v10288
        %v10879 = vunpack.c.h.b16 %v10288
        %v10880 = vunpack.c.l.b16 %v10289
        %v10881 = vunpack.c.h.b16 %v10289
        %v10882 = vunpack.c.l.b16 %v10290
        %v10883 = vpack.c.b16 %v10604, %v10595
        %v10884 = vpack.c.b16 %v10605, %v10596
        %v10885 = vpack.c.b16 %v10606, %v10597
        %v10886 = vpack.c.b16 %v10607, %v10598
        %v10887 = vpack.c.b16 %v10608, %v10599
        %v10888 = vpack.c.b16 %v10609, %v10600
        %v10889 = vpack.c.b16 %v10610, %v10601
        %v10890 = vpack.c.b16 %v10611, %v10602
        %v10891 = vpack.c.b16 %v10612, %v10603
        %v10892 = vpack.c.b16 %v10622, %v10613
        %v10893 = vpack.c.b16 %v10623, %v10614
        %v10894 = vpack.c.b16 %v10624, %v10615
        %v10895 = vpack.c.b16 %v10625, %v10616
        %v10896 = vpack.c.b16 %v10626, %v10617
        %v10897 = vpack.c.b16 %v10627, %v10618
        %v10898 = vpack.c.b16 %v10628, %v10619
        %v10899 = vpack.c.b16 %v10629, %v10620
        %v10900 = vpack.c.b16 %v10630, %v10621
        %v10901 = vpack.c.b16 %v10640, %v10631
        %v10902 = vpack.c.b16 %v10641, %v10632
        %v10903 = vpack.c.b16 %v10642, %v10633
        %v10904 = vpack.c.b16 %v10643, %v10634
        %v10905 = vpack.c.b16 %v10644, %v10635
        %v10906 = vpack.c.b16 %v10645, %v10636
        %v10907 = vpack.c.b16 %v10646, %v10637
        %v10908 = vpack.c.b16 %v10647, %v10638
        %v10909 = vpack.c.b16 %v10648, %v10639
        %v10910 = vpack.c.b16 %v10658, %v10649
        %v10911 = vpack.c.b16 %v10659, %v10650
        %v10912 = vpack.c.b16 %v10660, %v10651
        %v10913 = vpack.c.b16 %v10661, %v10652
        %v10914 = vpack.c.b16 %v10662, %v10653
        %v10915 = vpack.c.b16 %v10663, %v10654
        %v10916 = vpack.c.b16 %v10664, %v10655
        %v10917 = vpack.c.b16 %v10665, %v10656
        %v10918 = vpack.c.b16 %v10666, %v10657
        %v10919 = vpack.c.b16 %v10676, %v10667
        %v10920 = vpack.c.b16 %v10677, %v10668
        %v10921 = vpack.c.b16 %v10678, %v10669
        %v10922 = vpack.c.b16 %v10679, %v10670
        %v10923 = vpack.c.b16 %v10680, %v10671
        %v10924 = vpack.c.b16 %v10681, %v10672
        %v10925 = vpack.c.b16 %v10682, %v10673
        %v10926 = vpack.c.b16 %v10683, %v10674
        %v10927 = vpack.c.b16 %v10684, %v10675
        %v10928 = vpack.c.b16 %v10694, %v10685
        %v10929 = vpack.c.b16 %v10695, %v10686
        %v10930 = vpack.c.b16 %v10696, %v10687
        %v10931 = vpack.c.b16 %v10697, %v10688
        %v10932 = vpack.c.b16 %v10698, %v10689
        %v10933 = vpack.c.b16 %v10699, %v10690
        %v10934 = vpack.c.b16 %v10700, %v10691
        %v10935 = vpack.c.b16 %v10701, %v10692
        %v10936 = vpack.c.b16 %v10702, %v10693
        %v10937 = vpack.c.b16 %v10712, %v10703
        %v10938 = vpack.c.b16 %v10713, %v10704
        %v10939 = vpack.c.b16 %v10714, %v10705
        %v10940 = vpack.c.b16 %v10715, %v10706
        %v10941 = vpack.c.b16 %v10716, %v10707
        %v10942 = vpack.c.b16 %v10717, %v10708
        %v10943 = vpack.c.b16 %v10718, %v10709
        %v10944 = vpack.c.b16 %v10719, %v10710
        %v10945 = vpack.c.b16 %v10720, %v10711
        %v10946 = vpack.c.b16 %v10730, %v10721
        %v10947 = vpack.c.b16 %v10731, %v10722
        %v10948 = vpack.c.b16 %v10732, %v10723
        %v10949 = vpack.c.b16 %v10733, %v10724
        %v10950 = vpack.c.b16 %v10734, %v10725
        %v10951 = vpack.c.b16 %v10735, %v10726
        %v10952 = vpack.c.b16 %v10736, %v10727
        %v10953 = vpack.c.b16 %v10737, %v10728
        %v10954 = vpack.c.b16 %v10738, %v10729
        %v10955 = vpack.c.b16 %v10748, %v10739
        %v10956 = vpack.c.b16 %v10749, %v10740
        %v10957 = vpack.c.b16 %v10750, %v10741
        %v10958 = vpack.c.b16 %v10751, %v10742
        %v10959 = vpack.c.b16 %v10752, %v10743
        %v10960 = vpack.c.b16 %v10753, %v10744
        %v10961 = vpack.c.b16 %v10754, %v10745
        %v10962 = vpack.c.b16 %v10755, %v10746
        %v10963 = vpack.c.b16 %v10756, %v10747
        %v10964 = vpack.c.b16 %v10766, %v10757
        %v10965 = vpack.c.b16 %v10767, %v10758
        %v10966 = vpack.c.b16 %v10768, %v10759
        %v10967 = vpack.c.b16 %v10769, %v10760
        %v10968 = vpack.c.b16 %v10770, %v10761
        %v10969 = vpack.c.b16 %v10771, %v10762
        %v10970 = vpack.c.b16 %v10772, %v10763
        %v10971 = vpack.c.b16 %v10773, %v10764
        %v10972 = vpack.c.b16 %v10774, %v10765
        %v10973 = vpack.c.b16 %v10784, %v10775
        %v10974 = vpack.c.b16 %v10785, %v10776
        %v10975 = vpack.c.b16 %v10786, %v10777
        %v10976 = vpack.c.b16 %v10787, %v10778
        %v10977 = vpack.c.b16 %v10788, %v10779
        %v10978 = vpack.c.b16 %v10789, %v10780
        %v10979 = vpack.c.b16 %v10790, %v10781
        %v10980 = vpack.c.b16 %v10791, %v10782
        %v10981 = vpack.c.b16 %v10792, %v10783
        %v10982 = vpack.c.b16 %v10802, %v10793
        %v10983 = vpack.c.b16 %v10803, %v10794
        %v10984 = vpack.c.b16 %v10804, %v10795
        %v10985 = vpack.c.b16 %v10805, %v10796
        %v10986 = vpack.c.b16 %v10806, %v10797
        %v10987 = vpack.c.b16 %v10807, %v10798
        %v10988 = vpack.c.b16 %v10808, %v10799
        %v10989 = vpack.c.b16 %v10809, %v10800
        %v10990 = vpack.c.b16 %v10810, %v10801
        %v10991 = vpack.c.b16 %v10820, %v10811
        %v10992 = vpack.c.b16 %v10821, %v10812
        %v10993 = vpack.c.b16 %v10822, %v10813
        %v10994 = vpack.c.b16 %v10823, %v10814
        %v10995 = vpack.c.b16 %v10824, %v10815
        %v10996 = vpack.c.b16 %v10825, %v10816
        %v10997 = vpack.c.b16 %v10826, %v10817
        %v10998 = vpack.c.b16 %v10827, %v10818
        %v10999 = vpack.c.b16 %v10828, %v10819
        %v11000 = vpack.c.b16 %v10838, %v10829
        %v11001 = vpack.c.b16 %v10839, %v10830
        %v11002 = vpack.c.b16 %v10840, %v10831
        %v11003 = vpack.c.b16 %v10841, %v10832
        %v11004 = vpack.c.b16 %v10842, %v10833
        %v11005 = vpack.c.b16 %v10843, %v10834
        %v11006 = vpack.c.b16 %v10844, %v10835
        %v11007 = vpack.c.b16 %v10845, %v10836
        %v11008 = vpack.c.b16 %v10846, %v10837
        %v11009 = vpack.c.b16 %v10856, %v10847
        %v11010 = vpack.c.b16 %v10857, %v10848
        %v11011 = vpack.c.b16 %v10858, %v10849
        %v11012 = vpack.c.b16 %v10859, %v10850
        %v11013 = vpack.c.b16 %v10860, %v10851
        %v11014 = vpack.c.b16 %v10861, %v10852
        %v11015 = vpack.c.b16 %v10862, %v10853
        %v11016 = vpack.c.b16 %v10863, %v10854
        %v11017 = vpack.c.b16 %v10864, %v10855
        %v11018 = vpack.c.b16 %v10874, %v10865
        %v11019 = vpack.c.b16 %v10875, %v10866
        %v11020 = vpack.c.b16 %v10876, %v10867
        %v11021 = vpack.c.b16 %v10877, %v10868
        %v11022 = vpack.c.b16 %v10878, %v10869
        %v11023 = vpack.c.b16 %v10879, %v10870
        %v11024 = vpack.c.b16 %v10880, %v10871
        %v11025 = vpack.c.b16 %v10881, %v10872
        %v11026 = vpack.c.b16 %v10882, %v10873
        %v11315 = vunpack.c.l.b16 %v10291
        %v11316 = vunpack.c.l.b16 %v10292
        %v11317 = vunpack.c.l.b16 %v10293
        %v11318 = vunpack.c.l.b16 %v10294
        %v11319 = vunpack.c.l.b16 %v10295
        %v11320 = vunpack.c.l.b16 %v10296
        %v11321 = vunpack.c.l.b16 %v10297
        %v11322 = vunpack.c.l.b16 %v10298
        %v11323 = vunpack.c.l.b16 %v10299
        %v11324 = vunpack.c.l.b16 %v10300
        %v11325 = vunpack.c.l.b16 %v10301
        %v11326 = vunpack.c.l.b16 %v10302
        %v11327 = vunpack.c.l.b16 %v10303
        %v11328 = vunpack.c.l.b16 %v10304
        %v11329 = vunpack.c.l.b16 %v10305
        %v11330 = vunpack.c.l.b16 %v10306
        %v11331 = vunpack.c.l.b16 %v10307
        %v11332 = vunpack.c.l.b16 %v10308
        %v11333 = vunpack.c.l.b16 %v10309
        %v11334 = vunpack.c.l.b16 %v10310
        %v11335 = vunpack.c.l.b16 %v10311
        %v11336 = vunpack.c.l.b16 %v10312
        %v11337 = vunpack.c.l.b16 %v10313
        %v11338 = vunpack.c.l.b16 %v10314
        %v11339 = vunpack.c.l.b16 %v10315
        %v11340 = vunpack.c.l.b16 %v10316
        %v11341 = vunpack.c.l.b16 %v10317
        %v11342 = vunpack.c.l.b16 %v10318
        %v11343 = vunpack.c.l.b16 %v10319
        %v11344 = vunpack.c.l.b16 %v10320
        %v11345 = vunpack.c.l.b16 %v10321
        %v11346 = vunpack.c.l.b16 %v10322
        %v11347 = vunpack.c.l.b16 %v10323
        %v11348 = vunpack.c.l.b16 %v10324
        %v11349 = vunpack.c.l.b16 %v10325
        %v11350 = vunpack.c.l.b16 %v10326
        %v11351 = vunpack.c.l.b16 %v10327
        %v11352 = vunpack.c.l.b16 %v10328
        %v11353 = vunpack.c.l.b16 %v10329
        %v11354 = vunpack.c.l.b16 %v10330
        %v11355 = vunpack.c.l.b16 %v10331
        %v11356 = vunpack.c.l.b16 %v10332
        %v11357 = vunpack.c.l.b16 %v10333
        %v11358 = vunpack.c.l.b16 %v10334
        %v11359 = vunpack.c.l.b16 %v10335
        %v11360 = vunpack.c.l.b16 %v10336
        %v11361 = vunpack.c.l.b16 %v10337
        %v11362 = vunpack.c.l.b16 %v10338
        %v11363 = vunpack.c.l.b16 %v10339
        %v11364 = vunpack.c.l.b16 %v10340
        %v11365 = vunpack.c.l.b16 %v10341
        %v11366 = vunpack.c.l.b16 %v10342
        %v11367 = vunpack.c.l.b16 %v10343
        %v11368 = vunpack.c.l.b16 %v10344
        %v11369 = vunpack.c.l.b16 %v10345
        %v11370 = vunpack.c.l.b16 %v10346
        %v11371 = vunpack.c.l.b16 %v10347
        %v11372 = vunpack.c.l.b16 %v10348
        %v11373 = vunpack.c.l.b16 %v10349
        %v11374 = vunpack.c.l.b16 %v10350
        %v11375 = vunpack.c.l.b16 %v10351
        %v11376 = vunpack.c.l.b16 %v10352
        %v11377 = vunpack.c.l.b16 %v10353
        %v11378 = vunpack.c.l.b16 %v10354
        %v11379 = vunpack.c.l.b16 %v10355
        %v11380 = vunpack.c.l.b16 %v10356
        %v11381 = vunpack.c.l.b16 %v10357
        %v11382 = vunpack.c.l.b16 %v10358
        %v11383 = vunpack.c.l.b16 %v10359
        %v11384 = vunpack.c.l.b16 %v10360
        %v11385 = vunpack.c.l.b16 %v10361
        %v11386 = vunpack.c.l.b16 %v10362
        %v11387 = vunpack.c.l.b16 %v10363
        %v11388 = vunpack.c.l.b16 %v10364
        %v11389 = vunpack.c.l.b16 %v10365
        %v11390 = vunpack.c.l.b16 %v10366
        %v11391 = vunpack.c.l.b16 %v10367
        %v11392 = vunpack.c.l.b16 %v10368
        %v11393 = vunpack.c.l.b16 %v10369
        %v11394 = vunpack.c.l.b16 %v10370
        %v11395 = vunpack.c.l.b16 %v10371
        %v11396 = vunpack.c.l.b16 %v10372
        %v11397 = vunpack.c.l.b16 %v10373
        %v11398 = vunpack.c.l.b16 %v10374
        %v11399 = vunpack.c.l.b16 %v10375
        %v11400 = vunpack.c.l.b16 %v10376
        %v11401 = vunpack.c.l.b16 %v10377
        %v11402 = vunpack.c.l.b16 %v10378
        %v11403 = vunpack.c.l.b16 %v10379
        %v11404 = vunpack.c.l.b16 %v10380
        %v11405 = vunpack.c.l.b16 %v10381
        %v11406 = vunpack.c.l.b16 %v10382
        %v11407 = vunpack.c.l.b16 %v10383
        %v11408 = vunpack.c.l.b16 %v10384
        %v11409 = vunpack.c.l.b16 %v10385
        %v11410 = vunpack.c.l.b16 %v10386
        %v11411 = vunpack.c.l.b16 %v10387
        %v11412 = vunpack.c.l.b16 %v10388
        %v11413 = vunpack.c.l.b16 %v10389
        %v11414 = vunpack.c.l.b16 %v10390
        %v11415 = vunpack.c.l.b16 %v10391
        %v11416 = vunpack.c.l.b16 %v10392
        %v11417 = vunpack.c.l.b16 %v10393
        %v11418 = vunpack.c.l.b16 %v10394
        %v11419 = vunpack.c.l.b16 %v10395
        %v11420 = vunpack.c.l.b16 %v10396
        %v11421 = vunpack.c.l.b16 %v10397
        %v11422 = vunpack.c.l.b16 %v10398
        %v11423 = vunpack.c.l.b16 %v10399
        %v11424 = vunpack.c.l.b16 %v10400
        %v11425 = vunpack.c.l.b16 %v10401
        %v11426 = vunpack.c.l.b16 %v10402
        %v11427 = vunpack.c.l.b16 %v10403
        %v11428 = vunpack.c.l.b16 %v10404
        %v11429 = vunpack.c.l.b16 %v10405
        %v11430 = vunpack.c.l.b16 %v10406
        %v11431 = vunpack.c.l.b16 %v10407
        %v11432 = vunpack.c.l.b16 %v10408
        %v11433 = vunpack.c.l.b16 %v10409
        %v11434 = vunpack.c.l.b16 %v10410
        %v11435 = vunpack.c.l.b16 %v10411
        %v11436 = vunpack.c.l.b16 %v10412
        %v11437 = vunpack.c.l.b16 %v10413
        %v11438 = vunpack.c.l.b16 %v10414
        %v11439 = vunpack.c.l.b16 %v10415
        %v11440 = vunpack.c.l.b16 %v10416
        %v11441 = vunpack.c.l.b16 %v10417
        %v11442 = vunpack.c.l.b16 %v10418
        %v11443 = vunpack.c.l.b16 %v10419
        %v11444 = vunpack.c.l.b16 %v10420
        %v11445 = vunpack.c.l.b16 %v10421
        %v11446 = vunpack.c.l.b16 %v10422
        %v11447 = vunpack.c.l.b16 %v10423
        %v11448 = vunpack.c.l.b16 %v10424
        %v11449 = vunpack.c.l.b16 %v10425
        %v11450 = vunpack.c.l.b16 %v10426
        %v11451 = vunpack.c.l.b16 %v10427
        %v11452 = vunpack.c.l.b16 %v10428
        %v11453 = vunpack.c.l.b16 %v10429
        %v11454 = vunpack.c.l.b16 %v10430
        %v11455 = vunpack.c.l.b16 %v10431
        %v11456 = vunpack.c.l.b16 %v10432
        %v11457 = vunpack.c.l.b16 %v10433
        %v11458 = vunpack.c.l.b16 %v10434
        %v11459 = vpack.c.b16 %v11316, %v11315
        %v11460 = vpack.c.b16 %v11318, %v11317
        %v11461 = vpack.c.b16 %v11320, %v11319
        %v11462 = vpack.c.b16 %v11322, %v11321
        %v11463 = vpack.c.b16 %v11324, %v11323
        %v11464 = vpack.c.b16 %v11326, %v11325
        %v11465 = vpack.c.b16 %v11328, %v11327
        %v11466 = vpack.c.b16 %v11330, %v11329
        %v11467 = vpack.c.b16 %v11332, %v11331
        %v11468 = vpack.c.b16 %v11334, %v11333
        %v11469 = vpack.c.b16 %v11336, %v11335
        %v11470 = vpack.c.b16 %v11338, %v11337
        %v11471 = vpack.c.b16 %v11340, %v11339
        %v11472 = vpack.c.b16 %v11342, %v11341
        %v11473 = vpack.c.b16 %v11344, %v11343
        %v11474 = vpack.c.b16 %v11346, %v11345
        %v11475 = vpack.c.b16 %v11348, %v11347
        %v11476 = vpack.c.b16 %v11350, %v11349
        %v11477 = vpack.c.b16 %v11352, %v11351
        %v11478 = vpack.c.b16 %v11354, %v11353
        %v11479 = vpack.c.b16 %v11356, %v11355
        %v11480 = vpack.c.b16 %v11358, %v11357
        %v11481 = vpack.c.b16 %v11360, %v11359
        %v11482 = vpack.c.b16 %v11362, %v11361
        %v11483 = vpack.c.b16 %v11364, %v11363
        %v11484 = vpack.c.b16 %v11366, %v11365
        %v11485 = vpack.c.b16 %v11368, %v11367
        %v11486 = vpack.c.b16 %v11370, %v11369
        %v11487 = vpack.c.b16 %v11372, %v11371
        %v11488 = vpack.c.b16 %v11374, %v11373
        %v11489 = vpack.c.b16 %v11376, %v11375
        %v11490 = vpack.c.b16 %v11378, %v11377
        %v11491 = vpack.c.b16 %v11380, %v11379
        %v11492 = vpack.c.b16 %v11382, %v11381
        %v11493 = vpack.c.b16 %v11384, %v11383
        %v11494 = vpack.c.b16 %v11386, %v11385
        %v11495 = vpack.c.b16 %v11388, %v11387
        %v11496 = vpack.c.b16 %v11390, %v11389
        %v11497 = vpack.c.b16 %v11392, %v11391
        %v11498 = vpack.c.b16 %v11394, %v11393
        %v11499 = vpack.c.b16 %v11396, %v11395
        %v11500 = vpack.c.b16 %v11398, %v11397
        %v11501 = vpack.c.b16 %v11400, %v11399
        %v11502 = vpack.c.b16 %v11402, %v11401
        %v11503 = vpack.c.b16 %v11404, %v11403
        %v11504 = vpack.c.b16 %v11406, %v11405
        %v11505 = vpack.c.b16 %v11408, %v11407
        %v11506 = vpack.c.b16 %v11410, %v11409
        %v11507 = vpack.c.b16 %v11412, %v11411
        %v11508 = vpack.c.b16 %v11414, %v11413
        %v11509 = vpack.c.b16 %v11416, %v11415
        %v11510 = vpack.c.b16 %v11418, %v11417
        %v11511 = vpack.c.b16 %v11420, %v11419
        %v11512 = vpack.c.b16 %v11422, %v11421
        %v11513 = vpack.c.b16 %v11424, %v11423
        %v11514 = vpack.c.b16 %v11426, %v11425
        %v11515 = vpack.c.b16 %v11428, %v11427
        %v11516 = vpack.c.b16 %v11430, %v11429
        %v11517 = vpack.c.b16 %v11432, %v11431
        %v11518 = vpack.c.b16 %v11434, %v11433
        %v11519 = vpack.c.b16 %v11436, %v11435
        %v11520 = vpack.c.b16 %v11438, %v11437
        %v11521 = vpack.c.b16 %v11440, %v11439
        %v11522 = vpack.c.b16 %v11442, %v11441
        %v11523 = vpack.c.b16 %v11444, %v11443
        %v11524 = vpack.c.b16 %v11446, %v11445
        %v11525 = vpack.c.b16 %v11448, %v11447
        %v11526 = vpack.c.b16 %v11450, %v11449
        %v11527 = vpack.c.b16 %v11452, %v11451
        %v11528 = vpack.c.b16 %v11454, %v11453
        %v11529 = vpack.c.b16 %v11456, %v11455
        %v11530 = vpack.c.b16 %v11458, %v11457
        %11603 = vmatprep.subr.bf16.mxu0 0
        %11604 = vmatpush1.bf16.msra.mxu0 %v11466
        %11605 = vmatprep.subr.bf16.mxu0 0
        %11606 = vmatpush1.bf16.msra.mxu0 %v11465
        %11607 = vmatprep.subr.bf16.mxu0 0
        %11608 = vmatpush1.bf16.msra.mxu0 %v11464
        %11609 = vmatprep.subr.bf16.mxu0 0
        %11610 = vmatpush1.bf16.msra.mxu0 %v11463
        %11611 = vmatprep.subr.bf16.mxu0 0
        %11612 = vmatpush1.bf16.msra.mxu0 %v11462
        %11613 = vmatprep.subr.bf16.mxu0 0
        %11614 = vmatpush1.bf16.msra.mxu0 %v11461
        %11615 = vmatprep.subr.bf16.mxu0 0
        %11616 = vmatpush1.bf16.msra.mxu0 %v11460
        %11617 = vmatprep.subr.bf16.mxu0 0
        %11618 = vmatpush1.bf16.msra.mxu0 %v11459
        %11619 = vmatprep.subr.bf16.mxu0 0
        %11620 = vmatpush2.bf16.msra.mxu0 %v11474
        %11621 = vmatprep.subr.bf16.mxu0 0
        %11622 = vmatpush2.bf16.msra.mxu0 %v11473
        %11623 = vmatprep.subr.bf16.mxu0 0
        %11624 = vmatpush2.bf16.msra.mxu0 %v11472
        %11625 = vmatprep.subr.bf16.mxu0 0
        %11626 = vmatpush2.bf16.msra.mxu0 %v11471
        %11627 = vmatprep.subr.bf16.mxu0 0
        %11628 = vmatpush2.bf16.msra.mxu0 %v11470
        %11629 = vmatprep.subr.bf16.mxu0 0
        %11630 = vmatpush2.bf16.msra.mxu0 %v11469
        %11631 = vmatprep.subr.bf16.mxu0 0
        %11632 = vmatpush2.bf16.msra.mxu0 %v11468
        %11633 = vmatprep.subr.bf16.mxu0 0
        %11634 = vmatpush2.bf16.msra.mxu0 %v11467
        %11635 = vmatprep.mubr.bf16.mxu0 %v10884
        %11636 = vmatmul.mubr.bf16.gmra.mxu0 %v10883
        %v11637 = vpop.f32.mrf.mxu0
        %v11638 = vadd.f32 0.0, %v11637
        %v11639 = vpop.f32.mrf.mxu0
        %v11640 = vpop.f32.mrf.mxu0
        %v11641 = vadd.f32 0.0, %v11640
        %v11642 = vpop.f32.mrf.mxu0
        %11643 = vmatprep.mubr.bf16.mxu0 %v10893
        %11644 = vmatmul.mubr.bf16.gmra.mxu0 %v10892
        %v11645 = vpop.f32.mrf.mxu0
        %v11646 = vadd.f32 0.0, %v11645
        %v11647 = vpop.f32.mrf.mxu0
        %v11648 = vpop.f32.mrf.mxu0
        %v11649 = vadd.f32 0.0, %v11648
        %v11650 = vpop.f32.mrf.mxu0
        %11651 = vmatprep.mubr.bf16.mxu0 %v10902
        %11652 = vmatmul.mubr.bf16.gmra.mxu0 %v10901
        %v11653 = vpop.f32.mrf.mxu0
        %v11654 = vadd.f32 0.0, %v11653
        %v11655 = vpop.f32.mrf.mxu0
        %v11656 = vpop.f32.mrf.mxu0
        %v11657 = vadd.f32 0.0, %v11656
        %v11658 = vpop.f32.mrf.mxu0
        %11659 = vmatprep.mubr.bf16.mxu0 %v10911
        %11660 = vmatmul.mubr.bf16.gmra.mxu0 %v10910
        %v11661 = vpop.f32.mrf.mxu0
        %v11662 = vadd.f32 0.0, %v11661
        %v11663 = vpop.f32.mrf.mxu0
        %v11664 = vpop.f32.mrf.mxu0
        %v11665 = vadd.f32 0.0, %v11664
        %v11666 = vpop.f32.mrf.mxu0
        %11667 = vmatprep.mubr.bf16.mxu0 %v10920
        %11668 = vmatmul.mubr.bf16.gmra.mxu0 %v10919
        %v11669 = vpop.f32.mrf.mxu0
        %v11670 = vadd.f32 0.0, %v11669
        %v11671 = vpop.f32.mrf.mxu0
        %v11672 = vpop.f32.mrf.mxu0
        %v11673 = vadd.f32 0.0, %v11672
        %v11674 = vpop.f32.mrf.mxu0
        %11675 = vmatprep.mubr.bf16.mxu0 %v10929
        %11676 = vmatmul.mubr.bf16.gmra.mxu0 %v10928
        %v11677 = vpop.f32.mrf.mxu0
        %v11678 = vadd.f32 0.0, %v11677
        %v11679 = vpop.f32.mrf.mxu0
        %v11680 = vpop.f32.mrf.mxu0
        %v11681 = vadd.f32 0.0, %v11680
        %v11682 = vpop.f32.mrf.mxu0
        %11683 = vmatprep.mubr.bf16.mxu0 %v10938
        %11684 = vmatmul.mubr.bf16.gmra.mxu0 %v10937
        %v11685 = vpop.f32.mrf.mxu0
        %v11686 = vadd.f32 0.0, %v11685
        %v11687 = vpop.f32.mrf.mxu0
        %v11688 = vpop.f32.mrf.mxu0
        %v11689 = vadd.f32 0.0, %v11688
        %v11690 = vpop.f32.mrf.mxu0
        %11691 = vmatprep.mubr.bf16.mxu0 %v10947
        %11692 = vmatmul.mubr.bf16.gmra.mxu0 %v10946
        %v11693 = vpop.f32.mrf.mxu0
        %v11694 = vadd.f32 0.0, %v11693
        %v11695 = vpop.f32.mrf.mxu0
        %v11696 = vpop.f32.mrf.mxu0
        %v11697 = vadd.f32 0.0, %v11696
        %v11698 = vpop.f32.mrf.mxu0
        %11699 = vmatprep.mubr.bf16.mxu0 %v10956
        %11700 = vmatmul.mubr.bf16.gmra.mxu0 %v10955
        %v11701 = vpop.f32.mrf.mxu0
        %v11702 = vadd.f32 0.0, %v11701
        %v11703 = vpop.f32.mrf.mxu0
        %v11704 = vpop.f32.mrf.mxu0
        %v11705 = vadd.f32 0.0, %v11704
        %v11706 = vpop.f32.mrf.mxu0
        %11707 = vmatprep.mubr.bf16.mxu0 %v10965
        %11708 = vmatmul.mubr.bf16.gmra.mxu0 %v10964
        %v11709 = vpop.f32.mrf.mxu0
        %v11710 = vadd.f32 0.0, %v11709
        %v11711 = vpop.f32.mrf.mxu0
        %v11712 = vpop.f32.mrf.mxu0
        %v11713 = vadd.f32 0.0, %v11712
        %v11714 = vpop.f32.mrf.mxu0
        %11715 = vmatprep.mubr.bf16.mxu0 %v10974
        %11716 = vmatmul.mubr.bf16.gmra.mxu0 %v10973
        %v11717 = vpop.f32.mrf.mxu0
        %v11718 = vadd.f32 0.0, %v11717
        %v11719 = vpop.f32.mrf.mxu0
        %v11720 = vpop.f32.mrf.mxu0
        %v11721 = vadd.f32 0.0, %v11720
        %v11722 = vpop.f32.mrf.mxu0
        %11723 = vmatprep.mubr.bf16.mxu0 %v10983
        %11724 = vmatmul.mubr.bf16.gmra.mxu0 %v10982
        %v11725 = vpop.f32.mrf.mxu0
        %v11726 = vadd.f32 0.0, %v11725
        %v11727 = vpop.f32.mrf.mxu0
        %v11728 = vpop.f32.mrf.mxu0
        %v11729 = vadd.f32 0.0, %v11728
        %v11730 = vpop.f32.mrf.mxu0
        %11731 = vmatprep.mubr.bf16.mxu0 %v10992
        %11732 = vmatmul.mubr.bf16.gmra.mxu0 %v10991
        %v11733 = vpop.f32.mrf.mxu0
        %v11734 = vadd.f32 0.0, %v11733
        %v11735 = vpop.f32.mrf.mxu0
        %v11736 = vpop.f32.mrf.mxu0
        %v11737 = vadd.f32 0.0, %v11736
        %v11738 = vpop.f32.mrf.mxu0
        %11739 = vmatprep.mubr.bf16.mxu0 %v11001
        %11740 = vmatmul.mubr.bf16.gmra.mxu0 %v11000
        %v11741 = vpop.f32.mrf.mxu0
        %v11742 = vadd.f32 0.0, %v11741
        %v11743 = vpop.f32.mrf.mxu0
        %v11744 = vpop.f32.mrf.mxu0
        %v11745 = vadd.f32 0.0, %v11744
        %v11746 = vpop.f32.mrf.mxu0
        %11747 = vmatprep.mubr.bf16.mxu0 %v11010
        %11748 = vmatmul.mubr.bf16.gmra.mxu0 %v11009
        %v11749 = vpop.f32.mrf.mxu0
        %v11750 = vadd.f32 0.0, %v11749
        %v11751 = vpop.f32.mrf.mxu0
        %v11752 = vpop.f32.mrf.mxu0
        %v11753 = vadd.f32 0.0, %v11752
        %v11754 = vpop.f32.mrf.mxu0
        %11755 = vmatprep.mubr.bf16.mxu0 %v11019
        %11756 = vmatmul.mubr.bf16.gmra.mxu0 %v11018
        %v11757 = vpop.f32.mrf.mxu0
        %v11758 = vadd.f32 0.0, %v11757
        %v11759 = vpop.f32.mrf.mxu0
        %v11760 = vpop.f32.mrf.mxu0
        %v11761 = vadd.f32 0.0, %v11760
        %v11762 = vpop.f32.mrf.mxu0
        %11763 = vdwg.mxu0
        %11764 = vmatprep.subr.bf16.mxu0 0
        %11765 = vmatpush1.bf16.msra.mxu0 %v11482
        %11766 = vmatprep.subr.bf16.mxu0 0
        %11767 = vmatpush1.bf16.msra.mxu0 %v11481
        %11768 = vmatprep.subr.bf16.mxu0 0
        %11769 = vmatpush1.bf16.msra.mxu0 %v11480
        %11770 = vmatprep.subr.bf16.mxu0 0
        %11771 = vmatpush1.bf16.msra.mxu0 %v11479
        %11772 = vmatprep.subr.bf16.mxu0 0
        %11773 = vmatpush1.bf16.msra.mxu0 %v11478
        %11774 = vmatprep.subr.bf16.mxu0 0
        %11775 = vmatpush1.bf16.msra.mxu0 %v11477
        %11776 = vmatprep.subr.bf16.mxu0 0
        %11777 = vmatpush1.bf16.msra.mxu0 %v11476
        %11778 = vmatprep.subr.bf16.mxu0 0
        %11779 = vmatpush1.bf16.msra.mxu0 %v11475
        %11780 = vmatprep.subr.bf16.mxu0 0
        %11781 = vmatpush2.bf16.msra.mxu0 %v11490
        %11782 = vmatprep.subr.bf16.mxu0 0
        %11783 = vmatpush2.bf16.msra.mxu0 %v11489
        %11784 = vmatprep.subr.bf16.mxu0 0
        %11785 = vmatpush2.bf16.msra.mxu0 %v11488
        %11786 = vmatprep.subr.bf16.mxu0 0
        %11787 = vmatpush2.bf16.msra.mxu0 %v11487
        %11788 = vmatprep.subr.bf16.mxu0 0
        %11789 = vmatpush2.bf16.msra.mxu0 %v11486
        %11790 = vmatprep.subr.bf16.mxu0 0
        %11791 = vmatpush2.bf16.msra.mxu0 %v11485
        %11792 = vmatprep.subr.bf16.mxu0 0
        %11793 = vmatpush2.bf16.msra.mxu0 %v11484
        %11794 = vmatprep.subr.bf16.mxu0 0
        %11795 = vmatpush2.bf16.msra.mxu0 %v11483
        %11796 = vmatprep.mubr.bf16.mxu0 %v10886
        %11797 = vmatmul.mubr.bf16.gmra.mxu0 %v10885
        %v11798 = vpop.f32.mrf.mxu0
        %v11799 = vadd.f32 %v11638, %v11798
        %v11800 = vpop.f32.mrf.mxu0
        %v11801 = vpop.f32.mrf.mxu0
        %v11802 = vadd.f32 %v11641, %v11801
        %v11803 = vpop.f32.mrf.mxu0
        %11804 = vmatprep.mubr.bf16.mxu0 %v10895
        %11805 = vmatmul.mubr.bf16.gmra.mxu0 %v10894
        %v11806 = vpop.f32.mrf.mxu0
        %v11807 = vadd.f32 %v11646, %v11806
        %v11808 = vpop.f32.mrf.mxu0
        %v11809 = vpop.f32.mrf.mxu0
        %v11810 = vadd.f32 %v11649, %v11809
        %v11811 = vpop.f32.mrf.mxu0
        %11812 = vmatprep.mubr.bf16.mxu0 %v10904
        %11813 = vmatmul.mubr.bf16.gmra.mxu0 %v10903
        %v11814 = vpop.f32.mrf.mxu0
        %v11815 = vadd.f32 %v11654, %v11814
        %v11816 = vpop.f32.mrf.mxu0
        %v11817 = vpop.f32.mrf.mxu0
        %v11818 = vadd.f32 %v11657, %v11817
        %v11819 = vpop.f32.mrf.mxu0
        %11820 = vmatprep.mubr.bf16.mxu0 %v10913
        %11821 = vmatmul.mubr.bf16.gmra.mxu0 %v10912
        %v11822 = vpop.f32.mrf.mxu0
        %v11823 = vadd.f32 %v11662, %v11822
        %v11824 = vpop.f32.mrf.mxu0
        %v11825 = vpop.f32.mrf.mxu0
        %v11826 = vadd.f32 %v11665, %v11825
        %v11827 = vpop.f32.mrf.mxu0
        %11828 = vmatprep.mubr.bf16.mxu0 %v10922
        %11829 = vmatmul.mubr.bf16.gmra.mxu0 %v10921
        %v11830 = vpop.f32.mrf.mxu0
        %v11831 = vadd.f32 %v11670, %v11830
        %v11832 = vpop.f32.mrf.mxu0
        %v11833 = vpop.f32.mrf.mxu0
        %v11834 = vadd.f32 %v11673, %v11833
        %v11835 = vpop.f32.mrf.mxu0
        %11836 = vmatprep.mubr.bf16.mxu0 %v10931
        %11837 = vmatmul.mubr.bf16.gmra.mxu0 %v10930
        %v11838 = vpop.f32.mrf.mxu0
        %v11839 = vadd.f32 %v11678, %v11838
        %v11840 = vpop.f32.mrf.mxu0
        %v11841 = vpop.f32.mrf.mxu0
        %v11842 = vadd.f32 %v11681, %v11841
        %v11843 = vpop.f32.mrf.mxu0
        %11844 = vmatprep.mubr.bf16.mxu0 %v10940
        %11845 = vmatmul.mubr.bf16.gmra.mxu0 %v10939
        %v11846 = vpop.f32.mrf.mxu0
        %v11847 = vadd.f32 %v11686, %v11846
        %v11848 = vpop.f32.mrf.mxu0
        %v11849 = vpop.f32.mrf.mxu0
        %v11850 = vadd.f32 %v11689, %v11849
        %v11851 = vpop.f32.mrf.mxu0
        %11852 = vmatprep.mubr.bf16.mxu0 %v10949
        %11853 = vmatmul.mubr.bf16.gmra.mxu0 %v10948
        %v11854 = vpop.f32.mrf.mxu0
        %v11855 = vadd.f32 %v11694, %v11854
        %v11856 = vpop.f32.mrf.mxu0
        %v11857 = vpop.f32.mrf.mxu0
        %v11858 = vadd.f32 %v11697, %v11857
        %v11859 = vpop.f32.mrf.mxu0
        %11860 = vmatprep.mubr.bf16.mxu0 %v10958
        %11861 = vmatmul.mubr.bf16.gmra.mxu0 %v10957
        %v11862 = vpop.f32.mrf.mxu0
        %v11863 = vadd.f32 %v11702, %v11862
        %v11864 = vpop.f32.mrf.mxu0
        %v11865 = vpop.f32.mrf.mxu0
        %v11866 = vadd.f32 %v11705, %v11865
        %v11867 = vpop.f32.mrf.mxu0
        %11868 = vmatprep.mubr.bf16.mxu0 %v10967
        %11869 = vmatmul.mubr.bf16.gmra.mxu0 %v10966
        %v11870 = vpop.f32.mrf.mxu0
        %v11871 = vadd.f32 %v11710, %v11870
        %v11872 = vpop.f32.mrf.mxu0
        %v11873 = vpop.f32.mrf.mxu0
        %v11874 = vadd.f32 %v11713, %v11873
        %v11875 = vpop.f32.mrf.mxu0
        %11876 = vmatprep.mubr.bf16.mxu0 %v10976
        %11877 = vmatmul.mubr.bf16.gmra.mxu0 %v10975
        %v11878 = vpop.f32.mrf.mxu0
        %v11879 = vadd.f32 %v11718, %v11878
        %v11880 = vpop.f32.mrf.mxu0
        %v11881 = vpop.f32.mrf.mxu0
        %v11882 = vadd.f32 %v11721, %v11881
        %v11883 = vpop.f32.mrf.mxu0
        %11884 = vmatprep.mubr.bf16.mxu0 %v10985
        %11885 = vmatmul.mubr.bf16.gmra.mxu0 %v10984
        %v11886 = vpop.f32.mrf.mxu0
        %v11887 = vadd.f32 %v11726, %v11886
        %v11888 = vpop.f32.mrf.mxu0
        %v11889 = vpop.f32.mrf.mxu0
        %v11890 = vadd.f32 %v11729, %v11889
        %v11891 = vpop.f32.mrf.mxu0
        %11892 = vmatprep.mubr.bf16.mxu0 %v10994
        %11893 = vmatmul.mubr.bf16.gmra.mxu0 %v10993
        %v11894 = vpop.f32.mrf.mxu0
        %v11895 = vadd.f32 %v11734, %v11894
        %v11896 = vpop.f32.mrf.mxu0
        %v11897 = vpop.f32.mrf.mxu0
        %v11898 = vadd.f32 %v11737, %v11897
        %v11899 = vpop.f32.mrf.mxu0
        %11900 = vmatprep.mubr.bf16.mxu0 %v11003
        %11901 = vmatmul.mubr.bf16.gmra.mxu0 %v11002
        %v11902 = vpop.f32.mrf.mxu0
        %v11903 = vadd.f32 %v11742, %v11902
        %v11904 = vpop.f32.mrf.mxu0
        %v11905 = vpop.f32.mrf.mxu0
        %v11906 = vadd.f32 %v11745, %v11905
        %v11907 = vpop.f32.mrf.mxu0
        %11908 = vmatprep.mubr.bf16.mxu0 %v11012
        %11909 = vmatmul.mubr.bf16.gmra.mxu0 %v11011
        %v11910 = vpop.f32.mrf.mxu0
        %v11911 = vadd.f32 %v11750, %v11910
        %v11912 = vpop.f32.mrf.mxu0
        %v11913 = vpop.f32.mrf.mxu0
        %v11914 = vadd.f32 %v11753, %v11913
        %v11915 = vpop.f32.mrf.mxu0
        %11916 = vmatprep.mubr.bf16.mxu0 %v11021
        %11917 = vmatmul.mubr.bf16.gmra.mxu0 %v11020
        %v11918 = vpop.f32.mrf.mxu0
        %v11919 = vadd.f32 %v11758, %v11918
        %v11920 = vpop.f32.mrf.mxu0
        %v11921 = vpop.f32.mrf.mxu0
        %v11922 = vadd.f32 %v11761, %v11921
        %v11923 = vpop.f32.mrf.mxu0
        %11924 = vdwg.mxu0
        %11925 = vmatprep.subr.bf16.mxu0 0
        %11926 = vmatpush1.bf16.msra.mxu0 %v11498
        %11927 = vmatprep.subr.bf16.mxu0 0
        %11928 = vmatpush1.bf16.msra.mxu0 %v11497
        %11929 = vmatprep.subr.bf16.mxu0 0
        %11930 = vmatpush1.bf16.msra.mxu0 %v11496
        %11931 = vmatprep.subr.bf16.mxu0 0
        %11932 = vmatpush1.bf16.msra.mxu0 %v11495
        %11933 = vmatprep.subr.bf16.mxu0 0
        %11934 = vmatpush1.bf16.msra.mxu0 %v11494
        %11935 = vmatprep.subr.bf16.mxu0 0
        %11936 = vmatpush1.bf16.msra.mxu0 %v11493
        %11937 = vmatprep.subr.bf16.mxu0 0
        %11938 = vmatpush1.bf16.msra.mxu0 %v11492
        %11939 = vmatprep.subr.bf16.mxu0 0
        %11940 = vmatpush1.bf16.msra.mxu0 %v11491
        %11941 = vmatprep.subr.bf16.mxu0 0
        %11942 = vmatpush2.bf16.msra.mxu0 %v11506
        %11943 = vmatprep.subr.bf16.mxu0 0
        %11944 = vmatpush2.bf16.msra.mxu0 %v11505
        %11945 = vmatprep.subr.bf16.mxu0 0
        %11946 = vmatpush2.bf16.msra.mxu0 %v11504
        %11947 = vmatprep.subr.bf16.mxu0 0
        %11948 = vmatpush2.bf16.msra.mxu0 %v11503
        %11949 = vmatprep.subr.bf16.mxu0 0
        %11950 = vmatpush2.bf16.msra.mxu0 %v11502
        %11951 = vmatprep.subr.bf16.mxu0 0
        %11952 = vmatpush2.bf16.msra.mxu0 %v11501
        %11953 = vmatprep.subr.bf16.mxu0 0
        %11954 = vmatpush2.bf16.msra.mxu0 %v11500
        %11955 = vmatprep.subr.bf16.mxu0 0
        %11956 = vmatpush2.bf16.msra.mxu0 %v11499
        %11957 = vmatprep.mubr.bf16.mxu0 %v10888
        %11958 = vmatmul.mubr.bf16.gmra.mxu0 %v10887
        %v11959 = vpop.f32.mrf.mxu0
        %v11960 = vadd.f32 %v11799, %v11959
        %v11961 = vpop.f32.mrf.mxu0
        %v11962 = vpop.f32.mrf.mxu0
        %v11963 = vadd.f32 %v11802, %v11962
        %v11964 = vpop.f32.mrf.mxu0
        %11965 = vmatprep.mubr.bf16.mxu0 %v10897
        %11966 = vmatmul.mubr.bf16.gmra.mxu0 %v10896
        %v11967 = vpop.f32.mrf.mxu0
        %v11968 = vadd.f32 %v11807, %v11967
        %v11969 = vpop.f32.mrf.mxu0
        %v11970 = vpop.f32.mrf.mxu0
        %v11971 = vadd.f32 %v11810, %v11970
        %v11972 = vpop.f32.mrf.mxu0
        %11973 = vmatprep.mubr.bf16.mxu0 %v10906
        %11974 = vmatmul.mubr.bf16.gmra.mxu0 %v10905
        %v11975 = vpop.f32.mrf.mxu0
        %v11976 = vadd.f32 %v11815, %v11975
        %v11977 = vpop.f32.mrf.mxu0
        %v11978 = vpop.f32.mrf.mxu0
        %v11979 = vadd.f32 %v11818, %v11978
        %v11980 = vpop.f32.mrf.mxu0
        %11981 = vmatprep.mubr.bf16.mxu0 %v10915
        %11982 = vmatmul.mubr.bf16.gmra.mxu0 %v10914
        %v11983 = vpop.f32.mrf.mxu0
        %v11984 = vadd.f32 %v11823, %v11983
        %v11985 = vpop.f32.mrf.mxu0
        %v11986 = vpop.f32.mrf.mxu0
        %v11987 = vadd.f32 %v11826, %v11986
        %v11988 = vpop.f32.mrf.mxu0
        %11989 = vmatprep.mubr.bf16.mxu0 %v10924
        %11990 = vmatmul.mubr.bf16.gmra.mxu0 %v10923
        %v11991 = vpop.f32.mrf.mxu0
        %v11992 = vadd.f32 %v11831, %v11991
        %v11993 = vpop.f32.mrf.mxu0
        %v11994 = vpop.f32.mrf.mxu0
        %v11995 = vadd.f32 %v11834, %v11994
        %v11996 = vpop.f32.mrf.mxu0
        %11997 = vmatprep.mubr.bf16.mxu0 %v10933
        %11998 = vmatmul.mubr.bf16.gmra.mxu0 %v10932
        %v11999 = vpop.f32.mrf.mxu0
        %v12000 = vadd.f32 %v11839, %v11999
        %v12001 = vpop.f32.mrf.mxu0
        %v12002 = vpop.f32.mrf.mxu0
        %v12003 = vadd.f32 %v11842, %v12002
        %v12004 = vpop.f32.mrf.mxu0
        %12005 = vmatprep.mubr.bf16.mxu0 %v10942
        %12006 = vmatmul.mubr.bf16.gmra.mxu0 %v10941
        %v12007 = vpop.f32.mrf.mxu0
        %v12008 = vadd.f32 %v11847, %v12007
        %v12009 = vpop.f32.mrf.mxu0
        %v12010 = vpop.f32.mrf.mxu0
        %v12011 = vadd.f32 %v11850, %v12010
        %v12012 = vpop.f32.mrf.mxu0
        %12013 = vmatprep.mubr.bf16.mxu0 %v10951
        %12014 = vmatmul.mubr.bf16.gmra.mxu0 %v10950
        %v12015 = vpop.f32.mrf.mxu0
        %v12016 = vadd.f32 %v11855, %v12015
        %v12017 = vpop.f32.mrf.mxu0
        %v12018 = vpop.f32.mrf.mxu0
        %v12019 = vadd.f32 %v11858, %v12018
        %v12020 = vpop.f32.mrf.mxu0
        %12021 = vmatprep.mubr.bf16.mxu0 %v10960
        %12022 = vmatmul.mubr.bf16.gmra.mxu0 %v10959
        %v12023 = vpop.f32.mrf.mxu0
        %v12024 = vadd.f32 %v11863, %v12023
        %v12025 = vpop.f32.mrf.mxu0
        %v12026 = vpop.f32.mrf.mxu0
        %v12027 = vadd.f32 %v11866, %v12026
        %v12028 = vpop.f32.mrf.mxu0
        %12029 = vmatprep.mubr.bf16.mxu0 %v10969
        %12030 = vmatmul.mubr.bf16.gmra.mxu0 %v10968
        %v12031 = vpop.f32.mrf.mxu0
        %v12032 = vadd.f32 %v11871, %v12031
        %v12033 = vpop.f32.mrf.mxu0
        %v12034 = vpop.f32.mrf.mxu0
        %v12035 = vadd.f32 %v11874, %v12034
        %v12036 = vpop.f32.mrf.mxu0
        %12037 = vmatprep.mubr.bf16.mxu0 %v10978
        %12038 = vmatmul.mubr.bf16.gmra.mxu0 %v10977
        %v12039 = vpop.f32.mrf.mxu0
        %v12040 = vadd.f32 %v11879, %v12039
        %v12041 = vpop.f32.mrf.mxu0
        %v12042 = vpop.f32.mrf.mxu0
        %v12043 = vadd.f32 %v11882, %v12042
        %v12044 = vpop.f32.mrf.mxu0
        %12045 = vmatprep.mubr.bf16.mxu0 %v10987
        %12046 = vmatmul.mubr.bf16.gmra.mxu0 %v10986
        %v12047 = vpop.f32.mrf.mxu0
        %v12048 = vadd.f32 %v11887, %v12047
        %v12049 = vpop.f32.mrf.mxu0
        %v12050 = vpop.f32.mrf.mxu0
        %v12051 = vadd.f32 %v11890, %v12050
        %v12052 = vpop.f32.mrf.mxu0
        %12053 = vmatprep.mubr.bf16.mxu0 %v10996
        %12054 = vmatmul.mubr.bf16.gmra.mxu0 %v10995
        %v12055 = vpop.f32.mrf.mxu0
        %v12056 = vadd.f32 %v11895, %v12055
        %v12057 = vpop.f32.mrf.mxu0
        %v12058 = vpop.f32.mrf.mxu0
        %v12059 = vadd.f32 %v11898, %v12058
        %v12060 = vpop.f32.mrf.mxu0
        %12061 = vmatprep.mubr.bf16.mxu0 %v11005
        %12062 = vmatmul.mubr.bf16.gmra.mxu0 %v11004
        %v12063 = vpop.f32.mrf.mxu0
        %v12064 = vadd.f32 %v11903, %v12063
        %v12065 = vpop.f32.mrf.mxu0
        %v12066 = vpop.f32.mrf.mxu0
        %v12067 = vadd.f32 %v11906, %v12066
        %v12068 = vpop.f32.mrf.mxu0
        %12069 = vmatprep.mubr.bf16.mxu0 %v11014
        %12070 = vmatmul.mubr.bf16.gmra.mxu0 %v11013
        %v12071 = vpop.f32.mrf.mxu0
        %v12072 = vadd.f32 %v11911, %v12071
        %v12073 = vpop.f32.mrf.mxu0
        %v12074 = vpop.f32.mrf.mxu0
        %v12075 = vadd.f32 %v11914, %v12074
        %v12076 = vpop.f32.mrf.mxu0
        %12077 = vmatprep.mubr.bf16.mxu0 %v11023
        %12078 = vmatmul.mubr.bf16.gmra.mxu0 %v11022
        %v12079 = vpop.f32.mrf.mxu0
        %v12080 = vadd.f32 %v11919, %v12079
        %v12081 = vpop.f32.mrf.mxu0
        %v12082 = vpop.f32.mrf.mxu0
        %v12083 = vadd.f32 %v11922, %v12082
        %v12084 = vpop.f32.mrf.mxu0
        %12085 = vdwg.mxu0
        %12086 = vmatprep.subr.bf16.mxu0 0
        %12087 = vmatpush1.bf16.msra.mxu0 %v11514
        %12088 = vmatprep.subr.bf16.mxu0 0
        %12089 = vmatpush1.bf16.msra.mxu0 %v11513
        %12090 = vmatprep.subr.bf16.mxu0 0
        %12091 = vmatpush1.bf16.msra.mxu0 %v11512
        %12092 = vmatprep.subr.bf16.mxu0 0
        %12093 = vmatpush1.bf16.msra.mxu0 %v11511
        %12094 = vmatprep.subr.bf16.mxu0 0
        %12095 = vmatpush1.bf16.msra.mxu0 %v11510
        %12096 = vmatprep.subr.bf16.mxu0 0
        %12097 = vmatpush1.bf16.msra.mxu0 %v11509
        %12098 = vmatprep.subr.bf16.mxu0 0
        %12099 = vmatpush1.bf16.msra.mxu0 %v11508
        %12100 = vmatprep.subr.bf16.mxu0 0
        %12101 = vmatpush1.bf16.msra.mxu0 %v11507
        %12102 = vmatprep.subr.bf16.mxu0 0
        %12103 = vmatpush2.bf16.msra.mxu0 %v11522
        %12104 = vmatprep.subr.bf16.mxu0 0
        %12105 = vmatpush2.bf16.msra.mxu0 %v11521
        %12106 = vmatprep.subr.bf16.mxu0 0
        %12107 = vmatpush2.bf16.msra.mxu0 %v11520
        %12108 = vmatprep.subr.bf16.mxu0 0
        %12109 = vmatpush2.bf16.msra.mxu0 %v11519
        %12110 = vmatprep.subr.bf16.mxu0 0
        %12111 = vmatpush2.bf16.msra.mxu0 %v11518
        %12112 = vmatprep.subr.bf16.mxu0 0
        %12113 = vmatpush2.bf16.msra.mxu0 %v11517
        %12114 = vmatprep.subr.bf16.mxu0 0
        %12115 = vmatpush2.bf16.msra.mxu0 %v11516
        %12116 = vmatprep.subr.bf16.mxu0 0
        %12117 = vmatpush2.bf16.msra.mxu0 %v11515
        %12118 = vmatprep.mubr.bf16.mxu0 %v10890
        %12119 = vmatmul.mubr.bf16.gmra.mxu0 %v10889
        %v12120 = vpop.f32.mrf.mxu0
        %v12121 = vadd.f32 %v11960, %v12120
        %v12122 = vpop.f32.mrf.mxu0
        %v12123 = vpop.f32.mrf.mxu0
        %v12124 = vadd.f32 %v11963, %v12123
        %v12125 = vpop.f32.mrf.mxu0
        %12126 = vmatprep.mubr.bf16.mxu0 %v10899
        %12127 = vmatmul.mubr.bf16.gmra.mxu0 %v10898
        %v12128 = vpop.f32.mrf.mxu0
        %v12129 = vadd.f32 %v11968, %v12128
        %v12130 = vpop.f32.mrf.mxu0
        %v12131 = vpop.f32.mrf.mxu0
        %v12132 = vadd.f32 %v11971, %v12131
        %v12133 = vpop.f32.mrf.mxu0
        %12134 = vmatprep.mubr.bf16.mxu0 %v10908
        %12135 = vmatmul.mubr.bf16.gmra.mxu0 %v10907
        %v12136 = vpop.f32.mrf.mxu0
        %v12137 = vadd.f32 %v11976, %v12136
        %v12138 = vpop.f32.mrf.mxu0
        %v12139 = vpop.f32.mrf.mxu0
        %v12140 = vadd.f32 %v11979, %v12139
        %v12141 = vpop.f32.mrf.mxu0
        %12142 = vmatprep.mubr.bf16.mxu0 %v10917
        %12143 = vmatmul.mubr.bf16.gmra.mxu0 %v10916
        %v12144 = vpop.f32.mrf.mxu0
        %v12145 = vadd.f32 %v11984, %v12144
        %v12146 = vpop.f32.mrf.mxu0
        %v12147 = vpop.f32.mrf.mxu0
        %v12148 = vadd.f32 %v11987, %v12147
        %v12149 = vpop.f32.mrf.mxu0
        %12150 = vmatprep.mubr.bf16.mxu0 %v10926
        %12151 = vmatmul.mubr.bf16.gmra.mxu0 %v10925
        %v12152 = vpop.f32.mrf.mxu0
        %v12153 = vadd.f32 %v11992, %v12152
        %v12154 = vpop.f32.mrf.mxu0
        %v12155 = vpop.f32.mrf.mxu0
        %v12156 = vadd.f32 %v11995, %v12155
        %v12157 = vpop.f32.mrf.mxu0
        %12158 = vmatprep.mubr.bf16.mxu0 %v10935
        %12159 = vmatmul.mubr.bf16.gmra.mxu0 %v10934
        %v12160 = vpop.f32.mrf.mxu0
        %v12161 = vadd.f32 %v12000, %v12160
        %v12162 = vpop.f32.mrf.mxu0
        %v12163 = vpop.f32.mrf.mxu0
        %v12164 = vadd.f32 %v12003, %v12163
        %v12165 = vpop.f32.mrf.mxu0
        %12166 = vmatprep.mubr.bf16.mxu0 %v10944
        %12167 = vmatmul.mubr.bf16.gmra.mxu0 %v10943
        %v12168 = vpop.f32.mrf.mxu0
        %v12169 = vadd.f32 %v12008, %v12168
        %v12170 = vpop.f32.mrf.mxu0
        %v12171 = vpop.f32.mrf.mxu0
        %v12172 = vadd.f32 %v12011, %v12171
        %v12173 = vpop.f32.mrf.mxu0
        %12174 = vmatprep.mubr.bf16.mxu0 %v10953
        %12175 = vmatmul.mubr.bf16.gmra.mxu0 %v10952
        %v12176 = vpop.f32.mrf.mxu0
        %v12177 = vadd.f32 %v12016, %v12176
        %v12178 = vpop.f32.mrf.mxu0
        %v12179 = vpop.f32.mrf.mxu0
        %v12180 = vadd.f32 %v12019, %v12179
        %v12181 = vpop.f32.mrf.mxu0
        %12182 = vmatprep.mubr.bf16.mxu0 %v10962
        %12183 = vmatmul.mubr.bf16.gmra.mxu0 %v10961
        %v12184 = vpop.f32.mrf.mxu0
        %v12185 = vadd.f32 %v12024, %v12184
        %v12186 = vpop.f32.mrf.mxu0
        %v12187 = vpop.f32.mrf.mxu0
        %v12188 = vadd.f32 %v12027, %v12187
        %v12189 = vpop.f32.mrf.mxu0
        %12190 = vmatprep.mubr.bf16.mxu0 %v10971
        %12191 = vmatmul.mubr.bf16.gmra.mxu0 %v10970
        %v12192 = vpop.f32.mrf.mxu0
        %v12193 = vadd.f32 %v12032, %v12192
        %v12194 = vpop.f32.mrf.mxu0
        %v12195 = vpop.f32.mrf.mxu0
        %v12196 = vadd.f32 %v12035, %v12195
        %v12197 = vpop.f32.mrf.mxu0
        %12198 = vmatprep.mubr.bf16.mxu0 %v10980
        %12199 = vmatmul.mubr.bf16.gmra.mxu0 %v10979
        %v12200 = vpop.f32.mrf.mxu0
        %v12201 = vadd.f32 %v12040, %v12200
        %v12202 = vpop.f32.mrf.mxu0
        %v12203 = vpop.f32.mrf.mxu0
        %v12204 = vadd.f32 %v12043, %v12203
        %v12205 = vpop.f32.mrf.mxu0
        %12206 = vmatprep.mubr.bf16.mxu0 %v10989
        %12207 = vmatmul.mubr.bf16.gmra.mxu0 %v10988
        %v12208 = vpop.f32.mrf.mxu0
        %v12209 = vadd.f32 %v12048, %v12208
        %v12210 = vpop.f32.mrf.mxu0
        %v12211 = vpop.f32.mrf.mxu0
        %v12212 = vadd.f32 %v12051, %v12211
        %v12213 = vpop.f32.mrf.mxu0
        %12214 = vmatprep.mubr.bf16.mxu0 %v10998
        %12215 = vmatmul.mubr.bf16.gmra.mxu0 %v10997
        %v12216 = vpop.f32.mrf.mxu0
        %v12217 = vadd.f32 %v12056, %v12216
        %v12218 = vpop.f32.mrf.mxu0
        %v12219 = vpop.f32.mrf.mxu0
        %v12220 = vadd.f32 %v12059, %v12219
        %v12221 = vpop.f32.mrf.mxu0
        %12222 = vmatprep.mubr.bf16.mxu0 %v11007
        %12223 = vmatmul.mubr.bf16.gmra.mxu0 %v11006
        %v12224 = vpop.f32.mrf.mxu0
        %v12225 = vadd.f32 %v12064, %v12224
        %v12226 = vpop.f32.mrf.mxu0
        %v12227 = vpop.f32.mrf.mxu0
        %v12228 = vadd.f32 %v12067, %v12227
        %v12229 = vpop.f32.mrf.mxu0
        %12230 = vmatprep.mubr.bf16.mxu0 %v11016
        %12231 = vmatmul.mubr.bf16.gmra.mxu0 %v11015
        %v12232 = vpop.f32.mrf.mxu0
        %v12233 = vadd.f32 %v12072, %v12232
        %v12234 = vpop.f32.mrf.mxu0
        %v12235 = vpop.f32.mrf.mxu0
        %v12236 = vadd.f32 %v12075, %v12235
        %v12237 = vpop.f32.mrf.mxu0
        %12238 = vmatprep.mubr.bf16.mxu0 %v11025
        %12239 = vmatmul.mubr.bf16.gmra.mxu0 %v11024
        %v12240 = vpop.f32.mrf.mxu0
        %v12241 = vadd.f32 %v12080, %v12240
        %v12242 = vpop.f32.mrf.mxu0
        %v12243 = vpop.f32.mrf.mxu0
        %v12244 = vadd.f32 %v12083, %v12243
        %v12245 = vpop.f32.mrf.mxu0
        %12246 = vdwg.mxu0
        %12247 = vmatprep.subr.bf16.mxu0 0
        %12248 = vmatpush1.bf16.msra.mxu0 %v11530
        %12249 = vmatprep.subr.bf16.mxu0 0
        %12250 = vmatpush1.bf16.msra.mxu0 %v11529
        %12251 = vmatprep.subr.bf16.mxu0 0
        %12252 = vmatpush1.bf16.msra.mxu0 %v11528
        %12253 = vmatprep.subr.bf16.mxu0 0
        %12254 = vmatpush1.bf16.msra.mxu0 %v11527
        %12255 = vmatprep.subr.bf16.mxu0 0
        %12256 = vmatpush1.bf16.msra.mxu0 %v11526
        %12257 = vmatprep.subr.bf16.mxu0 0
        %12258 = vmatpush1.bf16.msra.mxu0 %v11525
        %12259 = vmatprep.subr.bf16.mxu0 0
        %12260 = vmatpush1.bf16.msra.mxu0 %v11524
        %12261 = vmatprep.subr.bf16.mxu0 0
        %12262 = vmatpush1.bf16.msra.mxu0 %v11523
        %12263 = vmatprep.subr.bf16.mxu0 0
        %12264 = vmatpush2.bf16.msra.mxu0 0
        %12265 = vmatprep.subr.bf16.mxu0 0
        %12266 = vmatpush2.bf16.msra.mxu0 0
        %12267 = vmatprep.subr.bf16.mxu0 0
        %12268 = vmatpush2.bf16.msra.mxu0 0
        %12269 = vmatprep.subr.bf16.mxu0 0
        %12270 = vmatpush2.bf16.msra.mxu0 0
        %12271 = vmatprep.subr.bf16.mxu0 0
        %12272 = vmatpush2.bf16.msra.mxu0 0
        %12273 = vmatprep.subr.bf16.mxu0 0
        %12274 = vmatpush2.bf16.msra.mxu0 0
        %12275 = vmatprep.subr.bf16.mxu0 0
        %12276 = vmatpush2.bf16.msra.mxu0 0
        %12277 = vmatprep.subr.bf16.mxu0 0
        %12278 = vmatpush2.bf16.msra.mxu0 0
        %12279 = vmatprep.mubr.bf16.mxu0 0
        %12280 = vmatmul.mubr.bf16.gmra.mxu0 %v10891
        %v12281 = vpop.f32.mrf.mxu0
        %v12282 = vadd.f32 %v12121, %v12281
        %v12283 = vpop.f32.mrf.mxu0
        %v12284 = vpop.f32.mrf.mxu0
        %v12285 = vadd.f32 %v12124, %v12284
        %v12286 = vpop.f32.mrf.mxu0
        %12287 = vmatprep.mubr.bf16.mxu0 0
        %12288 = vmatmul.mubr.bf16.gmra.mxu0 %v10900
        %v12289 = vpop.f32.mrf.mxu0
        %v12290 = vadd.f32 %v12129, %v12289
        %v12291 = vpop.f32.mrf.mxu0
        %v12292 = vpop.f32.mrf.mxu0
        %v12293 = vadd.f32 %v12132, %v12292
        %v12294 = vpop.f32.mrf.mxu0
        %12295 = vmatprep.mubr.bf16.mxu0 0
        %12296 = vmatmul.mubr.bf16.gmra.mxu0 %v10909
        %v12297 = vpop.f32.mrf.mxu0
        %v12298 = vadd.f32 %v12137, %v12297
        %v12299 = vpop.f32.mrf.mxu0
        %v12300 = vpop.f32.mrf.mxu0
        %v12301 = vadd.f32 %v12140, %v12300
        %v12302 = vpop.f32.mrf.mxu0
        %12303 = vmatprep.mubr.bf16.mxu0 0
        %12304 = vmatmul.mubr.bf16.gmra.mxu0 %v10918
        %v12305 = vpop.f32.mrf.mxu0
        %v12306 = vadd.f32 %v12145, %v12305
        %v12307 = vpop.f32.mrf.mxu0
        %v12308 = vpop.f32.mrf.mxu0
        %v12309 = vadd.f32 %v12148, %v12308
        %v12310 = vpop.f32.mrf.mxu0
        %12311 = vmatprep.mubr.bf16.mxu0 0
        %12312 = vmatmul.mubr.bf16.gmra.mxu0 %v10927
        %v12313 = vpop.f32.mrf.mxu0
        %v12314 = vadd.f32 %v12153, %v12313
        %v12315 = vpop.f32.mrf.mxu0
        %v12316 = vpop.f32.mrf.mxu0
        %v12317 = vadd.f32 %v12156, %v12316
        %v12318 = vpop.f32.mrf.mxu0
        %12319 = vmatprep.mubr.bf16.mxu0 0
        %12320 = vmatmul.mubr.bf16.gmra.mxu0 %v10936
        %v12321 = vpop.f32.mrf.mxu0
        %v12322 = vadd.f32 %v12161, %v12321
        %v12323 = vpop.f32.mrf.mxu0
        %v12324 = vpop.f32.mrf.mxu0
        %v12325 = vadd.f32 %v12164, %v12324
        %v12326 = vpop.f32.mrf.mxu0
        %12327 = vmatprep.mubr.bf16.mxu0 0
        %12328 = vmatmul.mubr.bf16.gmra.mxu0 %v10945
        %v12329 = vpop.f32.mrf.mxu0
        %v12330 = vadd.f32 %v12169, %v12329
        %v12331 = vpop.f32.mrf.mxu0
        %v12332 = vpop.f32.mrf.mxu0
        %v12333 = vadd.f32 %v12172, %v12332
        %v12334 = vpop.f32.mrf.mxu0
        %12335 = vmatprep.mubr.bf16.mxu0 0
        %12336 = vmatmul.mubr.bf16.gmra.mxu0 %v10954
        %v12337 = vpop.f32.mrf.mxu0
        %v12338 = vadd.f32 %v12177, %v12337
        %v12339 = vpop.f32.mrf.mxu0
        %v12340 = vpop.f32.mrf.mxu0
        %v12341 = vadd.f32 %v12180, %v12340
        %v12342 = vpop.f32.mrf.mxu0
        %12343 = vmatprep.mubr.bf16.mxu0 0
        %12344 = vmatmul.mubr.bf16.gmra.mxu0 %v10963
        %v12345 = vpop.f32.mrf.mxu0
        %v12346 = vadd.f32 %v12185, %v12345
        %v12347 = vpop.f32.mrf.mxu0
        %v12348 = vpop.f32.mrf.mxu0
        %v12349 = vadd.f32 %v12188, %v12348
        %v12350 = vpop.f32.mrf.mxu0
        %12351 = vmatprep.mubr.bf16.mxu0 0
        %12352 = vmatmul.mubr.bf16.gmra.mxu0 %v10972
        %v12353 = vpop.f32.mrf.mxu0
        %v12354 = vadd.f32 %v12193, %v12353
        %v12355 = vpop.f32.mrf.mxu0
        %v12356 = vpop.f32.mrf.mxu0
        %v12357 = vadd.f32 %v12196, %v12356
        %v12358 = vpop.f32.mrf.mxu0
        %12359 = vmatprep.mubr.bf16.mxu0 0
        %12360 = vmatmul.mubr.bf16.gmra.mxu0 %v10981
        %v12361 = vpop.f32.mrf.mxu0
        %v12362 = vadd.f32 %v12201, %v12361
        %v12363 = vpop.f32.mrf.mxu0
        %v12364 = vpop.f32.mrf.mxu0
        %v12365 = vadd.f32 %v12204, %v12364
        %v12366 = vpop.f32.mrf.mxu0
        %12367 = vmatprep.mubr.bf16.mxu0 0
        %12368 = vmatmul.mubr.bf16.gmra.mxu0 %v10990
        %v12369 = vpop.f32.mrf.mxu0
        %v12370 = vadd.f32 %v12209, %v12369
        %v12371 = vpop.f32.mrf.mxu0
        %v12372 = vpop.f32.mrf.mxu0
        %v12373 = vadd.f32 %v12212, %v12372
        %v12374 = vpop.f32.mrf.mxu0
        %12375 = vmatprep.mubr.bf16.mxu0 0
        %12376 = vmatmul.mubr.bf16.gmra.mxu0 %v10999
        %v12377 = vpop.f32.mrf.mxu0
        %v12378 = vadd.f32 %v12217, %v12377
        %v12379 = vpop.f32.mrf.mxu0
        %v12380 = vpop.f32.mrf.mxu0
        %v12381 = vadd.f32 %v12220, %v12380
        %v12382 = vpop.f32.mrf.mxu0
        %12383 = vmatprep.mubr.bf16.mxu0 0
        %12384 = vmatmul.mubr.bf16.gmra.mxu0 %v11008
        %v12385 = vpop.f32.mrf.mxu0
        %v12386 = vadd.f32 %v12225, %v12385
        %v12387 = vpop.f32.mrf.mxu0
        %v12388 = vpop.f32.mrf.mxu0
        %v12389 = vadd.f32 %v12228, %v12388
        %v12390 = vpop.f32.mrf.mxu0
        %12391 = vmatprep.mubr.bf16.mxu0 0
        %12392 = vmatmul.mubr.bf16.gmra.mxu0 %v11017
        %v12393 = vpop.f32.mrf.mxu0
        %v12394 = vadd.f32 %v12233, %v12393
        %v12395 = vpop.f32.mrf.mxu0
        %v12396 = vpop.f32.mrf.mxu0
        %v12397 = vadd.f32 %v12236, %v12396
        %v12398 = vpop.f32.mrf.mxu0
        %12399 = vmatprep.mubr.bf16.mxu0 0
        %12400 = vmatmul.mubr.bf16.gmra.mxu0 %v11026
        %v12401 = vpop.f32.mrf.mxu0
        %v12402 = vadd.f32 %v12241, %v12401
        %v12403 = vpop.f32.mrf.mxu0
        %v12404 = vpop.f32.mrf.mxu0
        %v12405 = vadd.f32 %v12244, %v12404
        %v12406 = vpop.f32.mrf.mxu0
        %12407 = vdwg.mxu0
        %v12408 = vld [vmem:[%s5] sm:$0x1]
        %v12410 = vlaneseq
        %v12411 = vshrl.u32 %v12410, 7
        %v12412 = vsub.s32 0, %v12411
        %v12413 = vrot.slane %v12408, %v12412
        %v12415 = vmul.f32 %v12282, %v12413
        %v12416 = vmul.f32 %v12285, %v12413
        %v12417 = vmul.f32 %v12290, %v12413
        %v12418 = vmul.f32 %v12293, %v12413
        %v12419 = vmul.f32 %v12298, %v12413
        %v12420 = vmul.f32 %v12301, %v12413
        %v12421 = vmul.f32 %v12306, %v12413
        %v12422 = vmul.f32 %v12309, %v12413
        %v12423 = vmul.f32 %v12314, %v12413
        %v12424 = vmul.f32 %v12317, %v12413
        %v12425 = vmul.f32 %v12322, %v12413
        %v12426 = vmul.f32 %v12325, %v12413
        %v12427 = vmul.f32 %v12330, %v12413
        %v12428 = vmul.f32 %v12333, %v12413
        %v12429 = vmul.f32 %v12338, %v12413
        %v12430 = vmul.f32 %v12341, %v12413
        %v12431 = vmul.f32 %v12346, %v12413
        %v12432 = vmul.f32 %v12349, %v12413
        %v12433 = vmul.f32 %v12354, %v12413
        %v12434 = vmul.f32 %v12357, %v12413
        %v12435 = vmul.f32 %v12362, %v12413
        %v12436 = vmul.f32 %v12365, %v12413
        %v12437 = vmul.f32 %v12370, %v12413
        %v12438 = vmul.f32 %v12373, %v12413
        %v12439 = vmul.f32 %v12378, %v12413
        %v12440 = vmul.f32 %v12381, %v12413
        %v12441 = vmul.f32 %v12386, %v12413
        %v12442 = vmul.f32 %v12389, %v12413
        %v12443 = vmul.f32 %v12394, %v12413
        %v12444 = vmul.f32 %v12397, %v12413
        %v12445 = vmul.f32 %v12402, %v12413
        %v12446 = vmul.f32 %v12405, %v12413
        %v12447 = vld [vmem:[%s6] sm:$0x1]
        %v12449 = vlaneseq
        %v12450 = vshrl.u32 %v12449, 7
        %v12451 = vsub.s32 0, %v12450
        %v12452 = vrot.slane %v12447, %v12451
        %v12454 = vadd.f32 %v12415, %v12452
        %v12455 = vadd.f32 %v12416, %v12452
        %v12456 = vadd.f32 %v12417, %v12452
        %v12457 = vadd.f32 %v12418, %v12452
        %v12458 = vadd.f32 %v12419, %v12452
        %v12459 = vadd.f32 %v12420, %v12452
        %v12460 = vadd.f32 %v12421, %v12452
        %v12461 = vadd.f32 %v12422, %v12452
        %v12462 = vadd.f32 %v12423, %v12452
        %v12463 = vadd.f32 %v12424, %v12452
        %v12464 = vadd.f32 %v12425, %v12452
        %v12465 = vadd.f32 %v12426, %v12452
        %v12466 = vadd.f32 %v12427, %v12452
        %v12467 = vadd.f32 %v12428, %v12452
        %v12468 = vadd.f32 %v12429, %v12452
        %v12469 = vadd.f32 %v12430, %v12452
        %v12470 = vadd.f32 %v12431, %v12452
        %v12471 = vadd.f32 %v12432, %v12452
        %v12472 = vadd.f32 %v12433, %v12452
        %v12473 = vadd.f32 %v12434, %v12452
        %v12474 = vadd.f32 %v12435, %v12452
        %v12475 = vadd.f32 %v12436, %v12452
        %v12476 = vadd.f32 %v12437, %v12452
        %v12477 = vadd.f32 %v12438, %v12452
        %v12478 = vadd.f32 %v12439, %v12452
        %v12479 = vadd.f32 %v12440, %v12452
        %v12480 = vadd.f32 %v12441, %v12452
        %v12481 = vadd.f32 %v12442, %v12452
        %v12482 = vadd.f32 %v12443, %v12452
        %v12483 = vadd.f32 %v12444, %v12452
        %v12484 = vadd.f32 %v12445, %v12452
        %v12485 = vadd.f32 %v12446, %v12452
        %v12486 = vld [vmem:[%s287] sm:$0xff]
        %v12487 = vld [vmem:[%s287 + $0x8] sm:$0xff]
        %v12488 = vld [vmem:[%s287 + $0x10] sm:$0xff]
        %v12489 = vld [vmem:[%s287 + $0x18] sm:$0xff]
        %v12490 = vld [vmem:[%s287 + $0x20] sm:$0xff]
        %v12491 = vld [vmem:[%s287 + $0x28] sm:$0xff]
        %v12492 = vld [vmem:[%s287 + $0x30] sm:$0xff]
        %v12493 = vld [vmem:[%s287 + $0x38] sm:$0xff]
        %v12494 = vld [vmem:[%s287 + $0x40] sm:$0xff]
        %v12495 = vld [vmem:[%s287 + $0x48] sm:$0xff]
        %v12496 = vld [vmem:[%s287 + $0x50] sm:$0xff]
        %v12497 = vld [vmem:[%s287 + $0x58] sm:$0xff]
        %v12498 = vld [vmem:[%s287 + $0x60] sm:$0xff]
        %v12499 = vld [vmem:[%s287 + $0x68] sm:$0xff]
        %v12500 = vld [vmem:[%s287 + $0x70] sm:$0xff]
        %v12501 = vld [vmem:[%s287 + $0x78] sm:$0xff]
        %v12502 = vld [vmem:[%s287 + $0x80] sm:$0xff]
        %v12503 = vld [vmem:[%s287 + $0x88] sm:$0xff]
        %v12504 = vld [vmem:[%s287 + $0x90] sm:$0xff]
        %v12505 = vld [vmem:[%s287 + $0x98] sm:$0xff]
        %v12506 = vld [vmem:[%s287 + $0xa0] sm:$0xff]
        %v12507 = vld [vmem:[%s287 + $0xa8] sm:$0xff]
        %v12508 = vld [vmem:[%s287 + $0xb0] sm:$0xff]
        %v12509 = vld [vmem:[%s287 + $0xb8] sm:$0xff]
        %v12510 = vld [vmem:[%s287 + $0xc0] sm:$0xff]
        %v12511 = vld [vmem:[%s287 + $0xc8] sm:$0xff]
        %v12512 = vld [vmem:[%s287 + $0xd0] sm:$0xff]
        %v12513 = vld [vmem:[%s287 + $0xd8] sm:$0xff]
        %v12514 = vld [vmem:[%s287 + $0xe0] sm:$0xff]
        %v12515 = vld [vmem:[%s287 + $0xe8] sm:$0xff]
        %v12516 = vld [vmem:[%s287 + $0xf0] sm:$0xff]
        %v12517 = vld [vmem:[%s287 + $0xf8] sm:$0xff]
        %v12518 = vadd.f32 %v12454, %v12486
        %v12519 = vadd.f32 %v12455, %v12487
        %v12520 = vadd.f32 %v12456, %v12488
        %v12521 = vadd.f32 %v12457, %v12489
        %v12522 = vadd.f32 %v12458, %v12490
        %v12523 = vadd.f32 %v12459, %v12491
        %v12524 = vadd.f32 %v12460, %v12492
        %v12525 = vadd.f32 %v12461, %v12493
        %v12526 = vadd.f32 %v12462, %v12494
        %v12527 = vadd.f32 %v12463, %v12495
        %v12528 = vadd.f32 %v12464, %v12496
        %v12529 = vadd.f32 %v12465, %v12497
        %v12530 = vadd.f32 %v12466, %v12498
        %v12531 = vadd.f32 %v12467, %v12499
        %v12532 = vadd.f32 %v12468, %v12500
        %v12533 = vadd.f32 %v12469, %v12501
        %v12534 = vadd.f32 %v12470, %v12502
        %v12535 = vadd.f32 %v12471, %v12503
        %v12536 = vadd.f32 %v12472, %v12504
        %v12537 = vadd.f32 %v12473, %v12505
        %v12538 = vadd.f32 %v12474, %v12506
        %v12539 = vadd.f32 %v12475, %v12507
        %v12540 = vadd.f32 %v12476, %v12508
        %v12541 = vadd.f32 %v12477, %v12509
        %v12542 = vadd.f32 %v12478, %v12510
        %v12543 = vadd.f32 %v12479, %v12511
        %v12544 = vadd.f32 %v12480, %v12512
        %v12545 = vadd.f32 %v12481, %v12513
        %v12546 = vadd.f32 %v12482, %v12514
        %v12547 = vadd.f32 %v12483, %v12515
        %v12548 = vadd.f32 %v12484, %v12516
        %v12549 = vadd.f32 %v12485, %v12517
        %v12550 = vmax.f32 %v12518, 0.0
        %v12551 = vmax.f32 %v12519, 0.0
        %v12552 = vmax.f32 %v12520, 0.0
        %v12553 = vmax.f32 %v12521, 0.0
        %v12554 = vmax.f32 %v12522, 0.0
        %v12555 = vmax.f32 %v12523, 0.0
        %v12556 = vmax.f32 %v12524, 0.0
        %v12557 = vmax.f32 %v12525, 0.0
        %v12558 = vmax.f32 %v12526, 0.0
        %v12559 = vmax.f32 %v12527, 0.0
        %v12560 = vmax.f32 %v12528, 0.0
        %v12561 = vmax.f32 %v12529, 0.0
        %v12562 = vmax.f32 %v12530, 0.0
        %v12563 = vmax.f32 %v12531, 0.0
        %v12564 = vmax.f32 %v12532, 0.0
        %v12565 = vmax.f32 %v12533, 0.0
        %v12566 = vmax.f32 %v12534, 0.0
        %v12567 = vmax.f32 %v12535, 0.0
        %v12568 = vmax.f32 %v12536, 0.0
        %v12569 = vmax.f32 %v12537, 0.0
        %v12570 = vmax.f32 %v12538, 0.0
        %v12571 = vmax.f32 %v12539, 0.0
        %v12572 = vmax.f32 %v12540, 0.0
        %v12573 = vmax.f32 %v12541, 0.0
        %v12574 = vmax.f32 %v12542, 0.0
        %v12575 = vmax.f32 %v12543, 0.0
        %v12576 = vmax.f32 %v12544, 0.0
        %v12577 = vmax.f32 %v12545, 0.0
        %v12578 = vmax.f32 %v12546, 0.0
        %v12579 = vmax.f32 %v12547, 0.0
        %v12580 = vmax.f32 %v12548, 0.0
        %v12581 = vmax.f32 %v12549, 0.0
        %12582 = vst [vmem:[%s325] sm:$0xff] %v12550
        %12583 = vst [vmem:[%s325 + $0x8] sm:$0xff] %v12551
        %12584 = vst [vmem:[%s325 + $0x10] sm:$0xff] %v12552
        %12585 = vst [vmem:[%s325 + $0x18] sm:$0xff] %v12553
        %12586 = vst [vmem:[%s325 + $0x20] sm:$0xff] %v12554
        %12587 = vst [vmem:[%s325 + $0x28] sm:$0xff] %v12555
        %12588 = vst [vmem:[%s325 + $0x30] sm:$0xff] %v12556
        %12589 = vst [vmem:[%s325 + $0x38] sm:$0xff] %v12557
        %12590 = vst [vmem:[%s325 + $0x40] sm:$0xff] %v12558
        %12591 = vst [vmem:[%s325 + $0x48] sm:$0xff] %v12559
        %12592 = vst [vmem:[%s325 + $0x50] sm:$0xff] %v12560
        %12593 = vst [vmem:[%s325 + $0x58] sm:$0xff] %v12561
        %12594 = vst [vmem:[%s325 + $0x60] sm:$0xff] %v12562
        %12595 = vst [vmem:[%s325 + $0x68] sm:$0xff] %v12563
        %12596 = vst [vmem:[%s325 + $0x70] sm:$0xff] %v12564
        %12597 = vst [vmem:[%s325 + $0x78] sm:$0xff] %v12565
        %12598 = vst [vmem:[%s325 + $0x80] sm:$0xff] %v12566
        %12599 = vst [vmem:[%s325 + $0x88] sm:$0xff] %v12567
        %12600 = vst [vmem:[%s325 + $0x90] sm:$0xff] %v12568
        %12601 = vst [vmem:[%s325 + $0x98] sm:$0xff] %v12569
        %12602 = vst [vmem:[%s325 + $0xa0] sm:$0xff] %v12570
        %12603 = vst [vmem:[%s325 + $0xa8] sm:$0xff] %v12571
        %12604 = vst [vmem:[%s325 + $0xb0] sm:$0xff] %v12572
        %12605 = vst [vmem:[%s325 + $0xb8] sm:$0xff] %v12573
        %12606 = vst [vmem:[%s325 + $0xc0] sm:$0xff] %v12574
        %12607 = vst [vmem:[%s325 + $0xc8] sm:$0xff] %v12575
        %12608 = vst [vmem:[%s325 + $0xd0] sm:$0xff] %v12576
        %12609 = vst [vmem:[%s325 + $0xd8] sm:$0xff] %v12577
        %12610 = vst [vmem:[%s325 + $0xe0] sm:$0xff] %v12578
        %12611 = vst [vmem:[%s325 + $0xe8] sm:$0xff] %v12579
        %12612 = vst [vmem:[%s325 + $0xf0] sm:$0xff] %v12580
        %12613 = vst [vmem:[%s325 + $0xf8] sm:$0xff] %v12581
        %s12614 = sand.u32 %s185, 1
        %s12615 = scalar_lea.sflag [#allocation7], %s12614
        %s12616 = sand.u32 %s185, 1
        %s12617 = smul.addr %s12616, 256
        %s12618 = scalar_lea.vmem [#allocation11], %s12617
        // Predicated region
        $region61: #{basic_block_pallas.1} parent=47 // pred_check
          %p12619 = pneg %p195
        $region62: #{basic_block_pallas.1} parent=47 // pred_check_branch
          %12621 = sbr.rel (%p12619) target = $region64
        $region63: #{basic_block_pallas.1} parent=47 // pred_region
          %s12623 = ssub.s32 4096, 4096
          %12624 = vsyncadd %s12615, %s12623
          %s12625 = smul.addr %s25, 32
          %s12626 = smul.addr %s12625, 128
          %s12627 = scalar_lea.hbm %s7, %s12626
          %s12628 = sshll.u32 %s12618, 4
          %s12629 = int_to_ptr.vmem [resolvable:$true] %s12628
          %12634 = dma.vmem_to_hbm [thread:$0]  %s12629, 4096, %s12627, %s12615, 128, 128, 8
        $region64: #{basic_block_pallas.1} parent=47 // pred_fallthru
          _
      $region48: #{basic_block_pallas.1} parent=5 // pred_fallthru
        _
      %p12635 = scmp.le.s32.totalorder 2, %s20
      // Predicated region
      $region65: #{basic_block_pallas.1} parent=5 // pred_check
        %p12636 = pneg %p12635
      $region66: #{basic_block_pallas.1} parent=5 // pred_check_branch
        %12638 = sbr.rel (%p12636) target = $region68
      $region67: #{basic_block_pallas.1} parent=5 // pred_region
        %s12639 = ssub.s32 %s20, 2
        // Predicated region
        $region69: #{basic_block_pallas.1} parent=67 // pred_check
          %p12640 = pneg %p201
        $region70: #{basic_block_pallas.1} parent=67 // pred_check_branch
          %12642 = sbr.rel (%p12640) target = $region72
        $region71: #{basic_block_pallas.1} parent=67 // pred_region
          %s12643 = sand.u32 %s186, 1
          %s12644 = scalar_lea.sflag [#allocation7], %s12643
          %s12645 = sand.u32 %s186, 1
          %s12646 = smul.addr %s12645, 256
          %s12647 = scalar_lea.vmem [#allocation11], %s12646
          %12648 = dma.done %s12644, 4096
        $region72: #{basic_block_pallas.1} parent=67 // pred_fallthru
          _
      $region68: #{basic_block_pallas.1} parent=5 // pred_fallthru
        _
    $region6: #{basic_block_pallas.1} parent=1 // loop_footer
      %s24 = sadd.s32 1, %s20
    $region7: #{basic_block_pallas.1} parent=1 // loop_footer_branch
      %19 = sbr.rel target = $region3
    $region8: #{basic_block_pallas.1} parent=1 // loop_exit
      _
    %12649 = vsyncpa [#allocation6], 1
    %s12650 = scalar_lea.sflag [#allocation6], 1
    %12651 = vsyncpa %s12650, 1
    %12652 = vsyncpa [#allocation9], 1
    %12653 = vsyncpa [#allocation7], 1
    %s12654 = scalar_lea.sflag [#allocation7], 1
    %12655 = vsyncpa %s12654, 1

</llo_original>
